<compile_context>
chip_gen: v6e
topology: v6e:2x2x1
jax: 0.10.0
libtpu: 0.0.40
codegen_flags: <defaults>
</compile_context>

<pallas_src>
import math
import functools

import jax
import jax.numpy as jnp
from jax.experimental import pallas as pl
from jax.experimental.pallas import tpu as pltpu

EPS = 1e-5                      # BatchNorm eps (PyTorch default)
VMEM_LIMIT = 32 * 1024 * 1024   # explicit scoped-VMEM limit, fits every generation


# ----------------------------- Pallas kernel --------------------------------

def _gemm_affine_act_kernel(w_ref, p_ref, s_ref, b_ref, o_ref, *, act):
    # (Cout, K) @ (K, TM) -> (Cout, TM); lane-dense output tile.
    acc = jnp.dot(w_ref[...], p_ref[...], preferred_element_type=jnp.float32)
    y = acc * s_ref[...] + b_ref[...]            # (Cout,1) broadcast over lanes
    if act == "leaky":
        y = jnp.where(y > 0, y, 0.2 * y)
    elif act == "relu":
        y = jnp.maximum(y, 0.0)
    elif act == "tanh":
        y = jnp.tanh(y)
    o_ref[...] = y.astype(o_ref.dtype)


def _choose_tm(K, Cout, M):
    """Lane tile: big blocks (~2-4 MiB patches), >=4 grid steps when possible,
    double-buffered footprint capped at ~20 MiB (v7x headroom)."""
    if M <= 512:
        return max(128, -(-M // 128) * 128)          # single lane-aligned tile
    tm = max(128, (4 << 20) // (2 * K))              # bf16 patch block ~4 MiB
    tm = 1 << int(math.floor(math.log2(tm)))
    tm = min(tm, 1 << 15)
    while tm > 128 and 2 * (2 * K * tm) + 2 * (4 * Cout * tm) > (20 << 20):
        tm //= 2
    while tm > 128 and M < 4 * tm:                   # keep >=4 steps (pipelining, 2 TCs)
        tm //= 2
    while tm > 128 and M % tm != 0:
        tm //= 2
    if M % tm != 0:
        tm = 512                                     # rare fallback: pad the tail
    return tm


def fused_gemm(wmat, patchesT, scale, shift, act):
    """wmat (Cout,K) bf16, patchesT (K,M) bf16 -> (Cout,M) f32 with fused affine+act."""
    Cout, K = wmat.shape
    M = patchesT.shape[1]
    tm = _choose_tm(K, Cout, M)
    Mp = -(-M // tm) * tm
    if Mp != M:
        patchesT = jnp.pad(patchesT, ((0, 0), (0, Mp - M)))
    kernel = functools.partial(_gemm_affine_act_kernel, act=act)
    cost = pl.CostEstimate(
        flops=2 * Mp * K * Cout,
        transcendentals=Mp * Cout if act == "tanh" else 0,
        bytes_accessed=int(K * Mp * 2 + Cout * K * 2 + Cout * Mp * 4 + 8 * Cout),
    )
    out = pl.pallas_call(
        kernel,
        out_shape=jax.ShapeDtypeStruct((Cout, Mp), jnp.float32),
        grid_spec=pltpu.PrefetchScalarGridSpec(
            num_scalar_prefetch=0,
            grid=(Mp // tm,),
            in_specs=[
                pl.BlockSpec((Cout, K), lambda i: (0, 0)),    # resident weights
                pl.BlockSpec((K, tm), lambda i: (0, i)),      # streamed patch columns
                pl.BlockSpec((Cout, 1), lambda i: (0, 0)),    # scale
                pl.BlockSpec((Cout, 1), lambda i: (0, 0)),    # shift
            ],
            out_specs=pl.BlockSpec((Cout, tm), lambda i: (0, i)),
        ),
        compiler_params=pltpu.CompilerParams(
            dimension_semantics=("parallel",),
            vmem_limit_bytes=VMEM_LIMIT),
        cost_estimate=cost,
    )(wmat, patchesT, scale.reshape(Cout, 1), shift.reshape(Cout, 1))
    return out[:, :M] if Mp != M else out


# --------------------------- conv via im2col + GEMM --------------------------

def im2col_T(x, k, stride, pad):
    """(N,C,H,W) f32 -> patchesT (C*k*k, N*Ho*Wo) bf16, K ordered (c, kh, kw)."""
    x = x.astype(jnp.bfloat16)
    N, C, H, W = x.shape
    xp = jnp.pad(x, ((0, 0), (0, 0), (pad, pad), (pad, pad)))
    Ho = (H + 2 * pad - k) // stride + 1
    Wo = (W + 2 * pad - k) // stride + 1
    cols = []
    for kh in range(k):
        for kw in range(k):
            cols.append(xp[:, :, kh:kh + stride * (Ho - 1) + 1:stride,
                           kw:kw + stride * (Wo - 1) + 1:stride])
    p = jnp.stack(cols, axis=2)                  # (N, C, k*k, Ho, Wo)
    p = p.transpose(1, 2, 0, 3, 4)               # (C, k*k, N, Ho, Wo); free when N == 1
    return p.reshape(C * k * k, N * Ho * Wo), Ho, Wo


def down_apply(x, p):
    # Conv2d(k=4, s=2, p=1) + folded BN + activation, all in one Pallas GEMM.
    N = x.shape[0]
    cout = p["cout"]
    patchesT, Ho, Wo = im2col_T(x, 4, 2, 1)
    out = fused_gemm(p["wmat"], patchesT, p["scale"], p["shift"], p["act"])
    return out.reshape(cout, N, Ho, Wo).transpose(1, 0, 2, 3)


def up_apply(x, p):
    # ConvTranspose2d(k=4, s=2, p=1)  ==  3x3 stride-1 conv (pad 1) producing 4*Cout
    # phase channels, followed by depth-to-space interleave into the 2x-res output.
    N, _, H, W = x.shape
    cout = p["cout"]
    patchesT, _, _ = im2col_T(x, 3, 1, 1)
    out = fused_gemm(p["wmat"], patchesT, p["scale"], p["shift"], p["act"])  # (4*Cout, N*H*W)
    out = out.reshape(2, 2, cout, N, H, W)        # (py, px, co, N, H, W)
    out = out.transpose(3, 2, 4, 0, 5, 1)         # (N, co, H, py, W, px)
    return out.reshape(N, cout, 2 * H, 2 * W)


# -------------------------- parameter packing --------------------------------

def fold_bn(bias, bn):
    """Fold conv bias + eval-mode BatchNorm into per-channel (scale, shift)."""
    if bn is None:
        return jnp.ones_like(bias), bias
    gamma, beta, mean, var = bn
    s = gamma / jnp.sqrt(var + EPS)
    return s, (bias - mean) * s + beta


# transposed-conv tap index (per output parity) -> 3x3 conv tap, with validity mask
_PHASE_IDX = ((3, 1, 0), (0, 2, 0))
_PHASE_MSK = ((1.0, 1.0, 0.0), (0.0, 1.0, 1.0))


def pack_up_weight(w_ct):
    """(Cin, Cout, 4, 4) ConvTranspose2d weight -> (4*Cout, Cin*9) GEMM matrix.
    Output channel index = (py*2 + px)*Cout + co  (sub-pixel phase major)."""
    Cin, Cout = w_ct.shape[0], w_ct.shape[1]
    blocks = []
    for py in range(2):
        ri = jnp.array(_PHASE_IDX[py]); rm = jnp.array(_PHASE_MSK[py], jnp.float32)
        for px in range(2):
            ci = jnp.array(_PHASE_IDX[px]); cm = jnp.array(_PHASE_MSK[px], jnp.float32)
            sub = w_ct[:, :, ri, :][:, :, :, ci]                 # (Cin, Cout, 3, 3)
            sub = sub * rm[None, None, :, None] * cm[None, None, None, :]
            blocks.append(sub.transpose(1, 0, 2, 3))             # (Cout, Cin, 3, 3)
    w3 = jnp.concatenate(blocks, axis=0)                         # (4*Cout, Cin, 3, 3)
    return w3.reshape(4 * Cout, Cin * 9)


def pack_params(params):
    """Pre-pack weights / folded scale+shift into GEMM layout (once, outside the jit)."""
    down_p, up_p, final_p = params
    packed_down = []
    for p in down_p:
        s, sh = fold_bn(p["b"], p["bn"])
        cout = p["w"].shape[0]
        packed_down.append(dict(
            wmat=p["w"].reshape(cout, -1).astype(jnp.bfloat16),  # (Cout, Cin*16)
            scale=s, shift=sh, act=p["act"], cout=cout))
    packed_up = []
    for p in list(up_p) + [final_p]:
        s, sh = fold_bn(p["b"], p["bn"])
        cout = p["w"].shape[1]
        packed_up.append(dict(
            wmat=pack_up_weight(p["w"]).astype(jnp.bfloat16),    # (4*Cout, Cin*9)
            scale=jnp.tile(s, 4), shift=jnp.tile(sh, 4), act=p["act"], cout=cout))
    return packed_down, packed_up[:-1], packed_up[-1]


# ------------------------------ Unet plumbing --------------------------------

def unet_forward(x, down_p, up_p, final_p, down_fn, up_fn):
    down_outputs = []
    out = down_fn(x, down_p[0])
    down_outputs.append(out)
    for i in range(1, len(down_p)):
        down_outputs.append(out)        # matches the (quirky) PyTorch forward
        out = down_fn(out, down_p[i])
    idx = -1
    for j in range(len(up_p)):
        out = up_fn(out, up_p[j])
        out = jnp.concatenate([out, down_outputs[idx]], axis=1)
        idx -= 1
    return up_fn(out, final_p)          # final ConvTranspose + Tanh


def build_configs(image_size, filters):
    down_count = int(math.log2(image_size))
    assert 2 ** down_count == image_size
    f = filters
    down = [(1, f, False, "leaky")]
    for _ in range(3):
        down.append((f, 2 * f, True, "leaky")); f *= 2
    for _ in range(down_count - 5):
        down.append((f, f, True, "leaky"))
    down.append((f, f, False, "relu"))              # last down: Conv + ReLU
    up = [(f, f, True, "relu")]
    for _ in range(3):
        up.append((2 * f, f, True, "relu"))
    for _ in range(down_count - 5):
        up.append((2 * f, f // 2, True, "relu")); f //= 2
    final = (2 * f, 2, False, "tanh")
    return down, up, final


def init_params(key, image_size, filters):
    down_cfg, up_cfg, final_cfg = build_configs(image_size, filters)
    keys = iter(jax.random.split(key, 2 * (len(down_cfg) + len(up_cfg) + 1)))

    def uni(k, shape, fan_in):
        b = 1.0 / math.sqrt(fan_in)
        return jax.random.uniform(k, shape, jnp.float32, -b, b)

    def bn_params(c):  # gamma, beta, running_mean, running_var (PyTorch defaults)
        return (jnp.ones((c,), jnp.float32), jnp.zeros((c,), jnp.float32),
                jnp.zeros((c,), jnp.float32), jnp.ones((c,), jnp.float32))

    down_p = []
    for cin, cout, norm, act in down_cfg:
        w = uni(next(keys), (cout, cin, 4, 4), cin * 16)     # Conv2d weight (O,I,kH,kW)
        b = uni(next(keys), (cout,), cin * 16)
        down_p.append(dict(w=w, b=b, bn=bn_params(cout) if norm else None, act=act))
    up_p = []
    for cin, cout, norm, act in up_cfg:
        w = uni(next(keys), (cin, cout, 4, 4), cin * 16)     # ConvTranspose2d (I,O,kH,kW)
        b = uni(next(keys), (cout,), cin * 16)
        up_p.append(dict(w=w, b=b, bn=bn_params(cout) if norm else None, act=act))
    cin, cout, norm, act = final_cfg
    w = uni(next(keys), (cin, cout, 4, 4), cin * 16)
    b = uni(next(keys), (cout,), cin * 16)
    final_p = dict(w=w, b=b, bn=None, act=act)
    return down_p, up_p, final_p


# ----------------------- pure-JAX reference (lax.conv) -----------------------

def _affine_act_ref(y, p):
    s, sh = fold_bn(p["b"], p["bn"])
    y = y * s[None, :, None, None] + sh[None, :, None, None]
    act = p["act"]
    if act == "leaky":
        return jnp.where(y > 0, y, 0.2 * y)
    if act == "relu":
        return jnp.maximum(y, 0.0)
    if act == "tanh":
        return jnp.tanh(y)
    return y


def down_ref(x, p):
    y = jax.lax.conv_general_dilated(
        x, p["w"], (2, 2), ((1, 1), (1, 1)),
        dimension_numbers=("NCHW", "OIHW", "NCHW"),
        precision=jax.lax.Precision.HIGHEST)
    return _affine_act_ref(y, p)


def up_ref(x, p):
    w_conv = jnp.flip(p["w"], axis=(2, 3)).transpose(1, 0, 2, 3)
    y = jax.lax.conv_general_dilated(
        x, w_conv, (1, 1), ((2, 2), (2, 2)), lhs_dilation=(2, 2),
        dimension_numbers=("NCHW", "OIHW", "NCHW"),
        precision=jax.lax.Precision.HIGHEST)
    return _affine_act_ref(y, p)


# ------------------------------------ main -----------------------------------

if __name__ == "__main__":
    # The module's skip/channel plan is only internally consistent when
    # log2(image_size) == 8, so image_size must be 256; keep batch/filters small.
    IMAGE_SIZE = 256
    FILTERS = 2
    BATCH = 1

    key = jax.random.PRNGKey(0)
    k_x, k_p = jax.random.split(key)
    x = jax.random.normal(k_x, (BATCH, 1, IMAGE_SIZE, IMAGE_SIZE), jnp.float32)
    params = init_params(k_p, IMAGE_SIZE, FILTERS)
    pdown, pup, pfinal = pack_params(params)

    pallas_fwd = jax.jit(lambda inp: unet_forward(inp, pdown, pup, pfinal,
                                                  down_apply, up_apply))
    out = jax.block_until_ready(pallas_fwd(x))

    rdown, rup, rfinal = params
    ref_fwd = jax.jit(lambda inp: unet_forward(inp, rdown, rup, rfinal,
                                               down_ref, up_ref))
    ref = jax.block_until_ready(ref_fwd(x))

    assert out.shape == (BATCH, 2, IMAGE_SIZE, IMAGE_SIZE), out.shape
    assert bool(jnp.all(jnp.isfinite(out)))
    assert bool(jnp.allclose(out, ref, atol=5e-2, rtol=5e-2)), \
        float(jnp.max(jnp.abs(out - ref)))
    print("KERNEL_OK")
</pallas_src>

<mosaic_0001>
module attributes {stable_mosaic.version = 11 : i64} {
  func.func @_gemm_affine_act_kernel(%arg0: i32, %arg1: memref<2x16xbf16, #tpu.memory_space<vmem>>, %arg2: memref<16x4096xbf16, #tpu.memory_space<vmem>>, %arg3: memref<2x1xf32, #tpu.memory_space<vmem>>, %arg4: memref<2x1xf32, #tpu.memory_space<vmem>>, %arg5: memref<2x4096xf32, #tpu.memory_space<vmem>>) attributes {dimension_semantics = [#tpu.dimension_semantics<parallel>], iteration_bounds = array<i64: 4>, scalar_prefetch = 0 : i64, scratch_operands = 0 : i64, tpu.core_type = #tpu.core_type<tc>, window_params = [{pipeline_mode = #tpu.pipeline_mode<synchronous>, transform_indices = @transform_0, window_bounds = array<i64: 2, 16>}, {transform_indices = @transform_1, window_bounds = array<i64: 16, 4096>}, {pipeline_mode = #tpu.pipeline_mode<synchronous>, transform_indices = @transform_2, window_bounds = array<i64: 2, 1>}, {pipeline_mode = #tpu.pipeline_mode<synchronous>, transform_indices = @transform_3, window_bounds = array<i64: 2, 1>}, {transform_indices = @transform_4, window_bounds = array<i64: 2, 4096>}]} {
    %c0 = arith.constant 0 : index
    %c0_0 = arith.constant 0 : index
    %0 = vector.load %arg1[%c0, %c0_0] : memref<2x16xbf16, #tpu.memory_space<vmem>>, vector<2x16xbf16>
    %c0_1 = arith.constant 0 : index
    %c0_2 = arith.constant 0 : index
    %1 = vector.load %arg2[%c0_1, %c0_2] : memref<16x4096xbf16, #tpu.memory_space<vmem>>, vector<16x4096xbf16>
    %cst = arith.constant dense<0.000000e+00> : vector<2x4096xf32>
    %2 = tpu.matmul %0, %1, %cst {dimension_numbers = #tpu.dot_dimension_numbers<[1], [0], [0], [1], [0, 0, 1, 1], [], []>} : vector<2x16xbf16>, vector<16x4096xbf16>, vector<2x4096xf32> -> vector<2x4096xf32>
    %c0_3 = arith.constant 0 : index
    %c0_4 = arith.constant 0 : index
    %3 = vector.load %arg3[%c0_3, %c0_4] : memref<2x1xf32, #tpu.memory_space<vmem>>, vector<2x1xf32>
    %4 = vector.broadcast %3 : vector<2x1xf32> to vector<2x4096xf32>
    %5 = arith.mulf %2, %4 : vector<2x4096xf32>
    %c0_5 = arith.constant 0 : index
    %c0_6 = arith.constant 0 : index
    %6 = vector.load %arg4[%c0_5, %c0_6] : memref<2x1xf32, #tpu.memory_space<vmem>>, vector<2x1xf32>
    %7 = vector.broadcast %6 : vector<2x1xf32> to vector<2x4096xf32>
    %8 = arith.addf %5, %7 : vector<2x4096xf32>
    %cst_7 = arith.constant 0.000000e+00 : f32
    %9 = vector.broadcast %cst_7 : f32 to vector<2x4096xf32>
    %10 = arith.cmpf ogt, %8, %9 : vector<2x4096xf32>
    %cst_8 = arith.constant 2.000000e-01 : f32
    %11 = vector.broadcast %cst_8 : f32 to vector<2x4096xf32>
    %12 = arith.mulf %11, %8 : vector<2x4096xf32>
    %13 = arith.select %10, %8, %12 : vector<2x4096xi1>, vector<2x4096xf32>
    %c0_9 = arith.constant 0 : index
    %c0_10 = arith.constant 0 : index
    %14 = vector.load %arg5[%c0_9, %c0_10] : memref<2x4096xf32, #tpu.memory_space<vmem>>, vector<2x4096xf32>
    tpu.vector_store %arg5[%c0_9, %c0_10], %13 {strides = array<i32>} : memref<2x4096xf32, #tpu.memory_space<vmem>>, vector<2x4096xf32>,
    return
  }
  func.func @transform_0(%arg0: i32) -> (i32, i32) {
    %c0_i32 = arith.constant 0 : i32
    %c0_i32_0 = arith.constant 0 : i32
    %c0_i32_1 = arith.constant 0 : i32
    return %c0_i32, %c0_i32_0 : i32, i32
  }
  func.func @transform_1(%arg0: i32) -> (i32, i32) {
    %c0_i32 = arith.constant 0 : i32
    %c0_i32_0 = arith.constant 0 : i32
    return %c0_i32, %arg0 : i32, i32
  }
  func.func @transform_2(%arg0: i32) -> (i32, i32) {
    %c0_i32 = arith.constant 0 : i32
    %c0_i32_0 = arith.constant 0 : i32
    %c0_i32_1 = arith.constant 0 : i32
    return %c0_i32, %c0_i32_0 : i32, i32
  }
  func.func @transform_3(%arg0: i32) -> (i32, i32) {
    %c0_i32 = arith.constant 0 : i32
    %c0_i32_0 = arith.constant 0 : i32
    %c0_i32_1 = arith.constant 0 : i32
    return %c0_i32, %c0_i32_0 : i32, i32
  }
  func.func @transform_4(%arg0: i32) -> (i32, i32) {
    %c0_i32 = arith.constant 0 : i32
    %c0_i32_0 = arith.constant 0 : i32
    return %c0_i32, %arg0 : i32, i32
  }
}

module attributes {stable_mosaic.version = 11 : i64} {
  func.func @_gemm_affine_act_kernel(%arg0: i32, %arg1: memref<4x32xbf16, #tpu.memory_space<vmem>>, %arg2: memref<32x1024xbf16, #tpu.memory_space<vmem>>, %arg3: memref<4x1xf32, #tpu.memory_space<vmem>>, %arg4: memref<4x1xf32, #tpu.memory_space<vmem>>, %arg5: memref<4x1024xf32, #tpu.memory_space<vmem>>) attributes {dimension_semantics = [#tpu.dimension_semantics<parallel>], iteration_bounds = array<i64: 4>, scalar_prefetch = 0 : i64, scratch_operands = 0 : i64, tpu.core_type = #tpu.core_type<tc>, window_params = [{pipeline_mode = #tpu.pipeline_mode<synchronous>, transform_indices = @transform_0, window_bounds = array<i64: 4, 32>}, {transform_indices = @transform_1, window_bounds = array<i64: 32, 1024>}, {pipeline_mode = #tpu.pipeline_mode<synchronous>, transform_indices = @transform_2, window_bounds = array<i64: 4, 1>}, {pipeline_mode = #tpu.pipeline_mode<synchronous>, transform_indices = @transform_3, window_bounds = array<i64: 4, 1>}, {transform_indices = @transform_4, window_bounds = array<i64: 4, 1024>}]} {
    %c0 = arith.constant 0 : index
    %c0_0 = arith.constant 0 : index
    %0 = vector.load %arg1[%c0, %c0_0] : memref<4x32xbf16, #tpu.memory_space<vmem>>, vector<4x32xbf16>
    %c0_1 = arith.constant 0 : index
    %c0_2 = arith.constant 0 : index
    %1 = vector.load %arg2[%c0_1, %c0_2] : memref<32x1024xbf16, #tpu.memory_space<vmem>>, vector<32x1024xbf16>
    %cst = arith.constant dense<0.000000e+00> : vector<4x1024xf32>
    %2 = tpu.matmul %0, %1, %cst {dimension_numbers = #tpu.dot_dimension_numbers<[1], [0], [0], [1], [0, 0, 1, 1], [], []>} : vector<4x32xbf16>, vector<32x1024xbf16>, vector<4x1024xf32> -> vector<4x1024xf32>
    %c0_3 = arith.constant 0 : index
    %c0_4 = arith.constant 0 : index
    %3 = vector.load %arg3[%c0_3, %c0_4] : memref<4x1xf32, #tpu.memory_space<vmem>>, vector<4x1xf32>
    %4 = vector.broadcast %3 : vector<4x1xf32> to vector<4x1024xf32>
    %5 = arith.mulf %2, %4 : vector<4x1024xf32>
    %c0_5 = arith.constant 0 : index
    %c0_6 = arith.constant 0 : index
    %6 = vector.load %arg4[%c0_5, %c0_6] : memref<4x1xf32, #tpu.memory_space<vmem>>, vector<4x1xf32>
    %7 = vector.broadcast %6 : vector<4x1xf32> to vector<4x1024xf32>
    %8 = arith.addf %5, %7 : vector<4x1024xf32>
    %cst_7 = arith.constant 0.000000e+00 : f32
    %9 = vector.broadcast %cst_7 : f32 to vector<4x1024xf32>
    %10 = arith.cmpf ogt, %8, %9 : vector<4x1024xf32>
    %cst_8 = arith.constant 2.000000e-01 : f32
    %11 = vector.broadcast %cst_8 : f32 to vector<4x1024xf32>
    %12 = arith.mulf %11, %8 : vector<4x1024xf32>
    %13 = arith.select %10, %8, %12 : vector<4x1024xi1>, vector<4x1024xf32>
    %c0_9 = arith.constant 0 : index
    %c0_10 = arith.constant 0 : index
    %14 = vector.load %arg5[%c0_9, %c0_10] : memref<4x1024xf32, #tpu.memory_space<vmem>>, vector<4x1024xf32>
    tpu.vector_store %arg5[%c0_9, %c0_10], %13 {strides = array<i32>} : memref<4x1024xf32, #tpu.memory_space<vmem>>, vector<4x1024xf32>,
    return
  }
  func.func @transform_0(%arg0: i32) -> (i32, i32) {
    %c0_i32 = arith.constant 0 : i32
    %c0_i32_0 = arith.constant 0 : i32
    %c0_i32_1 = arith.constant 0 : i32
    return %c0_i32, %c0_i32_0 : i32, i32
  }
  func.func @transform_1(%arg0: i32) -> (i32, i32) {
    %c0_i32 = arith.constant 0 : i32
    %c0_i32_0 = arith.constant 0 : i32
    return %c0_i32, %arg0 : i32, i32
  }
  func.func @transform_2(%arg0: i32) -> (i32, i32) {
    %c0_i32 = arith.constant 0 : i32
    %c0_i32_0 = arith.constant 0 : i32
    %c0_i32_1 = arith.constant 0 : i32
    return %c0_i32, %c0_i32_0 : i32, i32
  }
  func.func @transform_3(%arg0: i32) -> (i32, i32) {
    %c0_i32 = arith.constant 0 : i32
    %c0_i32_0 = arith.constant 0 : i32
    %c0_i32_1 = arith.constant 0 : i32
    return %c0_i32, %c0_i32_0 : i32, i32
  }
  func.func @transform_4(%arg0: i32) -> (i32, i32) {
    %c0_i32 = arith.constant 0 : i32
    %c0_i32_0 = arith.constant 0 : i32
    return %c0_i32, %arg0 : i32, i32
  }
}

module attributes {stable_mosaic.version = 11 : i64} {
  func.func @_gemm_affine_act_kernel(%arg0: i32, %arg1: memref<8x64xbf16, #tpu.memory_space<vmem>>, %arg2: memref<64x256xbf16, #tpu.memory_space<vmem>>, %arg3: memref<8x1xf32, #tpu.memory_space<vmem>>, %arg4: memref<8x1xf32, #tpu.memory_space<vmem>>, %arg5: memref<8x256xf32, #tpu.memory_space<vmem>>) attributes {dimension_semantics = [#tpu.dimension_semantics<parallel>], iteration_bounds = array<i64: 4>, scalar_prefetch = 0 : i64, scratch_operands = 0 : i64, tpu.core_type = #tpu.core_type<tc>, window_params = [{pipeline_mode = #tpu.pipeline_mode<synchronous>, transform_indices = @transform_0, window_bounds = array<i64: 8, 64>}, {transform_indices = @transform_1, window_bounds = array<i64: 64, 256>}, {pipeline_mode = #tpu.pipeline_mode<synchronous>, transform_indices = @transform_2, window_bounds = array<i64: 8, 1>}, {pipeline_mode = #tpu.pipeline_mode<synchronous>, transform_indices = @transform_3, window_bounds = array<i64: 8, 1>}, {transform_indices = @transform_4, window_bounds = array<i64: 8, 256>}]} {
    %c0 = arith.constant 0 : index
    %c0_0 = arith.constant 0 : index
    %0 = vector.load %arg1[%c0, %c0_0] : memref<8x64xbf16, #tpu.memory_space<vmem>>, vector<8x64xbf16>
    %c0_1 = arith.constant 0 : index
    %c0_2 = arith.constant 0 : index
    %1 = vector.load %arg2[%c0_1, %c0_2] : memref<64x256xbf16, #tpu.memory_space<vmem>>, vector<64x256xbf16>
    %cst = arith.constant dense<0.000000e+00> : vector<8x256xf32>
    %2 = tpu.matmul %0, %1, %cst {dimension_numbers = #tpu.dot_dimension_numbers<[1], [0], [0], [1], [0, 0, 1, 1], [], []>} : vector<8x64xbf16>, vector<64x256xbf16>, vector<8x256xf32> -> vector<8x256xf32>
    %c0_3 = arith.constant 0 : index
    %c0_4 = arith.constant 0 : index
    %3 = vector.load %arg3[%c0_3, %c0_4] : memref<8x1xf32, #tpu.memory_space<vmem>>, vector<8x1xf32>
    %4 = vector.broadcast %3 : vector<8x1xf32> to vector<8x256xf32>
    %5 = arith.mulf %2, %4 : vector<8x256xf32>
    %c0_5 = arith.constant 0 : index
    %c0_6 = arith.constant 0 : index
    %6 = vector.load %arg4[%c0_5, %c0_6] : memref<8x1xf32, #tpu.memory_space<vmem>>, vector<8x1xf32>
    %7 = vector.broadcast %6 : vector<8x1xf32> to vector<8x256xf32>
    %8 = arith.addf %5, %7 : vector<8x256xf32>
    %cst_7 = arith.constant 0.000000e+00 : f32
    %9 = vector.broadcast %cst_7 : f32 to vector<8x256xf32>
    %10 = arith.cmpf ogt, %8, %9 : vector<8x256xf32>
    %cst_8 = arith.constant 2.000000e-01 : f32
    %11 = vector.broadcast %cst_8 : f32 to vector<8x256xf32>
    %12 = arith.mulf %11, %8 : vector<8x256xf32>
    %13 = arith.select %10, %8, %12 : vector<8x256xi1>, vector<8x256xf32>
    %c0_9 = arith.constant 0 : index
    %c0_10 = arith.constant 0 : index
    %14 = vector.load %arg5[%c0_9, %c0_10] : memref<8x256xf32, #tpu.memory_space<vmem>>, vector<8x256xf32>
    tpu.vector_store %arg5[%c0_9, %c0_10], %13 {strides = array<i32>} : memref<8x256xf32, #tpu.memory_space<vmem>>, vector<8x256xf32>,
    return
  }
  func.func @transform_0(%arg0: i32) -> (i32, i32) {
    %c0_i32 = arith.constant 0 : i32
    %c0_i32_0 = arith.constant 0 : i32
    %c0_i32_1 = arith.constant 0 : i32
    return %c0_i32, %c0_i32_0 : i32, i32
  }
  func.func @transform_1(%arg0: i32) -> (i32, i32) {
    %c0_i32 = arith.constant 0 : i32
    %c0_i32_0 = arith.constant 0 : i32
    return %c0_i32, %arg0 : i32, i32
  }
  func.func @transform_2(%arg0: i32) -> (i32, i32) {
    %c0_i32 = arith.constant 0 : i32
    %c0_i32_0 = arith.constant 0 : i32
    %c0_i32_1 = arith.constant 0 : i32
    return %c0_i32, %c0_i32_0 : i32, i32
  }
  func.func @transform_3(%arg0: i32) -> (i32, i32) {
    %c0_i32 = arith.constant 0 : i32
    %c0_i32_0 = arith.constant 0 : i32
    %c0_i32_1 = arith.constant 0 : i32
    return %c0_i32, %c0_i32_0 : i32, i32
  }
  func.func @transform_4(%arg0: i32) -> (i32, i32) {
    %c0_i32 = arith.constant 0 : i32
    %c0_i32_0 = arith.constant 0 : i32
    return %c0_i32, %arg0 : i32, i32
  }
}

module attributes {stable_mosaic.version = 11 : i64} {
  func.func @_gemm_affine_act_kernel(%arg0: i32, %arg1: memref<16x128xbf16, #tpu.memory_space<vmem>>, %arg2: memref<128x256xbf16, #tpu.memory_space<vmem>>, %arg3: memref<16x1xf32, #tpu.memory_space<vmem>>, %arg4: memref<16x1xf32, #tpu.memory_space<vmem>>, %arg5: memref<16x256xf32, #tpu.memory_space<vmem>>) attributes {dimension_semantics = [#tpu.dimension_semantics<parallel>], iteration_bounds = array<i64: 1>, scalar_prefetch = 0 : i64, scratch_operands = 0 : i64, tpu.core_type = #tpu.core_type<tc>, window_params = [{pipeline_mode = #tpu.pipeline_mode<synchronous>, transform_indices = @transform_0, window_bounds = array<i64: 16, 128>}, {transform_indices = @transform_1, window_bounds = array<i64: 128, 256>}, {pipeline_mode = #tpu.pipeline_mode<synchronous>, transform_indices = @transform_2, window_bounds = array<i64: 16, 1>}, {pipeline_mode = #tpu.pipeline_mode<synchronous>, transform_indices = @transform_3, window_bounds = array<i64: 16, 1>}, {transform_indices = @transform_4, window_bounds = array<i64: 16, 256>}]} {
    %c0 = arith.constant 0 : index
    %c0_0 = arith.constant 0 : index
    %0 = vector.load %arg1[%c0, %c0_0] : memref<16x128xbf16, #tpu.memory_space<vmem>>, vector<16x128xbf16>
    %c0_1 = arith.constant 0 : index
    %c0_2 = arith.constant 0 : index
    %1 = vector.load %arg2[%c0_1, %c0_2] : memref<128x256xbf16, #tpu.memory_space<vmem>>, vector<128x256xbf16>
    %cst = arith.constant dense<0.000000e+00> : vector<16x256xf32>
    %2 = tpu.matmul %0, %1, %cst {dimension_numbers = #tpu.dot_dimension_numbers<[1], [0], [0], [1], [0, 0, 1, 1], [], []>} : vector<16x128xbf16>, vector<128x256xbf16>, vector<16x256xf32> -> vector<16x256xf32>
    %c0_3 = arith.constant 0 : index
    %c0_4 = arith.constant 0 : index
    %3 = vector.load %arg3[%c0_3, %c0_4] : memref<16x1xf32, #tpu.memory_space<vmem>>, vector<16x1xf32>
    %4 = vector.broadcast %3 : vector<16x1xf32> to vector<16x256xf32>
    %5 = arith.mulf %2, %4 : vector<16x256xf32>
    %c0_5 = arith.constant 0 : index
    %c0_6 = arith.constant 0 : index
    %6 = vector.load %arg4[%c0_5, %c0_6] : memref<16x1xf32, #tpu.memory_space<vmem>>, vector<16x1xf32>
    %7 = vector.broadcast %6 : vector<16x1xf32> to vector<16x256xf32>
    %8 = arith.addf %5, %7 : vector<16x256xf32>
    %cst_7 = arith.constant 0.000000e+00 : f32
    %9 = vector.broadcast %cst_7 : f32 to vector<16x256xf32>
    %10 = arith.cmpf ogt, %8, %9 : vector<16x256xf32>
    %cst_8 = arith.constant 2.000000e-01 : f32
    %11 = vector.broadcast %cst_8 : f32 to vector<16x256xf32>
    %12 = arith.mulf %11, %8 : vector<16x256xf32>
    %13 = arith.select %10, %8, %12 : vector<16x256xi1>, vector<16x256xf32>
    %c0_9 = arith.constant 0 : index
    %c0_10 = arith.constant 0 : index
    %14 = vector.load %arg5[%c0_9, %c0_10] : memref<16x256xf32, #tpu.memory_space<vmem>>, vector<16x256xf32>
    tpu.vector_store %arg5[%c0_9, %c0_10], %13 {strides = array<i32>} : memref<16x256xf32, #tpu.memory_space<vmem>>, vector<16x256xf32>,
    return
  }
  func.func @transform_0(%arg0: i32) -> (i32, i32) {
    %c0_i32 = arith.constant 0 : i32
    %c0_i32_0 = arith.constant 0 : i32
    %c0_i32_1 = arith.constant 0 : i32
    return %c0_i32, %c0_i32_0 : i32, i32
  }
  func.func @transform_1(%arg0: i32) -> (i32, i32) {
    %c0_i32 = arith.constant 0 : i32
    %c0_i32_0 = arith.constant 0 : i32
    return %c0_i32, %arg0 : i32, i32
  }
  func.func @transform_2(%arg0: i32) -> (i32, i32) {
    %c0_i32 = arith.constant 0 : i32
    %c0_i32_0 = arith.constant 0 : i32
    %c0_i32_1 = arith.constant 0 : i32
    return %c0_i32, %c0_i32_0 : i32, i32
  }
  func.func @transform_3(%arg0: i32) -> (i32, i32) {
    %c0_i32 = arith.constant 0 : i32
    %c0_i32_0 = arith.constant 0 : i32
    %c0_i32_1 = arith.constant 0 : i32
    return %c0_i32, %c0_i32_0 : i32, i32
  }
  func.func @transform_4(%arg0: i32) -> (i32, i32) {
    %c0_i32 = arith.constant 0 : i32
    %c0_i32_0 = arith.constant 0 : i32
    return %c0_i32, %arg0 : i32, i32
  }
}

module attributes {stable_mosaic.version = 11 : i64} {
  func.func @_gemm_affine_act_kernel(%arg0: i32, %arg1: memref<16x256xbf16, #tpu.memory_space<vmem>>, %arg2: memref<256x128xbf16, #tpu.memory_space<vmem>>, %arg3: memref<16x1xf32, #tpu.memory_space<vmem>>, %arg4: memref<16x1xf32, #tpu.memory_space<vmem>>, %arg5: memref<16x128xf32, #tpu.memory_space<vmem>>) attributes {dimension_semantics = [#tpu.dimension_semantics<parallel>], iteration_bounds = array<i64: 1>, scalar_prefetch = 0 : i64, scratch_operands = 0 : i64, tpu.core_type = #tpu.core_type<tc>, window_params = [{pipeline_mode = #tpu.pipeline_mode<synchronous>, transform_indices = @transform_0, window_bounds = array<i64: 16, 256>}, {transform_indices = @transform_1, window_bounds = array<i64: 256, 128>}, {pipeline_mode = #tpu.pipeline_mode<synchronous>, transform_indices = @transform_2, window_bounds = array<i64: 16, 1>}, {pipeline_mode = #tpu.pipeline_mode<synchronous>, transform_indices = @transform_3, window_bounds = array<i64: 16, 1>}, {transform_indices = @transform_4, window_bounds = array<i64: 16, 128>}]} {
    %c0 = arith.constant 0 : index
    %c0_0 = arith.constant 0 : index
    %0 = vector.load %arg1[%c0, %c0_0] : memref<16x256xbf16, #tpu.memory_space<vmem>>, vector<16x256xbf16>
    %c0_1 = arith.constant 0 : index
    %c0_2 = arith.constant 0 : index
    %1 = vector.load %arg2[%c0_1, %c0_2] : memref<256x128xbf16, #tpu.memory_space<vmem>>, vector<256x128xbf16>
    %cst = arith.constant dense<0.000000e+00> : vector<16x128xf32>
    %2 = tpu.matmul %0, %1, %cst {dimension_numbers = #tpu.dot_dimension_numbers<[1], [0], [0], [1], [0, 0, 1, 1], [], []>} : vector<16x256xbf16>, vector<256x128xbf16>, vector<16x128xf32> -> vector<16x128xf32>
    %c0_3 = arith.constant 0 : index
    %c0_4 = arith.constant 0 : index
    %3 = vector.load %arg3[%c0_3, %c0_4] : memref<16x1xf32, #tpu.memory_space<vmem>>, vector<16x1xf32>
    %4 = vector.broadcast %3 : vector<16x1xf32> to vector<16x128xf32>
    %5 = arith.mulf %2, %4 : vector<16x128xf32>
    %c0_5 = arith.constant 0 : index
    %c0_6 = arith.constant 0 : index
    %6 = vector.load %arg4[%c0_5, %c0_6] : memref<16x1xf32, #tpu.memory_space<vmem>>, vector<16x1xf32>
    %7 = vector.broadcast %6 : vector<16x1xf32> to vector<16x128xf32>
    %8 = arith.addf %5, %7 : vector<16x128xf32>
    %cst_7 = arith.constant 0.000000e+00 : f32
    %9 = vector.broadcast %cst_7 : f32 to vector<16x128xf32>
    %10 = arith.cmpf ogt, %8, %9 : vector<16x128xf32>
    %cst_8 = arith.constant 2.000000e-01 : f32
    %11 = vector.broadcast %cst_8 : f32 to vector<16x128xf32>
    %12 = arith.mulf %11, %8 : vector<16x128xf32>
    %13 = arith.select %10, %8, %12 : vector<16x128xi1>, vector<16x128xf32>
    %c0_9 = arith.constant 0 : index
    %c0_10 = arith.constant 0 : index
    %14 = vector.load %arg5[%c0_9, %c0_10] : memref<16x128xf32, #tpu.memory_space<vmem>>, vector<16x128xf32>
    tpu.vector_store %arg5[%c0_9, %c0_10], %13 {strides = array<i32>} : memref<16x128xf32, #tpu.memory_space<vmem>>, vector<16x128xf32>,
    return
  }
  func.func @transform_0(%arg0: i32) -> (i32, i32) {
    %c0_i32 = arith.constant 0 : i32
    %c0_i32_0 = arith.constant 0 : i32
    %c0_i32_1 = arith.constant 0 : i32
    return %c0_i32, %c0_i32_0 : i32, i32
  }
  func.func @transform_1(%arg0: i32) -> (i32, i32) {
    %c0_i32 = arith.constant 0 : i32
    %c0_i32_0 = arith.constant 0 : i32
    return %c0_i32, %arg0 : i32, i32
  }
  func.func @transform_2(%arg0: i32) -> (i32, i32) {
    %c0_i32 = arith.constant 0 : i32
    %c0_i32_0 = arith.constant 0 : i32
    %c0_i32_1 = arith.constant 0 : i32
    return %c0_i32, %c0_i32_0 : i32, i32
  }
  func.func @transform_3(%arg0: i32) -> (i32, i32) {
    %c0_i32 = arith.constant 0 : i32
    %c0_i32_0 = arith.constant 0 : i32
    %c0_i32_1 = arith.constant 0 : i32
    return %c0_i32, %c0_i32_0 : i32, i32
  }
  func.func @transform_4(%arg0: i32) -> (i32, i32) {
    %c0_i32 = arith.constant 0 : i32
    %c0_i32_0 = arith.constant 0 : i32
    return %c0_i32, %arg0 : i32, i32
  }
}

module attributes {stable_mosaic.version = 11 : i64} {
  func.func @_gemm_affine_act_kernel(%arg0: i32, %arg1: memref<16x256xbf16, #tpu.memory_space<vmem>>, %arg2: memref<256x128xbf16, #tpu.memory_space<vmem>>, %arg3: memref<16x1xf32, #tpu.memory_space<vmem>>, %arg4: memref<16x1xf32, #tpu.memory_space<vmem>>, %arg5: memref<16x128xf32, #tpu.memory_space<vmem>>) attributes {dimension_semantics = [#tpu.dimension_semantics<parallel>], iteration_bounds = array<i64: 1>, scalar_prefetch = 0 : i64, scratch_operands = 0 : i64, tpu.core_type = #tpu.core_type<tc>, window_params = [{pipeline_mode = #tpu.pipeline_mode<synchronous>, transform_indices = @transform_0, window_bounds = array<i64: 16, 256>}, {transform_indices = @transform_1, window_bounds = array<i64: 256, 128>}, {pipeline_mode = #tpu.pipeline_mode<synchronous>, transform_indices = @transform_2, window_bounds = array<i64: 16, 1>}, {pipeline_mode = #tpu.pipeline_mode<synchronous>, transform_indices = @transform_3, window_bounds = array<i64: 16, 1>}, {transform_indices = @transform_4, window_bounds = array<i64: 16, 128>}]} {
    %c0 = arith.constant 0 : index
    %c0_0 = arith.constant 0 : index
    %0 = vector.load %arg1[%c0, %c0_0] : memref<16x256xbf16, #tpu.memory_space<vmem>>, vector<16x256xbf16>
    %c0_1 = arith.constant 0 : index
    %c0_2 = arith.constant 0 : index
    %1 = vector.load %arg2[%c0_1, %c0_2] : memref<256x128xbf16, #tpu.memory_space<vmem>>, vector<256x128xbf16>
    %cst = arith.constant dense<0.000000e+00> : vector<16x128xf32>
    %2 = tpu.matmul %0, %1, %cst {dimension_numbers = #tpu.dot_dimension_numbers<[1], [0], [0], [1], [0, 0, 1, 1], [], []>} : vector<16x256xbf16>, vector<256x128xbf16>, vector<16x128xf32> -> vector<16x128xf32>
    %c0_3 = arith.constant 0 : index
    %c0_4 = arith.constant 0 : index
    %3 = vector.load %arg3[%c0_3, %c0_4] : memref<16x1xf32, #tpu.memory_space<vmem>>, vector<16x1xf32>
    %4 = vector.broadcast %3 : vector<16x1xf32> to vector<16x128xf32>
    %5 = arith.mulf %2, %4 : vector<16x128xf32>
    %c0_5 = arith.constant 0 : index
    %c0_6 = arith.constant 0 : index
    %6 = vector.load %arg4[%c0_5, %c0_6] : memref<16x1xf32, #tpu.memory_space<vmem>>, vector<16x1xf32>
    %7 = vector.broadcast %6 : vector<16x1xf32> to vector<16x128xf32>
    %8 = arith.addf %5, %7 : vector<16x128xf32>
    %cst_7 = arith.constant 0.000000e+00 : f32
    %9 = vector.broadcast %cst_7 : f32 to vector<16x128xf32>
    %10 = arith.maximumf %8, %9 : vector<16x128xf32>
    %c0_8 = arith.constant 0 : index
    %c0_9 = arith.constant 0 : index
    %11 = vector.load %arg5[%c0_8, %c0_9] : memref<16x128xf32, #tpu.memory_space<vmem>>, vector<16x128xf32>
    tpu.vector_store %arg5[%c0_8, %c0_9], %10 {strides = array<i32>} : memref<16x128xf32, #tpu.memory_space<vmem>>, vector<16x128xf32>,
    return
  }
  func.func @transform_0(%arg0: i32) -> (i32, i32) {
    %c0_i32 = arith.constant 0 : i32
    %c0_i32_0 = arith.constant 0 : i32
    %c0_i32_1 = arith.constant 0 : i32
    return %c0_i32, %c0_i32_0 : i32, i32
  }
  func.func @transform_1(%arg0: i32) -> (i32, i32) {
    %c0_i32 = arith.constant 0 : i32
    %c0_i32_0 = arith.constant 0 : i32
    return %c0_i32, %arg0 : i32, i32
  }
  func.func @transform_2(%arg0: i32) -> (i32, i32) {
    %c0_i32 = arith.constant 0 : i32
    %c0_i32_0 = arith.constant 0 : i32
    %c0_i32_1 = arith.constant 0 : i32
    return %c0_i32, %c0_i32_0 : i32, i32
  }
  func.func @transform_3(%arg0: i32) -> (i32, i32) {
    %c0_i32 = arith.constant 0 : i32
    %c0_i32_0 = arith.constant 0 : i32
    %c0_i32_1 = arith.constant 0 : i32
    return %c0_i32, %c0_i32_0 : i32, i32
  }
  func.func @transform_4(%arg0: i32) -> (i32, i32) {
    %c0_i32 = arith.constant 0 : i32
    %c0_i32_0 = arith.constant 0 : i32
    return %c0_i32, %arg0 : i32, i32
  }
}

module attributes {stable_mosaic.version = 11 : i64} {
  func.func @_gemm_affine_act_kernel(%arg0: i32, %arg1: memref<64x144xbf16, #tpu.memory_space<vmem>>, %arg2: memref<144x128xbf16, #tpu.memory_space<vmem>>, %arg3: memref<64x1xf32, #tpu.memory_space<vmem>>, %arg4: memref<64x1xf32, #tpu.memory_space<vmem>>, %arg5: memref<64x128xf32, #tpu.memory_space<vmem>>) attributes {dimension_semantics = [#tpu.dimension_semantics<parallel>], iteration_bounds = array<i64: 1>, scalar_prefetch = 0 : i64, scratch_operands = 0 : i64, tpu.core_type = #tpu.core_type<tc>, window_params = [{pipeline_mode = #tpu.pipeline_mode<synchronous>, transform_indices = @transform_0, window_bounds = array<i64: 64, 144>}, {transform_indices = @transform_1, window_bounds = array<i64: 144, 128>}, {pipeline_mode = #tpu.pipeline_mode<synchronous>, transform_indices = @transform_2, window_bounds = array<i64: 64, 1>}, {pipeline_mode = #tpu.pipeline_mode<synchronous>, transform_indices = @transform_3, window_bounds = array<i64: 64, 1>}, {transform_indices = @transform_4, window_bounds = array<i64: 64, 128>}]} {
    %c0 = arith.constant 0 : index
    %c0_0 = arith.constant 0 : index
    %0 = vector.load %arg1[%c0, %c0_0] : memref<64x144xbf16, #tpu.memory_space<vmem>>, vector<64x144xbf16>
    %c0_1 = arith.constant 0 : index
    %c0_2 = arith.constant 0 : index
    %1 = vector.load %arg2[%c0_1, %c0_2] : memref<144x128xbf16, #tpu.memory_space<vmem>>, vector<144x128xbf16>
    %cst = arith.constant dense<0.000000e+00> : vector<64x128xf32>
    %2 = tpu.matmul %0, %1, %cst {dimension_numbers = #tpu.dot_dimension_numbers<[1], [0], [0], [1], [0, 0, 1, 1], [], []>} : vector<64x144xbf16>, vector<144x128xbf16>, vector<64x128xf32> -> vector<64x128xf32>
    %c0_3 = arith.constant 0 : index
    %c0_4 = arith.constant 0 : index
    %3 = vector.load %arg3[%c0_3, %c0_4] : memref<64x1xf32, #tpu.memory_space<vmem>>, vector<64x1xf32>
    %4 = vector.broadcast %3 : vector<64x1xf32> to vector<64x128xf32>
    %5 = arith.mulf %2, %4 : vector<64x128xf32>
    %c0_5 = arith.constant 0 : index
    %c0_6 = arith.constant 0 : index
    %6 = vector.load %arg4[%c0_5, %c0_6] : memref<64x1xf32, #tpu.memory_space<vmem>>, vector<64x1xf32>
    %7 = vector.broadcast %6 : vector<64x1xf32> to vector<64x128xf32>
    %8 = arith.addf %5, %7 : vector<64x128xf32>
    %cst_7 = arith.constant 0.000000e+00 : f32
    %9 = vector.broadcast %cst_7 : f32 to vector<64x128xf32>
    %10 = arith.maximumf %8, %9 : vector<64x128xf32>
    %c0_8 = arith.constant 0 : index
    %c0_9 = arith.constant 0 : index
    %11 = vector.load %arg5[%c0_8, %c0_9] : memref<64x128xf32, #tpu.memory_space<vmem>>, vector<64x128xf32>
    tpu.vector_store %arg5[%c0_8, %c0_9], %10 {strides = array<i32>} : memref<64x128xf32, #tpu.memory_space<vmem>>, vector<64x128xf32>,
    return
  }
  func.func @transform_0(%arg0: i32) -> (i32, i32) {
    %c0_i32 = arith.constant 0 : i32
    %c0_i32_0 = arith.constant 0 : i32
    %c0_i32_1 = arith.constant 0 : i32
    return %c0_i32, %c0_i32_0 : i32, i32
  }
  func.func @transform_1(%arg0: i32) -> (i32, i32) {
    %c0_i32 = arith.constant 0 : i32
    %c0_i32_0 = arith.constant 0 : i32
    return %c0_i32, %arg0 : i32, i32
  }
  func.func @transform_2(%arg0: i32) -> (i32, i32) {
    %c0_i32 = arith.constant 0 : i32
    %c0_i32_0 = arith.constant 0 : i32
    %c0_i32_1 = arith.constant 0 : i32
    return %c0_i32, %c0_i32_0 : i32, i32
  }
  func.func @transform_3(%arg0: i32) -> (i32, i32) {
    %c0_i32 = arith.constant 0 : i32
    %c0_i32_0 = arith.constant 0 : i32
    %c0_i32_1 = arith.constant 0 : i32
    return %c0_i32, %c0_i32_0 : i32, i32
  }
  func.func @transform_4(%arg0: i32) -> (i32, i32) {
    %c0_i32 = arith.constant 0 : i32
    %c0_i32_0 = arith.constant 0 : i32
    return %c0_i32, %arg0 : i32, i32
  }
}

module attributes {stable_mosaic.version = 11 : i64} {
  func.func @_gemm_affine_act_kernel(%arg0: i32, %arg1: memref<64x288xbf16, #tpu.memory_space<vmem>>, %arg2: memref<288x128xbf16, #tpu.memory_space<vmem>>, %arg3: memref<64x1xf32, #tpu.memory_space<vmem>>, %arg4: memref<64x1xf32, #tpu.memory_space<vmem>>, %arg5: memref<64x128xf32, #tpu.memory_space<vmem>>) attributes {dimension_semantics = [#tpu.dimension_semantics<parallel>], iteration_bounds = array<i64: 1>, scalar_prefetch = 0 : i64, scratch_operands = 0 : i64, tpu.core_type = #tpu.core_type<tc>, window_params = [{pipeline_mode = #tpu.pipeline_mode<synchronous>, transform_indices = @transform_0, window_bounds = array<i64: 64, 288>}, {transform_indices = @transform_1, window_bounds = array<i64: 288, 128>}, {pipeline_mode = #tpu.pipeline_mode<synchronous>, transform_indices = @transform_2, window_bounds = array<i64: 64, 1>}, {pipeline_mode = #tpu.pipeline_mode<synchronous>, transform_indices = @transform_3, window_bounds = array<i64: 64, 1>}, {transform_indices = @transform_4, window_bounds = array<i64: 64, 128>}]} {
    %c0 = arith.constant 0 : index
    %c0_0 = arith.constant 0 : index
    %0 = vector.load %arg1[%c0, %c0_0] : memref<64x288xbf16, #tpu.memory_space<vmem>>, vector<64x288xbf16>
    %c0_1 = arith.constant 0 : index
    %c0_2 = arith.constant 0 : index
    %1 = vector.load %arg2[%c0_1, %c0_2] : memref<288x128xbf16, #tpu.memory_space<vmem>>, vector<288x128xbf16>
    %cst = arith.constant dense<0.000000e+00> : vector<64x128xf32>
    %2 = tpu.matmul %0, %1, %cst {dimension_numbers = #tpu.dot_dimension_numbers<[1], [0], [0], [1], [0, 0, 1, 1], [], []>} : vector<64x288xbf16>, vector<288x128xbf16>, vector<64x128xf32> -> vector<64x128xf32>
    %c0_3 = arith.constant 0 : index
    %c0_4 = arith.constant 0 : index
    %3 = vector.load %arg3[%c0_3, %c0_4] : memref<64x1xf32, #tpu.memory_space<vmem>>, vector<64x1xf32>
    %4 = vector.broadcast %3 : vector<64x1xf32> to vector<64x128xf32>
    %5 = arith.mulf %2, %4 : vector<64x128xf32>
    %c0_5 = arith.constant 0 : index
    %c0_6 = arith.constant 0 : index
    %6 = vector.load %arg4[%c0_5, %c0_6] : memref<64x1xf32, #tpu.memory_space<vmem>>, vector<64x1xf32>
    %7 = vector.broadcast %6 : vector<64x1xf32> to vector<64x128xf32>
    %8 = arith.addf %5, %7 : vector<64x128xf32>
    %cst_7 = arith.constant 0.000000e+00 : f32
    %9 = vector.broadcast %cst_7 : f32 to vector<64x128xf32>
    %10 = arith.maximumf %8, %9 : vector<64x128xf32>
    %c0_8 = arith.constant 0 : index
    %c0_9 = arith.constant 0 : index
    %11 = vector.load %arg5[%c0_8, %c0_9] : memref<64x128xf32, #tpu.memory_space<vmem>>, vector<64x128xf32>
    tpu.vector_store %arg5[%c0_8, %c0_9], %10 {strides = array<i32>} : memref<64x128xf32, #tpu.memory_space<vmem>>, vector<64x128xf32>,
    return
  }
  func.func @transform_0(%arg0: i32) -> (i32, i32) {
    %c0_i32 = arith.constant 0 : i32
    %c0_i32_0 = arith.constant 0 : i32
    %c0_i32_1 = arith.constant 0 : i32
    return %c0_i32, %c0_i32_0 : i32, i32
  }
  func.func @transform_1(%arg0: i32) -> (i32, i32) {
    %c0_i32 = arith.constant 0 : i32
    %c0_i32_0 = arith.constant 0 : i32
    return %c0_i32, %arg0 : i32, i32
  }
  func.func @transform_2(%arg0: i32) -> (i32, i32) {
    %c0_i32 = arith.constant 0 : i32
    %c0_i32_0 = arith.constant 0 : i32
    %c0_i32_1 = arith.constant 0 : i32
    return %c0_i32, %c0_i32_0 : i32, i32
  }
  func.func @transform_3(%arg0: i32) -> (i32, i32) {
    %c0_i32 = arith.constant 0 : i32
    %c0_i32_0 = arith.constant 0 : i32
    %c0_i32_1 = arith.constant 0 : i32
    return %c0_i32, %c0_i32_0 : i32, i32
  }
  func.func @transform_4(%arg0: i32) -> (i32, i32) {
    %c0_i32 = arith.constant 0 : i32
    %c0_i32_0 = arith.constant 0 : i32
    return %c0_i32, %arg0 : i32, i32
  }
}

module attributes {stable_mosaic.version = 11 : i64} {
  func.func @_gemm_affine_act_kernel(%arg0: i32, %arg1: memref<32x288xbf16, #tpu.memory_space<vmem>>, %arg2: memref<288x256xbf16, #tpu.memory_space<vmem>>, %arg3: memref<32x1xf32, #tpu.memory_space<vmem>>, %arg4: memref<32x1xf32, #tpu.memory_space<vmem>>, %arg5: memref<32x256xf32, #tpu.memory_space<vmem>>) attributes {dimension_semantics = [#tpu.dimension_semantics<parallel>], iteration_bounds = array<i64: 1>, scalar_prefetch = 0 : i64, scratch_operands = 0 : i64, tpu.core_type = #tpu.core_type<tc>, window_params = [{pipeline_mode = #tpu.pipeline_mode<synchronous>, transform_indices = @transform_0, window_bounds = array<i64: 32, 288>}, {transform_indices = @transform_1, window_bounds = array<i64: 288, 256>}, {pipeline_mode = #tpu.pipeline_mode<synchronous>, transform_indices = @transform_2, window_bounds = array<i64: 32, 1>}, {pipeline_mode = #tpu.pipeline_mode<synchronous>, transform_indices = @transform_3, window_bounds = array<i64: 32, 1>}, {transform_indices = @transform_4, window_bounds = array<i64: 32, 256>}]} {
    %c0 = arith.constant 0 : index
    %c0_0 = arith.constant 0 : index
    %0 = vector.load %arg1[%c0, %c0_0] : memref<32x288xbf16, #tpu.memory_space<vmem>>, vector<32x288xbf16>
    %c0_1 = arith.constant 0 : index
    %c0_2 = arith.constant 0 : index
    %1 = vector.load %arg2[%c0_1, %c0_2] : memref<288x256xbf16, #tpu.memory_space<vmem>>, vector<288x256xbf16>
    %cst = arith.constant dense<0.000000e+00> : vector<32x256xf32>
    %2 = tpu.matmul %0, %1, %cst {dimension_numbers = #tpu.dot_dimension_numbers<[1], [0], [0], [1], [0, 0, 1, 1], [], []>} : vector<32x288xbf16>, vector<288x256xbf16>, vector<32x256xf32> -> vector<32x256xf32>
    %c0_3 = arith.constant 0 : index
    %c0_4 = arith.constant 0 : index
    %3 = vector.load %arg3[%c0_3, %c0_4] : memref<32x1xf32, #tpu.memory_space<vmem>>, vector<32x1xf32>
    %4 = vector.broadcast %3 : vector<32x1xf32> to vector<32x256xf32>
    %5 = arith.mulf %2, %4 : vector<32x256xf32>
    %c0_5 = arith.constant 0 : index
    %c0_6 = arith.constant 0 : index
    %6 = vector.load %arg4[%c0_5, %c0_6] : memref<32x1xf32, #tpu.memory_space<vmem>>, vector<32x1xf32>
    %7 = vector.broadcast %6 : vector<32x1xf32> to vector<32x256xf32>
    %8 = arith.addf %5, %7 : vector<32x256xf32>
    %cst_7 = arith.constant 0.000000e+00 : f32
    %9 = vector.broadcast %cst_7 : f32 to vector<32x256xf32>
    %10 = arith.maximumf %8, %9 : vector<32x256xf32>
    %c0_8 = arith.constant 0 : index
    %c0_9 = arith.constant 0 : index
    %11 = vector.load %arg5[%c0_8, %c0_9] : memref<32x256xf32, #tpu.memory_space<vmem>>, vector<32x256xf32>
    tpu.vector_store %arg5[%c0_8, %c0_9], %10 {strides = array<i32>} : memref<32x256xf32, #tpu.memory_space<vmem>>, vector<32x256xf32>,
    return
  }
  func.func @transform_0(%arg0: i32) -> (i32, i32) {
    %c0_i32 = arith.constant 0 : i32
    %c0_i32_0 = arith.constant 0 : i32
    %c0_i32_1 = arith.constant 0 : i32
    return %c0_i32, %c0_i32_0 : i32, i32
  }
  func.func @transform_1(%arg0: i32) -> (i32, i32) {
    %c0_i32 = arith.constant 0 : i32
    %c0_i32_0 = arith.constant 0 : i32
    return %c0_i32, %arg0 : i32, i32
  }
  func.func @transform_2(%arg0: i32) -> (i32, i32) {
    %c0_i32 = arith.constant 0 : i32
    %c0_i32_0 = arith.constant 0 : i32
    %c0_i32_1 = arith.constant 0 : i32
    return %c0_i32, %c0_i32_0 : i32, i32
  }
  func.func @transform_3(%arg0: i32) -> (i32, i32) {
    %c0_i32 = arith.constant 0 : i32
    %c0_i32_0 = arith.constant 0 : i32
    %c0_i32_1 = arith.constant 0 : i32
    return %c0_i32, %c0_i32_0 : i32, i32
  }
  func.func @transform_4(%arg0: i32) -> (i32, i32) {
    %c0_i32 = arith.constant 0 : i32
    %c0_i32_0 = arith.constant 0 : i32
    return %c0_i32, %arg0 : i32, i32
  }
}

module attributes {stable_mosaic.version = 11 : i64} {
  func.func @_gemm_affine_act_kernel(%arg0: i32, %arg1: memref<16x144xbf16, #tpu.memory_space<vmem>>, %arg2: memref<144x256xbf16, #tpu.memory_space<vmem>>, %arg3: memref<16x1xf32, #tpu.memory_space<vmem>>, %arg4: memref<16x1xf32, #tpu.memory_space<vmem>>, %arg5: memref<16x256xf32, #tpu.memory_space<vmem>>) attributes {dimension_semantics = [#tpu.dimension_semantics<parallel>], iteration_bounds = array<i64: 4>, scalar_prefetch = 0 : i64, scratch_operands = 0 : i64, tpu.core_type = #tpu.core_type<tc>, window_params = [{pipeline_mode = #tpu.pipeline_mode<synchronous>, transform_indices = @transform_0, window_bounds = array<i64: 16, 144>}, {transform_indices = @transform_1, window_bounds = array<i64: 144, 256>}, {pipeline_mode = #tpu.pipeline_mode<synchronous>, transform_indices = @transform_2, window_bounds = array<i64: 16, 1>}, {pipeline_mode = #tpu.pipeline_mode<synchronous>, transform_indices = @transform_3, window_bounds = array<i64: 16, 1>}, {transform_indices = @transform_4, window_bounds = array<i64: 16, 256>}]} {
    %c0 = arith.constant 0 : index
    %c0_0 = arith.constant 0 : index
    %0 = vector.load %arg1[%c0, %c0_0] : memref<16x144xbf16, #tpu.memory_space<vmem>>, vector<16x144xbf16>
    %c0_1 = arith.constant 0 : index
    %c0_2 = arith.constant 0 : index
    %1 = vector.load %arg2[%c0_1, %c0_2] : memref<144x256xbf16, #tpu.memory_space<vmem>>, vector<144x256xbf16>
    %cst = arith.constant dense<0.000000e+00> : vector<16x256xf32>
    %2 = tpu.matmul %0, %1, %cst {dimension_numbers = #tpu.dot_dimension_numbers<[1], [0], [0], [1], [0, 0, 1, 1], [], []>} : vector<16x144xbf16>, vector<144x256xbf16>, vector<16x256xf32> -> vector<16x256xf32>
    %c0_3 = arith.constant 0 : index
    %c0_4 = arith.constant 0 : index
    %3 = vector.load %arg3[%c0_3, %c0_4] : memref<16x1xf32, #tpu.memory_space<vmem>>, vector<16x1xf32>
    %4 = vector.broadcast %3 : vector<16x1xf32> to vector<16x256xf32>
    %5 = arith.mulf %2, %4 : vector<16x256xf32>
    %c0_5 = arith.constant 0 : index
    %c0_6 = arith.constant 0 : index
    %6 = vector.load %arg4[%c0_5, %c0_6] : memref<16x1xf32, #tpu.memory_space<vmem>>, vector<16x1xf32>
    %7 = vector.broadcast %6 : vector<16x1xf32> to vector<16x256xf32>
    %8 = arith.addf %5, %7 : vector<16x256xf32>
    %cst_7 = arith.constant 0.000000e+00 : f32
    %9 = vector.broadcast %cst_7 : f32 to vector<16x256xf32>
    %10 = arith.maximumf %8, %9 : vector<16x256xf32>
    %c0_8 = arith.constant 0 : index
    %c0_9 = arith.constant 0 : index
    %11 = vector.load %arg5[%c0_8, %c0_9] : memref<16x256xf32, #tpu.memory_space<vmem>>, vector<16x256xf32>
    tpu.vector_store %arg5[%c0_8, %c0_9], %10 {strides = array<i32>} : memref<16x256xf32, #tpu.memory_space<vmem>>, vector<16x256xf32>,
    return
  }
  func.func @transform_0(%arg0: i32) -> (i32, i32) {
    %c0_i32 = arith.constant 0 : i32
    %c0_i32_0 = arith.constant 0 : i32
    %c0_i32_1 = arith.constant 0 : i32
    return %c0_i32, %c0_i32_0 : i32, i32
  }
  func.func @transform_1(%arg0: i32) -> (i32, i32) {
    %c0_i32 = arith.constant 0 : i32
    %c0_i32_0 = arith.constant 0 : i32
    return %c0_i32, %arg0 : i32, i32
  }
  func.func @transform_2(%arg0: i32) -> (i32, i32) {
    %c0_i32 = arith.constant 0 : i32
    %c0_i32_0 = arith.constant 0 : i32
    %c0_i32_1 = arith.constant 0 : i32
    return %c0_i32, %c0_i32_0 : i32, i32
  }
  func.func @transform_3(%arg0: i32) -> (i32, i32) {
    %c0_i32 = arith.constant 0 : i32
    %c0_i32_0 = arith.constant 0 : i32
    %c0_i32_1 = arith.constant 0 : i32
    return %c0_i32, %c0_i32_0 : i32, i32
  }
  func.func @transform_4(%arg0: i32) -> (i32, i32) {
    %c0_i32 = arith.constant 0 : i32
    %c0_i32_0 = arith.constant 0 : i32
    return %c0_i32, %arg0 : i32, i32
  }
}

module attributes {stable_mosaic.version = 11 : i64} {
  func.func @_gemm_affine_act_kernel(%arg0: i32, %arg1: memref<8x72xbf16, #tpu.memory_space<vmem>>, %arg2: memref<72x1024xbf16, #tpu.memory_space<vmem>>, %arg3: memref<8x1xf32, #tpu.memory_space<vmem>>, %arg4: memref<8x1xf32, #tpu.memory_space<vmem>>, %arg5: memref<8x1024xf32, #tpu.memory_space<vmem>>) attributes {dimension_semantics = [#tpu.dimension_semantics<parallel>], iteration_bounds = array<i64: 4>, scalar_prefetch = 0 : i64, scratch_operands = 0 : i64, tpu.core_type = #tpu.core_type<tc>, window_params = [{pipeline_mode = #tpu.pipeline_mode<synchronous>, transform_indices = @transform_0, window_bounds = array<i64: 8, 72>}, {transform_indices = @transform_1, window_bounds = array<i64: 72, 1024>}, {pipeline_mode = #tpu.pipeline_mode<synchronous>, transform_indices = @transform_2, window_bounds = array<i64: 8, 1>}, {pipeline_mode = #tpu.pipeline_mode<synchronous>, transform_indices = @transform_3, window_bounds = array<i64: 8, 1>}, {transform_indices = @transform_4, window_bounds = array<i64: 8, 1024>}]} {
    %c0 = arith.constant 0 : index
    %c0_0 = arith.constant 0 : index
    %0 = vector.load %arg1[%c0, %c0_0] : memref<8x72xbf16, #tpu.memory_space<vmem>>, vector<8x72xbf16>
    %c0_1 = arith.constant 0 : index
    %c0_2 = arith.constant 0 : index
    %1 = vector.load %arg2[%c0_1, %c0_2] : memref<72x1024xbf16, #tpu.memory_space<vmem>>, vector<72x1024xbf16>
    %cst = arith.constant dense<0.000000e+00> : vector<8x1024xf32>
    %2 = tpu.matmul %0, %1, %cst {dimension_numbers = #tpu.dot_dimension_numbers<[1], [0], [0], [1], [0, 0, 1, 1], [], []>} : vector<8x72xbf16>, vector<72x1024xbf16>, vector<8x1024xf32> -> vector<8x1024xf32>
    %c0_3 = arith.constant 0 : index
    %c0_4 = arith.constant 0 : index
    %3 = vector.load %arg3[%c0_3, %c0_4] : memref<8x1xf32, #tpu.memory_space<vmem>>, vector<8x1xf32>
    %4 = vector.broadcast %3 : vector<8x1xf32> to vector<8x1024xf32>
    %5 = arith.mulf %2, %4 : vector<8x1024xf32>
    %c0_5 = arith.constant 0 : index
    %c0_6 = arith.constant 0 : index
    %6 = vector.load %arg4[%c0_5, %c0_6] : memref<8x1xf32, #tpu.memory_space<vmem>>, vector<8x1xf32>
    %7 = vector.broadcast %6 : vector<8x1xf32> to vector<8x1024xf32>
    %8 = arith.addf %5, %7 : vector<8x1024xf32>
    %cst_7 = arith.constant 0.000000e+00 : f32
    %9 = vector.broadcast %cst_7 : f32 to vector<8x1024xf32>
    %10 = arith.maximumf %8, %9 : vector<8x1024xf32>
    %c0_8 = arith.constant 0 : index
    %c0_9 = arith.constant 0 : index
    %11 = vector.load %arg5[%c0_8, %c0_9] : memref<8x1024xf32, #tpu.memory_space<vmem>>, vector<8x1024xf32>
    tpu.vector_store %arg5[%c0_8, %c0_9], %10 {strides = array<i32>} : memref<8x1024xf32, #tpu.memory_space<vmem>>, vector<8x1024xf32>,
    return
  }
  func.func @transform_0(%arg0: i32) -> (i32, i32) {
    %c0_i32 = arith.constant 0 : i32
    %c0_i32_0 = arith.constant 0 : i32
    %c0_i32_1 = arith.constant 0 : i32
    return %c0_i32, %c0_i32_0 : i32, i32
  }
  func.func @transform_1(%arg0: i32) -> (i32, i32) {
    %c0_i32 = arith.constant 0 : i32
    %c0_i32_0 = arith.constant 0 : i32
    return %c0_i32, %arg0 : i32, i32
  }
  func.func @transform_2(%arg0: i32) -> (i32, i32) {
    %c0_i32 = arith.constant 0 : i32
    %c0_i32_0 = arith.constant 0 : i32
    %c0_i32_1 = arith.constant 0 : i32
    return %c0_i32, %c0_i32_0 : i32, i32
  }
  func.func @transform_3(%arg0: i32) -> (i32, i32) {
    %c0_i32 = arith.constant 0 : i32
    %c0_i32_0 = arith.constant 0 : i32
    %c0_i32_1 = arith.constant 0 : i32
    return %c0_i32, %c0_i32_0 : i32, i32
  }
  func.func @transform_4(%arg0: i32) -> (i32, i32) {
    %c0_i32 = arith.constant 0 : i32
    %c0_i32_0 = arith.constant 0 : i32
    return %c0_i32, %arg0 : i32, i32
  }
}

module attributes {stable_mosaic.version = 11 : i64} {
  func.func @_gemm_affine_act_kernel(%arg0: i32, %arg1: memref<8x36xbf16, #tpu.memory_space<vmem>>, %arg2: memref<36x4096xbf16, #tpu.memory_space<vmem>>, %arg3: memref<8x1xf32, #tpu.memory_space<vmem>>, %arg4: memref<8x1xf32, #tpu.memory_space<vmem>>, %arg5: memref<8x4096xf32, #tpu.memory_space<vmem>>) attributes {dimension_semantics = [#tpu.dimension_semantics<parallel>], iteration_bounds = array<i64: 4>, scalar_prefetch = 0 : i64, scratch_operands = 0 : i64, tpu.core_type = #tpu.core_type<tc>, window_params = [{pipeline_mode = #tpu.pipeline_mode<synchronous>, transform_indices = @transform_0, window_bounds = array<i64: 8, 36>}, {transform_indices = @transform_1, window_bounds = array<i64: 36, 4096>}, {pipeline_mode = #tpu.pipeline_mode<synchronous>, transform_indices = @transform_2, window_bounds = array<i64: 8, 1>}, {pipeline_mode = #tpu.pipeline_mode<synchronous>, transform_indices = @transform_3, window_bounds = array<i64: 8, 1>}, {transform_indices = @transform_4, window_bounds = array<i64: 8, 4096>}]} {
    %c0 = arith.constant 0 : index
    %c0_0 = arith.constant 0 : index
    %0 = vector.load %arg1[%c0, %c0_0] : memref<8x36xbf16, #tpu.memory_space<vmem>>, vector<8x36xbf16>
    %c0_1 = arith.constant 0 : index
    %c0_2 = arith.constant 0 : index
    %1 = vector.load %arg2[%c0_1, %c0_2] : memref<36x4096xbf16, #tpu.memory_space<vmem>>, vector<36x4096xbf16>
    %cst = arith.constant dense<0.000000e+00> : vector<8x4096xf32>
    %2 = tpu.matmul %0, %1, %cst {dimension_numbers = #tpu.dot_dimension_numbers<[1], [0], [0], [1], [0, 0, 1, 1], [], []>} : vector<8x36xbf16>, vector<36x4096xbf16>, vector<8x4096xf32> -> vector<8x4096xf32>
    %c0_3 = arith.constant 0 : index
    %c0_4 = arith.constant 0 : index
    %3 = vector.load %arg3[%c0_3, %c0_4] : memref<8x1xf32, #tpu.memory_space<vmem>>, vector<8x1xf32>
    %4 = vector.broadcast %3 : vector<8x1xf32> to vector<8x4096xf32>
    %5 = arith.mulf %2, %4 : vector<8x4096xf32>
    %c0_5 = arith.constant 0 : index
    %c0_6 = arith.constant 0 : index
    %6 = vector.load %arg4[%c0_5, %c0_6] : memref<8x1xf32, #tpu.memory_space<vmem>>, vector<8x1xf32>
    %7 = vector.broadcast %6 : vector<8x1xf32> to vector<8x4096xf32>
    %8 = arith.addf %5, %7 : vector<8x4096xf32>
    %9 = math.tanh %8 : vector<8x4096xf32>
    %c0_7 = arith.constant 0 : index
    %c0_8 = arith.constant 0 : index
    %10 = vector.load %arg5[%c0_7, %c0_8] : memref<8x4096xf32, #tpu.memory_space<vmem>>, vector<8x4096xf32>
    tpu.vector_store %arg5[%c0_7, %c0_8], %9 {strides = array<i32>} : memref<8x4096xf32, #tpu.memory_space<vmem>>, vector<8x4096xf32>,
    return
  }
  func.func @transform_0(%arg0: i32) -> (i32, i32) {
    %c0_i32 = arith.constant 0 : i32
    %c0_i32_0 = arith.constant 0 : i32
    %c0_i32_1 = arith.constant 0 : i32
    return %c0_i32, %c0_i32_0 : i32, i32
  }
  func.func @transform_1(%arg0: i32) -> (i32, i32) {
    %c0_i32 = arith.constant 0 : i32
    %c0_i32_0 = arith.constant 0 : i32
    return %c0_i32, %arg0 : i32, i32
  }
  func.func @transform_2(%arg0: i32) -> (i32, i32) {
    %c0_i32 = arith.constant 0 : i32
    %c0_i32_0 = arith.constant 0 : i32
    %c0_i32_1 = arith.constant 0 : i32
    return %c0_i32, %c0_i32_0 : i32, i32
  }
  func.func @transform_3(%arg0: i32) -> (i32, i32) {
    %c0_i32 = arith.constant 0 : i32
    %c0_i32_0 = arith.constant 0 : i32
    %c0_i32_1 = arith.constant 0 : i32
    return %c0_i32, %c0_i32_0 : i32, i32
  }
  func.func @transform_4(%arg0: i32) -> (i32, i32) {
    %c0_i32 = arith.constant 0 : i32
    %c0_i32_0 = arith.constant 0 : i32
    return %c0_i32, %arg0 : i32, i32
  }
}

</mosaic_0001>

<llo_original>
// kernel: _lambda_.16
$region0: #{_lambda_.16}
  #allocation0 [shape = 'u32[]', space=smem, size = 0x4, offset = 0x4, fixed_abs, tag = 'smem constant byte address 0x4 - core index']
  #allocation1 [shape = 'u32[144,128]{1,0:T(1,128)}', space=vmem, size = 0x12000, scoped, tag = 'internal scratch']
  %s0 = inlined_call_operand.vmem [shape: bf16[2,16], index: 0, kind: input, shape index: {}]
  %s1 = inlined_call_operand.vmem [shape: bf16[16,16384], index: 1, kind: input, shape index: {}]
  %s2 = inlined_call_operand.vmem [shape: f32[2,1], index: 2, kind: input, shape index: {}]
  %s3 = inlined_call_operand.vmem [shape: f32[2,1], index: 3, kind: input, shape index: {}]
  %s4 = inlined_call_operand.vmem [shape: f32[2,16384], index: 4, kind: output, shape index: {}]
  %s5 = sld [smem:[#allocation0]]
  $region72: #{_lambda_.16} parent=0
    _
  %s7 = ssub.s32 1, %s5
  %s8 = scalar_select 0, %s7, %s5
  $region1: #{_lambda_.16} parent=0
    #allocation2 [shape = 'u8[262144]{0}', space=vmem, size = 0x40000, scoped, tag = 'input window, operand 1']
    loop: start=0, step=1, limit=6
    $region2: #{_lambda_.16} parent=1 // loop_pre_header
      _
    $region3: #{_lambda_.16} parent=1 // loop_header
      %s10 = sphi 0, %s14
      %p11 = scmp.ge.s32.totalorder %s10, 6
      %s18 = sphi 0, %s18
      %s20 = sphi 0, %s18
      %s21 = sphi 0, %s20
      %s35 = sphi 0, %s21
      %s41 = sphi 0, %s43
      %s44 = sphi 0, %s41
      %s45 = sphi 0, %s44
      %s61 = sphi 0, %s45
      %s65 = sphi 0, %s65
      %s67 = sphi 0, %s65
      %s68 = sphi 0, %s67
      %s82 = sphi 0, %s68
      %s86 = sphi 0, %s86
      %s88 = sphi 0, %s86
      %s89 = sphi 0, %s88
      %s103 = sphi 0, %s89
      %s109 = sphi 0, %s111
      %s112 = sphi 0, %s109
      %s113 = sphi 0, %s112
      %s129 = sphi 0, %s113
    $region4: #{_lambda_.16} parent=1 // loop_header_branch
      %13 = sbr.rel (%p11) target = $region8
    $region5: #{_lambda_.16} parent=1 // loop_body
      %s15 = ssub.s32 %s10, 1
      %s16 = ssub.s32 %s10, 2
      %s17 = sadd.s32 %s10, 1
      %s19 = sadd.s32 %s18, 1
      %p22 = scmp.eq.s32.totalorder %s10, 3
      %p23 = scmp.ne.s32.totalorder %s18, %s20
      %p24 = scmp.eq.s32.totalorder %s10, 0
      %p25 = por %p23, %p24
      %p26 = scmp.ne.s32.totalorder %s18, %s20
      %p27 = scmp.eq.s32.totalorder %s15, 3
      %p28 = por %p26, %p27
      %p29 = scmp.ne.s32.totalorder %s20, %s21
      %p30 = scmp.eq.s32.totalorder %s15, 0
      %p31 = por %p29, %p30
      %p32 = scmp.ne.s32.totalorder %s20, %s21
      %p33 = scmp.eq.s32.totalorder %s16, 3
      %p34 = por %p32, %p33
      %p36 = scmp.ne.s32.totalorder %s21, %s35
      %p37 = scmp.eq.s32.totalorder %s16, 0
      %p38 = por %p36, %p37
      %s39 = ssub.s32 %s10, %s17
      %p40 = scmp.eq.s32.totalorder %s39, 0
      %s42 = sadd.s32 %s41, 1
      %s43 = scalar_select %p40, %s41, %s42
      %p46 = pneg %p40
      %p47 = scmp.eq.s32.totalorder %s10, 3
      %p48 = por %p46, %p47
      %p49 = scmp.ne.s32.totalorder %s41, %s44
      %p50 = scmp.eq.s32.totalorder %s10, 0
      %p51 = por %p49, %p50
      %p52 = scmp.ne.s32.totalorder %s41, %s44
      %p53 = scmp.eq.s32.totalorder %s15, 3
      %p54 = por %p52, %p53
      %p55 = scmp.ne.s32.totalorder %s44, %s45
      %p56 = scmp.eq.s32.totalorder %s15, 0
      %p57 = por %p55, %p56
      %p58 = scmp.ne.s32.totalorder %s44, %s45
      %p59 = scmp.eq.s32.totalorder %s16, 3
      %p60 = por %p58, %p59
      %p62 = scmp.ne.s32.totalorder %s45, %s61
      %p63 = scmp.eq.s32.totalorder %s16, 0
      %p64 = por %p62, %p63
      %s66 = sadd.s32 %s65, 1
      %p69 = scmp.eq.s32.totalorder %s10, 3
      %p70 = scmp.ne.s32.totalorder %s65, %s67
      %p71 = scmp.eq.s32.totalorder %s10, 0
      %p72 = por %p70, %p71
      %p73 = scmp.ne.s32.totalorder %s65, %s67
      %p74 = scmp.eq.s32.totalorder %s15, 3
      %p75 = por %p73, %p74
      %p76 = scmp.ne.s32.totalorder %s67, %s68
      %p77 = scmp.eq.s32.totalorder %s15, 0
      %p78 = por %p76, %p77
      %p79 = scmp.ne.s32.totalorder %s67, %s68
      %p80 = scmp.eq.s32.totalorder %s16, 3
      %p81 = por %p79, %p80
      %p83 = scmp.ne.s32.totalorder %s68, %s82
      %p84 = scmp.eq.s32.totalorder %s16, 0
      %p85 = por %p83, %p84
      %s87 = sadd.s32 %s86, 1
      %p90 = scmp.eq.s32.totalorder %s10, 3
      %p91 = scmp.ne.s32.totalorder %s86, %s88
      %p92 = scmp.eq.s32.totalorder %s10, 0
      %p93 = por %p91, %p92
      %p94 = scmp.ne.s32.totalorder %s86, %s88
      %p95 = scmp.eq.s32.totalorder %s15, 3
      %p96 = por %p94, %p95
      %p97 = scmp.ne.s32.totalorder %s88, %s89
      %p98 = scmp.eq.s32.totalorder %s15, 0
      %p99 = por %p97, %p98
      %p100 = scmp.ne.s32.totalorder %s88, %s89
      %p101 = scmp.eq.s32.totalorder %s16, 3
      %p102 = por %p100, %p101
      %p104 = scmp.ne.s32.totalorder %s89, %s103
      %p105 = scmp.eq.s32.totalorder %s16, 0
      %p106 = por %p104, %p105
      %s107 = ssub.s32 %s10, %s17
      %p108 = scmp.eq.s32.totalorder %s107, 0
      %s110 = sadd.s32 %s109, 1
      %s111 = scalar_select %p108, %s109, %s110
      %p114 = pneg %p108
      %p115 = scmp.eq.s32.totalorder %s10, 3
      %p116 = por %p114, %p115
      %p117 = scmp.ne.s32.totalorder %s109, %s112
      %p118 = scmp.eq.s32.totalorder %s10, 0
      %p119 = por %p117, %p118
      %p120 = scmp.ne.s32.totalorder %s109, %s112
      %p121 = scmp.eq.s32.totalorder %s15, 3
      %p122 = por %p120, %p121
      %p123 = scmp.ne.s32.totalorder %s112, %s113
      %p124 = scmp.eq.s32.totalorder %s15, 0
      %p125 = por %p123, %p124
      %p126 = scmp.ne.s32.totalorder %s112, %s113
      %p127 = scmp.eq.s32.totalorder %s16, 3
      %p128 = por %p126, %p127
      %p130 = scmp.ne.s32.totalorder %s113, %s129
      %p131 = scmp.eq.s32.totalorder %s16, 0
      %p132 = por %p130, %p131
      %p133 = scmp.le.s32.totalorder 1, %s10
      %p134 = scmp.lt.s32.totalorder %s10, 5
      %p135 = pnand %p133, %p134
      %p136 = pneg %p135
      // Predicated region
      $region9: #{_lambda_.16} parent=5 // pred_check
        _
      $region10: #{_lambda_.16} parent=5 // pred_check_branch
        %138 = sbr.rel (%p135) target = $region12
      $region11: #{_lambda_.16} parent=5 // pred_region
        %s139 = ssub.s32 %s10, 1
        // Predicated region
        $region13: #{_lambda_.16} parent=11 // pred_check
          %p140 = pneg %p31
        $region14: #{_lambda_.16} parent=11 // pred_check_branch
          %142 = sbr.rel (%p140) target = $region16
        $region15: #{_lambda_.16} parent=11 // pred_region
          _
        $region16: #{_lambda_.16} parent=11 // pred_fallthru
          _
        // Predicated region
        $region17: #{_lambda_.16} parent=11 // pred_check
          %p143 = pneg %p78
        $region18: #{_lambda_.16} parent=11 // pred_check_branch
          %145 = sbr.rel (%p143) target = $region20
        $region19: #{_lambda_.16} parent=11 // pred_region
          _
        $region20: #{_lambda_.16} parent=11 // pred_fallthru
          _
        // Predicated region
        $region21: #{_lambda_.16} parent=11 // pred_check
          %p146 = pneg %p99
        $region22: #{_lambda_.16} parent=11 // pred_check_branch
          %148 = sbr.rel (%p146) target = $region24
        $region23: #{_lambda_.16} parent=11 // pred_region
          _
        $region24: #{_lambda_.16} parent=11 // pred_fallthru
          _
      $region12: #{_lambda_.16} parent=5 // pred_fallthru
        _
      %p149 = scmp.lt.s32.totalorder %s10, 4
      // Predicated region
      $region25: #{_lambda_.16} parent=5 // pred_check
        %p150 = pneg %p149
      $region26: #{_lambda_.16} parent=5 // pred_check_branch
        %152 = sbr.rel (%p150) target = $region28
      $region27: #{_lambda_.16} parent=5 // pred_region
        // Predicated region
        $region29: #{_lambda_.16} parent=27 // pred_check
          %p153 = pneg %p51
        $region30: #{_lambda_.16} parent=27 // pred_check_branch
          %155 = sbr.rel (%p153) target = $region32
        $region31: #{_lambda_.16} parent=27 // pred_region
          %s156 = sand.u32 %s41, 1
          %s157 = sand.u32 %s41, 1
          %s158 = smul.addr %s157, 256
          %s159 = scalar_lea.vmem [#allocation2], %s158
          %s160 = smul.u32 32, %s10
          %s161 = smul.addr %s160, 4
          %s162 = scalar_lea.vmem %s1, %s161
          // Predicated region
          $region33: #{_lambda_.16} parent=31 // pred_check
            _
          $region34: #{_lambda_.16} parent=31 // pred_check_branch
            %164 = sbr.rel (0) target = $region36
          $region35: #{_lambda_.16} parent=31 // pred_region
            // Predicated region
            $region37: #{_lambda_.16} parent=35 // pred_check
              _
            $region38: #{_lambda_.16} parent=35 // pred_check_branch
              %166 = sbr.rel (0) target = $region40
            $region39: #{_lambda_.16} parent=35 // pred_region
              loop: start=0, step=1, limit=1
              $region41: #{_lambda_.16} parent=39 // loop_pre_header
                _
              $region42: #{_lambda_.16} parent=39 // loop_header
                %s168 = sphi 0, %s172
                %p169 = scmp.ge.s32.totalorder %s168, 1
                %s173 = sphi %s162, %s162
                %s174 = sphi %s159, %s159
              $region43: #{_lambda_.16} parent=39 // loop_header_branch
                %171 = sbr.rel (%p169) target = $region47
              $region44: #{_lambda_.16} parent=39 // loop_body
                %v175 = vld [vmem:[%s173] sm:$0xff]
                %176 = vst [vmem:[%s174] sm:$0xff] %v175
                %v177 = vld [vmem:[%s173 + $0x8] sm:$0xff]
                %178 = vst [vmem:[%s174 + $0x8] sm:$0xff] %v177
                %v179 = vld [vmem:[%s173 + $0x10] sm:$0xff]
                %180 = vst [vmem:[%s174 + $0x10] sm:$0xff] %v179
                %v181 = vld [vmem:[%s173 + $0x18] sm:$0xff]
                %182 = vst [vmem:[%s174 + $0x18] sm:$0xff] %v181
                %v183 = vld [vmem:[%s173 + $0x20] sm:$0xff]
                %184 = vst [vmem:[%s174 + $0x20] sm:$0xff] %v183
                %v185 = vld [vmem:[%s173 + $0x28] sm:$0xff]
                %186 = vst [vmem:[%s174 + $0x28] sm:$0xff] %v185
                %v187 = vld [vmem:[%s173 + $0x30] sm:$0xff]
                %188 = vst [vmem:[%s174 + $0x30] sm:$0xff] %v187
                %v189 = vld [vmem:[%s173 + $0x38] sm:$0xff]
                %190 = vst [vmem:[%s174 + $0x38] sm:$0xff] %v189
                %v191 = vld [vmem:[%s173 + $0x40] sm:$0xff]
                %192 = vst [vmem:[%s174 + $0x40] sm:$0xff] %v191
                %v193 = vld [vmem:[%s173 + $0x48] sm:$0xff]
                %194 = vst [vmem:[%s174 + $0x48] sm:$0xff] %v193
                %v195 = vld [vmem:[%s173 + $0x50] sm:$0xff]
                %196 = vst [vmem:[%s174 + $0x50] sm:$0xff] %v195
                %v197 = vld [vmem:[%s173 + $0x58] sm:$0xff]
                %198 = vst [vmem:[%s174 + $0x58] sm:$0xff] %v197
                %v199 = vld [vmem:[%s173 + $0x60] sm:$0xff]
                %200 = vst [vmem:[%s174 + $0x60] sm:$0xff] %v199
                %v201 = vld [vmem:[%s173 + $0x68] sm:$0xff]
                %202 = vst [vmem:[%s174 + $0x68] sm:$0xff] %v201
                %v203 = vld [vmem:[%s173 + $0x70] sm:$0xff]
                %204 = vst [vmem:[%s174 + $0x70] sm:$0xff] %v203
                %v205 = vld [vmem:[%s173 + $0x78] sm:$0xff]
                %206 = vst [vmem:[%s174 + $0x78] sm:$0xff] %v205
                %v207 = vld [vmem:[%s173 + $0x200] sm:$0xff]
                %208 = vst [vmem:[%s174 + $0x80] sm:$0xff] %v207
                %v209 = vld [vmem:[%s173 + $0x208] sm:$0xff]
                %210 = vst [vmem:[%s174 + $0x88] sm:$0xff] %v209
                %v211 = vld [vmem:[%s173 + $0x210] sm:$0xff]
                %212 = vst [vmem:[%s174 + $0x90] sm:$0xff] %v211
                %v213 = vld [vmem:[%s173 + $0x218] sm:$0xff]
                %214 = vst [vmem:[%s174 + $0x98] sm:$0xff] %v213
                %v215 = vld [vmem:[%s173 + $0x220] sm:$0xff]
                %216 = vst [vmem:[%s174 + $0xa0] sm:$0xff] %v215
                %v217 = vld [vmem:[%s173 + $0x228] sm:$0xff]
                %218 = vst [vmem:[%s174 + $0xa8] sm:$0xff] %v217
                %v219 = vld [vmem:[%s173 + $0x230] sm:$0xff]
                %220 = vst [vmem:[%s174 + $0xb0] sm:$0xff] %v219
                %v221 = vld [vmem:[%s173 + $0x238] sm:$0xff]
                %222 = vst [vmem:[%s174 + $0xb8] sm:$0xff] %v221
                %v223 = vld [vmem:[%s173 + $0x240] sm:$0xff]
                %224 = vst [vmem:[%s174 + $0xc0] sm:$0xff] %v223
                %v225 = vld [vmem:[%s173 + $0x248] sm:$0xff]
                %226 = vst [vmem:[%s174 + $0xc8] sm:$0xff] %v225
                %v227 = vld [vmem:[%s173 + $0x250] sm:$0xff]
                %228 = vst [vmem:[%s174 + $0xd0] sm:$0xff] %v227
                %v229 = vld [vmem:[%s173 + $0x258] sm:$0xff]
                %230 = vst [vmem:[%s174 + $0xd8] sm:$0xff] %v229
                %v231 = vld [vmem:[%s173 + $0x260] sm:$0xff]
                %232 = vst [vmem:[%s174 + $0xe0] sm:$0xff] %v231
                %v233 = vld [vmem:[%s173 + $0x268] sm:$0xff]
                %234 = vst [vmem:[%s174 + $0xe8] sm:$0xff] %v233
                %v235 = vld [vmem:[%s173 + $0x270] sm:$0xff]
                %236 = vst [vmem:[%s174 + $0xf0] sm:$0xff] %v235
                %v237 = vld [vmem:[%s173 + $0x278] sm:$0xff]
                %238 = vst [vmem:[%s174 + $0xf8] sm:$0xff] %v237
              $region45: #{_lambda_.16} parent=39 // loop_footer
                %s172 = sadd.s32 1, %s168
              $region46: #{_lambda_.16} parent=39 // loop_footer_branch
                %167 = sbr.rel target = $region42
              $region47: #{_lambda_.16} parent=39 // loop_exit
                _
            $region40: #{_lambda_.16} parent=35 // pred_fallthru
              _
            // Predicated region
            $region48: #{_lambda_.16} parent=35 // pred_check
              _
            $region49: #{_lambda_.16} parent=35 // pred_check_branch
              %240 = sbr.rel target = $region51
            $region50: #{_lambda_.16} parent=35 // pred_region
              _
            $region51: #{_lambda_.16} parent=35 // pred_fallthru
              _
          $region36: #{_lambda_.16} parent=31 // pred_fallthru
            _
          %241 = vnop
        $region32: #{_lambda_.16} parent=27 // pred_fallthru
          _
      $region28: #{_lambda_.16} parent=5 // pred_fallthru
        _
      %p242 = scmp.le.s32.totalorder 1, %s10
      %p243 = scmp.lt.s32.totalorder %s10, 5
      %p244 = pnand %p242, %p243
      %p245 = pneg %p244
      // Predicated region
      $region52: #{_lambda_.16} parent=5 // pred_check
        _
      $region53: #{_lambda_.16} parent=5 // pred_check_branch
        %247 = sbr.rel (%p244) target = $region55
      $region54: #{_lambda_.16} parent=5 // pred_region
        %s248 = ssub.s32 %s10, 1
        %s249 = sand.u32 %s44, 1
        %s250 = sand.u32 %s44, 1
        %s251 = smul.addr %s250, 256
        %s252 = scalar_lea.vmem [#allocation2], %s251
        // Predicated region
        $region56: #{_lambda_.16} parent=54 // pred_check
          %p253 = pneg %p57
        $region57: #{_lambda_.16} parent=54 // pred_check_branch
          %255 = sbr.rel (%p253) target = $region59
        $region58: #{_lambda_.16} parent=54 // pred_region
          _
        $region59: #{_lambda_.16} parent=54 // pred_fallthru
          _
        %p256 = pneg %p31
        %p257 = pneg %p28
        %s258 = sand.u32 %s44, 1
        %s259 = sand.u32 %s44, 1
        %s260 = smul.addr %s259, 256
        %s261 = scalar_lea.vmem [#allocation2], %s260
        %p262 = pneg %p57
        %p263 = pneg %p54
        %p264 = pneg %p78
        %p265 = pneg %p75
        %p266 = pneg %p99
        %p267 = pneg %p96
        %p268 = pneg %p125
        %p269 = pneg %p122
        %s270 = smul.u32 32, %s15
        %p271 = scmp.lt.s32.totalorder %s270, 127
        %s272 = scalar_select %p271, %s270, 127
        %s273 = smul.addr %s272, 2
        %s274 = scalar_lea.vmem %s4, %s273
        %s275 = smul.u32 32, %s15
        %s276 = smul.u32 32, %s15
        %p277 = scmp.lt.s32.totalorder %s276, 127
        %s278 = scalar_select %p277, %s276, 127
        %s279 = smul.addr %s278, 2
        %s280 = scalar_lea.vmem %s4, %s279
        %s281 = smul.u32 32, %s15
        %v283 = vld [vmem:[%s0] sm:$0x1]
        %v284 = vld [vmem:[%s252] sm:$0xff]
        %v285 = vld [vmem:[%s252 + $0x8] sm:$0xff]
        %v286 = vld [vmem:[%s252 + $0x10] sm:$0xff]
        %v287 = vld [vmem:[%s252 + $0x18] sm:$0xff]
        %v288 = vld [vmem:[%s252 + $0x20] sm:$0xff]
        %v289 = vld [vmem:[%s252 + $0x28] sm:$0xff]
        %v290 = vld [vmem:[%s252 + $0x30] sm:$0xff]
        %v291 = vld [vmem:[%s252 + $0x38] sm:$0xff]
        %v292 = vld [vmem:[%s252 + $0x40] sm:$0xff]
        %v293 = vld [vmem:[%s252 + $0x48] sm:$0xff]
        %v294 = vld [vmem:[%s252 + $0x50] sm:$0xff]
        %v295 = vld [vmem:[%s252 + $0x58] sm:$0xff]
        %v296 = vld [vmem:[%s252 + $0x60] sm:$0xff]
        %v297 = vld [vmem:[%s252 + $0x68] sm:$0xff]
        %v298 = vld [vmem:[%s252 + $0x70] sm:$0xff]
        %v299 = vld [vmem:[%s252 + $0x78] sm:$0xff]
        %v300 = vld [vmem:[%s252 + $0x80] sm:$0xff]
        %v301 = vld [vmem:[%s252 + $0x88] sm:$0xff]
        %v302 = vld [vmem:[%s252 + $0x90] sm:$0xff]
        %v303 = vld [vmem:[%s252 + $0x98] sm:$0xff]
        %v304 = vld [vmem:[%s252 + $0xa0] sm:$0xff]
        %v305 = vld [vmem:[%s252 + $0xa8] sm:$0xff]
        %v306 = vld [vmem:[%s252 + $0xb0] sm:$0xff]
        %v307 = vld [vmem:[%s252 + $0xb8] sm:$0xff]
        %v308 = vld [vmem:[%s252 + $0xc0] sm:$0xff]
        %v309 = vld [vmem:[%s252 + $0xc8] sm:$0xff]
        %v310 = vld [vmem:[%s252 + $0xd0] sm:$0xff]
        %v311 = vld [vmem:[%s252 + $0xd8] sm:$0xff]
        %v312 = vld [vmem:[%s252 + $0xe0] sm:$0xff]
        %v313 = vld [vmem:[%s252 + $0xe8] sm:$0xff]
        %v314 = vld [vmem:[%s252 + $0xf0] sm:$0xff]
        %v315 = vld [vmem:[%s252 + $0xf8] sm:$0xff]
        %v348 = vunpack.c.l.b16 %v284
        %v349 = vunpack.c.h.b16 %v284
        %v350 = vunpack.c.l.b16 %v285
        %v351 = vunpack.c.h.b16 %v285
        %v352 = vunpack.c.l.b16 %v286
        %v353 = vunpack.c.h.b16 %v286
        %v354 = vunpack.c.l.b16 %v287
        %v355 = vunpack.c.h.b16 %v287
        %v356 = vunpack.c.l.b16 %v288
        %v357 = vunpack.c.h.b16 %v288
        %v358 = vunpack.c.l.b16 %v289
        %v359 = vunpack.c.h.b16 %v289
        %v360 = vunpack.c.l.b16 %v290
        %v361 = vunpack.c.h.b16 %v290
        %v362 = vunpack.c.l.b16 %v291
        %v363 = vunpack.c.h.b16 %v291
        %v364 = vunpack.c.l.b16 %v292
        %v365 = vunpack.c.h.b16 %v292
        %v366 = vunpack.c.l.b16 %v293
        %v367 = vunpack.c.h.b16 %v293
        %v368 = vunpack.c.l.b16 %v294
        %v369 = vunpack.c.h.b16 %v294
        %v370 = vunpack.c.l.b16 %v295
        %v371 = vunpack.c.h.b16 %v295
        %v372 = vunpack.c.l.b16 %v296
        %v373 = vunpack.c.h.b16 %v296
        %v374 = vunpack.c.l.b16 %v297
        %v375 = vunpack.c.h.b16 %v297
        %v376 = vunpack.c.l.b16 %v298
        %v377 = vunpack.c.h.b16 %v298
        %v378 = vunpack.c.l.b16 %v299
        %v379 = vunpack.c.h.b16 %v299
        %v380 = vunpack.c.l.b16 %v300
        %v381 = vunpack.c.h.b16 %v300
        %v382 = vunpack.c.l.b16 %v301
        %v383 = vunpack.c.h.b16 %v301
        %v384 = vunpack.c.l.b16 %v302
        %v385 = vunpack.c.h.b16 %v302
        %v386 = vunpack.c.l.b16 %v303
        %v387 = vunpack.c.h.b16 %v303
        %v388 = vunpack.c.l.b16 %v304
        %v389 = vunpack.c.h.b16 %v304
        %v390 = vunpack.c.l.b16 %v305
        %v391 = vunpack.c.h.b16 %v305
        %v392 = vunpack.c.l.b16 %v306
        %v393 = vunpack.c.h.b16 %v306
        %v394 = vunpack.c.l.b16 %v307
        %v395 = vunpack.c.h.b16 %v307
        %v396 = vunpack.c.l.b16 %v308
        %v397 = vunpack.c.h.b16 %v308
        %v398 = vunpack.c.l.b16 %v309
        %v399 = vunpack.c.h.b16 %v309
        %v400 = vunpack.c.l.b16 %v310
        %v401 = vunpack.c.h.b16 %v310
        %v402 = vunpack.c.l.b16 %v311
        %v403 = vunpack.c.h.b16 %v311
        %v404 = vunpack.c.l.b16 %v312
        %v405 = vunpack.c.h.b16 %v312
        %v406 = vunpack.c.l.b16 %v313
        %v407 = vunpack.c.h.b16 %v313
        %v408 = vunpack.c.l.b16 %v314
        %v409 = vunpack.c.h.b16 %v314
        %v410 = vunpack.c.l.b16 %v315
        %v411 = vunpack.c.h.b16 %v315
        %v412 = vpack.c.b16 %v380, %v348
        %v413 = vpack.c.b16 %v381, %v349
        %v414 = vpack.c.b16 %v382, %v350
        %v415 = vpack.c.b16 %v383, %v351
        %v416 = vpack.c.b16 %v384, %v352
        %v417 = vpack.c.b16 %v385, %v353
        %v418 = vpack.c.b16 %v386, %v354
        %v419 = vpack.c.b16 %v387, %v355
        %v420 = vpack.c.b16 %v388, %v356
        %v421 = vpack.c.b16 %v389, %v357
        %v422 = vpack.c.b16 %v390, %v358
        %v423 = vpack.c.b16 %v391, %v359
        %v424 = vpack.c.b16 %v392, %v360
        %v425 = vpack.c.b16 %v393, %v361
        %v426 = vpack.c.b16 %v394, %v362
        %v427 = vpack.c.b16 %v395, %v363
        %v428 = vpack.c.b16 %v396, %v364
        %v429 = vpack.c.b16 %v397, %v365
        %v430 = vpack.c.b16 %v398, %v366
        %v431 = vpack.c.b16 %v399, %v367
        %v432 = vpack.c.b16 %v400, %v368
        %v433 = vpack.c.b16 %v401, %v369
        %v434 = vpack.c.b16 %v402, %v370
        %v435 = vpack.c.b16 %v403, %v371
        %v436 = vpack.c.b16 %v404, %v372
        %v437 = vpack.c.b16 %v405, %v373
        %v438 = vpack.c.b16 %v406, %v374
        %v439 = vpack.c.b16 %v407, %v375
        %v440 = vpack.c.b16 %v408, %v376
        %v441 = vpack.c.b16 %v409, %v377
        %v442 = vpack.c.b16 %v410, %v378
        %v443 = vpack.c.b16 %v411, %v379
        %vm476 = vcmask 130048
        %v478 = vsel %vm476, %v283, 0
        %480 = vmatprep.subr.bf16.mxu0 0
        %481 = vmatpush1.bf16.msra.mxu0 0
        %482 = vmatprep.subr.bf16.mxu0 0
        %483 = vmatpush1.bf16.msra.mxu0 0
        %484 = vmatprep.subr.bf16.mxu0 0
        %485 = vmatpush1.bf16.msra.mxu0 0
        %486 = vmatprep.subr.bf16.mxu0 0
        %487 = vmatpush1.bf16.msra.mxu0 0
        %488 = vmatprep.subr.bf16.mxu0 0
        %489 = vmatpush1.bf16.msra.mxu0 0
        %490 = vmatprep.subr.bf16.mxu0 0
        %491 = vmatpush1.bf16.msra.mxu0 0
        %492 = vmatprep.subr.bf16.mxu0 0
        %493 = vmatpush1.bf16.msra.mxu0 0
        %494 = vmatprep.subr.bf16.mxu0 %v413
        %495 = vmatpush1.bf16.msra.mxu0 %v412
        %496 = vmatprep.subr.bf16.mxu0 0
        %497 = vmatpush2.bf16.msra.mxu0 0
        %498 = vmatprep.subr.bf16.mxu0 0
        %499 = vmatpush2.bf16.msra.mxu0 0
        %500 = vmatprep.subr.bf16.mxu0 0
        %501 = vmatpush2.bf16.msra.mxu0 0
        %502 = vmatprep.subr.bf16.mxu0 0
        %503 = vmatpush2.bf16.msra.mxu0 0
        %504 = vmatprep.subr.bf16.mxu0 0
        %505 = vmatpush2.bf16.msra.mxu0 0
        %506 = vmatprep.subr.bf16.mxu0 0
        %507 = vmatpush2.bf16.msra.mxu0 0
        %508 = vmatprep.subr.bf16.mxu0 0
        %509 = vmatpush2.bf16.msra.mxu0 0
        %510 = vmatprep.subr.bf16.mxu0 0
        %511 = vmatpush2.bf16.msra.mxu0 0
        %512 = vmatprep.mubr.bf16.mxu0 0
        %513 = vmatmul.mubr.bf16.gmra.mxu0 %v478
        %v514 = vpop.f32.mrf.mxu0
        %v515 = vadd.f32 0.0, %v514
        %v516 = vpop.f32.mrf.mxu0
        %v517 = vadd.f32 0.0, %v516
        %v518 = vpop.f32.mrf.mxu0
        %v519 = vpop.f32.mrf.mxu0
        %520 = vdwg.mxu0
        %521 = vmatprep.subr.bf16.mxu0 0
        %522 = vmatpush1.bf16.msra.mxu0 0
        %523 = vmatprep.subr.bf16.mxu0 0
        %524 = vmatpush1.bf16.msra.mxu0 0
        %525 = vmatprep.subr.bf16.mxu0 0
        %526 = vmatpush1.bf16.msra.mxu0 0
        %527 = vmatprep.subr.bf16.mxu0 0
        %528 = vmatpush1.bf16.msra.mxu0 0
        %529 = vmatprep.subr.bf16.mxu0 0
        %530 = vmatpush1.bf16.msra.mxu0 0
        %531 = vmatprep.subr.bf16.mxu0 0
        %532 = vmatpush1.bf16.msra.mxu0 0
        %533 = vmatprep.subr.bf16.mxu0 0
        %534 = vmatpush1.bf16.msra.mxu0 0
        %535 = vmatprep.subr.bf16.mxu0 %v415
        %536 = vmatpush1.bf16.msra.mxu0 %v414
        %537 = vmatprep.subr.bf16.mxu0 0
        %538 = vmatpush2.bf16.msra.mxu0 0
        %539 = vmatprep.subr.bf16.mxu0 0
        %540 = vmatpush2.bf16.msra.mxu0 0
        %541 = vmatprep.subr.bf16.mxu0 0
        %542 = vmatpush2.bf16.msra.mxu0 0
        %543 = vmatprep.subr.bf16.mxu0 0
        %544 = vmatpush2.bf16.msra.mxu0 0
        %545 = vmatprep.subr.bf16.mxu0 0
        %546 = vmatpush2.bf16.msra.mxu0 0
        %547 = vmatprep.subr.bf16.mxu0 0
        %548 = vmatpush2.bf16.msra.mxu0 0
        %549 = vmatprep.subr.bf16.mxu0 0
        %550 = vmatpush2.bf16.msra.mxu0 0
        %551 = vmatprep.subr.bf16.mxu0 0
        %552 = vmatpush2.bf16.msra.mxu0 0
        %553 = vmatprep.mubr.bf16.mxu0 0
        %554 = vmatmul.mubr.bf16.gmra.mxu0 %v478
        %v555 = vpop.f32.mrf.mxu0
        %v556 = vadd.f32 0.0, %v555
        %v557 = vpop.f32.mrf.mxu0
        %v558 = vadd.f32 0.0, %v557
        %v559 = vpop.f32.mrf.mxu0
        %v560 = vpop.f32.mrf.mxu0
        %561 = vdwg.mxu0
        %562 = vmatprep.subr.bf16.mxu0 0
        %563 = vmatpush1.bf16.msra.mxu0 0
        %564 = vmatprep.subr.bf16.mxu0 0
        %565 = vmatpush1.bf16.msra.mxu0 0
        %566 = vmatprep.subr.bf16.mxu0 0
        %567 = vmatpush1.bf16.msra.mxu0 0
        %568 = vmatprep.subr.bf16.mxu0 0
        %569 = vmatpush1.bf16.msra.mxu0 0
        %570 = vmatprep.subr.bf16.mxu0 0
        %571 = vmatpush1.bf16.msra.mxu0 0
        %572 = vmatprep.subr.bf16.mxu0 0
        %573 = vmatpush1.bf16.msra.mxu0 0
        %574 = vmatprep.subr.bf16.mxu0 0
        %575 = vmatpush1.bf16.msra.mxu0 0
        %576 = vmatprep.subr.bf16.mxu0 %v417
        %577 = vmatpush1.bf16.msra.mxu0 %v416
        %578 = vmatprep.subr.bf16.mxu0 0
        %579 = vmatpush2.bf16.msra.mxu0 0
        %580 = vmatprep.subr.bf16.mxu0 0
        %581 = vmatpush2.bf16.msra.mxu0 0
        %582 = vmatprep.subr.bf16.mxu0 0
        %583 = vmatpush2.bf16.msra.mxu0 0
        %584 = vmatprep.subr.bf16.mxu0 0
        %585 = vmatpush2.bf16.msra.mxu0 0
        %586 = vmatprep.subr.bf16.mxu0 0
        %587 = vmatpush2.bf16.msra.mxu0 0
        %588 = vmatprep.subr.bf16.mxu0 0
        %589 = vmatpush2.bf16.msra.mxu0 0
        %590 = vmatprep.subr.bf16.mxu0 0
        %591 = vmatpush2.bf16.msra.mxu0 0
        %592 = vmatprep.subr.bf16.mxu0 0
        %593 = vmatpush2.bf16.msra.mxu0 0
        %594 = vmatprep.mubr.bf16.mxu0 0
        %595 = vmatmul.mubr.bf16.gmra.mxu0 %v478
        %v596 = vpop.f32.mrf.mxu0
        %v597 = vadd.f32 0.0, %v596
        %v598 = vpop.f32.mrf.mxu0
        %v599 = vadd.f32 0.0, %v598
        %v600 = vpop.f32.mrf.mxu0
        %v601 = vpop.f32.mrf.mxu0
        %602 = vdwg.mxu0
        %603 = vmatprep.subr.bf16.mxu0 0
        %604 = vmatpush1.bf16.msra.mxu0 0
        %605 = vmatprep.subr.bf16.mxu0 0
        %606 = vmatpush1.bf16.msra.mxu0 0
        %607 = vmatprep.subr.bf16.mxu0 0
        %608 = vmatpush1.bf16.msra.mxu0 0
        %609 = vmatprep.subr.bf16.mxu0 0
        %610 = vmatpush1.bf16.msra.mxu0 0
        %611 = vmatprep.subr.bf16.mxu0 0
        %612 = vmatpush1.bf16.msra.mxu0 0
        %613 = vmatprep.subr.bf16.mxu0 0
        %614 = vmatpush1.bf16.msra.mxu0 0
        %615 = vmatprep.subr.bf16.mxu0 0
        %616 = vmatpush1.bf16.msra.mxu0 0
        %617 = vmatprep.subr.bf16.mxu0 %v419
        %618 = vmatpush1.bf16.msra.mxu0 %v418
        %619 = vmatprep.subr.bf16.mxu0 0
        %620 = vmatpush2.bf16.msra.mxu0 0
        %621 = vmatprep.subr.bf16.mxu0 0
        %622 = vmatpush2.bf16.msra.mxu0 0
        %623 = vmatprep.subr.bf16.mxu0 0
        %624 = vmatpush2.bf16.msra.mxu0 0
        %625 = vmatprep.subr.bf16.mxu0 0
        %626 = vmatpush2.bf16.msra.mxu0 0
        %627 = vmatprep.subr.bf16.mxu0 0
        %628 = vmatpush2.bf16.msra.mxu0 0
        %629 = vmatprep.subr.bf16.mxu0 0
        %630 = vmatpush2.bf16.msra.mxu0 0
        %631 = vmatprep.subr.bf16.mxu0 0
        %632 = vmatpush2.bf16.msra.mxu0 0
        %633 = vmatprep.subr.bf16.mxu0 0
        %634 = vmatpush2.bf16.msra.mxu0 0
        %635 = vmatprep.mubr.bf16.mxu0 0
        %636 = vmatmul.mubr.bf16.gmra.mxu0 %v478
        %v637 = vpop.f32.mrf.mxu0
        %v638 = vadd.f32 0.0, %v637
        %v639 = vpop.f32.mrf.mxu0
        %v640 = vadd.f32 0.0, %v639
        %v641 = vpop.f32.mrf.mxu0
        %v642 = vpop.f32.mrf.mxu0
        %643 = vdwg.mxu0
        %644 = vmatprep.subr.bf16.mxu0 0
        %645 = vmatpush1.bf16.msra.mxu0 0
        %646 = vmatprep.subr.bf16.mxu0 0
        %647 = vmatpush1.bf16.msra.mxu0 0
        %648 = vmatprep.subr.bf16.mxu0 0
        %649 = vmatpush1.bf16.msra.mxu0 0
        %650 = vmatprep.subr.bf16.mxu0 0
        %651 = vmatpush1.bf16.msra.mxu0 0
        %652 = vmatprep.subr.bf16.mxu0 0
        %653 = vmatpush1.bf16.msra.mxu0 0
        %654 = vmatprep.subr.bf16.mxu0 0
        %655 = vmatpush1.bf16.msra.mxu0 0
        %656 = vmatprep.subr.bf16.mxu0 0
        %657 = vmatpush1.bf16.msra.mxu0 0
        %658 = vmatprep.subr.bf16.mxu0 %v421
        %659 = vmatpush1.bf16.msra.mxu0 %v420
        %660 = vmatprep.subr.bf16.mxu0 0
        %661 = vmatpush2.bf16.msra.mxu0 0
        %662 = vmatprep.subr.bf16.mxu0 0
        %663 = vmatpush2.bf16.msra.mxu0 0
        %664 = vmatprep.subr.bf16.mxu0 0
        %665 = vmatpush2.bf16.msra.mxu0 0
        %666 = vmatprep.subr.bf16.mxu0 0
        %667 = vmatpush2.bf16.msra.mxu0 0
        %668 = vmatprep.subr.bf16.mxu0 0
        %669 = vmatpush2.bf16.msra.mxu0 0
        %670 = vmatprep.subr.bf16.mxu0 0
        %671 = vmatpush2.bf16.msra.mxu0 0
        %672 = vmatprep.subr.bf16.mxu0 0
        %673 = vmatpush2.bf16.msra.mxu0 0
        %674 = vmatprep.subr.bf16.mxu0 0
        %675 = vmatpush2.bf16.msra.mxu0 0
        %676 = vmatprep.mubr.bf16.mxu0 0
        %677 = vmatmul.mubr.bf16.gmra.mxu0 %v478
        %v678 = vpop.f32.mrf.mxu0
        %v679 = vadd.f32 0.0, %v678
        %v680 = vpop.f32.mrf.mxu0
        %v681 = vadd.f32 0.0, %v680
        %v682 = vpop.f32.mrf.mxu0
        %v683 = vpop.f32.mrf.mxu0
        %684 = vdwg.mxu0
        %685 = vmatprep.subr.bf16.mxu0 0
        %686 = vmatpush1.bf16.msra.mxu0 0
        %687 = vmatprep.subr.bf16.mxu0 0
        %688 = vmatpush1.bf16.msra.mxu0 0
        %689 = vmatprep.subr.bf16.mxu0 0
        %690 = vmatpush1.bf16.msra.mxu0 0
        %691 = vmatprep.subr.bf16.mxu0 0
        %692 = vmatpush1.bf16.msra.mxu0 0
        %693 = vmatprep.subr.bf16.mxu0 0
        %694 = vmatpush1.bf16.msra.mxu0 0
        %695 = vmatprep.subr.bf16.mxu0 0
        %696 = vmatpush1.bf16.msra.mxu0 0
        %697 = vmatprep.subr.bf16.mxu0 0
        %698 = vmatpush1.bf16.msra.mxu0 0
        %699 = vmatprep.subr.bf16.mxu0 %v423
        %700 = vmatpush1.bf16.msra.mxu0 %v422
        %701 = vmatprep.subr.bf16.mxu0 0
        %702 = vmatpush2.bf16.msra.mxu0 0
        %703 = vmatprep.subr.bf16.mxu0 0
        %704 = vmatpush2.bf16.msra.mxu0 0
        %705 = vmatprep.subr.bf16.mxu0 0
        %706 = vmatpush2.bf16.msra.mxu0 0
        %707 = vmatprep.subr.bf16.mxu0 0
        %708 = vmatpush2.bf16.msra.mxu0 0
        %709 = vmatprep.subr.bf16.mxu0 0
        %710 = vmatpush2.bf16.msra.mxu0 0
        %711 = vmatprep.subr.bf16.mxu0 0
        %712 = vmatpush2.bf16.msra.mxu0 0
        %713 = vmatprep.subr.bf16.mxu0 0
        %714 = vmatpush2.bf16.msra.mxu0 0
        %715 = vmatprep.subr.bf16.mxu0 0
        %716 = vmatpush2.bf16.msra.mxu0 0
        %717 = vmatprep.mubr.bf16.mxu0 0
        %718 = vmatmul.mubr.bf16.gmra.mxu0 %v478
        %v719 = vpop.f32.mrf.mxu0
        %v720 = vadd.f32 0.0, %v719
        %v721 = vpop.f32.mrf.mxu0
        %v722 = vadd.f32 0.0, %v721
        %v723 = vpop.f32.mrf.mxu0
        %v724 = vpop.f32.mrf.mxu0
        %725 = vdwg.mxu0
        %726 = vmatprep.subr.bf16.mxu0 0
        %727 = vmatpush1.bf16.msra.mxu0 0
        %728 = vmatprep.subr.bf16.mxu0 0
        %729 = vmatpush1.bf16.msra.mxu0 0
        %730 = vmatprep.subr.bf16.mxu0 0
        %731 = vmatpush1.bf16.msra.mxu0 0
        %732 = vmatprep.subr.bf16.mxu0 0
        %733 = vmatpush1.bf16.msra.mxu0 0
        %734 = vmatprep.subr.bf16.mxu0 0
        %735 = vmatpush1.bf16.msra.mxu0 0
        %736 = vmatprep.subr.bf16.mxu0 0
        %737 = vmatpush1.bf16.msra.mxu0 0
        %738 = vmatprep.subr.bf16.mxu0 0
        %739 = vmatpush1.bf16.msra.mxu0 0
        %740 = vmatprep.subr.bf16.mxu0 %v425
        %741 = vmatpush1.bf16.msra.mxu0 %v424
        %742 = vmatprep.subr.bf16.mxu0 0
        %743 = vmatpush2.bf16.msra.mxu0 0
        %744 = vmatprep.subr.bf16.mxu0 0
        %745 = vmatpush2.bf16.msra.mxu0 0
        %746 = vmatprep.subr.bf16.mxu0 0
        %747 = vmatpush2.bf16.msra.mxu0 0
        %748 = vmatprep.subr.bf16.mxu0 0
        %749 = vmatpush2.bf16.msra.mxu0 0
        %750 = vmatprep.subr.bf16.mxu0 0
        %751 = vmatpush2.bf16.msra.mxu0 0
        %752 = vmatprep.subr.bf16.mxu0 0
        %753 = vmatpush2.bf16.msra.mxu0 0
        %754 = vmatprep.subr.bf16.mxu0 0
        %755 = vmatpush2.bf16.msra.mxu0 0
        %756 = vmatprep.subr.bf16.mxu0 0
        %757 = vmatpush2.bf16.msra.mxu0 0
        %758 = vmatprep.mubr.bf16.mxu0 0
        %759 = vmatmul.mubr.bf16.gmra.mxu0 %v478
        %v760 = vpop.f32.mrf.mxu0
        %v761 = vadd.f32 0.0, %v760
        %v762 = vpop.f32.mrf.mxu0
        %v763 = vadd.f32 0.0, %v762
        %v764 = vpop.f32.mrf.mxu0
        %v765 = vpop.f32.mrf.mxu0
        %766 = vdwg.mxu0
        %767 = vmatprep.subr.bf16.mxu0 0
        %768 = vmatpush1.bf16.msra.mxu0 0
        %769 = vmatprep.subr.bf16.mxu0 0
        %770 = vmatpush1.bf16.msra.mxu0 0
        %771 = vmatprep.subr.bf16.mxu0 0
        %772 = vmatpush1.bf16.msra.mxu0 0
        %773 = vmatprep.subr.bf16.mxu0 0
        %774 = vmatpush1.bf16.msra.mxu0 0
        %775 = vmatprep.subr.bf16.mxu0 0
        %776 = vmatpush1.bf16.msra.mxu0 0
        %777 = vmatprep.subr.bf16.mxu0 0
        %778 = vmatpush1.bf16.msra.mxu0 0
        %779 = vmatprep.subr.bf16.mxu0 0
        %780 = vmatpush1.bf16.msra.mxu0 0
        %781 = vmatprep.subr.bf16.mxu0 %v427
        %782 = vmatpush1.bf16.msra.mxu0 %v426
        %783 = vmatprep.subr.bf16.mxu0 0
        %784 = vmatpush2.bf16.msra.mxu0 0
        %785 = vmatprep.subr.bf16.mxu0 0
        %786 = vmatpush2.bf16.msra.mxu0 0
        %787 = vmatprep.subr.bf16.mxu0 0
        %788 = vmatpush2.bf16.msra.mxu0 0
        %789 = vmatprep.subr.bf16.mxu0 0
        %790 = vmatpush2.bf16.msra.mxu0 0
        %791 = vmatprep.subr.bf16.mxu0 0
        %792 = vmatpush2.bf16.msra.mxu0 0
        %793 = vmatprep.subr.bf16.mxu0 0
        %794 = vmatpush2.bf16.msra.mxu0 0
        %795 = vmatprep.subr.bf16.mxu0 0
        %796 = vmatpush2.bf16.msra.mxu0 0
        %797 = vmatprep.subr.bf16.mxu0 0
        %798 = vmatpush2.bf16.msra.mxu0 0
        %799 = vmatprep.mubr.bf16.mxu0 0
        %800 = vmatmul.mubr.bf16.gmra.mxu0 %v478
        %v801 = vpop.f32.mrf.mxu0
        %v802 = vadd.f32 0.0, %v801
        %v803 = vpop.f32.mrf.mxu0
        %v804 = vadd.f32 0.0, %v803
        %v805 = vpop.f32.mrf.mxu0
        %v806 = vpop.f32.mrf.mxu0
        %807 = vdwg.mxu0
        %808 = vmatprep.subr.bf16.mxu0 0
        %809 = vmatpush1.bf16.msra.mxu0 0
        %810 = vmatprep.subr.bf16.mxu0 0
        %811 = vmatpush1.bf16.msra.mxu0 0
        %812 = vmatprep.subr.bf16.mxu0 0
        %813 = vmatpush1.bf16.msra.mxu0 0
        %814 = vmatprep.subr.bf16.mxu0 0
        %815 = vmatpush1.bf16.msra.mxu0 0
        %816 = vmatprep.subr.bf16.mxu0 0
        %817 = vmatpush1.bf16.msra.mxu0 0
        %818 = vmatprep.subr.bf16.mxu0 0
        %819 = vmatpush1.bf16.msra.mxu0 0
        %820 = vmatprep.subr.bf16.mxu0 0
        %821 = vmatpush1.bf16.msra.mxu0 0
        %822 = vmatprep.subr.bf16.mxu0 %v429
        %823 = vmatpush1.bf16.msra.mxu0 %v428
        %824 = vmatprep.subr.bf16.mxu0 0
        %825 = vmatpush2.bf16.msra.mxu0 0
        %826 = vmatprep.subr.bf16.mxu0 0
        %827 = vmatpush2.bf16.msra.mxu0 0
        %828 = vmatprep.subr.bf16.mxu0 0
        %829 = vmatpush2.bf16.msra.mxu0 0
        %830 = vmatprep.subr.bf16.mxu0 0
        %831 = vmatpush2.bf16.msra.mxu0 0
        %832 = vmatprep.subr.bf16.mxu0 0
        %833 = vmatpush2.bf16.msra.mxu0 0
        %834 = vmatprep.subr.bf16.mxu0 0
        %835 = vmatpush2.bf16.msra.mxu0 0
        %836 = vmatprep.subr.bf16.mxu0 0
        %837 = vmatpush2.bf16.msra.mxu0 0
        %838 = vmatprep.subr.bf16.mxu0 0
        %839 = vmatpush2.bf16.msra.mxu0 0
        %840 = vmatprep.mubr.bf16.mxu0 0
        %841 = vmatmul.mubr.bf16.gmra.mxu0 %v478
        %v842 = vpop.f32.mrf.mxu0
        %v843 = vadd.f32 0.0, %v842
        %v844 = vpop.f32.mrf.mxu0
        %v845 = vadd.f32 0.0, %v844
        %v846 = vpop.f32.mrf.mxu0
        %v847 = vpop.f32.mrf.mxu0
        %848 = vdwg.mxu0
        %849 = vmatprep.subr.bf16.mxu0 0
        %850 = vmatpush1.bf16.msra.mxu0 0
        %851 = vmatprep.subr.bf16.mxu0 0
        %852 = vmatpush1.bf16.msra.mxu0 0
        %853 = vmatprep.subr.bf16.mxu0 0
        %854 = vmatpush1.bf16.msra.mxu0 0
        %855 = vmatprep.subr.bf16.mxu0 0
        %856 = vmatpush1.bf16.msra.mxu0 0
        %857 = vmatprep.subr.bf16.mxu0 0
        %858 = vmatpush1.bf16.msra.mxu0 0
        %859 = vmatprep.subr.bf16.mxu0 0
        %860 = vmatpush1.bf16.msra.mxu0 0
        %861 = vmatprep.subr.bf16.mxu0 0
        %862 = vmatpush1.bf16.msra.mxu0 0
        %863 = vmatprep.subr.bf16.mxu0 %v431
        %864 = vmatpush1.bf16.msra.mxu0 %v430
        %865 = vmatprep.subr.bf16.mxu0 0
        %866 = vmatpush2.bf16.msra.mxu0 0
        %867 = vmatprep.subr.bf16.mxu0 0
        %868 = vmatpush2.bf16.msra.mxu0 0
        %869 = vmatprep.subr.bf16.mxu0 0
        %870 = vmatpush2.bf16.msra.mxu0 0
        %871 = vmatprep.subr.bf16.mxu0 0
        %872 = vmatpush2.bf16.msra.mxu0 0
        %873 = vmatprep.subr.bf16.mxu0 0
        %874 = vmatpush2.bf16.msra.mxu0 0
        %875 = vmatprep.subr.bf16.mxu0 0
        %876 = vmatpush2.bf16.msra.mxu0 0
        %877 = vmatprep.subr.bf16.mxu0 0
        %878 = vmatpush2.bf16.msra.mxu0 0
        %879 = vmatprep.subr.bf16.mxu0 0
        %880 = vmatpush2.bf16.msra.mxu0 0
        %881 = vmatprep.mubr.bf16.mxu0 0
        %882 = vmatmul.mubr.bf16.gmra.mxu0 %v478
        %v883 = vpop.f32.mrf.mxu0
        %v884 = vadd.f32 0.0, %v883
        %v885 = vpop.f32.mrf.mxu0
        %v886 = vadd.f32 0.0, %v885
        %v887 = vpop.f32.mrf.mxu0
        %v888 = vpop.f32.mrf.mxu0
        %889 = vdwg.mxu0
        %890 = vmatprep.subr.bf16.mxu0 0
        %891 = vmatpush1.bf16.msra.mxu0 0
        %892 = vmatprep.subr.bf16.mxu0 0
        %893 = vmatpush1.bf16.msra.mxu0 0
        %894 = vmatprep.subr.bf16.mxu0 0
        %895 = vmatpush1.bf16.msra.mxu0 0
        %896 = vmatprep.subr.bf16.mxu0 0
        %897 = vmatpush1.bf16.msra.mxu0 0
        %898 = vmatprep.subr.bf16.mxu0 0
        %899 = vmatpush1.bf16.msra.mxu0 0
        %900 = vmatprep.subr.bf16.mxu0 0
        %901 = vmatpush1.bf16.msra.mxu0 0
        %902 = vmatprep.subr.bf16.mxu0 0
        %903 = vmatpush1.bf16.msra.mxu0 0
        %904 = vmatprep.subr.bf16.mxu0 %v433
        %905 = vmatpush1.bf16.msra.mxu0 %v432
        %906 = vmatprep.subr.bf16.mxu0 0
        %907 = vmatpush2.bf16.msra.mxu0 0
        %908 = vmatprep.subr.bf16.mxu0 0
        %909 = vmatpush2.bf16.msra.mxu0 0
        %910 = vmatprep.subr.bf16.mxu0 0
        %911 = vmatpush2.bf16.msra.mxu0 0
        %912 = vmatprep.subr.bf16.mxu0 0
        %913 = vmatpush2.bf16.msra.mxu0 0
        %914 = vmatprep.subr.bf16.mxu0 0
        %915 = vmatpush2.bf16.msra.mxu0 0
        %916 = vmatprep.subr.bf16.mxu0 0
        %917 = vmatpush2.bf16.msra.mxu0 0
        %918 = vmatprep.subr.bf16.mxu0 0
        %919 = vmatpush2.bf16.msra.mxu0 0
        %920 = vmatprep.subr.bf16.mxu0 0
        %921 = vmatpush2.bf16.msra.mxu0 0
        %922 = vmatprep.mubr.bf16.mxu0 0
        %923 = vmatmul.mubr.bf16.gmra.mxu0 %v478
        %v924 = vpop.f32.mrf.mxu0
        %v925 = vadd.f32 0.0, %v924
        %v926 = vpop.f32.mrf.mxu0
        %v927 = vadd.f32 0.0, %v926
        %v928 = vpop.f32.mrf.mxu0
        %v929 = vpop.f32.mrf.mxu0
        %930 = vdwg.mxu0
        %931 = vmatprep.subr.bf16.mxu0 0
        %932 = vmatpush1.bf16.msra.mxu0 0
        %933 = vmatprep.subr.bf16.mxu0 0
        %934 = vmatpush1.bf16.msra.mxu0 0
        %935 = vmatprep.subr.bf16.mxu0 0
        %936 = vmatpush1.bf16.msra.mxu0 0
        %937 = vmatprep.subr.bf16.mxu0 0
        %938 = vmatpush1.bf16.msra.mxu0 0
        %939 = vmatprep.subr.bf16.mxu0 0
        %940 = vmatpush1.bf16.msra.mxu0 0
        %941 = vmatprep.subr.bf16.mxu0 0
        %942 = vmatpush1.bf16.msra.mxu0 0
        %943 = vmatprep.subr.bf16.mxu0 0
        %944 = vmatpush1.bf16.msra.mxu0 0
        %945 = vmatprep.subr.bf16.mxu0 %v435
        %946 = vmatpush1.bf16.msra.mxu0 %v434
        %947 = vmatprep.subr.bf16.mxu0 0
        %948 = vmatpush2.bf16.msra.mxu0 0
        %949 = vmatprep.subr.bf16.mxu0 0
        %950 = vmatpush2.bf16.msra.mxu0 0
        %951 = vmatprep.subr.bf16.mxu0 0
        %952 = vmatpush2.bf16.msra.mxu0 0
        %953 = vmatprep.subr.bf16.mxu0 0
        %954 = vmatpush2.bf16.msra.mxu0 0
        %955 = vmatprep.subr.bf16.mxu0 0
        %956 = vmatpush2.bf16.msra.mxu0 0
        %957 = vmatprep.subr.bf16.mxu0 0
        %958 = vmatpush2.bf16.msra.mxu0 0
        %959 = vmatprep.subr.bf16.mxu0 0
        %960 = vmatpush2.bf16.msra.mxu0 0
        %961 = vmatprep.subr.bf16.mxu0 0
        %962 = vmatpush2.bf16.msra.mxu0 0
        %963 = vmatprep.mubr.bf16.mxu0 0
        %964 = vmatmul.mubr.bf16.gmra.mxu0 %v478
        %v965 = vpop.f32.mrf.mxu0
        %v966 = vadd.f32 0.0, %v965
        %v967 = vpop.f32.mrf.mxu0
        %v968 = vadd.f32 0.0, %v967
        %v969 = vpop.f32.mrf.mxu0
        %v970 = vpop.f32.mrf.mxu0
        %971 = vdwg.mxu0
        %972 = vmatprep.subr.bf16.mxu0 0
        %973 = vmatpush1.bf16.msra.mxu0 0
        %974 = vmatprep.subr.bf16.mxu0 0
        %975 = vmatpush1.bf16.msra.mxu0 0
        %976 = vmatprep.subr.bf16.mxu0 0
        %977 = vmatpush1.bf16.msra.mxu0 0
        %978 = vmatprep.subr.bf16.mxu0 0
        %979 = vmatpush1.bf16.msra.mxu0 0
        %980 = vmatprep.subr.bf16.mxu0 0
        %981 = vmatpush1.bf16.msra.mxu0 0
        %982 = vmatprep.subr.bf16.mxu0 0
        %983 = vmatpush1.bf16.msra.mxu0 0
        %984 = vmatprep.subr.bf16.mxu0 0
        %985 = vmatpush1.bf16.msra.mxu0 0
        %986 = vmatprep.subr.bf16.mxu0 %v437
        %987 = vmatpush1.bf16.msra.mxu0 %v436
        %988 = vmatprep.subr.bf16.mxu0 0
        %989 = vmatpush2.bf16.msra.mxu0 0
        %990 = vmatprep.subr.bf16.mxu0 0
        %991 = vmatpush2.bf16.msra.mxu0 0
        %992 = vmatprep.subr.bf16.mxu0 0
        %993 = vmatpush2.bf16.msra.mxu0 0
        %994 = vmatprep.subr.bf16.mxu0 0
        %995 = vmatpush2.bf16.msra.mxu0 0
        %996 = vmatprep.subr.bf16.mxu0 0
        %997 = vmatpush2.bf16.msra.mxu0 0
        %998 = vmatprep.subr.bf16.mxu0 0
        %999 = vmatpush2.bf16.msra.mxu0 0
        %1000 = vmatprep.subr.bf16.mxu0 0
        %1001 = vmatpush2.bf16.msra.mxu0 0
        %1002 = vmatprep.subr.bf16.mxu0 0
        %1003 = vmatpush2.bf16.msra.mxu0 0
        %1004 = vmatprep.mubr.bf16.mxu0 0
        %1005 = vmatmul.mubr.bf16.gmra.mxu0 %v478
        %v1006 = vpop.f32.mrf.mxu0
        %v1007 = vadd.f32 0.0, %v1006
        %v1008 = vpop.f32.mrf.mxu0
        %v1009 = vadd.f32 0.0, %v1008
        %v1010 = vpop.f32.mrf.mxu0
        %v1011 = vpop.f32.mrf.mxu0
        %1012 = vdwg.mxu0
        %1013 = vmatprep.subr.bf16.mxu0 0
        %1014 = vmatpush1.bf16.msra.mxu0 0
        %1015 = vmatprep.subr.bf16.mxu0 0
        %1016 = vmatpush1.bf16.msra.mxu0 0
        %1017 = vmatprep.subr.bf16.mxu0 0
        %1018 = vmatpush1.bf16.msra.mxu0 0
        %1019 = vmatprep.subr.bf16.mxu0 0
        %1020 = vmatpush1.bf16.msra.mxu0 0
        %1021 = vmatprep.subr.bf16.mxu0 0
        %1022 = vmatpush1.bf16.msra.mxu0 0
        %1023 = vmatprep.subr.bf16.mxu0 0
        %1024 = vmatpush1.bf16.msra.mxu0 0
        %1025 = vmatprep.subr.bf16.mxu0 0
        %1026 = vmatpush1.bf16.msra.mxu0 0
        %1027 = vmatprep.subr.bf16.mxu0 %v439
        %1028 = vmatpush1.bf16.msra.mxu0 %v438
        %1029 = vmatprep.subr.bf16.mxu0 0
        %1030 = vmatpush2.bf16.msra.mxu0 0
        %1031 = vmatprep.subr.bf16.mxu0 0
        %1032 = vmatpush2.bf16.msra.mxu0 0
        %1033 = vmatprep.subr.bf16.mxu0 0
        %1034 = vmatpush2.bf16.msra.mxu0 0
        %1035 = vmatprep.subr.bf16.mxu0 0
        %1036 = vmatpush2.bf16.msra.mxu0 0
        %1037 = vmatprep.subr.bf16.mxu0 0
        %1038 = vmatpush2.bf16.msra.mxu0 0
        %1039 = vmatprep.subr.bf16.mxu0 0
        %1040 = vmatpush2.bf16.msra.mxu0 0
        %1041 = vmatprep.subr.bf16.mxu0 0
        %1042 = vmatpush2.bf16.msra.mxu0 0
        %1043 = vmatprep.subr.bf16.mxu0 0
        %1044 = vmatpush2.bf16.msra.mxu0 0
        %1045 = vmatprep.mubr.bf16.mxu0 0
        %1046 = vmatmul.mubr.bf16.gmra.mxu0 %v478
        %v1047 = vpop.f32.mrf.mxu0
        %v1048 = vadd.f32 0.0, %v1047
        %v1049 = vpop.f32.mrf.mxu0
        %v1050 = vadd.f32 0.0, %v1049
        %v1051 = vpop.f32.mrf.mxu0
        %v1052 = vpop.f32.mrf.mxu0
        %1053 = vdwg.mxu0
        %1054 = vmatprep.subr.bf16.mxu0 0
        %1055 = vmatpush1.bf16.msra.mxu0 0
        %1056 = vmatprep.subr.bf16.mxu0 0
        %1057 = vmatpush1.bf16.msra.mxu0 0
        %1058 = vmatprep.subr.bf16.mxu0 0
        %1059 = vmatpush1.bf16.msra.mxu0 0
        %1060 = vmatprep.subr.bf16.mxu0 0
        %1061 = vmatpush1.bf16.msra.mxu0 0
        %1062 = vmatprep.subr.bf16.mxu0 0
        %1063 = vmatpush1.bf16.msra.mxu0 0
        %1064 = vmatprep.subr.bf16.mxu0 0
        %1065 = vmatpush1.bf16.msra.mxu0 0
        %1066 = vmatprep.subr.bf16.mxu0 0
        %1067 = vmatpush1.bf16.msra.mxu0 0
        %1068 = vmatprep.subr.bf16.mxu0 %v441
        %1069 = vmatpush1.bf16.msra.mxu0 %v440
        %1070 = vmatprep.subr.bf16.mxu0 0
        %1071 = vmatpush2.bf16.msra.mxu0 0
        %1072 = vmatprep.subr.bf16.mxu0 0
        %1073 = vmatpush2.bf16.msra.mxu0 0
        %1074 = vmatprep.subr.bf16.mxu0 0
        %1075 = vmatpush2.bf16.msra.mxu0 0
        %1076 = vmatprep.subr.bf16.mxu0 0
        %1077 = vmatpush2.bf16.msra.mxu0 0
        %1078 = vmatprep.subr.bf16.mxu0 0
        %1079 = vmatpush2.bf16.msra.mxu0 0
        %1080 = vmatprep.subr.bf16.mxu0 0
        %1081 = vmatpush2.bf16.msra.mxu0 0
        %1082 = vmatprep.subr.bf16.mxu0 0
        %1083 = vmatpush2.bf16.msra.mxu0 0
        %1084 = vmatprep.subr.bf16.mxu0 0
        %1085 = vmatpush2.bf16.msra.mxu0 0
        %1086 = vmatprep.mubr.bf16.mxu0 0
        %1087 = vmatmul.mubr.bf16.gmra.mxu0 %v478
        %v1088 = vpop.f32.mrf.mxu0
        %v1089 = vadd.f32 0.0, %v1088
        %v1090 = vpop.f32.mrf.mxu0
        %v1091 = vadd.f32 0.0, %v1090
        %v1092 = vpop.f32.mrf.mxu0
        %v1093 = vpop.f32.mrf.mxu0
        %1094 = vdwg.mxu0
        %1095 = vmatprep.subr.bf16.mxu0 0
        %1096 = vmatpush1.bf16.msra.mxu0 0
        %1097 = vmatprep.subr.bf16.mxu0 0
        %1098 = vmatpush1.bf16.msra.mxu0 0
        %1099 = vmatprep.subr.bf16.mxu0 0
        %1100 = vmatpush1.bf16.msra.mxu0 0
        %1101 = vmatprep.subr.bf16.mxu0 0
        %1102 = vmatpush1.bf16.msra.mxu0 0
        %1103 = vmatprep.subr.bf16.mxu0 0
        %1104 = vmatpush1.bf16.msra.mxu0 0
        %1105 = vmatprep.subr.bf16.mxu0 0
        %1106 = vmatpush1.bf16.msra.mxu0 0
        %1107 = vmatprep.subr.bf16.mxu0 0
        %1108 = vmatpush1.bf16.msra.mxu0 0
        %1109 = vmatprep.subr.bf16.mxu0 %v443
        %1110 = vmatpush1.bf16.msra.mxu0 %v442
        %1111 = vmatprep.subr.bf16.mxu0 0
        %1112 = vmatpush2.bf16.msra.mxu0 0
        %1113 = vmatprep.subr.bf16.mxu0 0
        %1114 = vmatpush2.bf16.msra.mxu0 0
        %1115 = vmatprep.subr.bf16.mxu0 0
        %1116 = vmatpush2.bf16.msra.mxu0 0
        %1117 = vmatprep.subr.bf16.mxu0 0
        %1118 = vmatpush2.bf16.msra.mxu0 0
        %1119 = vmatprep.subr.bf16.mxu0 0
        %1120 = vmatpush2.bf16.msra.mxu0 0
        %1121 = vmatprep.subr.bf16.mxu0 0
        %1122 = vmatpush2.bf16.msra.mxu0 0
        %1123 = vmatprep.subr.bf16.mxu0 0
        %1124 = vmatpush2.bf16.msra.mxu0 0
        %1125 = vmatprep.subr.bf16.mxu0 0
        %1126 = vmatpush2.bf16.msra.mxu0 0
        %1127 = vmatprep.mubr.bf16.mxu0 0
        %1128 = vmatmul.mubr.bf16.gmra.mxu0 %v478
        %v1129 = vpop.f32.mrf.mxu0
        %v1130 = vadd.f32 0.0, %v1129
        %v1131 = vpop.f32.mrf.mxu0
        %v1132 = vadd.f32 0.0, %v1131
        %v1133 = vpop.f32.mrf.mxu0
        %v1134 = vpop.f32.mrf.mxu0
        %1135 = vdwg.mxu0
        %v1136 = vld [vmem:[%s2] sm:$0x3]
        %1138 = vset.pattern.permute.xlu0 0
        %1139 = vperm.xlu0 %1138, %v1136
        %v1140 = vpop.permute.xlu0 %1139
        %v1142 = vmul.f32 %v515, %v1140
        %v1143 = vmul.f32 %v517, %v1140
        %v1144 = vmul.f32 %v556, %v1140
        %v1145 = vmul.f32 %v558, %v1140
        %v1146 = vmul.f32 %v597, %v1140
        %v1147 = vmul.f32 %v599, %v1140
        %v1148 = vmul.f32 %v638, %v1140
        %v1149 = vmul.f32 %v640, %v1140
        %v1150 = vmul.f32 %v679, %v1140
        %v1151 = vmul.f32 %v681, %v1140
        %v1152 = vmul.f32 %v720, %v1140
        %v1153 = vmul.f32 %v722, %v1140
        %v1154 = vmul.f32 %v761, %v1140
        %v1155 = vmul.f32 %v763, %v1140
        %v1156 = vmul.f32 %v802, %v1140
        %v1157 = vmul.f32 %v804, %v1140
        %v1158 = vmul.f32 %v843, %v1140
        %v1159 = vmul.f32 %v845, %v1140
        %v1160 = vmul.f32 %v884, %v1140
        %v1161 = vmul.f32 %v886, %v1140
        %v1162 = vmul.f32 %v925, %v1140
        %v1163 = vmul.f32 %v927, %v1140
        %v1164 = vmul.f32 %v966, %v1140
        %v1165 = vmul.f32 %v968, %v1140
        %v1166 = vmul.f32 %v1007, %v1140
        %v1167 = vmul.f32 %v1009, %v1140
        %v1168 = vmul.f32 %v1048, %v1140
        %v1169 = vmul.f32 %v1050, %v1140
        %v1170 = vmul.f32 %v1089, %v1140
        %v1171 = vmul.f32 %v1091, %v1140
        %v1172 = vmul.f32 %v1130, %v1140
        %v1173 = vmul.f32 %v1132, %v1140
        %v1174 = vld [vmem:[%s3] sm:$0x3]
        %1176 = vset.pattern.permute.xlu0 0
        %1177 = vperm.xlu0 %1176, %v1174
        %v1178 = vpop.permute.xlu0 %1177
        %v1180 = vadd.f32 %v1142, %v1178
        %v1181 = vadd.f32 %v1143, %v1178
        %v1182 = vadd.f32 %v1144, %v1178
        %v1183 = vadd.f32 %v1145, %v1178
        %v1184 = vadd.f32 %v1146, %v1178
        %v1185 = vadd.f32 %v1147, %v1178
        %v1186 = vadd.f32 %v1148, %v1178
        %v1187 = vadd.f32 %v1149, %v1178
        %v1188 = vadd.f32 %v1150, %v1178
        %v1189 = vadd.f32 %v1151, %v1178
        %v1190 = vadd.f32 %v1152, %v1178
        %v1191 = vadd.f32 %v1153, %v1178
        %v1192 = vadd.f32 %v1154, %v1178
        %v1193 = vadd.f32 %v1155, %v1178
        %v1194 = vadd.f32 %v1156, %v1178
        %v1195 = vadd.f32 %v1157, %v1178
        %v1196 = vadd.f32 %v1158, %v1178
        %v1197 = vadd.f32 %v1159, %v1178
        %v1198 = vadd.f32 %v1160, %v1178
        %v1199 = vadd.f32 %v1161, %v1178
        %v1200 = vadd.f32 %v1162, %v1178
        %v1201 = vadd.f32 %v1163, %v1178
        %v1202 = vadd.f32 %v1164, %v1178
        %v1203 = vadd.f32 %v1165, %v1178
        %v1204 = vadd.f32 %v1166, %v1178
        %v1205 = vadd.f32 %v1167, %v1178
        %v1206 = vadd.f32 %v1168, %v1178
        %v1207 = vadd.f32 %v1169, %v1178
        %v1208 = vadd.f32 %v1170, %v1178
        %v1209 = vadd.f32 %v1171, %v1178
        %v1210 = vadd.f32 %v1172, %v1178
        %v1211 = vadd.f32 %v1173, %v1178
        %vm1212 = vcmp.gt.f32.partialorder %v1180, 0.0
        %vm1213 = vcmp.gt.f32.partialorder %v1181, 0.0
        %vm1214 = vcmp.gt.f32.partialorder %v1182, 0.0
        %vm1215 = vcmp.gt.f32.partialorder %v1183, 0.0
        %vm1216 = vcmp.gt.f32.partialorder %v1184, 0.0
        %vm1217 = vcmp.gt.f32.partialorder %v1185, 0.0
        %vm1218 = vcmp.gt.f32.partialorder %v1186, 0.0
        %vm1219 = vcmp.gt.f32.partialorder %v1187, 0.0
        %vm1220 = vcmp.gt.f32.partialorder %v1188, 0.0
        %vm1221 = vcmp.gt.f32.partialorder %v1189, 0.0
        %vm1222 = vcmp.gt.f32.partialorder %v1190, 0.0
        %vm1223 = vcmp.gt.f32.partialorder %v1191, 0.0
        %vm1224 = vcmp.gt.f32.partialorder %v1192, 0.0
        %vm1225 = vcmp.gt.f32.partialorder %v1193, 0.0
        %vm1226 = vcmp.gt.f32.partialorder %v1194, 0.0
        %vm1227 = vcmp.gt.f32.partialorder %v1195, 0.0
        %vm1228 = vcmp.gt.f32.partialorder %v1196, 0.0
        %vm1229 = vcmp.gt.f32.partialorder %v1197, 0.0
        %vm1230 = vcmp.gt.f32.partialorder %v1198, 0.0
        %vm1231 = vcmp.gt.f32.partialorder %v1199, 0.0
        %vm1232 = vcmp.gt.f32.partialorder %v1200, 0.0
        %vm1233 = vcmp.gt.f32.partialorder %v1201, 0.0
        %vm1234 = vcmp.gt.f32.partialorder %v1202, 0.0
        %vm1235 = vcmp.gt.f32.partialorder %v1203, 0.0
        %vm1236 = vcmp.gt.f32.partialorder %v1204, 0.0
        %vm1237 = vcmp.gt.f32.partialorder %v1205, 0.0
        %vm1238 = vcmp.gt.f32.partialorder %v1206, 0.0
        %vm1239 = vcmp.gt.f32.partialorder %v1207, 0.0
        %vm1240 = vcmp.gt.f32.partialorder %v1208, 0.0
        %vm1241 = vcmp.gt.f32.partialorder %v1209, 0.0
        %vm1242 = vcmp.gt.f32.partialorder %v1210, 0.0
        %vm1243 = vcmp.gt.f32.partialorder %v1211, 0.0
        %v1244 = vmul.f32 %v1180, 0.2
        %v1245 = vmul.f32 %v1181, 0.2
        %v1246 = vmul.f32 %v1182, 0.2
        %v1247 = vmul.f32 %v1183, 0.2
        %v1248 = vmul.f32 %v1184, 0.2
        %v1249 = vmul.f32 %v1185, 0.2
        %v1250 = vmul.f32 %v1186, 0.2
        %v1251 = vmul.f32 %v1187, 0.2
        %v1252 = vmul.f32 %v1188, 0.2
        %v1253 = vmul.f32 %v1189, 0.2
        %v1254 = vmul.f32 %v1190, 0.2
        %v1255 = vmul.f32 %v1191, 0.2
        %v1256 = vmul.f32 %v1192, 0.2
        %v1257 = vmul.f32 %v1193, 0.2
        %v1258 = vmul.f32 %v1194, 0.2
        %v1259 = vmul.f32 %v1195, 0.2
        %v1260 = vmul.f32 %v1196, 0.2
        %v1261 = vmul.f32 %v1197, 0.2
        %v1262 = vmul.f32 %v1198, 0.2
        %v1263 = vmul.f32 %v1199, 0.2
        %v1264 = vmul.f32 %v1200, 0.2
        %v1265 = vmul.f32 %v1201, 0.2
        %v1266 = vmul.f32 %v1202, 0.2
        %v1267 = vmul.f32 %v1203, 0.2
        %v1268 = vmul.f32 %v1204, 0.2
        %v1269 = vmul.f32 %v1205, 0.2
        %v1270 = vmul.f32 %v1206, 0.2
        %v1271 = vmul.f32 %v1207, 0.2
        %v1272 = vmul.f32 %v1208, 0.2
        %v1273 = vmul.f32 %v1209, 0.2
        %v1274 = vmul.f32 %v1210, 0.2
        %v1275 = vmul.f32 %v1211, 0.2
        %v1276 = vsel %vm1212, %v1180, %v1244
        %v1277 = vsel %vm1213, %v1181, %v1245
        %v1278 = vsel %vm1214, %v1182, %v1246
        %v1279 = vsel %vm1215, %v1183, %v1247
        %v1280 = vsel %vm1216, %v1184, %v1248
        %v1281 = vsel %vm1217, %v1185, %v1249
        %v1282 = vsel %vm1218, %v1186, %v1250
        %v1283 = vsel %vm1219, %v1187, %v1251
        %v1284 = vsel %vm1220, %v1188, %v1252
        %v1285 = vsel %vm1221, %v1189, %v1253
        %v1286 = vsel %vm1222, %v1190, %v1254
        %v1287 = vsel %vm1223, %v1191, %v1255
        %v1288 = vsel %vm1224, %v1192, %v1256
        %v1289 = vsel %vm1225, %v1193, %v1257
        %v1290 = vsel %vm1226, %v1194, %v1258
        %v1291 = vsel %vm1227, %v1195, %v1259
        %v1292 = vsel %vm1228, %v1196, %v1260
        %v1293 = vsel %vm1229, %v1197, %v1261
        %v1294 = vsel %vm1230, %v1198, %v1262
        %v1295 = vsel %vm1231, %v1199, %v1263
        %v1296 = vsel %vm1232, %v1200, %v1264
        %v1297 = vsel %vm1233, %v1201, %v1265
        %v1298 = vsel %vm1234, %v1202, %v1266
        %v1299 = vsel %vm1235, %v1203, %v1267
        %v1300 = vsel %vm1236, %v1204, %v1268
        %v1301 = vsel %vm1237, %v1205, %v1269
        %v1302 = vsel %vm1238, %v1206, %v1270
        %v1303 = vsel %vm1239, %v1207, %v1271
        %v1304 = vsel %vm1240, %v1208, %v1272
        %v1305 = vsel %vm1241, %v1209, %v1273
        %v1306 = vsel %vm1242, %v1210, %v1274
        %v1307 = vsel %vm1243, %v1211, %v1275
        %v1340 = vcombine.low %v1276, %v1277
        %v1341 = vcombine.low %v1278, %v1279
        %v1343 = vunpack.c.l.s4 1983009808
        %v1344 = vunpack.c.0.s8 %v1343
        %v1345 = vlaneseq
        %v1346 = vshrl.u32 %v1345, 7
        %v1347 = vsub.s32 %v1344, %v1346
        %v1348 = vrot.slane %v1340, %v1347
        %v1350 = vunpack.c.l.s4 1983009808
        %v1351 = vunpack.c.0.s8 %v1350
        %v1352 = vlaneseq
        %v1353 = vshrl.u32 %v1352, 7
        %v1354 = vsub.s32 %v1351, %v1353
        %v1355 = vrot.slane %v1341, %v1354
        %v1356 = vcombine.low %v1348, %v1355
        %v1357 = vcombine.low %v1280, %v1281
        %v1358 = vcombine.low %v1282, %v1283
        %v1360 = vunpack.c.l.s4 1983009808
        %v1361 = vunpack.c.0.s8 %v1360
        %v1362 = vlaneseq
        %v1363 = vshrl.u32 %v1362, 7
        %v1364 = vsub.s32 %v1361, %v1363
        %v1365 = vrot.slane %v1357, %v1364
        %v1367 = vunpack.c.l.s4 1983009808
        %v1368 = vunpack.c.0.s8 %v1367
        %v1369 = vlaneseq
        %v1370 = vshrl.u32 %v1369, 7
        %v1371 = vsub.s32 %v1368, %v1370
        %v1372 = vrot.slane %v1358, %v1371
        %v1373 = vcombine.low %v1365, %v1372
        %v1374 = vcombine.low %v1284, %v1285
        %v1375 = vcombine.low %v1286, %v1287
        %v1377 = vunpack.c.l.s4 1983009808
        %v1378 = vunpack.c.0.s8 %v1377
        %v1379 = vlaneseq
        %v1380 = vshrl.u32 %v1379, 7
        %v1381 = vsub.s32 %v1378, %v1380
        %v1382 = vrot.slane %v1374, %v1381
        %v1384 = vunpack.c.l.s4 1983009808
        %v1385 = vunpack.c.0.s8 %v1384
        %v1386 = vlaneseq
        %v1387 = vshrl.u32 %v1386, 7
        %v1388 = vsub.s32 %v1385, %v1387
        %v1389 = vrot.slane %v1375, %v1388
        %v1390 = vcombine.low %v1382, %v1389
        %v1391 = vcombine.low %v1288, %v1289
        %v1392 = vcombine.low %v1290, %v1291
        %v1394 = vunpack.c.l.s4 1983009808
        %v1395 = vunpack.c.0.s8 %v1394
        %v1396 = vlaneseq
        %v1397 = vshrl.u32 %v1396, 7
        %v1398 = vsub.s32 %v1395, %v1397
        %v1399 = vrot.slane %v1391, %v1398
        %v1401 = vunpack.c.l.s4 1983009808
        %v1402 = vunpack.c.0.s8 %v1401
        %v1403 = vlaneseq
        %v1404 = vshrl.u32 %v1403, 7
        %v1405 = vsub.s32 %v1402, %v1404
        %v1406 = vrot.slane %v1392, %v1405
        %v1407 = vcombine.low %v1399, %v1406
        %v1408 = vcombine.low %v1292, %v1293
        %v1409 = vcombine.low %v1294, %v1295
        %v1411 = vunpack.c.l.s4 1983009808
        %v1412 = vunpack.c.0.s8 %v1411
        %v1413 = vlaneseq
        %v1414 = vshrl.u32 %v1413, 7
        %v1415 = vsub.s32 %v1412, %v1414
        %v1416 = vrot.slane %v1408, %v1415
        %v1418 = vunpack.c.l.s4 1983009808
        %v1419 = vunpack.c.0.s8 %v1418
        %v1420 = vlaneseq
        %v1421 = vshrl.u32 %v1420, 7
        %v1422 = vsub.s32 %v1419, %v1421
        %v1423 = vrot.slane %v1409, %v1422
        %v1424 = vcombine.low %v1416, %v1423
        %v1425 = vcombine.low %v1296, %v1297
        %v1426 = vcombine.low %v1298, %v1299
        %v1428 = vunpack.c.l.s4 1983009808
        %v1429 = vunpack.c.0.s8 %v1428
        %v1430 = vlaneseq
        %v1431 = vshrl.u32 %v1430, 7
        %v1432 = vsub.s32 %v1429, %v1431
        %v1433 = vrot.slane %v1425, %v1432
        %v1435 = vunpack.c.l.s4 1983009808
        %v1436 = vunpack.c.0.s8 %v1435
        %v1437 = vlaneseq
        %v1438 = vshrl.u32 %v1437, 7
        %v1439 = vsub.s32 %v1436, %v1438
        %v1440 = vrot.slane %v1426, %v1439
        %v1441 = vcombine.low %v1433, %v1440
        %v1442 = vcombine.low %v1300, %v1301
        %v1443 = vcombine.low %v1302, %v1303
        %v1445 = vunpack.c.l.s4 1983009808
        %v1446 = vunpack.c.0.s8 %v1445
        %v1447 = vlaneseq
        %v1448 = vshrl.u32 %v1447, 7
        %v1449 = vsub.s32 %v1446, %v1448
        %v1450 = vrot.slane %v1442, %v1449
        %v1452 = vunpack.c.l.s4 1983009808
        %v1453 = vunpack.c.0.s8 %v1452
        %v1454 = vlaneseq
        %v1455 = vshrl.u32 %v1454, 7
        %v1456 = vsub.s32 %v1453, %v1455
        %v1457 = vrot.slane %v1443, %v1456
        %v1458 = vcombine.low %v1450, %v1457
        %v1459 = vcombine.low %v1304, %v1305
        %v1460 = vcombine.low %v1306, %v1307
        %v1462 = vunpack.c.l.s4 1983009808
        %v1463 = vunpack.c.0.s8 %v1462
        %v1464 = vlaneseq
        %v1465 = vshrl.u32 %v1464, 7
        %v1466 = vsub.s32 %v1463, %v1465
        %v1467 = vrot.slane %v1459, %v1466
        %v1469 = vunpack.c.l.s4 1983009808
        %v1470 = vunpack.c.0.s8 %v1469
        %v1471 = vlaneseq
        %v1472 = vshrl.u32 %v1471, 7
        %v1473 = vsub.s32 %v1470, %v1472
        %v1474 = vrot.slane %v1460, %v1473
        %v1475 = vcombine.low %v1467, %v1474
        %1484 = vst [vmem:[%s280] sm:$0xff] %v1356
        %1485 = vst [vmem:[%s280 + $0x8] sm:$0xff] %v1373
        %1486 = vst [vmem:[%s280 + $0x10] sm:$0xff] %v1390
        %1487 = vst [vmem:[%s280 + $0x18] sm:$0xff] %v1407
        %1488 = vst [vmem:[%s280 + $0x20] sm:$0xff] %v1424
        %1489 = vst [vmem:[%s280 + $0x28] sm:$0xff] %v1441
        %1490 = vst [vmem:[%s280 + $0x30] sm:$0xff] %v1458
        %1491 = vst [vmem:[%s280 + $0x38] sm:$0xff] %v1475
        %s1492 = smul.u32 32, %s15
        %p1493 = scmp.lt.s32.totalorder %s1492, 127
        %s1494 = scalar_select %p1493, %s1492, 127
        %s1495 = smul.addr %s1494, 2
        %s1496 = scalar_lea.vmem %s4, %s1495
        // Predicated region
        $region60: #{_lambda_.16} parent=54 // pred_check
          %p1497 = pneg %p122
        $region61: #{_lambda_.16} parent=54 // pred_check_branch
          %1499 = sbr.rel (%p1497) target = $region63
        $region62: #{_lambda_.16} parent=54 // pred_region
          %s1500 = smul.u32 32, %s15
        $region63: #{_lambda_.16} parent=54 // pred_fallthru
          _
      $region55: #{_lambda_.16} parent=5 // pred_fallthru
        _
      %p1501 = scmp.le.s32.totalorder 2, %s10
      // Predicated region
      $region64: #{_lambda_.16} parent=5 // pred_check
        %p1502 = pneg %p1501
      $region65: #{_lambda_.16} parent=5 // pred_check_branch
        %1504 = sbr.rel (%p1502) target = $region67
      $region66: #{_lambda_.16} parent=5 // pred_region
        %s1505 = ssub.s32 %s10, 2
        // Predicated region
        $region68: #{_lambda_.16} parent=66 // pred_check
          %p1506 = pneg %p128
        $region69: #{_lambda_.16} parent=66 // pred_check_branch
          %1508 = sbr.rel (%p1506) target = $region71
        $region70: #{_lambda_.16} parent=66 // pred_region
          %s1509 = smul.u32 32, %s16
          %p1510 = scmp.lt.s32.totalorder %s1509, 127
          %s1511 = scalar_select %p1510, %s1509, 127
          %s1512 = smul.addr %s1511, 2
          %s1513 = scalar_lea.vmem %s4, %s1512
        $region71: #{_lambda_.16} parent=66 // pred_fallthru
          _
      $region67: #{_lambda_.16} parent=5 // pred_fallthru
        _
    $region6: #{_lambda_.16} parent=1 // loop_footer
      %s14 = sadd.s32 1, %s10
    $region7: #{_lambda_.16} parent=1 // loop_footer_branch
      %9 = sbr.rel target = $region3
    $region8: #{_lambda_.16} parent=1 // loop_exit
      _

// kernel: _lambda_.17
$region0: #{_lambda_.17}
  #allocation0 [shape = 'u32[]', space=smem, size = 0x4, offset = 0x4, fixed_abs, tag = 'smem constant byte address 0x4 - core index']
  #allocation1 [shape = 'u32[144,128]{1,0:T(1,128)}', space=vmem, size = 0x12000, scoped, tag = 'internal scratch']
  %s0 = inlined_call_operand.vmem [shape: bf16[4,32], index: 0, kind: input, shape index: {}]
  %s1 = inlined_call_operand.vmem [shape: bf16[32,4096], index: 1, kind: input, shape index: {}]
  %s2 = inlined_call_operand.vmem [shape: f32[4,1], index: 2, kind: input, shape index: {}]
  %s3 = inlined_call_operand.vmem [shape: f32[4,1], index: 3, kind: input, shape index: {}]
  %s4 = inlined_call_operand.vmem [shape: f32[4,4096], index: 4, kind: output, shape index: {}]
  %s5 = sld [smem:[#allocation0]]
  $region72: #{_lambda_.17} parent=0
    _
  %s7 = ssub.s32 1, %s5
  %s8 = scalar_select 0, %s7, %s5
  $region1: #{_lambda_.17} parent=0
    #allocation2 [shape = 'u8[131072]{0}', space=vmem, size = 0x20000, scoped, tag = 'input window, operand 1']
    loop: start=0, step=1, limit=6
    $region2: #{_lambda_.17} parent=1 // loop_pre_header
      _
    $region3: #{_lambda_.17} parent=1 // loop_header
      %s10 = sphi 0, %s14
      %p11 = scmp.ge.s32.totalorder %s10, 6
      %s18 = sphi 0, %s18
      %s20 = sphi 0, %s18
      %s21 = sphi 0, %s20
      %s35 = sphi 0, %s21
      %s41 = sphi 0, %s43
      %s44 = sphi 0, %s41
      %s45 = sphi 0, %s44
      %s61 = sphi 0, %s45
      %s65 = sphi 0, %s65
      %s67 = sphi 0, %s65
      %s68 = sphi 0, %s67
      %s82 = sphi 0, %s68
      %s86 = sphi 0, %s86
      %s88 = sphi 0, %s86
      %s89 = sphi 0, %s88
      %s103 = sphi 0, %s89
      %s109 = sphi 0, %s111
      %s112 = sphi 0, %s109
      %s113 = sphi 0, %s112
      %s129 = sphi 0, %s113
    $region4: #{_lambda_.17} parent=1 // loop_header_branch
      %13 = sbr.rel (%p11) target = $region8
    $region5: #{_lambda_.17} parent=1 // loop_body
      %s15 = ssub.s32 %s10, 1
      %s16 = ssub.s32 %s10, 2
      %s17 = sadd.s32 %s10, 1
      %s19 = sadd.s32 %s18, 1
      %p22 = scmp.eq.s32.totalorder %s10, 3
      %p23 = scmp.ne.s32.totalorder %s18, %s20
      %p24 = scmp.eq.s32.totalorder %s10, 0
      %p25 = por %p23, %p24
      %p26 = scmp.ne.s32.totalorder %s18, %s20
      %p27 = scmp.eq.s32.totalorder %s15, 3
      %p28 = por %p26, %p27
      %p29 = scmp.ne.s32.totalorder %s20, %s21
      %p30 = scmp.eq.s32.totalorder %s15, 0
      %p31 = por %p29, %p30
      %p32 = scmp.ne.s32.totalorder %s20, %s21
      %p33 = scmp.eq.s32.totalorder %s16, 3
      %p34 = por %p32, %p33
      %p36 = scmp.ne.s32.totalorder %s21, %s35
      %p37 = scmp.eq.s32.totalorder %s16, 0
      %p38 = por %p36, %p37
      %s39 = ssub.s32 %s10, %s17
      %p40 = scmp.eq.s32.totalorder %s39, 0
      %s42 = sadd.s32 %s41, 1
      %s43 = scalar_select %p40, %s41, %s42
      %p46 = pneg %p40
      %p47 = scmp.eq.s32.totalorder %s10, 3
      %p48 = por %p46, %p47
      %p49 = scmp.ne.s32.totalorder %s41, %s44
      %p50 = scmp.eq.s32.totalorder %s10, 0
      %p51 = por %p49, %p50
      %p52 = scmp.ne.s32.totalorder %s41, %s44
      %p53 = scmp.eq.s32.totalorder %s15, 3
      %p54 = por %p52, %p53
      %p55 = scmp.ne.s32.totalorder %s44, %s45
      %p56 = scmp.eq.s32.totalorder %s15, 0
      %p57 = por %p55, %p56
      %p58 = scmp.ne.s32.totalorder %s44, %s45
      %p59 = scmp.eq.s32.totalorder %s16, 3
      %p60 = por %p58, %p59
      %p62 = scmp.ne.s32.totalorder %s45, %s61
      %p63 = scmp.eq.s32.totalorder %s16, 0
      %p64 = por %p62, %p63
      %s66 = sadd.s32 %s65, 1
      %p69 = scmp.eq.s32.totalorder %s10, 3
      %p70 = scmp.ne.s32.totalorder %s65, %s67
      %p71 = scmp.eq.s32.totalorder %s10, 0
      %p72 = por %p70, %p71
      %p73 = scmp.ne.s32.totalorder %s65, %s67
      %p74 = scmp.eq.s32.totalorder %s15, 3
      %p75 = por %p73, %p74
      %p76 = scmp.ne.s32.totalorder %s67, %s68
      %p77 = scmp.eq.s32.totalorder %s15, 0
      %p78 = por %p76, %p77
      %p79 = scmp.ne.s32.totalorder %s67, %s68
      %p80 = scmp.eq.s32.totalorder %s16, 3
      %p81 = por %p79, %p80
      %p83 = scmp.ne.s32.totalorder %s68, %s82
      %p84 = scmp.eq.s32.totalorder %s16, 0
      %p85 = por %p83, %p84
      %s87 = sadd.s32 %s86, 1
      %p90 = scmp.eq.s32.totalorder %s10, 3
      %p91 = scmp.ne.s32.totalorder %s86, %s88
      %p92 = scmp.eq.s32.totalorder %s10, 0
      %p93 = por %p91, %p92
      %p94 = scmp.ne.s32.totalorder %s86, %s88
      %p95 = scmp.eq.s32.totalorder %s15, 3
      %p96 = por %p94, %p95
      %p97 = scmp.ne.s32.totalorder %s88, %s89
      %p98 = scmp.eq.s32.totalorder %s15, 0
      %p99 = por %p97, %p98
      %p100 = scmp.ne.s32.totalorder %s88, %s89
      %p101 = scmp.eq.s32.totalorder %s16, 3
      %p102 = por %p100, %p101
      %p104 = scmp.ne.s32.totalorder %s89, %s103
      %p105 = scmp.eq.s32.totalorder %s16, 0
      %p106 = por %p104, %p105
      %s107 = ssub.s32 %s10, %s17
      %p108 = scmp.eq.s32.totalorder %s107, 0
      %s110 = sadd.s32 %s109, 1
      %s111 = scalar_select %p108, %s109, %s110
      %p114 = pneg %p108
      %p115 = scmp.eq.s32.totalorder %s10, 3
      %p116 = por %p114, %p115
      %p117 = scmp.ne.s32.totalorder %s109, %s112
      %p118 = scmp.eq.s32.totalorder %s10, 0
      %p119 = por %p117, %p118
      %p120 = scmp.ne.s32.totalorder %s109, %s112
      %p121 = scmp.eq.s32.totalorder %s15, 3
      %p122 = por %p120, %p121
      %p123 = scmp.ne.s32.totalorder %s112, %s113
      %p124 = scmp.eq.s32.totalorder %s15, 0
      %p125 = por %p123, %p124
      %p126 = scmp.ne.s32.totalorder %s112, %s113
      %p127 = scmp.eq.s32.totalorder %s16, 3
      %p128 = por %p126, %p127
      %p130 = scmp.ne.s32.totalorder %s113, %s129
      %p131 = scmp.eq.s32.totalorder %s16, 0
      %p132 = por %p130, %p131
      %p133 = scmp.le.s32.totalorder 1, %s10
      %p134 = scmp.lt.s32.totalorder %s10, 5
      %p135 = pnand %p133, %p134
      %p136 = pneg %p135
      // Predicated region
      $region9: #{_lambda_.17} parent=5 // pred_check
        _
      $region10: #{_lambda_.17} parent=5 // pred_check_branch
        %138 = sbr.rel (%p135) target = $region12
      $region11: #{_lambda_.17} parent=5 // pred_region
        %s139 = ssub.s32 %s10, 1
        // Predicated region
        $region13: #{_lambda_.17} parent=11 // pred_check
          %p140 = pneg %p31
        $region14: #{_lambda_.17} parent=11 // pred_check_branch
          %142 = sbr.rel (%p140) target = $region16
        $region15: #{_lambda_.17} parent=11 // pred_region
          _
        $region16: #{_lambda_.17} parent=11 // pred_fallthru
          _
        // Predicated region
        $region17: #{_lambda_.17} parent=11 // pred_check
          %p143 = pneg %p78
        $region18: #{_lambda_.17} parent=11 // pred_check_branch
          %145 = sbr.rel (%p143) target = $region20
        $region19: #{_lambda_.17} parent=11 // pred_region
          _
        $region20: #{_lambda_.17} parent=11 // pred_fallthru
          _
        // Predicated region
        $region21: #{_lambda_.17} parent=11 // pred_check
          %p146 = pneg %p99
        $region22: #{_lambda_.17} parent=11 // pred_check_branch
          %148 = sbr.rel (%p146) target = $region24
        $region23: #{_lambda_.17} parent=11 // pred_region
          _
        $region24: #{_lambda_.17} parent=11 // pred_fallthru
          _
      $region12: #{_lambda_.17} parent=5 // pred_fallthru
        _
      %p149 = scmp.lt.s32.totalorder %s10, 4
      // Predicated region
      $region25: #{_lambda_.17} parent=5 // pred_check
        %p150 = pneg %p149
      $region26: #{_lambda_.17} parent=5 // pred_check_branch
        %152 = sbr.rel (%p150) target = $region28
      $region27: #{_lambda_.17} parent=5 // pred_region
        // Predicated region
        $region29: #{_lambda_.17} parent=27 // pred_check
          %p153 = pneg %p51
        $region30: #{_lambda_.17} parent=27 // pred_check_branch
          %155 = sbr.rel (%p153) target = $region32
        $region31: #{_lambda_.17} parent=27 // pred_region
          %s156 = sand.u32 %s41, 1
          %s157 = sand.u32 %s41, 1
          %s158 = smul.addr %s157, 128
          %s159 = scalar_lea.vmem [#allocation2], %s158
          %s160 = smul.u32 8, %s10
          %s161 = smul.addr %s160, 4
          %s162 = scalar_lea.vmem %s1, %s161
          // Predicated region
          $region33: #{_lambda_.17} parent=31 // pred_check
            _
          $region34: #{_lambda_.17} parent=31 // pred_check_branch
            %164 = sbr.rel (0) target = $region36
          $region35: #{_lambda_.17} parent=31 // pred_region
            // Predicated region
            $region37: #{_lambda_.17} parent=35 // pred_check
              _
            $region38: #{_lambda_.17} parent=35 // pred_check_branch
              %166 = sbr.rel (0) target = $region40
            $region39: #{_lambda_.17} parent=35 // pred_region
              loop: start=0, step=1, limit=1
              $region41: #{_lambda_.17} parent=39 // loop_pre_header
                _
              $region42: #{_lambda_.17} parent=39 // loop_header
                %s168 = sphi 0, %s172
                %p169 = scmp.ge.s32.totalorder %s168, 1
                %s173 = sphi %s162, %s162
                %s174 = sphi %s159, %s159
              $region43: #{_lambda_.17} parent=39 // loop_header_branch
                %171 = sbr.rel (%p169) target = $region47
              $region44: #{_lambda_.17} parent=39 // loop_body
                %v175 = vld [vmem:[%s173] sm:$0xff]
                %176 = vst [vmem:[%s174] sm:$0xff] %v175
                %v177 = vld [vmem:[%s173 + $0x8] sm:$0xff]
                %178 = vst [vmem:[%s174 + $0x8] sm:$0xff] %v177
                %v179 = vld [vmem:[%s173 + $0x10] sm:$0xff]
                %180 = vst [vmem:[%s174 + $0x10] sm:$0xff] %v179
                %v181 = vld [vmem:[%s173 + $0x18] sm:$0xff]
                %182 = vst [vmem:[%s174 + $0x18] sm:$0xff] %v181
                %v183 = vld [vmem:[%s173 + $0x80] sm:$0xff]
                %184 = vst [vmem:[%s174 + $0x20] sm:$0xff] %v183
                %v185 = vld [vmem:[%s173 + $0x88] sm:$0xff]
                %186 = vst [vmem:[%s174 + $0x28] sm:$0xff] %v185
                %v187 = vld [vmem:[%s173 + $0x90] sm:$0xff]
                %188 = vst [vmem:[%s174 + $0x30] sm:$0xff] %v187
                %v189 = vld [vmem:[%s173 + $0x98] sm:$0xff]
                %190 = vst [vmem:[%s174 + $0x38] sm:$0xff] %v189
                %v191 = vld [vmem:[%s173 + $0x100] sm:$0xff]
                %192 = vst [vmem:[%s174 + $0x40] sm:$0xff] %v191
                %v193 = vld [vmem:[%s173 + $0x108] sm:$0xff]
                %194 = vst [vmem:[%s174 + $0x48] sm:$0xff] %v193
                %v195 = vld [vmem:[%s173 + $0x110] sm:$0xff]
                %196 = vst [vmem:[%s174 + $0x50] sm:$0xff] %v195
                %v197 = vld [vmem:[%s173 + $0x118] sm:$0xff]
                %198 = vst [vmem:[%s174 + $0x58] sm:$0xff] %v197
                %v199 = vld [vmem:[%s173 + $0x180] sm:$0xff]
                %200 = vst [vmem:[%s174 + $0x60] sm:$0xff] %v199
                %v201 = vld [vmem:[%s173 + $0x188] sm:$0xff]
                %202 = vst [vmem:[%s174 + $0x68] sm:$0xff] %v201
                %v203 = vld [vmem:[%s173 + $0x190] sm:$0xff]
                %204 = vst [vmem:[%s174 + $0x70] sm:$0xff] %v203
                %v205 = vld [vmem:[%s173 + $0x198] sm:$0xff]
                %206 = vst [vmem:[%s174 + $0x78] sm:$0xff] %v205
              $region45: #{_lambda_.17} parent=39 // loop_footer
                %s172 = sadd.s32 1, %s168
              $region46: #{_lambda_.17} parent=39 // loop_footer_branch
                %167 = sbr.rel target = $region42
              $region47: #{_lambda_.17} parent=39 // loop_exit
                _
            $region40: #{_lambda_.17} parent=35 // pred_fallthru
              _
            // Predicated region
            $region48: #{_lambda_.17} parent=35 // pred_check
              _
            $region49: #{_lambda_.17} parent=35 // pred_check_branch
              %208 = sbr.rel target = $region51
            $region50: #{_lambda_.17} parent=35 // pred_region
              _
            $region51: #{_lambda_.17} parent=35 // pred_fallthru
              _
          $region36: #{_lambda_.17} parent=31 // pred_fallthru
            _
          %209 = vnop
        $region32: #{_lambda_.17} parent=27 // pred_fallthru
          _
      $region28: #{_lambda_.17} parent=5 // pred_fallthru
        _
      %p210 = scmp.le.s32.totalorder 1, %s10
      %p211 = scmp.lt.s32.totalorder %s10, 5
      %p212 = pnand %p210, %p211
      %p213 = pneg %p212
      // Predicated region
      $region52: #{_lambda_.17} parent=5 // pred_check
        _
      $region53: #{_lambda_.17} parent=5 // pred_check_branch
        %215 = sbr.rel (%p212) target = $region55
      $region54: #{_lambda_.17} parent=5 // pred_region
        %s216 = ssub.s32 %s10, 1
        %s217 = sand.u32 %s44, 1
        %s218 = sand.u32 %s44, 1
        %s219 = smul.addr %s218, 128
        %s220 = scalar_lea.vmem [#allocation2], %s219
        // Predicated region
        $region56: #{_lambda_.17} parent=54 // pred_check
          %p221 = pneg %p57
        $region57: #{_lambda_.17} parent=54 // pred_check_branch
          %223 = sbr.rel (%p221) target = $region59
        $region58: #{_lambda_.17} parent=54 // pred_region
          _
        $region59: #{_lambda_.17} parent=54 // pred_fallthru
          _
        %p224 = pneg %p31
        %p225 = pneg %p28
        %s226 = sand.u32 %s44, 1
        %s227 = sand.u32 %s44, 1
        %s228 = smul.addr %s227, 128
        %s229 = scalar_lea.vmem [#allocation2], %s228
        %p230 = pneg %p57
        %p231 = pneg %p54
        %p232 = pneg %p78
        %p233 = pneg %p75
        %p234 = pneg %p99
        %p235 = pneg %p96
        %p236 = pneg %p125
        %p237 = pneg %p122
        %s238 = smul.u32 8, %s15
        %p239 = scmp.lt.s32.totalorder %s238, 31
        %s240 = scalar_select %p239, %s238, 31
        %s241 = smul.addr %s240, 4
        %s242 = scalar_lea.vmem %s4, %s241
        %s243 = smul.u32 8, %s15
        %s244 = smul.u32 8, %s15
        %p245 = scmp.lt.s32.totalorder %s244, 31
        %s246 = scalar_select %p245, %s244, 31
        %s247 = smul.addr %s246, 4
        %s248 = scalar_lea.vmem %s4, %s247
        %s249 = smul.u32 8, %s15
        %v251 = vld [vmem:[%s0] sm:$0x3]
        %v252 = vld [vmem:[%s220] sm:$0xff]
        %v253 = vld [vmem:[%s220 + $0x8] sm:$0xff]
        %v254 = vld [vmem:[%s220 + $0x10] sm:$0xff]
        %v255 = vld [vmem:[%s220 + $0x18] sm:$0xff]
        %v256 = vld [vmem:[%s220 + $0x20] sm:$0xff]
        %v257 = vld [vmem:[%s220 + $0x28] sm:$0xff]
        %v258 = vld [vmem:[%s220 + $0x30] sm:$0xff]
        %v259 = vld [vmem:[%s220 + $0x38] sm:$0xff]
        %v260 = vld [vmem:[%s220 + $0x40] sm:$0xff]
        %v261 = vld [vmem:[%s220 + $0x48] sm:$0xff]
        %v262 = vld [vmem:[%s220 + $0x50] sm:$0xff]
        %v263 = vld [vmem:[%s220 + $0x58] sm:$0xff]
        %v264 = vld [vmem:[%s220 + $0x60] sm:$0xff]
        %v265 = vld [vmem:[%s220 + $0x68] sm:$0xff]
        %v266 = vld [vmem:[%s220 + $0x70] sm:$0xff]
        %v267 = vld [vmem:[%s220 + $0x78] sm:$0xff]
        %v284 = vunpack.c.l.b16 %v252
        %v285 = vunpack.c.h.b16 %v252
        %v286 = vunpack.c.l.b16 %v253
        %v287 = vunpack.c.h.b16 %v253
        %v288 = vunpack.c.l.b16 %v254
        %v289 = vunpack.c.h.b16 %v254
        %v290 = vunpack.c.l.b16 %v255
        %v291 = vunpack.c.h.b16 %v255
        %v292 = vunpack.c.l.b16 %v256
        %v293 = vunpack.c.h.b16 %v256
        %v294 = vunpack.c.l.b16 %v257
        %v295 = vunpack.c.h.b16 %v257
        %v296 = vunpack.c.l.b16 %v258
        %v297 = vunpack.c.h.b16 %v258
        %v298 = vunpack.c.l.b16 %v259
        %v299 = vunpack.c.h.b16 %v259
        %v300 = vunpack.c.l.b16 %v260
        %v301 = vunpack.c.h.b16 %v260
        %v302 = vunpack.c.l.b16 %v261
        %v303 = vunpack.c.h.b16 %v261
        %v304 = vunpack.c.l.b16 %v262
        %v305 = vunpack.c.h.b16 %v262
        %v306 = vunpack.c.l.b16 %v263
        %v307 = vunpack.c.h.b16 %v263
        %v308 = vunpack.c.l.b16 %v264
        %v309 = vunpack.c.h.b16 %v264
        %v310 = vunpack.c.l.b16 %v265
        %v311 = vunpack.c.h.b16 %v265
        %v312 = vunpack.c.l.b16 %v266
        %v313 = vunpack.c.h.b16 %v266
        %v314 = vunpack.c.l.b16 %v267
        %v315 = vunpack.c.h.b16 %v267
        %v316 = vpack.c.b16 %v292, %v284
        %v317 = vpack.c.b16 %v293, %v285
        %v318 = vpack.c.b16 %v294, %v286
        %v319 = vpack.c.b16 %v295, %v287
        %v320 = vpack.c.b16 %v296, %v288
        %v321 = vpack.c.b16 %v297, %v289
        %v322 = vpack.c.b16 %v298, %v290
        %v323 = vpack.c.b16 %v299, %v291
        %v324 = vpack.c.b16 %v308, %v300
        %v325 = vpack.c.b16 %v309, %v301
        %v326 = vpack.c.b16 %v310, %v302
        %v327 = vpack.c.b16 %v311, %v303
        %v328 = vpack.c.b16 %v312, %v304
        %v329 = vpack.c.b16 %v313, %v305
        %v330 = vpack.c.b16 %v314, %v306
        %v331 = vpack.c.b16 %v315, %v307
        %vm348 = vcmask 261120
        %v350 = vsel %vm348, %v251, 0
        %352 = vmatprep.subr.bf16.mxu0 0
        %353 = vmatpush1.bf16.msra.mxu0 0
        %354 = vmatprep.subr.bf16.mxu0 0
        %355 = vmatpush1.bf16.msra.mxu0 0
        %356 = vmatprep.subr.bf16.mxu0 0
        %357 = vmatpush1.bf16.msra.mxu0 0
        %358 = vmatprep.subr.bf16.mxu0 0
        %359 = vmatpush1.bf16.msra.mxu0 0
        %360 = vmatprep.subr.bf16.mxu0 0
        %361 = vmatpush1.bf16.msra.mxu0 0
        %362 = vmatprep.subr.bf16.mxu0 0
        %363 = vmatpush1.bf16.msra.mxu0 0
        %364 = vmatprep.subr.bf16.mxu0 %v325
        %365 = vmatpush1.bf16.msra.mxu0 %v324
        %366 = vmatprep.subr.bf16.mxu0 %v317
        %367 = vmatpush1.bf16.msra.mxu0 %v316
        %368 = vmatprep.subr.bf16.mxu0 0
        %369 = vmatpush2.bf16.msra.mxu0 0
        %370 = vmatprep.subr.bf16.mxu0 0
        %371 = vmatpush2.bf16.msra.mxu0 0
        %372 = vmatprep.subr.bf16.mxu0 0
        %373 = vmatpush2.bf16.msra.mxu0 0
        %374 = vmatprep.subr.bf16.mxu0 0
        %375 = vmatpush2.bf16.msra.mxu0 0
        %376 = vmatprep.subr.bf16.mxu0 0
        %377 = vmatpush2.bf16.msra.mxu0 0
        %378 = vmatprep.subr.bf16.mxu0 0
        %379 = vmatpush2.bf16.msra.mxu0 0
        %380 = vmatprep.subr.bf16.mxu0 0
        %381 = vmatpush2.bf16.msra.mxu0 0
        %382 = vmatprep.subr.bf16.mxu0 0
        %383 = vmatpush2.bf16.msra.mxu0 0
        %384 = vmatprep.mubr.bf16.mxu0 0
        %385 = vmatmul.mubr.bf16.gmra.mxu0 %v350
        %v386 = vpop.f32.mrf.mxu0
        %v387 = vadd.f32 0.0, %v386
        %v388 = vpop.f32.mrf.mxu0
        %v389 = vadd.f32 0.0, %v388
        %v390 = vpop.f32.mrf.mxu0
        %v391 = vpop.f32.mrf.mxu0
        %392 = vdwg.mxu0
        %393 = vmatprep.subr.bf16.mxu0 0
        %394 = vmatpush1.bf16.msra.mxu0 0
        %395 = vmatprep.subr.bf16.mxu0 0
        %396 = vmatpush1.bf16.msra.mxu0 0
        %397 = vmatprep.subr.bf16.mxu0 0
        %398 = vmatpush1.bf16.msra.mxu0 0
        %399 = vmatprep.subr.bf16.mxu0 0
        %400 = vmatpush1.bf16.msra.mxu0 0
        %401 = vmatprep.subr.bf16.mxu0 0
        %402 = vmatpush1.bf16.msra.mxu0 0
        %403 = vmatprep.subr.bf16.mxu0 0
        %404 = vmatpush1.bf16.msra.mxu0 0
        %405 = vmatprep.subr.bf16.mxu0 %v327
        %406 = vmatpush1.bf16.msra.mxu0 %v326
        %407 = vmatprep.subr.bf16.mxu0 %v319
        %408 = vmatpush1.bf16.msra.mxu0 %v318
        %409 = vmatprep.subr.bf16.mxu0 0
        %410 = vmatpush2.bf16.msra.mxu0 0
        %411 = vmatprep.subr.bf16.mxu0 0
        %412 = vmatpush2.bf16.msra.mxu0 0
        %413 = vmatprep.subr.bf16.mxu0 0
        %414 = vmatpush2.bf16.msra.mxu0 0
        %415 = vmatprep.subr.bf16.mxu0 0
        %416 = vmatpush2.bf16.msra.mxu0 0
        %417 = vmatprep.subr.bf16.mxu0 0
        %418 = vmatpush2.bf16.msra.mxu0 0
        %419 = vmatprep.subr.bf16.mxu0 0
        %420 = vmatpush2.bf16.msra.mxu0 0
        %421 = vmatprep.subr.bf16.mxu0 0
        %422 = vmatpush2.bf16.msra.mxu0 0
        %423 = vmatprep.subr.bf16.mxu0 0
        %424 = vmatpush2.bf16.msra.mxu0 0
        %425 = vmatprep.mubr.bf16.mxu0 0
        %426 = vmatmul.mubr.bf16.gmra.mxu0 %v350
        %v427 = vpop.f32.mrf.mxu0
        %v428 = vadd.f32 0.0, %v427
        %v429 = vpop.f32.mrf.mxu0
        %v430 = vadd.f32 0.0, %v429
        %v431 = vpop.f32.mrf.mxu0
        %v432 = vpop.f32.mrf.mxu0
        %433 = vdwg.mxu0
        %434 = vmatprep.subr.bf16.mxu0 0
        %435 = vmatpush1.bf16.msra.mxu0 0
        %436 = vmatprep.subr.bf16.mxu0 0
        %437 = vmatpush1.bf16.msra.mxu0 0
        %438 = vmatprep.subr.bf16.mxu0 0
        %439 = vmatpush1.bf16.msra.mxu0 0
        %440 = vmatprep.subr.bf16.mxu0 0
        %441 = vmatpush1.bf16.msra.mxu0 0
        %442 = vmatprep.subr.bf16.mxu0 0
        %443 = vmatpush1.bf16.msra.mxu0 0
        %444 = vmatprep.subr.bf16.mxu0 0
        %445 = vmatpush1.bf16.msra.mxu0 0
        %446 = vmatprep.subr.bf16.mxu0 %v329
        %447 = vmatpush1.bf16.msra.mxu0 %v328
        %448 = vmatprep.subr.bf16.mxu0 %v321
        %449 = vmatpush1.bf16.msra.mxu0 %v320
        %450 = vmatprep.subr.bf16.mxu0 0
        %451 = vmatpush2.bf16.msra.mxu0 0
        %452 = vmatprep.subr.bf16.mxu0 0
        %453 = vmatpush2.bf16.msra.mxu0 0
        %454 = vmatprep.subr.bf16.mxu0 0
        %455 = vmatpush2.bf16.msra.mxu0 0
        %456 = vmatprep.subr.bf16.mxu0 0
        %457 = vmatpush2.bf16.msra.mxu0 0
        %458 = vmatprep.subr.bf16.mxu0 0
        %459 = vmatpush2.bf16.msra.mxu0 0
        %460 = vmatprep.subr.bf16.mxu0 0
        %461 = vmatpush2.bf16.msra.mxu0 0
        %462 = vmatprep.subr.bf16.mxu0 0
        %463 = vmatpush2.bf16.msra.mxu0 0
        %464 = vmatprep.subr.bf16.mxu0 0
        %465 = vmatpush2.bf16.msra.mxu0 0
        %466 = vmatprep.mubr.bf16.mxu0 0
        %467 = vmatmul.mubr.bf16.gmra.mxu0 %v350
        %v468 = vpop.f32.mrf.mxu0
        %v469 = vadd.f32 0.0, %v468
        %v470 = vpop.f32.mrf.mxu0
        %v471 = vadd.f32 0.0, %v470
        %v472 = vpop.f32.mrf.mxu0
        %v473 = vpop.f32.mrf.mxu0
        %474 = vdwg.mxu0
        %475 = vmatprep.subr.bf16.mxu0 0
        %476 = vmatpush1.bf16.msra.mxu0 0
        %477 = vmatprep.subr.bf16.mxu0 0
        %478 = vmatpush1.bf16.msra.mxu0 0
        %479 = vmatprep.subr.bf16.mxu0 0
        %480 = vmatpush1.bf16.msra.mxu0 0
        %481 = vmatprep.subr.bf16.mxu0 0
        %482 = vmatpush1.bf16.msra.mxu0 0
        %483 = vmatprep.subr.bf16.mxu0 0
        %484 = vmatpush1.bf16.msra.mxu0 0
        %485 = vmatprep.subr.bf16.mxu0 0
        %486 = vmatpush1.bf16.msra.mxu0 0
        %487 = vmatprep.subr.bf16.mxu0 %v331
        %488 = vmatpush1.bf16.msra.mxu0 %v330
        %489 = vmatprep.subr.bf16.mxu0 %v323
        %490 = vmatpush1.bf16.msra.mxu0 %v322
        %491 = vmatprep.subr.bf16.mxu0 0
        %492 = vmatpush2.bf16.msra.mxu0 0
        %493 = vmatprep.subr.bf16.mxu0 0
        %494 = vmatpush2.bf16.msra.mxu0 0
        %495 = vmatprep.subr.bf16.mxu0 0
        %496 = vmatpush2.bf16.msra.mxu0 0
        %497 = vmatprep.subr.bf16.mxu0 0
        %498 = vmatpush2.bf16.msra.mxu0 0
        %499 = vmatprep.subr.bf16.mxu0 0
        %500 = vmatpush2.bf16.msra.mxu0 0
        %501 = vmatprep.subr.bf16.mxu0 0
        %502 = vmatpush2.bf16.msra.mxu0 0
        %503 = vmatprep.subr.bf16.mxu0 0
        %504 = vmatpush2.bf16.msra.mxu0 0
        %505 = vmatprep.subr.bf16.mxu0 0
        %506 = vmatpush2.bf16.msra.mxu0 0
        %507 = vmatprep.mubr.bf16.mxu0 0
        %508 = vmatmul.mubr.bf16.gmra.mxu0 %v350
        %v509 = vpop.f32.mrf.mxu0
        %v510 = vadd.f32 0.0, %v509
        %v511 = vpop.f32.mrf.mxu0
        %v512 = vadd.f32 0.0, %v511
        %v513 = vpop.f32.mrf.mxu0
        %v514 = vpop.f32.mrf.mxu0
        %515 = vdwg.mxu0
        %v516 = vld [vmem:[%s2] sm:$0xf]
        %518 = vset.pattern.permute.xlu0 0
        %519 = vperm.xlu0 %518, %v516
        %v520 = vpop.permute.xlu0 %519
        %v522 = vmul.f32 %v387, %v520
        %v523 = vmul.f32 %v389, %v520
        %v524 = vmul.f32 %v428, %v520
        %v525 = vmul.f32 %v430, %v520
        %v526 = vmul.f32 %v469, %v520
        %v527 = vmul.f32 %v471, %v520
        %v528 = vmul.f32 %v510, %v520
        %v529 = vmul.f32 %v512, %v520
        %v530 = vld [vmem:[%s3] sm:$0xf]
        %532 = vset.pattern.permute.xlu0 0
        %533 = vperm.xlu0 %532, %v530
        %v534 = vpop.permute.xlu0 %533
        %v536 = vadd.f32 %v522, %v534
        %v537 = vadd.f32 %v523, %v534
        %v538 = vadd.f32 %v524, %v534
        %v539 = vadd.f32 %v525, %v534
        %v540 = vadd.f32 %v526, %v534
        %v541 = vadd.f32 %v527, %v534
        %v542 = vadd.f32 %v528, %v534
        %v543 = vadd.f32 %v529, %v534
        %vm544 = vcmp.gt.f32.partialorder %v536, 0.0
        %vm545 = vcmp.gt.f32.partialorder %v537, 0.0
        %vm546 = vcmp.gt.f32.partialorder %v538, 0.0
        %vm547 = vcmp.gt.f32.partialorder %v539, 0.0
        %vm548 = vcmp.gt.f32.partialorder %v540, 0.0
        %vm549 = vcmp.gt.f32.partialorder %v541, 0.0
        %vm550 = vcmp.gt.f32.partialorder %v542, 0.0
        %vm551 = vcmp.gt.f32.partialorder %v543, 0.0
        %v552 = vmul.f32 %v536, 0.2
        %v553 = vmul.f32 %v537, 0.2
        %v554 = vmul.f32 %v538, 0.2
        %v555 = vmul.f32 %v539, 0.2
        %v556 = vmul.f32 %v540, 0.2
        %v557 = vmul.f32 %v541, 0.2
        %v558 = vmul.f32 %v542, 0.2
        %v559 = vmul.f32 %v543, 0.2
        %v560 = vsel %vm544, %v536, %v552
        %v561 = vsel %vm545, %v537, %v553
        %v562 = vsel %vm546, %v538, %v554
        %v563 = vsel %vm547, %v539, %v555
        %v564 = vsel %vm548, %v540, %v556
        %v565 = vsel %vm549, %v541, %v557
        %v566 = vsel %vm550, %v542, %v558
        %v567 = vsel %vm551, %v543, %v559
        %v576 = vcombine.low %v560, %v561
        %v577 = vcombine.low %v562, %v563
        %v578 = vcombine.low %v564, %v565
        %v579 = vcombine.low %v566, %v567
        %584 = vst [vmem:[%s248] sm:$0xff] %v576
        %585 = vst [vmem:[%s248 + $0x8] sm:$0xff] %v577
        %586 = vst [vmem:[%s248 + $0x10] sm:$0xff] %v578
        %587 = vst [vmem:[%s248 + $0x18] sm:$0xff] %v579
        %s588 = smul.u32 8, %s15
        %p589 = scmp.lt.s32.totalorder %s588, 31
        %s590 = scalar_select %p589, %s588, 31
        %s591 = smul.addr %s590, 4
        %s592 = scalar_lea.vmem %s4, %s591
        // Predicated region
        $region60: #{_lambda_.17} parent=54 // pred_check
          %p593 = pneg %p122
        $region61: #{_lambda_.17} parent=54 // pred_check_branch
          %595 = sbr.rel (%p593) target = $region63
        $region62: #{_lambda_.17} parent=54 // pred_region
          %s596 = smul.u32 8, %s15
        $region63: #{_lambda_.17} parent=54 // pred_fallthru
          _
      $region55: #{_lambda_.17} parent=5 // pred_fallthru
        _
      %p597 = scmp.le.s32.totalorder 2, %s10
      // Predicated region
      $region64: #{_lambda_.17} parent=5 // pred_check
        %p598 = pneg %p597
      $region65: #{_lambda_.17} parent=5 // pred_check_branch
        %600 = sbr.rel (%p598) target = $region67
      $region66: #{_lambda_.17} parent=5 // pred_region
        %s601 = ssub.s32 %s10, 2
        // Predicated region
        $region68: #{_lambda_.17} parent=66 // pred_check
          %p602 = pneg %p128
        $region69: #{_lambda_.17} parent=66 // pred_check_branch
          %604 = sbr.rel (%p602) target = $region71
        $region70: #{_lambda_.17} parent=66 // pred_region
          %s605 = smul.u32 8, %s16
          %p606 = scmp.lt.s32.totalorder %s605, 31
          %s607 = scalar_select %p606, %s605, 31
          %s608 = smul.addr %s607, 4
          %s609 = scalar_lea.vmem %s4, %s608
        $region71: #{_lambda_.17} parent=66 // pred_fallthru
          _
      $region67: #{_lambda_.17} parent=5 // pred_fallthru
        _
    $region6: #{_lambda_.17} parent=1 // loop_footer
      %s14 = sadd.s32 1, %s10
    $region7: #{_lambda_.17} parent=1 // loop_footer_branch
      %9 = sbr.rel target = $region3
    $region8: #{_lambda_.17} parent=1 // loop_exit
      _

// kernel: _lambda_.18
$region0: #{_lambda_.18}
  #allocation0 [shape = 'u32[]', space=smem, size = 0x4, offset = 0x4, fixed_abs, tag = 'smem constant byte address 0x4 - core index']
  #allocation1 [shape = 'u32[144,128]{1,0:T(1,128)}', space=vmem, size = 0x12000, scoped, tag = 'internal scratch']
  %s0 = inlined_call_operand.vmem [shape: bf16[8,64], index: 0, kind: input, shape index: {}]
  %s1 = inlined_call_operand.vmem [shape: bf16[64,1024], index: 1, kind: input, shape index: {}]
  %s2 = inlined_call_operand.vmem [shape: f32[8,1], index: 2, kind: input, shape index: {}]
  %s3 = inlined_call_operand.vmem [shape: f32[8,1], index: 3, kind: input, shape index: {}]
  %s4 = inlined_call_operand.vmem [shape: f32[8,1024], index: 4, kind: output, shape index: {}]
  %s5 = sld [smem:[#allocation0]]
  $region87: #{_lambda_.18} parent=0
    _
  %s7 = ssub.s32 1, %s5
  %s8 = scalar_select 0, %s7, %s5
  $region1: #{_lambda_.18} parent=0
    #allocation2 [shape = 'u8[65536]{0}', space=vmem, size = 0x10000, scoped, tag = 'input window, operand 1']
    loop: start=0, step=1, limit=6
    $region2: #{_lambda_.18} parent=1 // loop_pre_header
      _
    $region3: #{_lambda_.18} parent=1 // loop_header
      %s10 = sphi 0, %s14
      %p11 = scmp.ge.s32.totalorder %s10, 6
      %s18 = sphi 0, %s18
      %s20 = sphi 0, %s18
      %s21 = sphi 0, %s20
      %s35 = sphi 0, %s21
      %s41 = sphi 0, %s43
      %s44 = sphi 0, %s41
      %s45 = sphi 0, %s44
      %s61 = sphi 0, %s45
      %s65 = sphi 0, %s65
      %s67 = sphi 0, %s65
      %s68 = sphi 0, %s67
      %s82 = sphi 0, %s68
      %s86 = sphi 0, %s86
      %s88 = sphi 0, %s86
      %s89 = sphi 0, %s88
      %s103 = sphi 0, %s89
      %s109 = sphi 0, %s111
      %s112 = sphi 0, %s109
      %s113 = sphi 0, %s112
      %s129 = sphi 0, %s113
    $region4: #{_lambda_.18} parent=1 // loop_header_branch
      %13 = sbr.rel (%p11) target = $region8
    $region5: #{_lambda_.18} parent=1 // loop_body
      %s15 = ssub.s32 %s10, 1
      %s16 = ssub.s32 %s10, 2
      %s17 = sadd.s32 %s10, 1
      %s19 = sadd.s32 %s18, 1
      %p22 = scmp.eq.s32.totalorder %s10, 3
      %p23 = scmp.ne.s32.totalorder %s18, %s20
      %p24 = scmp.eq.s32.totalorder %s10, 0
      %p25 = por %p23, %p24
      %p26 = scmp.ne.s32.totalorder %s18, %s20
      %p27 = scmp.eq.s32.totalorder %s15, 3
      %p28 = por %p26, %p27
      %p29 = scmp.ne.s32.totalorder %s20, %s21
      %p30 = scmp.eq.s32.totalorder %s15, 0
      %p31 = por %p29, %p30
      %p32 = scmp.ne.s32.totalorder %s20, %s21
      %p33 = scmp.eq.s32.totalorder %s16, 3
      %p34 = por %p32, %p33
      %p36 = scmp.ne.s32.totalorder %s21, %s35
      %p37 = scmp.eq.s32.totalorder %s16, 0
      %p38 = por %p36, %p37
      %s39 = ssub.s32 %s10, %s17
      %p40 = scmp.eq.s32.totalorder %s39, 0
      %s42 = sadd.s32 %s41, 1
      %s43 = scalar_select %p40, %s41, %s42
      %p46 = pneg %p40
      %p47 = scmp.eq.s32.totalorder %s10, 3
      %p48 = por %p46, %p47
      %p49 = scmp.ne.s32.totalorder %s41, %s44
      %p50 = scmp.eq.s32.totalorder %s10, 0
      %p51 = por %p49, %p50
      %p52 = scmp.ne.s32.totalorder %s41, %s44
      %p53 = scmp.eq.s32.totalorder %s15, 3
      %p54 = por %p52, %p53
      %p55 = scmp.ne.s32.totalorder %s44, %s45
      %p56 = scmp.eq.s32.totalorder %s15, 0
      %p57 = por %p55, %p56
      %p58 = scmp.ne.s32.totalorder %s44, %s45
      %p59 = scmp.eq.s32.totalorder %s16, 3
      %p60 = por %p58, %p59
      %p62 = scmp.ne.s32.totalorder %s45, %s61
      %p63 = scmp.eq.s32.totalorder %s16, 0
      %p64 = por %p62, %p63
      %s66 = sadd.s32 %s65, 1
      %p69 = scmp.eq.s32.totalorder %s10, 3
      %p70 = scmp.ne.s32.totalorder %s65, %s67
      %p71 = scmp.eq.s32.totalorder %s10, 0
      %p72 = por %p70, %p71
      %p73 = scmp.ne.s32.totalorder %s65, %s67
      %p74 = scmp.eq.s32.totalorder %s15, 3
      %p75 = por %p73, %p74
      %p76 = scmp.ne.s32.totalorder %s67, %s68
      %p77 = scmp.eq.s32.totalorder %s15, 0
      %p78 = por %p76, %p77
      %p79 = scmp.ne.s32.totalorder %s67, %s68
      %p80 = scmp.eq.s32.totalorder %s16, 3
      %p81 = por %p79, %p80
      %p83 = scmp.ne.s32.totalorder %s68, %s82
      %p84 = scmp.eq.s32.totalorder %s16, 0
      %p85 = por %p83, %p84
      %s87 = sadd.s32 %s86, 1
      %p90 = scmp.eq.s32.totalorder %s10, 3
      %p91 = scmp.ne.s32.totalorder %s86, %s88
      %p92 = scmp.eq.s32.totalorder %s10, 0
      %p93 = por %p91, %p92
      %p94 = scmp.ne.s32.totalorder %s86, %s88
      %p95 = scmp.eq.s32.totalorder %s15, 3
      %p96 = por %p94, %p95
      %p97 = scmp.ne.s32.totalorder %s88, %s89
      %p98 = scmp.eq.s32.totalorder %s15, 0
      %p99 = por %p97, %p98
      %p100 = scmp.ne.s32.totalorder %s88, %s89
      %p101 = scmp.eq.s32.totalorder %s16, 3
      %p102 = por %p100, %p101
      %p104 = scmp.ne.s32.totalorder %s89, %s103
      %p105 = scmp.eq.s32.totalorder %s16, 0
      %p106 = por %p104, %p105
      %s107 = ssub.s32 %s10, %s17
      %p108 = scmp.eq.s32.totalorder %s107, 0
      %s110 = sadd.s32 %s109, 1
      %s111 = scalar_select %p108, %s109, %s110
      %p114 = pneg %p108
      %p115 = scmp.eq.s32.totalorder %s10, 3
      %p116 = por %p114, %p115
      %p117 = scmp.ne.s32.totalorder %s109, %s112
      %p118 = scmp.eq.s32.totalorder %s10, 0
      %p119 = por %p117, %p118
      %p120 = scmp.ne.s32.totalorder %s109, %s112
      %p121 = scmp.eq.s32.totalorder %s15, 3
      %p122 = por %p120, %p121
      %p123 = scmp.ne.s32.totalorder %s112, %s113
      %p124 = scmp.eq.s32.totalorder %s15, 0
      %p125 = por %p123, %p124
      %p126 = scmp.ne.s32.totalorder %s112, %s113
      %p127 = scmp.eq.s32.totalorder %s16, 3
      %p128 = por %p126, %p127
      %p130 = scmp.ne.s32.totalorder %s113, %s129
      %p131 = scmp.eq.s32.totalorder %s16, 0
      %p132 = por %p130, %p131
      %p133 = scmp.le.s32.totalorder 1, %s10
      %p134 = scmp.lt.s32.totalorder %s10, 5
      %p135 = pnand %p133, %p134
      %p136 = pneg %p135
      // Predicated region
      $region9: #{_lambda_.18} parent=5 // pred_check
        _
      $region10: #{_lambda_.18} parent=5 // pred_check_branch
        %138 = sbr.rel (%p135) target = $region12
      $region11: #{_lambda_.18} parent=5 // pred_region
        %s139 = ssub.s32 %s10, 1
        // Predicated region
        $region13: #{_lambda_.18} parent=11 // pred_check
          %p140 = pneg %p31
        $region14: #{_lambda_.18} parent=11 // pred_check_branch
          %142 = sbr.rel (%p140) target = $region16
        $region15: #{_lambda_.18} parent=11 // pred_region
          _
        $region16: #{_lambda_.18} parent=11 // pred_fallthru
          _
        // Predicated region
        $region17: #{_lambda_.18} parent=11 // pred_check
          %p143 = pneg %p78
        $region18: #{_lambda_.18} parent=11 // pred_check_branch
          %145 = sbr.rel (%p143) target = $region20
        $region19: #{_lambda_.18} parent=11 // pred_region
          _
        $region20: #{_lambda_.18} parent=11 // pred_fallthru
          _
        // Predicated region
        $region21: #{_lambda_.18} parent=11 // pred_check
          %p146 = pneg %p99
        $region22: #{_lambda_.18} parent=11 // pred_check_branch
          %148 = sbr.rel (%p146) target = $region24
        $region23: #{_lambda_.18} parent=11 // pred_region
          _
        $region24: #{_lambda_.18} parent=11 // pred_fallthru
          _
      $region12: #{_lambda_.18} parent=5 // pred_fallthru
        _
      %p149 = scmp.lt.s32.totalorder %s10, 4
      // Predicated region
      $region25: #{_lambda_.18} parent=5 // pred_check
        %p150 = pneg %p149
      $region26: #{_lambda_.18} parent=5 // pred_check_branch
        %152 = sbr.rel (%p150) target = $region28
      $region27: #{_lambda_.18} parent=5 // pred_region
        // Predicated region
        $region29: #{_lambda_.18} parent=27 // pred_check
          %p153 = pneg %p51
        $region30: #{_lambda_.18} parent=27 // pred_check_branch
          %155 = sbr.rel (%p153) target = $region32
        $region31: #{_lambda_.18} parent=27 // pred_region
          %s156 = sand.u32 %s41, 1
          %s157 = sand.u32 %s41, 1
          %s158 = smul.addr %s157, 64
          %s159 = scalar_lea.vmem [#allocation2], %s158
          %s160 = smul.u32 2, %s10
          %s161 = smul.addr %s160, 4
          %s162 = scalar_lea.vmem %s1, %s161
          // Predicated region
          $region33: #{_lambda_.18} parent=31 // pred_check
            _
          $region34: #{_lambda_.18} parent=31 // pred_check_branch
            %164 = sbr.rel (0) target = $region36
          $region35: #{_lambda_.18} parent=31 // pred_region
            // Predicated region
            $region37: #{_lambda_.18} parent=35 // pred_check
              _
            $region38: #{_lambda_.18} parent=35 // pred_check_branch
              %166 = sbr.rel (0) target = $region40
            $region39: #{_lambda_.18} parent=35 // pred_region
              // Predicated region
              $region52: #{_lambda_.18} parent=39 // pred_check
                _
              $region53: #{_lambda_.18} parent=39 // pred_check_branch
                %196 = sbr.rel (0) target = $region55
              $region54: #{_lambda_.18} parent=39 // pred_region
                loop: start=0, step=1, limit=1
                $region56: #{_lambda_.18} parent=54 // loop_pre_header
                  _
                $region57: #{_lambda_.18} parent=54 // loop_header
                  %s198 = sphi 0, %s202
                  %p199 = scmp.ge.s32.totalorder %s198, 1
                  %s203 = sphi %s162, %s162
                  %s204 = sphi %s159, %s159
                $region58: #{_lambda_.18} parent=54 // loop_header_branch
                  %201 = sbr.rel (%p199) target = $region62
                $region59: #{_lambda_.18} parent=54 // loop_body
                  %v205 = vld [vmem:[%s203] sm:$0xff]
                  %206 = vst [vmem:[%s204] sm:$0xff] %v205
                  %v207 = vld [vmem:[%s203 + $0x20] sm:$0xff]
                  %208 = vst [vmem:[%s204 + $0x8] sm:$0xff] %v207
                  %v209 = vld [vmem:[%s203 + $0x40] sm:$0xff]
                  %210 = vst [vmem:[%s204 + $0x10] sm:$0xff] %v209
                  %v211 = vld [vmem:[%s203 + $0x60] sm:$0xff]
                  %212 = vst [vmem:[%s204 + $0x18] sm:$0xff] %v211
                  %v213 = vld [vmem:[%s203 + $0x80] sm:$0xff]
                  %214 = vst [vmem:[%s204 + $0x20] sm:$0xff] %v213
                  %v215 = vld [vmem:[%s203 + $0xa0] sm:$0xff]
                  %216 = vst [vmem:[%s204 + $0x28] sm:$0xff] %v215
                  %v217 = vld [vmem:[%s203 + $0xc0] sm:$0xff]
                  %218 = vst [vmem:[%s204 + $0x30] sm:$0xff] %v217
                  %v219 = vld [vmem:[%s203 + $0xe0] sm:$0xff]
                  %220 = vst [vmem:[%s204 + $0x38] sm:$0xff] %v219
                $region60: #{_lambda_.18} parent=54 // loop_footer
                  %s202 = sadd.s32 1, %s198
                $region61: #{_lambda_.18} parent=54 // loop_footer_branch
                  %197 = sbr.rel target = $region57
                $region62: #{_lambda_.18} parent=54 // loop_exit
                  _
              $region55: #{_lambda_.18} parent=39 // pred_fallthru
                _
              // Predicated region
              $region63: #{_lambda_.18} parent=39 // pred_check
                _
              $region64: #{_lambda_.18} parent=39 // pred_check_branch
                %222 = sbr.rel target = $region66
              $region65: #{_lambda_.18} parent=39 // pred_region
                _
              $region66: #{_lambda_.18} parent=39 // pred_fallthru
                _
            $region40: #{_lambda_.18} parent=35 // pred_fallthru
              _
            // Predicated region
            $region41: #{_lambda_.18} parent=35 // pred_check
              _
            $region42: #{_lambda_.18} parent=35 // pred_check_branch
              %168 = sbr.rel target = $region44
            $region43: #{_lambda_.18} parent=35 // pred_region
              %s170 = ssub.s32 256, 1
              loop: start=0, step=1, limit=1
              $region45: #{_lambda_.18} parent=43 // loop_pre_header
                _
              $region46: #{_lambda_.18} parent=43 // loop_header
                %s172 = sphi 0, %s176
                %p173 = scmp.ge.s32.totalorder %s172, 1
                %s177 = sphi %s162, %s162
                %s178 = sphi %s159, %s159
              $region47: #{_lambda_.18} parent=43 // loop_header_branch
                %175 = sbr.rel (%p173) target = $region51
              $region48: #{_lambda_.18} parent=43 // loop_body
                %v179 = vld [vmem:[%s177] sm:%s170]
                %180 = vst [vmem:[%s178] sm:%s170] %v179
                %v181 = vld [vmem:[%s177 + $0x20] sm:%s170]
                %182 = vst [vmem:[%s178 + $0x8] sm:%s170] %v181
                %v183 = vld [vmem:[%s177 + $0x40] sm:%s170]
                %184 = vst [vmem:[%s178 + $0x10] sm:%s170] %v183
                %v185 = vld [vmem:[%s177 + $0x60] sm:%s170]
                %186 = vst [vmem:[%s178 + $0x18] sm:%s170] %v185
                %v187 = vld [vmem:[%s177 + $0x80] sm:%s170]
                %188 = vst [vmem:[%s178 + $0x20] sm:%s170] %v187
                %v189 = vld [vmem:[%s177 + $0xa0] sm:%s170]
                %190 = vst [vmem:[%s178 + $0x28] sm:%s170] %v189
                %v191 = vld [vmem:[%s177 + $0xc0] sm:%s170]
                %192 = vst [vmem:[%s178 + $0x30] sm:%s170] %v191
                %v193 = vld [vmem:[%s177 + $0xe0] sm:%s170]
                %194 = vst [vmem:[%s178 + $0x38] sm:%s170] %v193
              $region49: #{_lambda_.18} parent=43 // loop_footer
                %s176 = sadd.s32 1, %s172
              $region50: #{_lambda_.18} parent=43 // loop_footer_branch
                %171 = sbr.rel target = $region46
              $region51: #{_lambda_.18} parent=43 // loop_exit
                _
            $region44: #{_lambda_.18} parent=35 // pred_fallthru
              _
          $region36: #{_lambda_.18} parent=31 // pred_fallthru
            _
          %223 = vnop
        $region32: #{_lambda_.18} parent=27 // pred_fallthru
          _
      $region28: #{_lambda_.18} parent=5 // pred_fallthru
        _
      %p224 = scmp.le.s32.totalorder 1, %s10
      %p225 = scmp.lt.s32.totalorder %s10, 5
      %p226 = pnand %p224, %p225
      %p227 = pneg %p226
      // Predicated region
      $region67: #{_lambda_.18} parent=5 // pred_check
        _
      $region68: #{_lambda_.18} parent=5 // pred_check_branch
        %229 = sbr.rel (%p226) target = $region70
      $region69: #{_lambda_.18} parent=5 // pred_region
        %s230 = ssub.s32 %s10, 1
        %s231 = sand.u32 %s44, 1
        %s232 = sand.u32 %s44, 1
        %s233 = smul.addr %s232, 64
        %s234 = scalar_lea.vmem [#allocation2], %s233
        // Predicated region
        $region71: #{_lambda_.18} parent=69 // pred_check
          %p235 = pneg %p57
        $region72: #{_lambda_.18} parent=69 // pred_check_branch
          %237 = sbr.rel (%p235) target = $region74
        $region73: #{_lambda_.18} parent=69 // pred_region
          _
        $region74: #{_lambda_.18} parent=69 // pred_fallthru
          _
        %p238 = pneg %p31
        %p239 = pneg %p28
        %s240 = sand.u32 %s44, 1
        %s241 = sand.u32 %s44, 1
        %s242 = smul.addr %s241, 64
        %s243 = scalar_lea.vmem [#allocation2], %s242
        %p244 = pneg %p57
        %p245 = pneg %p54
        %p246 = pneg %p78
        %p247 = pneg %p75
        %p248 = pneg %p99
        %p249 = pneg %p96
        %p250 = pneg %p125
        %p251 = pneg %p122
        %s252 = smul.u32 2, %s15
        %p253 = scmp.lt.s32.totalorder %s252, 7
        %s254 = scalar_select %p253, %s252, 7
        %s255 = smul.addr %s254, 8
        %s256 = scalar_lea.vmem %s4, %s255
        %s257 = smul.u32 2, %s15
        %s258 = smul.u32 2, %s15
        %p259 = scmp.lt.s32.totalorder %s258, 7
        %s260 = scalar_select %p259, %s258, 7
        %s261 = smul.addr %s260, 8
        %s262 = scalar_lea.vmem %s4, %s261
        %s263 = smul.u32 2, %s15
        %v265 = vld [vmem:[%s0] sm:$0xf]
        %v266 = vld [vmem:[%s234] sm:$0xff]
        %v267 = vld [vmem:[%s234 + $0x8] sm:$0xff]
        %v268 = vld [vmem:[%s234 + $0x10] sm:$0xff]
        %v269 = vld [vmem:[%s234 + $0x18] sm:$0xff]
        %v270 = vld [vmem:[%s234 + $0x20] sm:$0xff]
        %v271 = vld [vmem:[%s234 + $0x28] sm:$0xff]
        %v272 = vld [vmem:[%s234 + $0x30] sm:$0xff]
        %v273 = vld [vmem:[%s234 + $0x38] sm:$0xff]
        %v282 = vunpack.c.l.b16 %v266
        %v283 = vunpack.c.h.b16 %v266
        %v284 = vunpack.c.l.b16 %v267
        %v285 = vunpack.c.h.b16 %v267
        %v286 = vunpack.c.l.b16 %v268
        %v287 = vunpack.c.h.b16 %v268
        %v288 = vunpack.c.l.b16 %v269
        %v289 = vunpack.c.h.b16 %v269
        %v290 = vunpack.c.l.b16 %v270
        %v291 = vunpack.c.h.b16 %v270
        %v292 = vunpack.c.l.b16 %v271
        %v293 = vunpack.c.h.b16 %v271
        %v294 = vunpack.c.l.b16 %v272
        %v295 = vunpack.c.h.b16 %v272
        %v296 = vunpack.c.l.b16 %v273
        %v297 = vunpack.c.h.b16 %v273
        %v298 = vpack.c.b16 %v284, %v282
        %v299 = vpack.c.b16 %v285, %v283
        %v300 = vpack.c.b16 %v288, %v286
        %v301 = vpack.c.b16 %v289, %v287
        %v302 = vpack.c.b16 %v292, %v290
        %v303 = vpack.c.b16 %v293, %v291
        %v304 = vpack.c.b16 %v296, %v294
        %v305 = vpack.c.b16 %v297, %v295
        %vm314 = vcmask 523264
        %v316 = vsel %vm314, %v265, 0
        %318 = vmatprep.subr.bf16.mxu0 0
        %319 = vmatpush1.bf16.msra.mxu0 0
        %320 = vmatprep.subr.bf16.mxu0 0
        %321 = vmatpush1.bf16.msra.mxu0 0
        %322 = vmatprep.subr.bf16.mxu0 0
        %323 = vmatpush1.bf16.msra.mxu0 0
        %324 = vmatprep.subr.bf16.mxu0 0
        %325 = vmatpush1.bf16.msra.mxu0 0
        %326 = vmatprep.subr.bf16.mxu0 %v305
        %327 = vmatpush1.bf16.msra.mxu0 %v304
        %328 = vmatprep.subr.bf16.mxu0 %v303
        %329 = vmatpush1.bf16.msra.mxu0 %v302
        %330 = vmatprep.subr.bf16.mxu0 %v301
        %331 = vmatpush1.bf16.msra.mxu0 %v300
        %332 = vmatprep.subr.bf16.mxu0 %v299
        %333 = vmatpush1.bf16.msra.mxu0 %v298
        %334 = vmatprep.subr.bf16.mxu0 0
        %335 = vmatpush2.bf16.msra.mxu0 0
        %336 = vmatprep.subr.bf16.mxu0 0
        %337 = vmatpush2.bf16.msra.mxu0 0
        %338 = vmatprep.subr.bf16.mxu0 0
        %339 = vmatpush2.bf16.msra.mxu0 0
        %340 = vmatprep.subr.bf16.mxu0 0
        %341 = vmatpush2.bf16.msra.mxu0 0
        %342 = vmatprep.subr.bf16.mxu0 0
        %343 = vmatpush2.bf16.msra.mxu0 0
        %344 = vmatprep.subr.bf16.mxu0 0
        %345 = vmatpush2.bf16.msra.mxu0 0
        %346 = vmatprep.subr.bf16.mxu0 0
        %347 = vmatpush2.bf16.msra.mxu0 0
        %348 = vmatprep.subr.bf16.mxu0 0
        %349 = vmatpush2.bf16.msra.mxu0 0
        %350 = vmatprep.mubr.bf16.mxu0 0
        %351 = vmatmul.mubr.bf16.gmra.mxu0 %v316
        %v352 = vpop.f32.mrf.mxu0
        %v353 = vadd.f32 0.0, %v352
        %v354 = vpop.f32.mrf.mxu0
        %v355 = vadd.f32 0.0, %v354
        %v356 = vpop.f32.mrf.mxu0
        %v357 = vpop.f32.mrf.mxu0
        %358 = vdwg.mxu0
        %v359 = vld [vmem:[%s2] sm:$0xff]
        %361 = vset.pattern.permute.xlu0 0
        %362 = vperm.xlu0 %361, %v359
        %v363 = vpop.permute.xlu0 %362
        %v365 = vmul.f32 %v353, %v363
        %v366 = vmul.f32 %v355, %v363
        %v367 = vld [vmem:[%s3] sm:$0xff]
        %369 = vset.pattern.permute.xlu0 0
        %370 = vperm.xlu0 %369, %v367
        %v371 = vpop.permute.xlu0 %370
        %v373 = vadd.f32 %v365, %v371
        %v374 = vadd.f32 %v366, %v371
        %vm375 = vcmp.gt.f32.partialorder %v373, 0.0
        %vm376 = vcmp.gt.f32.partialorder %v374, 0.0
        %v377 = vmul.f32 %v373, 0.2
        %v378 = vmul.f32 %v374, 0.2
        %v379 = vsel %vm375, %v373, %v377
        %v380 = vsel %vm376, %v374, %v378
        %381 = vst [vmem:[%s262] sm:$0xff] %v379
        %382 = vst [vmem:[%s262 + $0x8] sm:$0xff] %v380
        %s383 = smul.u32 2, %s15
        %p384 = scmp.lt.s32.totalorder %s383, 7
        %s385 = scalar_select %p384, %s383, 7
        %s386 = smul.addr %s385, 8
        %s387 = scalar_lea.vmem %s4, %s386
        // Predicated region
        $region75: #{_lambda_.18} parent=69 // pred_check
          %p388 = pneg %p122
        $region76: #{_lambda_.18} parent=69 // pred_check_branch
          %390 = sbr.rel (%p388) target = $region78
        $region77: #{_lambda_.18} parent=69 // pred_region
          %s391 = smul.u32 2, %s15
        $region78: #{_lambda_.18} parent=69 // pred_fallthru
          _
      $region70: #{_lambda_.18} parent=5 // pred_fallthru
        _
      %p392 = scmp.le.s32.totalorder 2, %s10
      // Predicated region
      $region79: #{_lambda_.18} parent=5 // pred_check
        %p393 = pneg %p392
      $region80: #{_lambda_.18} parent=5 // pred_check_branch
        %395 = sbr.rel (%p393) target = $region82
      $region81: #{_lambda_.18} parent=5 // pred_region
        %s396 = ssub.s32 %s10, 2
        // Predicated region
        $region83: #{_lambda_.18} parent=81 // pred_check
          %p397 = pneg %p128
        $region84: #{_lambda_.18} parent=81 // pred_check_branch
          %399 = sbr.rel (%p397) target = $region86
        $region85: #{_lambda_.18} parent=81 // pred_region
          %s400 = smul.u32 2, %s16
          %p401 = scmp.lt.s32.totalorder %s400, 7
          %s402 = scalar_select %p401, %s400, 7
          %s403 = smul.addr %s402, 8
          %s404 = scalar_lea.vmem %s4, %s403
        $region86: #{_lambda_.18} parent=81 // pred_fallthru
          _
      $region82: #{_lambda_.18} parent=5 // pred_fallthru
        _
    $region6: #{_lambda_.18} parent=1 // loop_footer
      %s14 = sadd.s32 1, %s10
    $region7: #{_lambda_.18} parent=1 // loop_footer_branch
      %9 = sbr.rel target = $region3
    $region8: #{_lambda_.18} parent=1 // loop_exit
      _

// kernel: _lambda_.19
$region0: #{_lambda_.19}
  #allocation0 [shape = 'u32[]', space=smem, size = 0x4, offset = 0x4, fixed_abs, tag = 'smem constant byte address 0x4 - core index']
  #allocation1 [shape = 'u32[144,128]{1,0:T(1,128)}', space=vmem, size = 0x12000, scoped, tag = 'internal scratch']
  %s0 = inlined_call_operand.vmem [shape: bf16[16,128], index: 0, kind: input, shape index: {}]
  %s1 = inlined_call_operand.vmem [shape: bf16[128,256], index: 1, kind: input, shape index: {}]
  %s2 = inlined_call_operand.vmem [shape: f32[16,1], index: 2, kind: input, shape index: {}]
  %s3 = inlined_call_operand.vmem [shape: f32[16,1], index: 3, kind: input, shape index: {}]
  %s4 = inlined_call_operand.vmem [shape: f32[16,256], index: 4, kind: output, shape index: {}]
  %s5 = sld [smem:[#allocation0]]
  $region26: #{_lambda_.19} parent=0
    _
  %s7 = ssub.s32 1, %s5
  %s8 = scalar_select 0, %s7, %s5
  // Predicated region
  $region2: #{_lambda_.19} parent=0 // pred_check
    _
  $region3: #{_lambda_.19} parent=0 // pred_check_branch
    %10 = sbr.rel (0) target = $region5
  $region4: #{_lambda_.19} parent=0 // pred_region
    _
  $region5: #{_lambda_.19} parent=0 // pred_fallthru
    _
  // Predicated region
  $region6: #{_lambda_.19} parent=0 // pred_check
    _
  $region7: #{_lambda_.19} parent=0 // pred_check_branch
    %12 = sbr.rel (0) target = $region9
  $region8: #{_lambda_.19} parent=0 // pred_region
    _
  $region9: #{_lambda_.19} parent=0 // pred_fallthru
    _
  // Predicated region
  $region10: #{_lambda_.19} parent=0 // pred_check
    _
  $region11: #{_lambda_.19} parent=0 // pred_check_branch
    %14 = sbr.rel (0) target = $region13
  $region12: #{_lambda_.19} parent=0 // pred_region
    _
  $region13: #{_lambda_.19} parent=0 // pred_fallthru
    _
  // Predicated region
  $region14: #{_lambda_.19} parent=0 // pred_check
    _
  $region15: #{_lambda_.19} parent=0 // pred_check_branch
    %16 = sbr.rel (0) target = $region17
  $region16: #{_lambda_.19} parent=0 // pred_region
    _
  $region17: #{_lambda_.19} parent=0 // pred_fallthru
    _
  %v18 = vld [vmem:[%s0] sm:$0xf]
  %v19 = vld [vmem:[%s0 + $0x4] sm:$0xf]
  %v20 = vld [vmem:[%s1] sm:$0xff]
  %v21 = vld [vmem:[%s1 + $0x8] sm:$0xff]
  %v22 = vld [vmem:[%s1 + $0x10] sm:$0xff]
  %v23 = vld [vmem:[%s1 + $0x18] sm:$0xff]
  %v24 = vld [vmem:[%s1 + $0x20] sm:$0xff]
  %v25 = vld [vmem:[%s1 + $0x28] sm:$0xff]
  %v26 = vld [vmem:[%s1 + $0x30] sm:$0xff]
  %v27 = vld [vmem:[%s1 + $0x38] sm:$0xff]
  %v28 = vld [vmem:[%s1 + $0x40] sm:$0xff]
  %v29 = vld [vmem:[%s1 + $0x48] sm:$0xff]
  %v30 = vld [vmem:[%s1 + $0x50] sm:$0xff]
  %v31 = vld [vmem:[%s1 + $0x58] sm:$0xff]
  %v32 = vld [vmem:[%s1 + $0x60] sm:$0xff]
  %v33 = vld [vmem:[%s1 + $0x68] sm:$0xff]
  %v34 = vld [vmem:[%s1 + $0x70] sm:$0xff]
  %v35 = vld [vmem:[%s1 + $0x78] sm:$0xff]
  %v38 = vunpack.c.l.b16 %v18
  %v39 = vunpack.c.l.b16 %v19
  %v40 = vpack.c.b16 %v39, %v38
  %v58 = vunpack.c.l.b16 %v20
  %v59 = vunpack.c.h.b16 %v20
  %v60 = vunpack.c.l.b16 %v21
  %v61 = vunpack.c.h.b16 %v21
  %v62 = vunpack.c.l.b16 %v22
  %v63 = vunpack.c.h.b16 %v22
  %v64 = vunpack.c.l.b16 %v23
  %v65 = vunpack.c.h.b16 %v23
  %v66 = vunpack.c.l.b16 %v24
  %v67 = vunpack.c.h.b16 %v24
  %v68 = vunpack.c.l.b16 %v25
  %v69 = vunpack.c.h.b16 %v25
  %v70 = vunpack.c.l.b16 %v26
  %v71 = vunpack.c.h.b16 %v26
  %v72 = vunpack.c.l.b16 %v27
  %v73 = vunpack.c.h.b16 %v27
  %v74 = vunpack.c.l.b16 %v28
  %v75 = vunpack.c.h.b16 %v28
  %v76 = vunpack.c.l.b16 %v29
  %v77 = vunpack.c.h.b16 %v29
  %v78 = vunpack.c.l.b16 %v30
  %v79 = vunpack.c.h.b16 %v30
  %v80 = vunpack.c.l.b16 %v31
  %v81 = vunpack.c.h.b16 %v31
  %v82 = vunpack.c.l.b16 %v32
  %v83 = vunpack.c.h.b16 %v32
  %v84 = vunpack.c.l.b16 %v33
  %v85 = vunpack.c.h.b16 %v33
  %v86 = vunpack.c.l.b16 %v34
  %v87 = vunpack.c.h.b16 %v34
  %v88 = vunpack.c.l.b16 %v35
  %v89 = vunpack.c.h.b16 %v35
  %v90 = vpack.c.b16 %v60, %v58
  %v91 = vpack.c.b16 %v61, %v59
  %v92 = vpack.c.b16 %v64, %v62
  %v93 = vpack.c.b16 %v65, %v63
  %v94 = vpack.c.b16 %v68, %v66
  %v95 = vpack.c.b16 %v69, %v67
  %v96 = vpack.c.b16 %v72, %v70
  %v97 = vpack.c.b16 %v73, %v71
  %v98 = vpack.c.b16 %v76, %v74
  %v99 = vpack.c.b16 %v77, %v75
  %v100 = vpack.c.b16 %v80, %v78
  %v101 = vpack.c.b16 %v81, %v79
  %v102 = vpack.c.b16 %v84, %v82
  %v103 = vpack.c.b16 %v85, %v83
  %v104 = vpack.c.b16 %v88, %v86
  %v105 = vpack.c.b16 %v89, %v87
  %122 = vmatprep.subr.bf16.mxu0 %v105
  %123 = vmatpush1.bf16.msra.mxu0 %v104
  %124 = vmatprep.subr.bf16.mxu0 %v103
  %125 = vmatpush1.bf16.msra.mxu0 %v102
  %126 = vmatprep.subr.bf16.mxu0 %v101
  %127 = vmatpush1.bf16.msra.mxu0 %v100
  %128 = vmatprep.subr.bf16.mxu0 %v99
  %129 = vmatpush1.bf16.msra.mxu0 %v98
  %130 = vmatprep.subr.bf16.mxu0 %v97
  %131 = vmatpush1.bf16.msra.mxu0 %v96
  %132 = vmatprep.subr.bf16.mxu0 %v95
  %133 = vmatpush1.bf16.msra.mxu0 %v94
  %134 = vmatprep.subr.bf16.mxu0 %v93
  %135 = vmatpush1.bf16.msra.mxu0 %v92
  %136 = vmatprep.subr.bf16.mxu0 %v91
  %137 = vmatpush1.bf16.msra.mxu0 %v90
  %138 = vmatprep.subr.bf16.mxu0 0
  %139 = vmatpush2.bf16.msra.mxu0 0
  %140 = vmatprep.subr.bf16.mxu0 0
  %141 = vmatpush2.bf16.msra.mxu0 0
  %142 = vmatprep.subr.bf16.mxu0 0
  %143 = vmatpush2.bf16.msra.mxu0 0
  %144 = vmatprep.subr.bf16.mxu0 0
  %145 = vmatpush2.bf16.msra.mxu0 0
  %146 = vmatprep.subr.bf16.mxu0 0
  %147 = vmatpush2.bf16.msra.mxu0 0
  %148 = vmatprep.subr.bf16.mxu0 0
  %149 = vmatpush2.bf16.msra.mxu0 0
  %150 = vmatprep.subr.bf16.mxu0 0
  %151 = vmatpush2.bf16.msra.mxu0 0
  %152 = vmatprep.subr.bf16.mxu0 0
  %153 = vmatpush2.bf16.msra.mxu0 0
  %154 = vmatprep.mubr.bf16.mxu0 0
  %155 = vmatmul.mubr.bf16.gmra.mxu0 %v40
  %v156 = vpop.f32.mrf.mxu0
  %v157 = vadd.f32 0.0, %v156
  %v158 = vpop.f32.mrf.mxu0
  %v159 = vadd.f32 0.0, %v158
  %v160 = vpop.f32.mrf.mxu0
  %v161 = vadd.f32 0.0, %v160
  %v162 = vpop.f32.mrf.mxu0
  %v163 = vadd.f32 0.0, %v162
  %164 = vdwg.mxu0
  %v165 = vld [vmem:[%s2] sm:$0xff]
  %v166 = vld [vmem:[%s2 + $0x8] sm:$0xff]
  %168 = vset.pattern.permute.xlu0 0
  %169 = vperm.xlu0 %168, %v165
  %v170 = vpop.permute.xlu0 %169
  %173 = vset.pattern.permute.xlu0 0
  %174 = vperm.xlu0 %173, %v166
  %v175 = vpop.permute.xlu0 %174
  %v177 = vmul.f32 %v157, %v170
  %v178 = vmul.f32 %v159, %v170
  %v179 = vmul.f32 %v161, %v175
  %v180 = vmul.f32 %v163, %v175
  %v181 = vld [vmem:[%s3] sm:$0xff]
  %v182 = vld [vmem:[%s3 + $0x8] sm:$0xff]
  %184 = vset.pattern.permute.xlu0 0
  %185 = vperm.xlu0 %184, %v181
  %v186 = vpop.permute.xlu0 %185
  %189 = vset.pattern.permute.xlu0 0
  %190 = vperm.xlu0 %189, %v182
  %v191 = vpop.permute.xlu0 %190
  %v193 = vadd.f32 %v177, %v186
  %v194 = vadd.f32 %v178, %v186
  %v195 = vadd.f32 %v179, %v191
  %v196 = vadd.f32 %v180, %v191
  %vm197 = vcmp.gt.f32.partialorder %v193, 0.0
  %vm198 = vcmp.gt.f32.partialorder %v194, 0.0
  %vm199 = vcmp.gt.f32.partialorder %v195, 0.0
  %vm200 = vcmp.gt.f32.partialorder %v196, 0.0
  %v201 = vmul.f32 %v193, 0.2
  %v202 = vmul.f32 %v194, 0.2
  %v203 = vmul.f32 %v195, 0.2
  %v204 = vmul.f32 %v196, 0.2
  %v205 = vsel %vm197, %v193, %v201
  %v206 = vsel %vm198, %v194, %v202
  %v207 = vsel %vm199, %v195, %v203
  %v208 = vsel %vm200, %v196, %v204
  %209 = vst [vmem:[%s4] sm:$0xff] %v205
  %210 = vst [vmem:[%s4 + $0x8] sm:$0xff] %v206
  %211 = vst [vmem:[%s4 + $0x10] sm:$0xff] %v207
  %212 = vst [vmem:[%s4 + $0x18] sm:$0xff] %v208
  // Predicated region
  $region18: #{_lambda_.19} parent=0 // pred_check
    _
  $region19: #{_lambda_.19} parent=0 // pred_check_branch
    %214 = sbr.rel (0) target = $region21
  $region20: #{_lambda_.19} parent=0 // pred_region
    _
  $region21: #{_lambda_.19} parent=0 // pred_fallthru
    _
  // Predicated region
  $region22: #{_lambda_.19} parent=0 // pred_check
    _
  $region23: #{_lambda_.19} parent=0 // pred_check_branch
    %216 = sbr.rel (0) target = $region25
  $region24: #{_lambda_.19} parent=0 // pred_region
    _
  $region25: #{_lambda_.19} parent=0 // pred_fallthru
    _

// kernel: _lambda_.20
$region0: #{_lambda_.20}
  #allocation0 [shape = 'u32[]', space=smem, size = 0x4, offset = 0x4, fixed_abs, tag = 'smem constant byte address 0x4 - core index']
  #allocation1 [shape = 'u32[144,128]{1,0:T(1,128)}', space=vmem, size = 0x12000, scoped, tag = 'internal scratch']
  %s0 = inlined_call_operand.vmem [shape: bf16[16,256], index: 0, kind: input, shape index: {}]
  %s1 = inlined_call_operand.vmem [shape: bf16[256,128], index: 1, kind: input, shape index: {}]
  %s2 = inlined_call_operand.vmem [shape: f32[16,1], index: 2, kind: input, shape index: {}]
  %s3 = inlined_call_operand.vmem [shape: f32[16,1], index: 3, kind: input, shape index: {}]
  %s4 = inlined_call_operand.vmem [shape: f32[16,128], index: 4, kind: output, shape index: {}]
  %s5 = sld [smem:[#allocation0]]
  $region26: #{_lambda_.20} parent=0
    _
  %s7 = ssub.s32 1, %s5
  %s8 = scalar_select 0, %s7, %s5
  // Predicated region
  $region2: #{_lambda_.20} parent=0 // pred_check
    _
  $region3: #{_lambda_.20} parent=0 // pred_check_branch
    %10 = sbr.rel (0) target = $region5
  $region4: #{_lambda_.20} parent=0 // pred_region
    _
  $region5: #{_lambda_.20} parent=0 // pred_fallthru
    _
  // Predicated region
  $region6: #{_lambda_.20} parent=0 // pred_check
    _
  $region7: #{_lambda_.20} parent=0 // pred_check_branch
    %12 = sbr.rel (0) target = $region9
  $region8: #{_lambda_.20} parent=0 // pred_region
    _
  $region9: #{_lambda_.20} parent=0 // pred_fallthru
    _
  // Predicated region
  $region10: #{_lambda_.20} parent=0 // pred_check
    _
  $region11: #{_lambda_.20} parent=0 // pred_check_branch
    %14 = sbr.rel (0) target = $region13
  $region12: #{_lambda_.20} parent=0 // pred_region
    _
  $region13: #{_lambda_.20} parent=0 // pred_fallthru
    _
  // Predicated region
  $region14: #{_lambda_.20} parent=0 // pred_check
    _
  $region15: #{_lambda_.20} parent=0 // pred_check_branch
    %16 = sbr.rel (0) target = $region17
  $region16: #{_lambda_.20} parent=0 // pred_region
    _
  $region17: #{_lambda_.20} parent=0 // pred_fallthru
    _
  %v18 = vld [vmem:[%s0] sm:$0xff]
  %v19 = vld [vmem:[%s0 + $0x8] sm:$0xff]
  %v20 = vld [vmem:[%s1] sm:$0xf]
  %v21 = vld [vmem:[%s1 + $0x4] sm:$0xf]
  %v22 = vld [vmem:[%s1 + $0x8] sm:$0xf]
  %v23 = vld [vmem:[%s1 + $0xc] sm:$0xf]
  %v24 = vld [vmem:[%s1 + $0x10] sm:$0xf]
  %v25 = vld [vmem:[%s1 + $0x14] sm:$0xf]
  %v26 = vld [vmem:[%s1 + $0x18] sm:$0xf]
  %v27 = vld [vmem:[%s1 + $0x1c] sm:$0xf]
  %v28 = vld [vmem:[%s1 + $0x20] sm:$0xf]
  %v29 = vld [vmem:[%s1 + $0x24] sm:$0xf]
  %v30 = vld [vmem:[%s1 + $0x28] sm:$0xf]
  %v31 = vld [vmem:[%s1 + $0x2c] sm:$0xf]
  %v32 = vld [vmem:[%s1 + $0x30] sm:$0xf]
  %v33 = vld [vmem:[%s1 + $0x34] sm:$0xf]
  %v34 = vld [vmem:[%s1 + $0x38] sm:$0xf]
  %v35 = vld [vmem:[%s1 + $0x3c] sm:$0xf]
  %v36 = vld [vmem:[%s1 + $0x40] sm:$0xf]
  %v37 = vld [vmem:[%s1 + $0x44] sm:$0xf]
  %v38 = vld [vmem:[%s1 + $0x48] sm:$0xf]
  %v39 = vld [vmem:[%s1 + $0x4c] sm:$0xf]
  %v40 = vld [vmem:[%s1 + $0x50] sm:$0xf]
  %v41 = vld [vmem:[%s1 + $0x54] sm:$0xf]
  %v42 = vld [vmem:[%s1 + $0x58] sm:$0xf]
  %v43 = vld [vmem:[%s1 + $0x5c] sm:$0xf]
  %v44 = vld [vmem:[%s1 + $0x60] sm:$0xf]
  %v45 = vld [vmem:[%s1 + $0x64] sm:$0xf]
  %v46 = vld [vmem:[%s1 + $0x68] sm:$0xf]
  %v47 = vld [vmem:[%s1 + $0x6c] sm:$0xf]
  %v48 = vld [vmem:[%s1 + $0x70] sm:$0xf]
  %v49 = vld [vmem:[%s1 + $0x74] sm:$0xf]
  %v50 = vld [vmem:[%s1 + $0x78] sm:$0xf]
  %v51 = vld [vmem:[%s1 + $0x7c] sm:$0xf]
  %v54 = vunpack.c.l.b16 %v18
  %v55 = vunpack.c.h.b16 %v18
  %v56 = vunpack.c.l.b16 %v19
  %v57 = vunpack.c.h.b16 %v19
  %v58 = vpack.c.b16 %v56, %v54
  %v59 = vpack.c.b16 %v57, %v55
  %v94 = vunpack.c.l.b16 %v20
  %v95 = vunpack.c.l.b16 %v21
  %v96 = vunpack.c.l.b16 %v22
  %v97 = vunpack.c.l.b16 %v23
  %v98 = vunpack.c.l.b16 %v24
  %v99 = vunpack.c.l.b16 %v25
  %v100 = vunpack.c.l.b16 %v26
  %v101 = vunpack.c.l.b16 %v27
  %v102 = vunpack.c.l.b16 %v28
  %v103 = vunpack.c.l.b16 %v29
  %v104 = vunpack.c.l.b16 %v30
  %v105 = vunpack.c.l.b16 %v31
  %v106 = vunpack.c.l.b16 %v32
  %v107 = vunpack.c.l.b16 %v33
  %v108 = vunpack.c.l.b16 %v34
  %v109 = vunpack.c.l.b16 %v35
  %v110 = vunpack.c.l.b16 %v36
  %v111 = vunpack.c.l.b16 %v37
  %v112 = vunpack.c.l.b16 %v38
  %v113 = vunpack.c.l.b16 %v39
  %v114 = vunpack.c.l.b16 %v40
  %v115 = vunpack.c.l.b16 %v41
  %v116 = vunpack.c.l.b16 %v42
  %v117 = vunpack.c.l.b16 %v43
  %v118 = vunpack.c.l.b16 %v44
  %v119 = vunpack.c.l.b16 %v45
  %v120 = vunpack.c.l.b16 %v46
  %v121 = vunpack.c.l.b16 %v47
  %v122 = vunpack.c.l.b16 %v48
  %v123 = vunpack.c.l.b16 %v49
  %v124 = vunpack.c.l.b16 %v50
  %v125 = vunpack.c.l.b16 %v51
  %v126 = vpack.c.b16 %v95, %v94
  %v127 = vpack.c.b16 %v97, %v96
  %v128 = vpack.c.b16 %v99, %v98
  %v129 = vpack.c.b16 %v101, %v100
  %v130 = vpack.c.b16 %v103, %v102
  %v131 = vpack.c.b16 %v105, %v104
  %v132 = vpack.c.b16 %v107, %v106
  %v133 = vpack.c.b16 %v109, %v108
  %v134 = vpack.c.b16 %v111, %v110
  %v135 = vpack.c.b16 %v113, %v112
  %v136 = vpack.c.b16 %v115, %v114
  %v137 = vpack.c.b16 %v117, %v116
  %v138 = vpack.c.b16 %v119, %v118
  %v139 = vpack.c.b16 %v121, %v120
  %v140 = vpack.c.b16 %v123, %v122
  %v141 = vpack.c.b16 %v125, %v124
  %158 = vmatprep.subr.bf16.mxu0 0
  %159 = vmatpush1.bf16.msra.mxu0 %v133
  %160 = vmatprep.subr.bf16.mxu0 0
  %161 = vmatpush1.bf16.msra.mxu0 %v132
  %162 = vmatprep.subr.bf16.mxu0 0
  %163 = vmatpush1.bf16.msra.mxu0 %v131
  %164 = vmatprep.subr.bf16.mxu0 0
  %165 = vmatpush1.bf16.msra.mxu0 %v130
  %166 = vmatprep.subr.bf16.mxu0 0
  %167 = vmatpush1.bf16.msra.mxu0 %v129
  %168 = vmatprep.subr.bf16.mxu0 0
  %169 = vmatpush1.bf16.msra.mxu0 %v128
  %170 = vmatprep.subr.bf16.mxu0 0
  %171 = vmatpush1.bf16.msra.mxu0 %v127
  %172 = vmatprep.subr.bf16.mxu0 0
  %173 = vmatpush1.bf16.msra.mxu0 %v126
  %174 = vmatprep.subr.bf16.mxu0 0
  %175 = vmatpush2.bf16.msra.mxu0 %v141
  %176 = vmatprep.subr.bf16.mxu0 0
  %177 = vmatpush2.bf16.msra.mxu0 %v140
  %178 = vmatprep.subr.bf16.mxu0 0
  %179 = vmatpush2.bf16.msra.mxu0 %v139
  %180 = vmatprep.subr.bf16.mxu0 0
  %181 = vmatpush2.bf16.msra.mxu0 %v138
  %182 = vmatprep.subr.bf16.mxu0 0
  %183 = vmatpush2.bf16.msra.mxu0 %v137
  %184 = vmatprep.subr.bf16.mxu0 0
  %185 = vmatpush2.bf16.msra.mxu0 %v136
  %186 = vmatprep.subr.bf16.mxu0 0
  %187 = vmatpush2.bf16.msra.mxu0 %v135
  %188 = vmatprep.subr.bf16.mxu0 0
  %189 = vmatpush2.bf16.msra.mxu0 %v134
  %190 = vmatprep.mubr.bf16.mxu0 %v59
  %191 = vmatmul.mubr.bf16.gmra.mxu0 %v58
  %v192 = vpop.f32.mrf.mxu0
  %v193 = vadd.f32 0.0, %v192
  %v194 = vpop.f32.mrf.mxu0
  %v195 = vpop.f32.mrf.mxu0
  %v196 = vadd.f32 0.0, %v195
  %v197 = vpop.f32.mrf.mxu0
  %198 = vdwg.mxu0
  %v199 = vld [vmem:[%s2] sm:$0xff]
  %v200 = vld [vmem:[%s2 + $0x8] sm:$0xff]
  %202 = vset.pattern.permute.xlu0 0
  %203 = vperm.xlu0 %202, %v199
  %v204 = vpop.permute.xlu0 %203
  %207 = vset.pattern.permute.xlu0 0
  %208 = vperm.xlu0 %207, %v200
  %v209 = vpop.permute.xlu0 %208
  %v211 = vmul.f32 %v193, %v204
  %v212 = vmul.f32 %v196, %v209
  %v213 = vld [vmem:[%s3] sm:$0xff]
  %v214 = vld [vmem:[%s3 + $0x8] sm:$0xff]
  %216 = vset.pattern.permute.xlu0 0
  %217 = vperm.xlu0 %216, %v213
  %v218 = vpop.permute.xlu0 %217
  %221 = vset.pattern.permute.xlu0 0
  %222 = vperm.xlu0 %221, %v214
  %v223 = vpop.permute.xlu0 %222
  %v225 = vadd.f32 %v211, %v218
  %v226 = vadd.f32 %v212, %v223
  %vm227 = vcmp.gt.f32.partialorder %v225, 0.0
  %vm228 = vcmp.gt.f32.partialorder %v226, 0.0
  %v229 = vmul.f32 %v225, 0.2
  %v230 = vmul.f32 %v226, 0.2
  %v231 = vsel %vm227, %v225, %v229
  %v232 = vsel %vm228, %v226, %v230
  %233 = vst [vmem:[%s4] sm:$0xff] %v231
  %234 = vst [vmem:[%s4 + $0x8] sm:$0xff] %v232
  // Predicated region
  $region18: #{_lambda_.20} parent=0 // pred_check
    _
  $region19: #{_lambda_.20} parent=0 // pred_check_branch
    %236 = sbr.rel (0) target = $region21
  $region20: #{_lambda_.20} parent=0 // pred_region
    _
  $region21: #{_lambda_.20} parent=0 // pred_fallthru
    _
  // Predicated region
  $region22: #{_lambda_.20} parent=0 // pred_check
    _
  $region23: #{_lambda_.20} parent=0 // pred_check_branch
    %238 = sbr.rel (0) target = $region25
  $region24: #{_lambda_.20} parent=0 // pred_region
    _
  $region25: #{_lambda_.20} parent=0 // pred_fallthru
    _

// kernel: _lambda_.23
$region0: #{_lambda_.23}
  #allocation0 [shape = 'u32[]', space=smem, size = 0x4, offset = 0x4, fixed_abs, tag = 'smem constant byte address 0x4 - core index']
  #allocation1 [shape = 'u32[144,128]{1,0:T(1,128)}', space=vmem, size = 0x12000, scoped, tag = 'internal scratch']
  %s0 = inlined_call_operand.vmem [shape: bf16[16,256], index: 0, kind: input, shape index: {}]
  %s1 = inlined_call_operand.vmem [shape: bf16[256,128], index: 1, kind: input, shape index: {}]
  %s2 = inlined_call_operand.vmem [shape: f32[16,1], index: 2, kind: input, shape index: {}]
  %s3 = inlined_call_operand.vmem [shape: f32[16,1], index: 3, kind: input, shape index: {}]
  %s4 = inlined_call_operand.vmem [shape: f32[16,128], index: 4, kind: output, shape index: {}]
  %s5 = sld [smem:[#allocation0]]
  $region26: #{_lambda_.23} parent=0
    _
  %s7 = ssub.s32 1, %s5
  %s8 = scalar_select 0, %s7, %s5
  // Predicated region
  $region2: #{_lambda_.23} parent=0 // pred_check
    _
  $region3: #{_lambda_.23} parent=0 // pred_check_branch
    %10 = sbr.rel (0) target = $region5
  $region4: #{_lambda_.23} parent=0 // pred_region
    _
  $region5: #{_lambda_.23} parent=0 // pred_fallthru
    _
  // Predicated region
  $region6: #{_lambda_.23} parent=0 // pred_check
    _
  $region7: #{_lambda_.23} parent=0 // pred_check_branch
    %12 = sbr.rel (0) target = $region9
  $region8: #{_lambda_.23} parent=0 // pred_region
    _
  $region9: #{_lambda_.23} parent=0 // pred_fallthru
    _
  // Predicated region
  $region10: #{_lambda_.23} parent=0 // pred_check
    _
  $region11: #{_lambda_.23} parent=0 // pred_check_branch
    %14 = sbr.rel (0) target = $region13
  $region12: #{_lambda_.23} parent=0 // pred_region
    _
  $region13: #{_lambda_.23} parent=0 // pred_fallthru
    _
  // Predicated region
  $region14: #{_lambda_.23} parent=0 // pred_check
    _
  $region15: #{_lambda_.23} parent=0 // pred_check_branch
    %16 = sbr.rel (0) target = $region17
  $region16: #{_lambda_.23} parent=0 // pred_region
    _
  $region17: #{_lambda_.23} parent=0 // pred_fallthru
    _
  %v18 = vld [vmem:[%s0] sm:$0xff]
  %v19 = vld [vmem:[%s0 + $0x8] sm:$0xff]
  %v20 = vld [vmem:[%s1] sm:$0xf]
  %v21 = vld [vmem:[%s1 + $0x4] sm:$0xf]
  %v22 = vld [vmem:[%s1 + $0x8] sm:$0xf]
  %v23 = vld [vmem:[%s1 + $0xc] sm:$0xf]
  %v24 = vld [vmem:[%s1 + $0x10] sm:$0xf]
  %v25 = vld [vmem:[%s1 + $0x14] sm:$0xf]
  %v26 = vld [vmem:[%s1 + $0x18] sm:$0xf]
  %v27 = vld [vmem:[%s1 + $0x1c] sm:$0xf]
  %v28 = vld [vmem:[%s1 + $0x20] sm:$0xf]
  %v29 = vld [vmem:[%s1 + $0x24] sm:$0xf]
  %v30 = vld [vmem:[%s1 + $0x28] sm:$0xf]
  %v31 = vld [vmem:[%s1 + $0x2c] sm:$0xf]
  %v32 = vld [vmem:[%s1 + $0x30] sm:$0xf]
  %v33 = vld [vmem:[%s1 + $0x34] sm:$0xf]
  %v34 = vld [vmem:[%s1 + $0x38] sm:$0xf]
  %v35 = vld [vmem:[%s1 + $0x3c] sm:$0xf]
  %v36 = vld [vmem:[%s1 + $0x40] sm:$0xf]
  %v37 = vld [vmem:[%s1 + $0x44] sm:$0xf]
  %v38 = vld [vmem:[%s1 + $0x48] sm:$0xf]
  %v39 = vld [vmem:[%s1 + $0x4c] sm:$0xf]
  %v40 = vld [vmem:[%s1 + $0x50] sm:$0xf]
  %v41 = vld [vmem:[%s1 + $0x54] sm:$0xf]
  %v42 = vld [vmem:[%s1 + $0x58] sm:$0xf]
  %v43 = vld [vmem:[%s1 + $0x5c] sm:$0xf]
  %v44 = vld [vmem:[%s1 + $0x60] sm:$0xf]
  %v45 = vld [vmem:[%s1 + $0x64] sm:$0xf]
  %v46 = vld [vmem:[%s1 + $0x68] sm:$0xf]
  %v47 = vld [vmem:[%s1 + $0x6c] sm:$0xf]
  %v48 = vld [vmem:[%s1 + $0x70] sm:$0xf]
  %v49 = vld [vmem:[%s1 + $0x74] sm:$0xf]
  %v50 = vld [vmem:[%s1 + $0x78] sm:$0xf]
  %v51 = vld [vmem:[%s1 + $0x7c] sm:$0xf]
  %v54 = vunpack.c.l.b16 %v18
  %v55 = vunpack.c.h.b16 %v18
  %v56 = vunpack.c.l.b16 %v19
  %v57 = vunpack.c.h.b16 %v19
  %v58 = vpack.c.b16 %v56, %v54
  %v59 = vpack.c.b16 %v57, %v55
  %v94 = vunpack.c.l.b16 %v20
  %v95 = vunpack.c.l.b16 %v21
  %v96 = vunpack.c.l.b16 %v22
  %v97 = vunpack.c.l.b16 %v23
  %v98 = vunpack.c.l.b16 %v24
  %v99 = vunpack.c.l.b16 %v25
  %v100 = vunpack.c.l.b16 %v26
  %v101 = vunpack.c.l.b16 %v27
  %v102 = vunpack.c.l.b16 %v28
  %v103 = vunpack.c.l.b16 %v29
  %v104 = vunpack.c.l.b16 %v30
  %v105 = vunpack.c.l.b16 %v31
  %v106 = vunpack.c.l.b16 %v32
  %v107 = vunpack.c.l.b16 %v33
  %v108 = vunpack.c.l.b16 %v34
  %v109 = vunpack.c.l.b16 %v35
  %v110 = vunpack.c.l.b16 %v36
  %v111 = vunpack.c.l.b16 %v37
  %v112 = vunpack.c.l.b16 %v38
  %v113 = vunpack.c.l.b16 %v39
  %v114 = vunpack.c.l.b16 %v40
  %v115 = vunpack.c.l.b16 %v41
  %v116 = vunpack.c.l.b16 %v42
  %v117 = vunpack.c.l.b16 %v43
  %v118 = vunpack.c.l.b16 %v44
  %v119 = vunpack.c.l.b16 %v45
  %v120 = vunpack.c.l.b16 %v46
  %v121 = vunpack.c.l.b16 %v47
  %v122 = vunpack.c.l.b16 %v48
  %v123 = vunpack.c.l.b16 %v49
  %v124 = vunpack.c.l.b16 %v50
  %v125 = vunpack.c.l.b16 %v51
  %v126 = vpack.c.b16 %v95, %v94
  %v127 = vpack.c.b16 %v97, %v96
  %v128 = vpack.c.b16 %v99, %v98
  %v129 = vpack.c.b16 %v101, %v100
  %v130 = vpack.c.b16 %v103, %v102
  %v131 = vpack.c.b16 %v105, %v104
  %v132 = vpack.c.b16 %v107, %v106
  %v133 = vpack.c.b16 %v109, %v108
  %v134 = vpack.c.b16 %v111, %v110
  %v135 = vpack.c.b16 %v113, %v112
  %v136 = vpack.c.b16 %v115, %v114
  %v137 = vpack.c.b16 %v117, %v116
  %v138 = vpack.c.b16 %v119, %v118
  %v139 = vpack.c.b16 %v121, %v120
  %v140 = vpack.c.b16 %v123, %v122
  %v141 = vpack.c.b16 %v125, %v124
  %158 = vmatprep.subr.bf16.mxu0 0
  %159 = vmatpush1.bf16.msra.mxu0 %v133
  %160 = vmatprep.subr.bf16.mxu0 0
  %161 = vmatpush1.bf16.msra.mxu0 %v132
  %162 = vmatprep.subr.bf16.mxu0 0
  %163 = vmatpush1.bf16.msra.mxu0 %v131
  %164 = vmatprep.subr.bf16.mxu0 0
  %165 = vmatpush1.bf16.msra.mxu0 %v130
  %166 = vmatprep.subr.bf16.mxu0 0
  %167 = vmatpush1.bf16.msra.mxu0 %v129
  %168 = vmatprep.subr.bf16.mxu0 0
  %169 = vmatpush1.bf16.msra.mxu0 %v128
  %170 = vmatprep.subr.bf16.mxu0 0
  %171 = vmatpush1.bf16.msra.mxu0 %v127
  %172 = vmatprep.subr.bf16.mxu0 0
  %173 = vmatpush1.bf16.msra.mxu0 %v126
  %174 = vmatprep.subr.bf16.mxu0 0
  %175 = vmatpush2.bf16.msra.mxu0 %v141
  %176 = vmatprep.subr.bf16.mxu0 0
  %177 = vmatpush2.bf16.msra.mxu0 %v140
  %178 = vmatprep.subr.bf16.mxu0 0
  %179 = vmatpush2.bf16.msra.mxu0 %v139
  %180 = vmatprep.subr.bf16.mxu0 0
  %181 = vmatpush2.bf16.msra.mxu0 %v138
  %182 = vmatprep.subr.bf16.mxu0 0
  %183 = vmatpush2.bf16.msra.mxu0 %v137
  %184 = vmatprep.subr.bf16.mxu0 0
  %185 = vmatpush2.bf16.msra.mxu0 %v136
  %186 = vmatprep.subr.bf16.mxu0 0
  %187 = vmatpush2.bf16.msra.mxu0 %v135
  %188 = vmatprep.subr.bf16.mxu0 0
  %189 = vmatpush2.bf16.msra.mxu0 %v134
  %190 = vmatprep.mubr.bf16.mxu0 %v59
  %191 = vmatmul.mubr.bf16.gmra.mxu0 %v58
  %v192 = vpop.f32.mrf.mxu0
  %v193 = vadd.f32 0.0, %v192
  %v194 = vpop.f32.mrf.mxu0
  %v195 = vpop.f32.mrf.mxu0
  %v196 = vadd.f32 0.0, %v195
  %v197 = vpop.f32.mrf.mxu0
  %198 = vdwg.mxu0
  %v199 = vld [vmem:[%s2] sm:$0xff]
  %v200 = vld [vmem:[%s2 + $0x8] sm:$0xff]
  %202 = vset.pattern.permute.xlu0 0
  %203 = vperm.xlu0 %202, %v199
  %v204 = vpop.permute.xlu0 %203
  %207 = vset.pattern.permute.xlu0 0
  %208 = vperm.xlu0 %207, %v200
  %v209 = vpop.permute.xlu0 %208
  %v211 = vmul.f32 %v193, %v204
  %v212 = vmul.f32 %v196, %v209
  %v213 = vld [vmem:[%s3] sm:$0xff]
  %v214 = vld [vmem:[%s3 + $0x8] sm:$0xff]
  %216 = vset.pattern.permute.xlu0 0
  %217 = vperm.xlu0 %216, %v213
  %v218 = vpop.permute.xlu0 %217
  %221 = vset.pattern.permute.xlu0 0
  %222 = vperm.xlu0 %221, %v214
  %v223 = vpop.permute.xlu0 %222
  %v225 = vadd.f32 %v211, %v218
  %v226 = vadd.f32 %v212, %v223
  %v227 = vmax.f32 %v225, 0.0
  %v228 = vmax.f32 %v226, 0.0
  %229 = vst [vmem:[%s4] sm:$0xff] %v227
  %230 = vst [vmem:[%s4 + $0x8] sm:$0xff] %v228
  // Predicated region
  $region18: #{_lambda_.23} parent=0 // pred_check
    _
  $region19: #{_lambda_.23} parent=0 // pred_check_branch
    %232 = sbr.rel (0) target = $region21
  $region20: #{_lambda_.23} parent=0 // pred_region
    _
  $region21: #{_lambda_.23} parent=0 // pred_fallthru
    _
  // Predicated region
  $region22: #{_lambda_.23} parent=0 // pred_check
    _
  $region23: #{_lambda_.23} parent=0 // pred_check_branch
    %234 = sbr.rel (0) target = $region25
  $region24: #{_lambda_.23} parent=0 // pred_region
    _
  $region25: #{_lambda_.23} parent=0 // pred_fallthru
    _

// kernel: _lambda_.24
$region0: #{_lambda_.24}
  #allocation0 [shape = 'u32[]', space=smem, size = 0x4, offset = 0x4, fixed_abs, tag = 'smem constant byte address 0x4 - core index']
  #allocation1 [shape = 'u32[144,128]{1,0:T(1,128)}', space=vmem, size = 0x12000, scoped, tag = 'internal scratch']
  %s0 = inlined_call_operand.vmem [shape: bf16[64,144], index: 0, kind: input, shape index: {}]
  %s1 = inlined_call_operand.vmem [shape: bf16[144,128], index: 1, kind: input, shape index: {}]
  %s2 = inlined_call_operand.vmem [shape: f32[64,1], index: 2, kind: input, shape index: {}]
  %s3 = inlined_call_operand.vmem [shape: f32[64,1], index: 3, kind: input, shape index: {}]
  %s4 = inlined_call_operand.vmem [shape: f32[64,128], index: 4, kind: output, shape index: {}]
  %s5 = sld [smem:[#allocation0]]
  $region26: #{_lambda_.24} parent=0
    _
  %s7 = ssub.s32 1, %s5
  %s8 = scalar_select 0, %s7, %s5
  // Predicated region
  $region2: #{_lambda_.24} parent=0 // pred_check
    _
  $region3: #{_lambda_.24} parent=0 // pred_check_branch
    %10 = sbr.rel (0) target = $region5
  $region4: #{_lambda_.24} parent=0 // pred_region
    _
  $region5: #{_lambda_.24} parent=0 // pred_fallthru
    _
  // Predicated region
  $region6: #{_lambda_.24} parent=0 // pred_check
    _
  $region7: #{_lambda_.24} parent=0 // pred_check_branch
    %12 = sbr.rel (0) target = $region9
  $region8: #{_lambda_.24} parent=0 // pred_region
    _
  $region9: #{_lambda_.24} parent=0 // pred_fallthru
    _
  // Predicated region
  $region10: #{_lambda_.24} parent=0 // pred_check
    _
  $region11: #{_lambda_.24} parent=0 // pred_check_branch
    %14 = sbr.rel (0) target = $region13
  $region12: #{_lambda_.24} parent=0 // pred_region
    _
  $region13: #{_lambda_.24} parent=0 // pred_fallthru
    _
  // Predicated region
  $region14: #{_lambda_.24} parent=0 // pred_check
    _
  $region15: #{_lambda_.24} parent=0 // pred_check_branch
    %16 = sbr.rel (0) target = $region17
  $region16: #{_lambda_.24} parent=0 // pred_region
    _
  $region17: #{_lambda_.24} parent=0 // pred_fallthru
    _
  %v18 = vld [vmem:[%s0] sm:$0xff]
  %v19 = vld [vmem:[%s0 + $0x8] sm:$0xff]
  %v20 = vld [vmem:[%s0 + $0x10] sm:$0xff]
  %v21 = vld [vmem:[%s0 + $0x18] sm:$0xff]
  %v22 = vld [vmem:[%s0 + $0x20] sm:$0xff]
  %v23 = vld [vmem:[%s0 + $0x28] sm:$0xff]
  %v24 = vld [vmem:[%s0 + $0x30] sm:$0xff]
  %v25 = vld [vmem:[%s0 + $0x38] sm:$0xff]
  %v26 = vld [vmem:[%s1] sm:$0xf]
  %v27 = vld [vmem:[%s1 + $0x4] sm:$0xf]
  %v28 = vld [vmem:[%s1 + $0x8] sm:$0xf]
  %v29 = vld [vmem:[%s1 + $0xc] sm:$0xf]
  %v30 = vld [vmem:[%s1 + $0x10] sm:$0xf]
  %v31 = vld [vmem:[%s1 + $0x14] sm:$0xf]
  %v32 = vld [vmem:[%s1 + $0x18] sm:$0xf]
  %v33 = vld [vmem:[%s1 + $0x1c] sm:$0xf]
  %v34 = vld [vmem:[%s1 + $0x20] sm:$0xf]
  %v35 = vld [vmem:[%s1 + $0x24] sm:$0xf]
  %v36 = vld [vmem:[%s1 + $0x28] sm:$0xf]
  %v37 = vld [vmem:[%s1 + $0x2c] sm:$0xf]
  %v38 = vld [vmem:[%s1 + $0x30] sm:$0xf]
  %v39 = vld [vmem:[%s1 + $0x34] sm:$0xf]
  %v40 = vld [vmem:[%s1 + $0x38] sm:$0xf]
  %v41 = vld [vmem:[%s1 + $0x3c] sm:$0xf]
  %v42 = vld [vmem:[%s1 + $0x40] sm:$0xf]
  %v43 = vld [vmem:[%s1 + $0x44] sm:$0xf]
  %v52 = vunpack.c.l.b16 %v18
  %v53 = vunpack.c.h.b16 %v18
  %v54 = vunpack.c.l.b16 %v19
  %v55 = vunpack.c.h.b16 %v19
  %v56 = vunpack.c.l.b16 %v20
  %v57 = vunpack.c.h.b16 %v20
  %v58 = vunpack.c.l.b16 %v21
  %v59 = vunpack.c.h.b16 %v21
  %v60 = vunpack.c.l.b16 %v22
  %v61 = vunpack.c.h.b16 %v22
  %v62 = vunpack.c.l.b16 %v23
  %v63 = vunpack.c.h.b16 %v23
  %v64 = vunpack.c.l.b16 %v24
  %v65 = vunpack.c.h.b16 %v24
  %v66 = vunpack.c.l.b16 %v25
  %v67 = vunpack.c.h.b16 %v25
  %v68 = vpack.c.b16 %v54, %v52
  %v69 = vpack.c.b16 %v55, %v53
  %v70 = vpack.c.b16 %v58, %v56
  %v71 = vpack.c.b16 %v59, %v57
  %v72 = vpack.c.b16 %v62, %v60
  %v73 = vpack.c.b16 %v63, %v61
  %v74 = vpack.c.b16 %v66, %v64
  %v75 = vpack.c.b16 %v67, %v65
  %v98 = vunpack.c.l.b16 %v26
  %v99 = vunpack.c.l.b16 %v27
  %v100 = vunpack.c.l.b16 %v28
  %v101 = vunpack.c.l.b16 %v29
  %v102 = vunpack.c.l.b16 %v30
  %v103 = vunpack.c.l.b16 %v31
  %v104 = vunpack.c.l.b16 %v32
  %v105 = vunpack.c.l.b16 %v33
  %v106 = vunpack.c.l.b16 %v34
  %v107 = vunpack.c.l.b16 %v35
  %v108 = vunpack.c.l.b16 %v36
  %v109 = vunpack.c.l.b16 %v37
  %v110 = vunpack.c.l.b16 %v38
  %v111 = vunpack.c.l.b16 %v39
  %v112 = vunpack.c.l.b16 %v40
  %v113 = vunpack.c.l.b16 %v41
  %v114 = vunpack.c.l.b16 %v42
  %v115 = vunpack.c.l.b16 %v43
  %v116 = vpack.c.b16 %v99, %v98
  %v117 = vpack.c.b16 %v101, %v100
  %v118 = vpack.c.b16 %v103, %v102
  %v119 = vpack.c.b16 %v105, %v104
  %v120 = vpack.c.b16 %v107, %v106
  %v121 = vpack.c.b16 %v109, %v108
  %v122 = vpack.c.b16 %v111, %v110
  %v123 = vpack.c.b16 %v113, %v112
  %v124 = vpack.c.b16 %v115, %v114
  %vm134 = vcmask 130048
  %v136 = vsel %vm134, %v69, 0
  %v139 = vsel %vm134, %v71, 0
  %v142 = vsel %vm134, %v73, 0
  %v145 = vsel %vm134, %v75, 0
  %147 = vmatprep.subr.bf16.mxu0 0
  %148 = vmatpush1.bf16.msra.mxu0 %v123
  %149 = vmatprep.subr.bf16.mxu0 0
  %150 = vmatpush1.bf16.msra.mxu0 %v122
  %151 = vmatprep.subr.bf16.mxu0 0
  %152 = vmatpush1.bf16.msra.mxu0 %v121
  %153 = vmatprep.subr.bf16.mxu0 0
  %154 = vmatpush1.bf16.msra.mxu0 %v120
  %155 = vmatprep.subr.bf16.mxu0 0
  %156 = vmatpush1.bf16.msra.mxu0 %v119
  %157 = vmatprep.subr.bf16.mxu0 0
  %158 = vmatpush1.bf16.msra.mxu0 %v118
  %159 = vmatprep.subr.bf16.mxu0 0
  %160 = vmatpush1.bf16.msra.mxu0 %v117
  %161 = vmatprep.subr.bf16.mxu0 0
  %162 = vmatpush1.bf16.msra.mxu0 %v116
  %163 = vmatprep.subr.bf16.mxu0 0
  %164 = vmatpush2.bf16.msra.mxu0 0
  %165 = vmatprep.subr.bf16.mxu0 0
  %166 = vmatpush2.bf16.msra.mxu0 0
  %167 = vmatprep.subr.bf16.mxu0 0
  %168 = vmatpush2.bf16.msra.mxu0 0
  %169 = vmatprep.subr.bf16.mxu0 0
  %170 = vmatpush2.bf16.msra.mxu0 0
  %171 = vmatprep.subr.bf16.mxu0 0
  %172 = vmatpush2.bf16.msra.mxu0 0
  %173 = vmatprep.subr.bf16.mxu0 0
  %174 = vmatpush2.bf16.msra.mxu0 0
  %175 = vmatprep.subr.bf16.mxu0 0
  %176 = vmatpush2.bf16.msra.mxu0 0
  %177 = vmatprep.subr.bf16.mxu0 0
  %178 = vmatpush2.bf16.msra.mxu0 %v124
  %179 = vmatprep.mubr.bf16.mxu0 %v136
  %180 = vmatmul.mubr.bf16.gmra.mxu0 %v68
  %v181 = vpop.f32.mrf.mxu0
  %v182 = vadd.f32 0.0, %v181
  %v183 = vpop.f32.mrf.mxu0
  %v184 = vpop.f32.mrf.mxu0
  %v185 = vadd.f32 0.0, %v184
  %v186 = vpop.f32.mrf.mxu0
  %187 = vmatprep.mubr.bf16.mxu0 %v139
  %188 = vmatmul.mubr.bf16.gmra.mxu0 %v70
  %v189 = vpop.f32.mrf.mxu0
  %v190 = vadd.f32 0.0, %v189
  %v191 = vpop.f32.mrf.mxu0
  %v192 = vpop.f32.mrf.mxu0
  %v193 = vadd.f32 0.0, %v192
  %v194 = vpop.f32.mrf.mxu0
  %195 = vmatprep.mubr.bf16.mxu0 %v142
  %196 = vmatmul.mubr.bf16.gmra.mxu0 %v72
  %v197 = vpop.f32.mrf.mxu0
  %v198 = vadd.f32 0.0, %v197
  %v199 = vpop.f32.mrf.mxu0
  %v200 = vpop.f32.mrf.mxu0
  %v201 = vadd.f32 0.0, %v200
  %v202 = vpop.f32.mrf.mxu0
  %203 = vmatprep.mubr.bf16.mxu0 %v145
  %204 = vmatmul.mubr.bf16.gmra.mxu0 %v74
  %v205 = vpop.f32.mrf.mxu0
  %v206 = vadd.f32 0.0, %v205
  %v207 = vpop.f32.mrf.mxu0
  %v208 = vpop.f32.mrf.mxu0
  %v209 = vadd.f32 0.0, %v208
  %v210 = vpop.f32.mrf.mxu0
  %211 = vdwg.mxu0
  %v212 = vld [vmem:[%s2] sm:$0xff]
  %v213 = vld [vmem:[%s2 + $0x8] sm:$0xff]
  %v214 = vld [vmem:[%s2 + $0x10] sm:$0xff]
  %v215 = vld [vmem:[%s2 + $0x18] sm:$0xff]
  %v216 = vld [vmem:[%s2 + $0x20] sm:$0xff]
  %v217 = vld [vmem:[%s2 + $0x28] sm:$0xff]
  %v218 = vld [vmem:[%s2 + $0x30] sm:$0xff]
  %v219 = vld [vmem:[%s2 + $0x38] sm:$0xff]
  %221 = vset.pattern.permute.xlu0 0
  %222 = vperm.xlu0 %221, %v212
  %v223 = vpop.permute.xlu0 %222
  %226 = vset.pattern.permute.xlu0 0
  %227 = vperm.xlu0 %226, %v213
  %v228 = vpop.permute.xlu0 %227
  %231 = vset.pattern.permute.xlu0 0
  %232 = vperm.xlu0 %231, %v214
  %v233 = vpop.permute.xlu0 %232
  %236 = vset.pattern.permute.xlu0 0
  %237 = vperm.xlu0 %236, %v215
  %v238 = vpop.permute.xlu0 %237
  %241 = vset.pattern.permute.xlu0 0
  %242 = vperm.xlu0 %241, %v216
  %v243 = vpop.permute.xlu0 %242
  %246 = vset.pattern.permute.xlu0 0
  %247 = vperm.xlu0 %246, %v217
  %v248 = vpop.permute.xlu0 %247
  %251 = vset.pattern.permute.xlu0 0
  %252 = vperm.xlu0 %251, %v218
  %v253 = vpop.permute.xlu0 %252
  %256 = vset.pattern.permute.xlu0 0
  %257 = vperm.xlu0 %256, %v219
  %v258 = vpop.permute.xlu0 %257
  %v260 = vmul.f32 %v182, %v223
  %v261 = vmul.f32 %v185, %v228
  %v262 = vmul.f32 %v190, %v233
  %v263 = vmul.f32 %v193, %v238
  %v264 = vmul.f32 %v198, %v243
  %v265 = vmul.f32 %v201, %v248
  %v266 = vmul.f32 %v206, %v253
  %v267 = vmul.f32 %v209, %v258
  %v268 = vld [vmem:[%s3] sm:$0xff]
  %v269 = vld [vmem:[%s3 + $0x8] sm:$0xff]
  %v270 = vld [vmem:[%s3 + $0x10] sm:$0xff]
  %v271 = vld [vmem:[%s3 + $0x18] sm:$0xff]
  %v272 = vld [vmem:[%s3 + $0x20] sm:$0xff]
  %v273 = vld [vmem:[%s3 + $0x28] sm:$0xff]
  %v274 = vld [vmem:[%s3 + $0x30] sm:$0xff]
  %v275 = vld [vmem:[%s3 + $0x38] sm:$0xff]
  %277 = vset.pattern.permute.xlu0 0
  %278 = vperm.xlu0 %277, %v268
  %v279 = vpop.permute.xlu0 %278
  %282 = vset.pattern.permute.xlu0 0
  %283 = vperm.xlu0 %282, %v269
  %v284 = vpop.permute.xlu0 %283
  %287 = vset.pattern.permute.xlu0 0
  %288 = vperm.xlu0 %287, %v270
  %v289 = vpop.permute.xlu0 %288
  %292 = vset.pattern.permute.xlu0 0
  %293 = vperm.xlu0 %292, %v271
  %v294 = vpop.permute.xlu0 %293
  %297 = vset.pattern.permute.xlu0 0
  %298 = vperm.xlu0 %297, %v272
  %v299 = vpop.permute.xlu0 %298
  %302 = vset.pattern.permute.xlu0 0
  %303 = vperm.xlu0 %302, %v273
  %v304 = vpop.permute.xlu0 %303
  %307 = vset.pattern.permute.xlu0 0
  %308 = vperm.xlu0 %307, %v274
  %v309 = vpop.permute.xlu0 %308
  %312 = vset.pattern.permute.xlu0 0
  %313 = vperm.xlu0 %312, %v275
  %v314 = vpop.permute.xlu0 %313
  %v316 = vadd.f32 %v260, %v279
  %v317 = vadd.f32 %v261, %v284
  %v318 = vadd.f32 %v262, %v289
  %v319 = vadd.f32 %v263, %v294
  %v320 = vadd.f32 %v264, %v299
  %v321 = vadd.f32 %v265, %v304
  %v322 = vadd.f32 %v266, %v309
  %v323 = vadd.f32 %v267, %v314
  %v324 = vmax.f32 %v316, 0.0
  %v325 = vmax.f32 %v317, 0.0
  %v326 = vmax.f32 %v318, 0.0
  %v327 = vmax.f32 %v319, 0.0
  %v328 = vmax.f32 %v320, 0.0
  %v329 = vmax.f32 %v321, 0.0
  %v330 = vmax.f32 %v322, 0.0
  %v331 = vmax.f32 %v323, 0.0
  %332 = vst [vmem:[%s4] sm:$0xff] %v324
  %333 = vst [vmem:[%s4 + $0x8] sm:$0xff] %v325
  %334 = vst [vmem:[%s4 + $0x10] sm:$0xff] %v326
  %335 = vst [vmem:[%s4 + $0x18] sm:$0xff] %v327
  %336 = vst [vmem:[%s4 + $0x20] sm:$0xff] %v328
  %337 = vst [vmem:[%s4 + $0x28] sm:$0xff] %v329
  %338 = vst [vmem:[%s4 + $0x30] sm:$0xff] %v330
  %339 = vst [vmem:[%s4 + $0x38] sm:$0xff] %v331
  // Predicated region
  $region18: #{_lambda_.24} parent=0 // pred_check
    _
  $region19: #{_lambda_.24} parent=0 // pred_check_branch
    %341 = sbr.rel (0) target = $region21
  $region20: #{_lambda_.24} parent=0 // pred_region
    _
  $region21: #{_lambda_.24} parent=0 // pred_fallthru
    _
  // Predicated region
  $region22: #{_lambda_.24} parent=0 // pred_check
    _
  $region23: #{_lambda_.24} parent=0 // pred_check_branch
    %343 = sbr.rel (0) target = $region25
  $region24: #{_lambda_.24} parent=0 // pred_region
    _
  $region25: #{_lambda_.24} parent=0 // pred_fallthru
    _

// kernel: _lambda_.25
$region0: #{_lambda_.25}
  #allocation0 [shape = 'u32[]', space=smem, size = 0x4, offset = 0x4, fixed_abs, tag = 'smem constant byte address 0x4 - core index']
  #allocation1 [shape = 'u32[144,128]{1,0:T(1,128)}', space=vmem, size = 0x12000, scoped, tag = 'internal scratch']
  %s0 = inlined_call_operand.vmem [shape: bf16[64,288], index: 0, kind: input, shape index: {}]
  %s1 = inlined_call_operand.vmem [shape: bf16[288,128], index: 1, kind: input, shape index: {}]
  %s2 = inlined_call_operand.vmem [shape: f32[64,1], index: 2, kind: input, shape index: {}]
  %s3 = inlined_call_operand.vmem [shape: f32[64,1], index: 3, kind: input, shape index: {}]
  %s4 = inlined_call_operand.vmem [shape: f32[64,128], index: 4, kind: output, shape index: {}]
  %s5 = sld [smem:[#allocation0]]
  $region26: #{_lambda_.25} parent=0
    _
  %s7 = ssub.s32 1, %s5
  %s8 = scalar_select 0, %s7, %s5
  // Predicated region
  $region2: #{_lambda_.25} parent=0 // pred_check
    _
  $region3: #{_lambda_.25} parent=0 // pred_check_branch
    %10 = sbr.rel (0) target = $region5
  $region4: #{_lambda_.25} parent=0 // pred_region
    _
  $region5: #{_lambda_.25} parent=0 // pred_fallthru
    _
  // Predicated region
  $region6: #{_lambda_.25} parent=0 // pred_check
    _
  $region7: #{_lambda_.25} parent=0 // pred_check_branch
    %12 = sbr.rel (0) target = $region9
  $region8: #{_lambda_.25} parent=0 // pred_region
    _
  $region9: #{_lambda_.25} parent=0 // pred_fallthru
    _
  // Predicated region
  $region10: #{_lambda_.25} parent=0 // pred_check
    _
  $region11: #{_lambda_.25} parent=0 // pred_check_branch
    %14 = sbr.rel (0) target = $region13
  $region12: #{_lambda_.25} parent=0 // pred_region
    _
  $region13: #{_lambda_.25} parent=0 // pred_fallthru
    _
  // Predicated region
  $region14: #{_lambda_.25} parent=0 // pred_check
    _
  $region15: #{_lambda_.25} parent=0 // pred_check_branch
    %16 = sbr.rel (0) target = $region17
  $region16: #{_lambda_.25} parent=0 // pred_region
    _
  $region17: #{_lambda_.25} parent=0 // pred_fallthru
    _
  %v18 = vld [vmem:[%s0] sm:$0xff]
  %v19 = vld [vmem:[%s0 + $0x8] sm:$0xf]
  %v20 = vld [vmem:[%s0 + $0xc] sm:$0xff]
  %v21 = vld [vmem:[%s0 + $0x14] sm:$0xf]
  %v22 = vld [vmem:[%s0 + $0x18] sm:$0xff]
  %v23 = vld [vmem:[%s0 + $0x20] sm:$0xf]
  %v24 = vld [vmem:[%s0 + $0x24] sm:$0xff]
  %v25 = vld [vmem:[%s0 + $0x2c] sm:$0xf]
  %v26 = vld [vmem:[%s0 + $0x30] sm:$0xff]
  %v27 = vld [vmem:[%s0 + $0x38] sm:$0xf]
  %v28 = vld [vmem:[%s0 + $0x3c] sm:$0xff]
  %v29 = vld [vmem:[%s0 + $0x44] sm:$0xf]
  %v30 = vld [vmem:[%s0 + $0x48] sm:$0xff]
  %v31 = vld [vmem:[%s0 + $0x50] sm:$0xf]
  %v32 = vld [vmem:[%s0 + $0x54] sm:$0xff]
  %v33 = vld [vmem:[%s0 + $0x5c] sm:$0xf]
  %v34 = vld [vmem:[%s1] sm:$0xf]
  %v35 = vld [vmem:[%s1 + $0x4] sm:$0xf]
  %v36 = vld [vmem:[%s1 + $0x8] sm:$0xf]
  %v37 = vld [vmem:[%s1 + $0xc] sm:$0xf]
  %v38 = vld [vmem:[%s1 + $0x10] sm:$0xf]
  %v39 = vld [vmem:[%s1 + $0x14] sm:$0xf]
  %v40 = vld [vmem:[%s1 + $0x18] sm:$0xf]
  %v41 = vld [vmem:[%s1 + $0x1c] sm:$0xf]
  %v42 = vld [vmem:[%s1 + $0x20] sm:$0xf]
  %v43 = vld [vmem:[%s1 + $0x24] sm:$0xf]
  %v44 = vld [vmem:[%s1 + $0x28] sm:$0xf]
  %v45 = vld [vmem:[%s1 + $0x2c] sm:$0xf]
  %v46 = vld [vmem:[%s1 + $0x30] sm:$0xf]
  %v47 = vld [vmem:[%s1 + $0x34] sm:$0xf]
  %v48 = vld [vmem:[%s1 + $0x38] sm:$0xf]
  %v49 = vld [vmem:[%s1 + $0x3c] sm:$0xf]
  %v50 = vld [vmem:[%s1 + $0x40] sm:$0xf]
  %v51 = vld [vmem:[%s1 + $0x44] sm:$0xf]
  %v52 = vld [vmem:[%s1 + $0x48] sm:$0xf]
  %v53 = vld [vmem:[%s1 + $0x4c] sm:$0xf]
  %v54 = vld [vmem:[%s1 + $0x50] sm:$0xf]
  %v55 = vld [vmem:[%s1 + $0x54] sm:$0xf]
  %v56 = vld [vmem:[%s1 + $0x58] sm:$0xf]
  %v57 = vld [vmem:[%s1 + $0x5c] sm:$0xf]
  %v58 = vld [vmem:[%s1 + $0x60] sm:$0xf]
  %v59 = vld [vmem:[%s1 + $0x64] sm:$0xf]
  %v60 = vld [vmem:[%s1 + $0x68] sm:$0xf]
  %v61 = vld [vmem:[%s1 + $0x6c] sm:$0xf]
  %v62 = vld [vmem:[%s1 + $0x70] sm:$0xf]
  %v63 = vld [vmem:[%s1 + $0x74] sm:$0xf]
  %v64 = vld [vmem:[%s1 + $0x78] sm:$0xf]
  %v65 = vld [vmem:[%s1 + $0x7c] sm:$0xf]
  %v66 = vld [vmem:[%s1 + $0x80] sm:$0xf]
  %v67 = vld [vmem:[%s1 + $0x84] sm:$0xf]
  %v68 = vld [vmem:[%s1 + $0x88] sm:$0xf]
  %v69 = vld [vmem:[%s1 + $0x8c] sm:$0xf]
  %v86 = vunpack.c.l.b16 %v18
  %v87 = vunpack.c.h.b16 %v18
  %v88 = vunpack.c.l.b16 %v19
  %v89 = vunpack.c.l.b16 %v20
  %v90 = vunpack.c.h.b16 %v20
  %v91 = vunpack.c.l.b16 %v21
  %v92 = vunpack.c.l.b16 %v22
  %v93 = vunpack.c.h.b16 %v22
  %v94 = vunpack.c.l.b16 %v23
  %v95 = vunpack.c.l.b16 %v24
  %v96 = vunpack.c.h.b16 %v24
  %v97 = vunpack.c.l.b16 %v25
  %v98 = vunpack.c.l.b16 %v26
  %v99 = vunpack.c.h.b16 %v26
  %v100 = vunpack.c.l.b16 %v27
  %v101 = vunpack.c.l.b16 %v28
  %v102 = vunpack.c.h.b16 %v28
  %v103 = vunpack.c.l.b16 %v29
  %v104 = vunpack.c.l.b16 %v30
  %v105 = vunpack.c.h.b16 %v30
  %v106 = vunpack.c.l.b16 %v31
  %v107 = vunpack.c.l.b16 %v32
  %v108 = vunpack.c.h.b16 %v32
  %v109 = vunpack.c.l.b16 %v33
  %v110 = vpack.c.b16 %v89, %v86
  %v111 = vpack.c.b16 %v90, %v87
  %v112 = vpack.c.b16 %v91, %v88
  %v113 = vpack.c.b16 %v95, %v92
  %v114 = vpack.c.b16 %v96, %v93
  %v115 = vpack.c.b16 %v97, %v94
  %v116 = vpack.c.b16 %v101, %v98
  %v117 = vpack.c.b16 %v102, %v99
  %v118 = vpack.c.b16 %v103, %v100
  %v119 = vpack.c.b16 %v107, %v104
  %v120 = vpack.c.b16 %v108, %v105
  %v121 = vpack.c.b16 %v109, %v106
  %v166 = vunpack.c.l.b16 %v34
  %v167 = vunpack.c.l.b16 %v35
  %v168 = vunpack.c.l.b16 %v36
  %v169 = vunpack.c.l.b16 %v37
  %v170 = vunpack.c.l.b16 %v38
  %v171 = vunpack.c.l.b16 %v39
  %v172 = vunpack.c.l.b16 %v40
  %v173 = vunpack.c.l.b16 %v41
  %v174 = vunpack.c.l.b16 %v42
  %v175 = vunpack.c.l.b16 %v43
  %v176 = vunpack.c.l.b16 %v44
  %v177 = vunpack.c.l.b16 %v45
  %v178 = vunpack.c.l.b16 %v46
  %v179 = vunpack.c.l.b16 %v47
  %v180 = vunpack.c.l.b16 %v48
  %v181 = vunpack.c.l.b16 %v49
  %v182 = vunpack.c.l.b16 %v50
  %v183 = vunpack.c.l.b16 %v51
  %v184 = vunpack.c.l.b16 %v52
  %v185 = vunpack.c.l.b16 %v53
  %v186 = vunpack.c.l.b16 %v54
  %v187 = vunpack.c.l.b16 %v55
  %v188 = vunpack.c.l.b16 %v56
  %v189 = vunpack.c.l.b16 %v57
  %v190 = vunpack.c.l.b16 %v58
  %v191 = vunpack.c.l.b16 %v59
  %v192 = vunpack.c.l.b16 %v60
  %v193 = vunpack.c.l.b16 %v61
  %v194 = vunpack.c.l.b16 %v62
  %v195 = vunpack.c.l.b16 %v63
  %v196 = vunpack.c.l.b16 %v64
  %v197 = vunpack.c.l.b16 %v65
  %v198 = vunpack.c.l.b16 %v66
  %v199 = vunpack.c.l.b16 %v67
  %v200 = vunpack.c.l.b16 %v68
  %v201 = vunpack.c.l.b16 %v69
  %v202 = vpack.c.b16 %v167, %v166
  %v203 = vpack.c.b16 %v169, %v168
  %v204 = vpack.c.b16 %v171, %v170
  %v205 = vpack.c.b16 %v173, %v172
  %v206 = vpack.c.b16 %v175, %v174
  %v207 = vpack.c.b16 %v177, %v176
  %v208 = vpack.c.b16 %v179, %v178
  %v209 = vpack.c.b16 %v181, %v180
  %v210 = vpack.c.b16 %v183, %v182
  %v211 = vpack.c.b16 %v185, %v184
  %v212 = vpack.c.b16 %v187, %v186
  %v213 = vpack.c.b16 %v189, %v188
  %v214 = vpack.c.b16 %v191, %v190
  %v215 = vpack.c.b16 %v193, %v192
  %v216 = vpack.c.b16 %v195, %v194
  %v217 = vpack.c.b16 %v197, %v196
  %v218 = vpack.c.b16 %v199, %v198
  %v219 = vpack.c.b16 %v201, %v200
  %vm238 = vcmask 261120
  %v240 = vsel %vm238, %v112, 0
  %v243 = vsel %vm238, %v115, 0
  %v246 = vsel %vm238, %v118, 0
  %v249 = vsel %vm238, %v121, 0
  %251 = vmatprep.subr.bf16.mxu0 0
  %252 = vmatpush1.bf16.msra.mxu0 %v209
  %253 = vmatprep.subr.bf16.mxu0 0
  %254 = vmatpush1.bf16.msra.mxu0 %v208
  %255 = vmatprep.subr.bf16.mxu0 0
  %256 = vmatpush1.bf16.msra.mxu0 %v207
  %257 = vmatprep.subr.bf16.mxu0 0
  %258 = vmatpush1.bf16.msra.mxu0 %v206
  %259 = vmatprep.subr.bf16.mxu0 0
  %260 = vmatpush1.bf16.msra.mxu0 %v205
  %261 = vmatprep.subr.bf16.mxu0 0
  %262 = vmatpush1.bf16.msra.mxu0 %v204
  %263 = vmatprep.subr.bf16.mxu0 0
  %264 = vmatpush1.bf16.msra.mxu0 %v203
  %265 = vmatprep.subr.bf16.mxu0 0
  %266 = vmatpush1.bf16.msra.mxu0 %v202
  %267 = vmatprep.subr.bf16.mxu0 0
  %268 = vmatpush2.bf16.msra.mxu0 %v217
  %269 = vmatprep.subr.bf16.mxu0 0
  %270 = vmatpush2.bf16.msra.mxu0 %v216
  %271 = vmatprep.subr.bf16.mxu0 0
  %272 = vmatpush2.bf16.msra.mxu0 %v215
  %273 = vmatprep.subr.bf16.mxu0 0
  %274 = vmatpush2.bf16.msra.mxu0 %v214
  %275 = vmatprep.subr.bf16.mxu0 0
  %276 = vmatpush2.bf16.msra.mxu0 %v213
  %277 = vmatprep.subr.bf16.mxu0 0
  %278 = vmatpush2.bf16.msra.mxu0 %v212
  %279 = vmatprep.subr.bf16.mxu0 0
  %280 = vmatpush2.bf16.msra.mxu0 %v211
  %281 = vmatprep.subr.bf16.mxu0 0
  %282 = vmatpush2.bf16.msra.mxu0 %v210
  %283 = vmatprep.mubr.bf16.mxu0 %v111
  %284 = vmatmul.mubr.bf16.gmra.mxu0 %v110
  %v285 = vpop.f32.mrf.mxu0
  %v286 = vadd.f32 0.0, %v285
  %v287 = vpop.f32.mrf.mxu0
  %v288 = vpop.f32.mrf.mxu0
  %v289 = vadd.f32 0.0, %v288
  %v290 = vpop.f32.mrf.mxu0
  %291 = vmatprep.mubr.bf16.mxu0 %v114
  %292 = vmatmul.mubr.bf16.gmra.mxu0 %v113
  %v293 = vpop.f32.mrf.mxu0
  %v294 = vadd.f32 0.0, %v293
  %v295 = vpop.f32.mrf.mxu0
  %v296 = vpop.f32.mrf.mxu0
  %v297 = vadd.f32 0.0, %v296
  %v298 = vpop.f32.mrf.mxu0
  %299 = vmatprep.mubr.bf16.mxu0 %v117
  %300 = vmatmul.mubr.bf16.gmra.mxu0 %v116
  %v301 = vpop.f32.mrf.mxu0
  %v302 = vadd.f32 0.0, %v301
  %v303 = vpop.f32.mrf.mxu0
  %v304 = vpop.f32.mrf.mxu0
  %v305 = vadd.f32 0.0, %v304
  %v306 = vpop.f32.mrf.mxu0
  %307 = vmatprep.mubr.bf16.mxu0 %v120
  %308 = vmatmul.mubr.bf16.gmra.mxu0 %v119
  %v309 = vpop.f32.mrf.mxu0
  %v310 = vadd.f32 0.0, %v309
  %v311 = vpop.f32.mrf.mxu0
  %v312 = vpop.f32.mrf.mxu0
  %v313 = vadd.f32 0.0, %v312
  %v314 = vpop.f32.mrf.mxu0
  %315 = vdwg.mxu0
  %316 = vmatprep.subr.bf16.mxu0 0
  %317 = vmatpush1.bf16.msra.mxu0 0
  %318 = vmatprep.subr.bf16.mxu0 0
  %319 = vmatpush1.bf16.msra.mxu0 0
  %320 = vmatprep.subr.bf16.mxu0 0
  %321 = vmatpush1.bf16.msra.mxu0 0
  %322 = vmatprep.subr.bf16.mxu0 0
  %323 = vmatpush1.bf16.msra.mxu0 0
  %324 = vmatprep.subr.bf16.mxu0 0
  %325 = vmatpush1.bf16.msra.mxu0 0
  %326 = vmatprep.subr.bf16.mxu0 0
  %327 = vmatpush1.bf16.msra.mxu0 0
  %328 = vmatprep.subr.bf16.mxu0 0
  %329 = vmatpush1.bf16.msra.mxu0 %v219
  %330 = vmatprep.subr.bf16.mxu0 0
  %331 = vmatpush1.bf16.msra.mxu0 %v218
  %332 = vmatprep.subr.bf16.mxu0 0
  %333 = vmatpush2.bf16.msra.mxu0 0
  %334 = vmatprep.subr.bf16.mxu0 0
  %335 = vmatpush2.bf16.msra.mxu0 0
  %336 = vmatprep.subr.bf16.mxu0 0
  %337 = vmatpush2.bf16.msra.mxu0 0
  %338 = vmatprep.subr.bf16.mxu0 0
  %339 = vmatpush2.bf16.msra.mxu0 0
  %340 = vmatprep.subr.bf16.mxu0 0
  %341 = vmatpush2.bf16.msra.mxu0 0
  %342 = vmatprep.subr.bf16.mxu0 0
  %343 = vmatpush2.bf16.msra.mxu0 0
  %344 = vmatprep.subr.bf16.mxu0 0
  %345 = vmatpush2.bf16.msra.mxu0 0
  %346 = vmatprep.subr.bf16.mxu0 0
  %347 = vmatpush2.bf16.msra.mxu0 0
  %348 = vmatprep.mubr.bf16.mxu0 0
  %349 = vmatmul.mubr.bf16.gmra.mxu0 %v240
  %v350 = vpop.f32.mrf.mxu0
  %v351 = vadd.f32 %v286, %v350
  %v352 = vpop.f32.mrf.mxu0
  %v353 = vpop.f32.mrf.mxu0
  %v354 = vadd.f32 %v289, %v353
  %v355 = vpop.f32.mrf.mxu0
  %356 = vmatprep.mubr.bf16.mxu0 0
  %357 = vmatmul.mubr.bf16.gmra.mxu0 %v243
  %v358 = vpop.f32.mrf.mxu0
  %v359 = vadd.f32 %v294, %v358
  %v360 = vpop.f32.mrf.mxu0
  %v361 = vpop.f32.mrf.mxu0
  %v362 = vadd.f32 %v297, %v361
  %v363 = vpop.f32.mrf.mxu0
  %364 = vmatprep.mubr.bf16.mxu0 0
  %365 = vmatmul.mubr.bf16.gmra.mxu0 %v246
  %v366 = vpop.f32.mrf.mxu0
  %v367 = vadd.f32 %v302, %v366
  %v368 = vpop.f32.mrf.mxu0
  %v369 = vpop.f32.mrf.mxu0
  %v370 = vadd.f32 %v305, %v369
  %v371 = vpop.f32.mrf.mxu0
  %372 = vmatprep.mubr.bf16.mxu0 0
  %373 = vmatmul.mubr.bf16.gmra.mxu0 %v249
  %v374 = vpop.f32.mrf.mxu0
  %v375 = vadd.f32 %v310, %v374
  %v376 = vpop.f32.mrf.mxu0
  %v377 = vpop.f32.mrf.mxu0
  %v378 = vadd.f32 %v313, %v377
  %v379 = vpop.f32.mrf.mxu0
  %380 = vdwg.mxu0
  %v381 = vld [vmem:[%s2] sm:$0xff]
  %v382 = vld [vmem:[%s2 + $0x8] sm:$0xff]
  %v383 = vld [vmem:[%s2 + $0x10] sm:$0xff]
  %v384 = vld [vmem:[%s2 + $0x18] sm:$0xff]
  %v385 = vld [vmem:[%s2 + $0x20] sm:$0xff]
  %v386 = vld [vmem:[%s2 + $0x28] sm:$0xff]
  %v387 = vld [vmem:[%s2 + $0x30] sm:$0xff]
  %v388 = vld [vmem:[%s2 + $0x38] sm:$0xff]
  %390 = vset.pattern.permute.xlu0 0
  %391 = vperm.xlu0 %390, %v381
  %v392 = vpop.permute.xlu0 %391
  %395 = vset.pattern.permute.xlu0 0
  %396 = vperm.xlu0 %395, %v382
  %v397 = vpop.permute.xlu0 %396
  %400 = vset.pattern.permute.xlu0 0
  %401 = vperm.xlu0 %400, %v383
  %v402 = vpop.permute.xlu0 %401
  %405 = vset.pattern.permute.xlu0 0
  %406 = vperm.xlu0 %405, %v384
  %v407 = vpop.permute.xlu0 %406
  %410 = vset.pattern.permute.xlu0 0
  %411 = vperm.xlu0 %410, %v385
  %v412 = vpop.permute.xlu0 %411
  %415 = vset.pattern.permute.xlu0 0
  %416 = vperm.xlu0 %415, %v386
  %v417 = vpop.permute.xlu0 %416
  %420 = vset.pattern.permute.xlu0 0
  %421 = vperm.xlu0 %420, %v387
  %v422 = vpop.permute.xlu0 %421
  %425 = vset.pattern.permute.xlu0 0
  %426 = vperm.xlu0 %425, %v388
  %v427 = vpop.permute.xlu0 %426
  %v429 = vmul.f32 %v351, %v392
  %v430 = vmul.f32 %v354, %v397
  %v431 = vmul.f32 %v359, %v402
  %v432 = vmul.f32 %v362, %v407
  %v433 = vmul.f32 %v367, %v412
  %v434 = vmul.f32 %v370, %v417
  %v435 = vmul.f32 %v375, %v422
  %v436 = vmul.f32 %v378, %v427
  %v437 = vld [vmem:[%s3] sm:$0xff]
  %v438 = vld [vmem:[%s3 + $0x8] sm:$0xff]
  %v439 = vld [vmem:[%s3 + $0x10] sm:$0xff]
  %v440 = vld [vmem:[%s3 + $0x18] sm:$0xff]
  %v441 = vld [vmem:[%s3 + $0x20] sm:$0xff]
  %v442 = vld [vmem:[%s3 + $0x28] sm:$0xff]
  %v443 = vld [vmem:[%s3 + $0x30] sm:$0xff]
  %v444 = vld [vmem:[%s3 + $0x38] sm:$0xff]
  %446 = vset.pattern.permute.xlu0 0
  %447 = vperm.xlu0 %446, %v437
  %v448 = vpop.permute.xlu0 %447
  %451 = vset.pattern.permute.xlu0 0
  %452 = vperm.xlu0 %451, %v438
  %v453 = vpop.permute.xlu0 %452
  %456 = vset.pattern.permute.xlu0 0
  %457 = vperm.xlu0 %456, %v439
  %v458 = vpop.permute.xlu0 %457
  %461 = vset.pattern.permute.xlu0 0
  %462 = vperm.xlu0 %461, %v440
  %v463 = vpop.permute.xlu0 %462
  %466 = vset.pattern.permute.xlu0 0
  %467 = vperm.xlu0 %466, %v441
  %v468 = vpop.permute.xlu0 %467
  %471 = vset.pattern.permute.xlu0 0
  %472 = vperm.xlu0 %471, %v442
  %v473 = vpop.permute.xlu0 %472
  %476 = vset.pattern.permute.xlu0 0
  %477 = vperm.xlu0 %476, %v443
  %v478 = vpop.permute.xlu0 %477
  %481 = vset.pattern.permute.xlu0 0
  %482 = vperm.xlu0 %481, %v444
  %v483 = vpop.permute.xlu0 %482
  %v485 = vadd.f32 %v429, %v448
  %v486 = vadd.f32 %v430, %v453
  %v487 = vadd.f32 %v431, %v458
  %v488 = vadd.f32 %v432, %v463
  %v489 = vadd.f32 %v433, %v468
  %v490 = vadd.f32 %v434, %v473
  %v491 = vadd.f32 %v435, %v478
  %v492 = vadd.f32 %v436, %v483
  %v493 = vmax.f32 %v485, 0.0
  %v494 = vmax.f32 %v486, 0.0
  %v495 = vmax.f32 %v487, 0.0
  %v496 = vmax.f32 %v488, 0.0
  %v497 = vmax.f32 %v489, 0.0
  %v498 = vmax.f32 %v490, 0.0
  %v499 = vmax.f32 %v491, 0.0
  %v500 = vmax.f32 %v492, 0.0
  %501 = vst [vmem:[%s4] sm:$0xff] %v493
  %502 = vst [vmem:[%s4 + $0x8] sm:$0xff] %v494
  %503 = vst [vmem:[%s4 + $0x10] sm:$0xff] %v495
  %504 = vst [vmem:[%s4 + $0x18] sm:$0xff] %v496
  %505 = vst [vmem:[%s4 + $0x20] sm:$0xff] %v497
  %506 = vst [vmem:[%s4 + $0x28] sm:$0xff] %v498
  %507 = vst [vmem:[%s4 + $0x30] sm:$0xff] %v499
  %508 = vst [vmem:[%s4 + $0x38] sm:$0xff] %v500
  // Predicated region
  $region18: #{_lambda_.25} parent=0 // pred_check
    _
  $region19: #{_lambda_.25} parent=0 // pred_check_branch
    %510 = sbr.rel (0) target = $region21
  $region20: #{_lambda_.25} parent=0 // pred_region
    _
  $region21: #{_lambda_.25} parent=0 // pred_fallthru
    _
  // Predicated region
  $region22: #{_lambda_.25} parent=0 // pred_check
    _
  $region23: #{_lambda_.25} parent=0 // pred_check_branch
    %512 = sbr.rel (0) target = $region25
  $region24: #{_lambda_.25} parent=0 // pred_region
    _
  $region25: #{_lambda_.25} parent=0 // pred_fallthru
    _

// kernel: _lambda_.28
$region0: #{_lambda_.28}
  #allocation0 [shape = 'u32[]', space=smem, size = 0x4, offset = 0x4, fixed_abs, tag = 'smem constant byte address 0x4 - core index']
  #allocation1 [shape = 'u32[144,128]{1,0:T(1,128)}', space=vmem, size = 0x12000, scoped, tag = 'internal scratch']
  %s0 = inlined_call_operand.vmem [shape: bf16[32,288], index: 0, kind: input, shape index: {}]
  %s1 = inlined_call_operand.vmem [shape: bf16[288,256], index: 1, kind: input, shape index: {}]
  %s2 = inlined_call_operand.vmem [shape: f32[32,1], index: 2, kind: input, shape index: {}]
  %s3 = inlined_call_operand.vmem [shape: f32[32,1], index: 3, kind: input, shape index: {}]
  %s4 = inlined_call_operand.vmem [shape: f32[32,256], index: 4, kind: output, shape index: {}]
  %s5 = sld [smem:[#allocation0]]
  $region26: #{_lambda_.28} parent=0
    _
  %s7 = ssub.s32 1, %s5
  %s8 = scalar_select 0, %s7, %s5
  // Predicated region
  $region2: #{_lambda_.28} parent=0 // pred_check
    _
  $region3: #{_lambda_.28} parent=0 // pred_check_branch
    %10 = sbr.rel (0) target = $region5
  $region4: #{_lambda_.28} parent=0 // pred_region
    _
  $region5: #{_lambda_.28} parent=0 // pred_fallthru
    _
  // Predicated region
  $region6: #{_lambda_.28} parent=0 // pred_check
    _
  $region7: #{_lambda_.28} parent=0 // pred_check_branch
    %12 = sbr.rel (0) target = $region9
  $region8: #{_lambda_.28} parent=0 // pred_region
    _
  $region9: #{_lambda_.28} parent=0 // pred_fallthru
    _
  // Predicated region
  $region10: #{_lambda_.28} parent=0 // pred_check
    _
  $region11: #{_lambda_.28} parent=0 // pred_check_branch
    %14 = sbr.rel (0) target = $region13
  $region12: #{_lambda_.28} parent=0 // pred_region
    _
  $region13: #{_lambda_.28} parent=0 // pred_fallthru
    _
  // Predicated region
  $region14: #{_lambda_.28} parent=0 // pred_check
    _
  $region15: #{_lambda_.28} parent=0 // pred_check_branch
    %16 = sbr.rel (0) target = $region17
  $region16: #{_lambda_.28} parent=0 // pred_region
    _
  $region17: #{_lambda_.28} parent=0 // pred_fallthru
    _
  %v18 = vld [vmem:[%s0] sm:$0xff]
  %v19 = vld [vmem:[%s0 + $0x8] sm:$0xf]
  %v20 = vld [vmem:[%s0 + $0xc] sm:$0xff]
  %v21 = vld [vmem:[%s0 + $0x14] sm:$0xf]
  %v22 = vld [vmem:[%s0 + $0x18] sm:$0xff]
  %v23 = vld [vmem:[%s0 + $0x20] sm:$0xf]
  %v24 = vld [vmem:[%s0 + $0x24] sm:$0xff]
  %v25 = vld [vmem:[%s0 + $0x2c] sm:$0xf]
  %v26 = vld [vmem:[%s1] sm:$0xff]
  %v27 = vld [vmem:[%s1 + $0x8] sm:$0xff]
  %v28 = vld [vmem:[%s1 + $0x10] sm:$0xff]
  %v29 = vld [vmem:[%s1 + $0x18] sm:$0xff]
  %v30 = vld [vmem:[%s1 + $0x20] sm:$0xff]
  %v31 = vld [vmem:[%s1 + $0x28] sm:$0xff]
  %v32 = vld [vmem:[%s1 + $0x30] sm:$0xff]
  %v33 = vld [vmem:[%s1 + $0x38] sm:$0xff]
  %v34 = vld [vmem:[%s1 + $0x40] sm:$0xff]
  %v35 = vld [vmem:[%s1 + $0x48] sm:$0xff]
  %v36 = vld [vmem:[%s1 + $0x50] sm:$0xff]
  %v37 = vld [vmem:[%s1 + $0x58] sm:$0xff]
  %v38 = vld [vmem:[%s1 + $0x60] sm:$0xff]
  %v39 = vld [vmem:[%s1 + $0x68] sm:$0xff]
  %v40 = vld [vmem:[%s1 + $0x70] sm:$0xff]
  %v41 = vld [vmem:[%s1 + $0x78] sm:$0xff]
  %v42 = vld [vmem:[%s1 + $0x80] sm:$0xff]
  %v43 = vld [vmem:[%s1 + $0x88] sm:$0xff]
  %v44 = vld [vmem:[%s1 + $0x90] sm:$0xff]
  %v45 = vld [vmem:[%s1 + $0x98] sm:$0xff]
  %v46 = vld [vmem:[%s1 + $0xa0] sm:$0xff]
  %v47 = vld [vmem:[%s1 + $0xa8] sm:$0xff]
  %v48 = vld [vmem:[%s1 + $0xb0] sm:$0xff]
  %v49 = vld [vmem:[%s1 + $0xb8] sm:$0xff]
  %v50 = vld [vmem:[%s1 + $0xc0] sm:$0xff]
  %v51 = vld [vmem:[%s1 + $0xc8] sm:$0xff]
  %v52 = vld [vmem:[%s1 + $0xd0] sm:$0xff]
  %v53 = vld [vmem:[%s1 + $0xd8] sm:$0xff]
  %v54 = vld [vmem:[%s1 + $0xe0] sm:$0xff]
  %v55 = vld [vmem:[%s1 + $0xe8] sm:$0xff]
  %v56 = vld [vmem:[%s1 + $0xf0] sm:$0xff]
  %v57 = vld [vmem:[%s1 + $0xf8] sm:$0xff]
  %v58 = vld [vmem:[%s1 + $0x100] sm:$0xff]
  %v59 = vld [vmem:[%s1 + $0x108] sm:$0xff]
  %v60 = vld [vmem:[%s1 + $0x110] sm:$0xff]
  %v61 = vld [vmem:[%s1 + $0x118] sm:$0xff]
  %v70 = vunpack.c.l.b16 %v18
  %v71 = vunpack.c.h.b16 %v18
  %v72 = vunpack.c.l.b16 %v19
  %v73 = vunpack.c.l.b16 %v20
  %v74 = vunpack.c.h.b16 %v20
  %v75 = vunpack.c.l.b16 %v21
  %v76 = vunpack.c.l.b16 %v22
  %v77 = vunpack.c.h.b16 %v22
  %v78 = vunpack.c.l.b16 %v23
  %v79 = vunpack.c.l.b16 %v24
  %v80 = vunpack.c.h.b16 %v24
  %v81 = vunpack.c.l.b16 %v25
  %v82 = vpack.c.b16 %v73, %v70
  %v83 = vpack.c.b16 %v74, %v71
  %v84 = vpack.c.b16 %v75, %v72
  %v85 = vpack.c.b16 %v79, %v76
  %v86 = vpack.c.b16 %v80, %v77
  %v87 = vpack.c.b16 %v81, %v78
  %v128 = vunpack.c.l.b16 %v26
  %v129 = vunpack.c.h.b16 %v26
  %v130 = vunpack.c.l.b16 %v27
  %v131 = vunpack.c.h.b16 %v27
  %v132 = vunpack.c.l.b16 %v28
  %v133 = vunpack.c.h.b16 %v28
  %v134 = vunpack.c.l.b16 %v29
  %v135 = vunpack.c.h.b16 %v29
  %v136 = vunpack.c.l.b16 %v30
  %v137 = vunpack.c.h.b16 %v30
  %v138 = vunpack.c.l.b16 %v31
  %v139 = vunpack.c.h.b16 %v31
  %v140 = vunpack.c.l.b16 %v32
  %v141 = vunpack.c.h.b16 %v32
  %v142 = vunpack.c.l.b16 %v33
  %v143 = vunpack.c.h.b16 %v33
  %v144 = vunpack.c.l.b16 %v34
  %v145 = vunpack.c.h.b16 %v34
  %v146 = vunpack.c.l.b16 %v35
  %v147 = vunpack.c.h.b16 %v35
  %v148 = vunpack.c.l.b16 %v36
  %v149 = vunpack.c.h.b16 %v36
  %v150 = vunpack.c.l.b16 %v37
  %v151 = vunpack.c.h.b16 %v37
  %v152 = vunpack.c.l.b16 %v38
  %v153 = vunpack.c.h.b16 %v38
  %v154 = vunpack.c.l.b16 %v39
  %v155 = vunpack.c.h.b16 %v39
  %v156 = vunpack.c.l.b16 %v40
  %v157 = vunpack.c.h.b16 %v40
  %v158 = vunpack.c.l.b16 %v41
  %v159 = vunpack.c.h.b16 %v41
  %v160 = vunpack.c.l.b16 %v42
  %v161 = vunpack.c.h.b16 %v42
  %v162 = vunpack.c.l.b16 %v43
  %v163 = vunpack.c.h.b16 %v43
  %v164 = vunpack.c.l.b16 %v44
  %v165 = vunpack.c.h.b16 %v44
  %v166 = vunpack.c.l.b16 %v45
  %v167 = vunpack.c.h.b16 %v45
  %v168 = vunpack.c.l.b16 %v46
  %v169 = vunpack.c.h.b16 %v46
  %v170 = vunpack.c.l.b16 %v47
  %v171 = vunpack.c.h.b16 %v47
  %v172 = vunpack.c.l.b16 %v48
  %v173 = vunpack.c.h.b16 %v48
  %v174 = vunpack.c.l.b16 %v49
  %v175 = vunpack.c.h.b16 %v49
  %v176 = vunpack.c.l.b16 %v50
  %v177 = vunpack.c.h.b16 %v50
  %v178 = vunpack.c.l.b16 %v51
  %v179 = vunpack.c.h.b16 %v51
  %v180 = vunpack.c.l.b16 %v52
  %v181 = vunpack.c.h.b16 %v52
  %v182 = vunpack.c.l.b16 %v53
  %v183 = vunpack.c.h.b16 %v53
  %v184 = vunpack.c.l.b16 %v54
  %v185 = vunpack.c.h.b16 %v54
  %v186 = vunpack.c.l.b16 %v55
  %v187 = vunpack.c.h.b16 %v55
  %v188 = vunpack.c.l.b16 %v56
  %v189 = vunpack.c.h.b16 %v56
  %v190 = vunpack.c.l.b16 %v57
  %v191 = vunpack.c.h.b16 %v57
  %v192 = vunpack.c.l.b16 %v58
  %v193 = vunpack.c.h.b16 %v58
  %v194 = vunpack.c.l.b16 %v59
  %v195 = vunpack.c.h.b16 %v59
  %v196 = vunpack.c.l.b16 %v60
  %v197 = vunpack.c.h.b16 %v60
  %v198 = vunpack.c.l.b16 %v61
  %v199 = vunpack.c.h.b16 %v61
  %v200 = vpack.c.b16 %v130, %v128
  %v201 = vpack.c.b16 %v131, %v129
  %v202 = vpack.c.b16 %v134, %v132
  %v203 = vpack.c.b16 %v135, %v133
  %v204 = vpack.c.b16 %v138, %v136
  %v205 = vpack.c.b16 %v139, %v137
  %v206 = vpack.c.b16 %v142, %v140
  %v207 = vpack.c.b16 %v143, %v141
  %v208 = vpack.c.b16 %v146, %v144
  %v209 = vpack.c.b16 %v147, %v145
  %v210 = vpack.c.b16 %v150, %v148
  %v211 = vpack.c.b16 %v151, %v149
  %v212 = vpack.c.b16 %v154, %v152
  %v213 = vpack.c.b16 %v155, %v153
  %v214 = vpack.c.b16 %v158, %v156
  %v215 = vpack.c.b16 %v159, %v157
  %v216 = vpack.c.b16 %v162, %v160
  %v217 = vpack.c.b16 %v163, %v161
  %v218 = vpack.c.b16 %v166, %v164
  %v219 = vpack.c.b16 %v167, %v165
  %v220 = vpack.c.b16 %v170, %v168
  %v221 = vpack.c.b16 %v171, %v169
  %v222 = vpack.c.b16 %v174, %v172
  %v223 = vpack.c.b16 %v175, %v173
  %v224 = vpack.c.b16 %v178, %v176
  %v225 = vpack.c.b16 %v179, %v177
  %v226 = vpack.c.b16 %v182, %v180
  %v227 = vpack.c.b16 %v183, %v181
  %v228 = vpack.c.b16 %v186, %v184
  %v229 = vpack.c.b16 %v187, %v185
  %v230 = vpack.c.b16 %v190, %v188
  %v231 = vpack.c.b16 %v191, %v189
  %v232 = vpack.c.b16 %v194, %v192
  %v233 = vpack.c.b16 %v195, %v193
  %v234 = vpack.c.b16 %v198, %v196
  %v235 = vpack.c.b16 %v199, %v197
  %vm272 = vcmask 261120
  %v274 = vsel %vm272, %v84, 0
  %v277 = vsel %vm272, %v87, 0
  %279 = vmatprep.subr.bf16.mxu0 %v215
  %280 = vmatpush1.bf16.msra.mxu0 %v214
  %281 = vmatprep.subr.bf16.mxu0 %v213
  %282 = vmatpush1.bf16.msra.mxu0 %v212
  %283 = vmatprep.subr.bf16.mxu0 %v211
  %284 = vmatpush1.bf16.msra.mxu0 %v210
  %285 = vmatprep.subr.bf16.mxu0 %v209
  %286 = vmatpush1.bf16.msra.mxu0 %v208
  %287 = vmatprep.subr.bf16.mxu0 %v207
  %288 = vmatpush1.bf16.msra.mxu0 %v206
  %289 = vmatprep.subr.bf16.mxu0 %v205
  %290 = vmatpush1.bf16.msra.mxu0 %v204
  %291 = vmatprep.subr.bf16.mxu0 %v203
  %292 = vmatpush1.bf16.msra.mxu0 %v202
  %293 = vmatprep.subr.bf16.mxu0 %v201
  %294 = vmatpush1.bf16.msra.mxu0 %v200
  %295 = vmatprep.subr.bf16.mxu0 %v231
  %296 = vmatpush2.bf16.msra.mxu0 %v230
  %297 = vmatprep.subr.bf16.mxu0 %v229
  %298 = vmatpush2.bf16.msra.mxu0 %v228
  %299 = vmatprep.subr.bf16.mxu0 %v227
  %300 = vmatpush2.bf16.msra.mxu0 %v226
  %301 = vmatprep.subr.bf16.mxu0 %v225
  %302 = vmatpush2.bf16.msra.mxu0 %v224
  %303 = vmatprep.subr.bf16.mxu0 %v223
  %304 = vmatpush2.bf16.msra.mxu0 %v222
  %305 = vmatprep.subr.bf16.mxu0 %v221
  %306 = vmatpush2.bf16.msra.mxu0 %v220
  %307 = vmatprep.subr.bf16.mxu0 %v219
  %308 = vmatpush2.bf16.msra.mxu0 %v218
  %309 = vmatprep.subr.bf16.mxu0 %v217
  %310 = vmatpush2.bf16.msra.mxu0 %v216
  %311 = vmatprep.mubr.bf16.mxu0 %v83
  %312 = vmatmul.mubr.bf16.gmra.mxu0 %v82
  %v313 = vpop.f32.mrf.mxu0
  %v314 = vadd.f32 0.0, %v313
  %v315 = vpop.f32.mrf.mxu0
  %v316 = vadd.f32 0.0, %v315
  %v317 = vpop.f32.mrf.mxu0
  %v318 = vadd.f32 0.0, %v317
  %v319 = vpop.f32.mrf.mxu0
  %v320 = vadd.f32 0.0, %v319
  %321 = vmatprep.mubr.bf16.mxu0 %v86
  %322 = vmatmul.mubr.bf16.gmra.mxu0 %v85
  %v323 = vpop.f32.mrf.mxu0
  %v324 = vadd.f32 0.0, %v323
  %v325 = vpop.f32.mrf.mxu0
  %v326 = vadd.f32 0.0, %v325
  %v327 = vpop.f32.mrf.mxu0
  %v328 = vadd.f32 0.0, %v327
  %v329 = vpop.f32.mrf.mxu0
  %v330 = vadd.f32 0.0, %v329
  %331 = vdwg.mxu0
  %332 = vmatprep.subr.bf16.mxu0 0
  %333 = vmatpush1.bf16.msra.mxu0 0
  %334 = vmatprep.subr.bf16.mxu0 0
  %335 = vmatpush1.bf16.msra.mxu0 0
  %336 = vmatprep.subr.bf16.mxu0 0
  %337 = vmatpush1.bf16.msra.mxu0 0
  %338 = vmatprep.subr.bf16.mxu0 0
  %339 = vmatpush1.bf16.msra.mxu0 0
  %340 = vmatprep.subr.bf16.mxu0 0
  %341 = vmatpush1.bf16.msra.mxu0 0
  %342 = vmatprep.subr.bf16.mxu0 0
  %343 = vmatpush1.bf16.msra.mxu0 0
  %344 = vmatprep.subr.bf16.mxu0 %v235
  %345 = vmatpush1.bf16.msra.mxu0 %v234
  %346 = vmatprep.subr.bf16.mxu0 %v233
  %347 = vmatpush1.bf16.msra.mxu0 %v232
  %348 = vmatprep.subr.bf16.mxu0 0
  %349 = vmatpush2.bf16.msra.mxu0 0
  %350 = vmatprep.subr.bf16.mxu0 0
  %351 = vmatpush2.bf16.msra.mxu0 0
  %352 = vmatprep.subr.bf16.mxu0 0
  %353 = vmatpush2.bf16.msra.mxu0 0
  %354 = vmatprep.subr.bf16.mxu0 0
  %355 = vmatpush2.bf16.msra.mxu0 0
  %356 = vmatprep.subr.bf16.mxu0 0
  %357 = vmatpush2.bf16.msra.mxu0 0
  %358 = vmatprep.subr.bf16.mxu0 0
  %359 = vmatpush2.bf16.msra.mxu0 0
  %360 = vmatprep.subr.bf16.mxu0 0
  %361 = vmatpush2.bf16.msra.mxu0 0
  %362 = vmatprep.subr.bf16.mxu0 0
  %363 = vmatpush2.bf16.msra.mxu0 0
  %364 = vmatprep.mubr.bf16.mxu0 0
  %365 = vmatmul.mubr.bf16.gmra.mxu0 %v274
  %v366 = vpop.f32.mrf.mxu0
  %v367 = vadd.f32 %v314, %v366
  %v368 = vpop.f32.mrf.mxu0
  %v369 = vadd.f32 %v316, %v368
  %v370 = vpop.f32.mrf.mxu0
  %v371 = vadd.f32 %v318, %v370
  %v372 = vpop.f32.mrf.mxu0
  %v373 = vadd.f32 %v320, %v372
  %374 = vmatprep.mubr.bf16.mxu0 0
  %375 = vmatmul.mubr.bf16.gmra.mxu0 %v277
  %v376 = vpop.f32.mrf.mxu0
  %v377 = vadd.f32 %v324, %v376
  %v378 = vpop.f32.mrf.mxu0
  %v379 = vadd.f32 %v326, %v378
  %v380 = vpop.f32.mrf.mxu0
  %v381 = vadd.f32 %v328, %v380
  %v382 = vpop.f32.mrf.mxu0
  %v383 = vadd.f32 %v330, %v382
  %384 = vdwg.mxu0
  %v385 = vld [vmem:[%s2] sm:$0xff]
  %v386 = vld [vmem:[%s2 + $0x8] sm:$0xff]
  %v387 = vld [vmem:[%s2 + $0x10] sm:$0xff]
  %v388 = vld [vmem:[%s2 + $0x18] sm:$0xff]
  %390 = vset.pattern.permute.xlu0 0
  %391 = vperm.xlu0 %390, %v385
  %v392 = vpop.permute.xlu0 %391
  %395 = vset.pattern.permute.xlu0 0
  %396 = vperm.xlu0 %395, %v386
  %v397 = vpop.permute.xlu0 %396
  %400 = vset.pattern.permute.xlu0 0
  %401 = vperm.xlu0 %400, %v387
  %v402 = vpop.permute.xlu0 %401
  %405 = vset.pattern.permute.xlu0 0
  %406 = vperm.xlu0 %405, %v388
  %v407 = vpop.permute.xlu0 %406
  %v409 = vmul.f32 %v367, %v392
  %v410 = vmul.f32 %v369, %v392
  %v411 = vmul.f32 %v371, %v397
  %v412 = vmul.f32 %v373, %v397
  %v413 = vmul.f32 %v377, %v402
  %v414 = vmul.f32 %v379, %v402
  %v415 = vmul.f32 %v381, %v407
  %v416 = vmul.f32 %v383, %v407
  %v417 = vld [vmem:[%s3] sm:$0xff]
  %v418 = vld [vmem:[%s3 + $0x8] sm:$0xff]
  %v419 = vld [vmem:[%s3 + $0x10] sm:$0xff]
  %v420 = vld [vmem:[%s3 + $0x18] sm:$0xff]
  %422 = vset.pattern.permute.xlu0 0
  %423 = vperm.xlu0 %422, %v417
  %v424 = vpop.permute.xlu0 %423
  %427 = vset.pattern.permute.xlu0 0
  %428 = vperm.xlu0 %427, %v418
  %v429 = vpop.permute.xlu0 %428
  %432 = vset.pattern.permute.xlu0 0
  %433 = vperm.xlu0 %432, %v419
  %v434 = vpop.permute.xlu0 %433
  %437 = vset.pattern.permute.xlu0 0
  %438 = vperm.xlu0 %437, %v420
  %v439 = vpop.permute.xlu0 %438
  %v441 = vadd.f32 %v409, %v424
  %v442 = vadd.f32 %v410, %v424
  %v443 = vadd.f32 %v411, %v429
  %v444 = vadd.f32 %v412, %v429
  %v445 = vadd.f32 %v413, %v434
  %v446 = vadd.f32 %v414, %v434
  %v447 = vadd.f32 %v415, %v439
  %v448 = vadd.f32 %v416, %v439
  %v449 = vmax.f32 %v441, 0.0
  %v450 = vmax.f32 %v442, 0.0
  %v451 = vmax.f32 %v443, 0.0
  %v452 = vmax.f32 %v444, 0.0
  %v453 = vmax.f32 %v445, 0.0
  %v454 = vmax.f32 %v446, 0.0
  %v455 = vmax.f32 %v447, 0.0
  %v456 = vmax.f32 %v448, 0.0
  %457 = vst [vmem:[%s4] sm:$0xff] %v449
  %458 = vst [vmem:[%s4 + $0x8] sm:$0xff] %v450
  %459 = vst [vmem:[%s4 + $0x10] sm:$0xff] %v451
  %460 = vst [vmem:[%s4 + $0x18] sm:$0xff] %v452
  %461 = vst [vmem:[%s4 + $0x20] sm:$0xff] %v453
  %462 = vst [vmem:[%s4 + $0x28] sm:$0xff] %v454
  %463 = vst [vmem:[%s4 + $0x30] sm:$0xff] %v455
  %464 = vst [vmem:[%s4 + $0x38] sm:$0xff] %v456
  // Predicated region
  $region18: #{_lambda_.28} parent=0 // pred_check
    _
  $region19: #{_lambda_.28} parent=0 // pred_check_branch
    %466 = sbr.rel (0) target = $region21
  $region20: #{_lambda_.28} parent=0 // pred_region
    _
  $region21: #{_lambda_.28} parent=0 // pred_fallthru
    _
  // Predicated region
  $region22: #{_lambda_.28} parent=0 // pred_check
    _
  $region23: #{_lambda_.28} parent=0 // pred_check_branch
    %468 = sbr.rel (0) target = $region25
  $region24: #{_lambda_.28} parent=0 // pred_region
    _
  $region25: #{_lambda_.28} parent=0 // pred_fallthru
    _

// kernel: _lambda_.29
$region0: #{_lambda_.29}
  #allocation0 [shape = 'u32[]', space=smem, size = 0x4, offset = 0x4, fixed_abs, tag = 'smem constant byte address 0x4 - core index']
  #allocation1 [shape = 'u32[144,128]{1,0:T(1,128)}', space=vmem, size = 0x12000, scoped, tag = 'internal scratch']
  %s0 = inlined_call_operand.vmem [shape: bf16[16,144], index: 0, kind: input, shape index: {}]
  %s1 = inlined_call_operand.vmem [shape: bf16[144,1024], index: 1, kind: input, shape index: {}]
  %s2 = inlined_call_operand.vmem [shape: f32[16,1], index: 2, kind: input, shape index: {}]
  %s3 = inlined_call_operand.vmem [shape: f32[16,1], index: 3, kind: input, shape index: {}]
  %s4 = inlined_call_operand.vmem [shape: f32[16,1024], index: 4, kind: output, shape index: {}]
  %s5 = sld [smem:[#allocation0]]
  $region106: #{_lambda_.29} parent=0
    _
  %s7 = ssub.s32 1, %s5
  %s8 = scalar_select 0, %s7, %s5
  $region1: #{_lambda_.29} parent=0
    #allocation2 [shape = 'u8[147456]{0}', space=vmem, size = 0x24000, scoped, tag = 'input window, operand 1']
    #allocation3 [shape = 'u8[32768]{0}', space=vmem, size = 0x8000, scoped, tag = 'output window, operand 0']
    loop: start=0, step=1, limit=6
    $region2: #{_lambda_.29} parent=1 // loop_pre_header
      _
    $region3: #{_lambda_.29} parent=1 // loop_header
      %s10 = sphi 0, %s14
      %p11 = scmp.ge.s32.totalorder %s10, 6
      %s18 = sphi 0, %s18
      %s20 = sphi 0, %s18
      %s21 = sphi 0, %s20
      %s35 = sphi 0, %s21
      %s41 = sphi 0, %s43
      %s44 = sphi 0, %s41
      %s45 = sphi 0, %s44
      %s61 = sphi 0, %s45
      %s65 = sphi 0, %s65
      %s67 = sphi 0, %s65
      %s68 = sphi 0, %s67
      %s82 = sphi 0, %s68
      %s86 = sphi 0, %s86
      %s88 = sphi 0, %s86
      %s89 = sphi 0, %s88
      %s103 = sphi 0, %s89
      %s109 = sphi 0, %s111
      %s112 = sphi 0, %s109
      %s113 = sphi 0, %s112
      %s129 = sphi 0, %s113
    $region4: #{_lambda_.29} parent=1 // loop_header_branch
      %13 = sbr.rel (%p11) target = $region8
    $region5: #{_lambda_.29} parent=1 // loop_body
      %s15 = ssub.s32 %s10, 1
      %s16 = ssub.s32 %s10, 2
      %s17 = sadd.s32 %s10, 1
      %s19 = sadd.s32 %s18, 1
      %p22 = scmp.eq.s32.totalorder %s10, 3
      %p23 = scmp.ne.s32.totalorder %s18, %s20
      %p24 = scmp.eq.s32.totalorder %s10, 0
      %p25 = por %p23, %p24
      %p26 = scmp.ne.s32.totalorder %s18, %s20
      %p27 = scmp.eq.s32.totalorder %s15, 3
      %p28 = por %p26, %p27
      %p29 = scmp.ne.s32.totalorder %s20, %s21
      %p30 = scmp.eq.s32.totalorder %s15, 0
      %p31 = por %p29, %p30
      %p32 = scmp.ne.s32.totalorder %s20, %s21
      %p33 = scmp.eq.s32.totalorder %s16, 3
      %p34 = por %p32, %p33
      %p36 = scmp.ne.s32.totalorder %s21, %s35
      %p37 = scmp.eq.s32.totalorder %s16, 0
      %p38 = por %p36, %p37
      %s39 = ssub.s32 %s10, %s17
      %p40 = scmp.eq.s32.totalorder %s39, 0
      %s42 = sadd.s32 %s41, 1
      %s43 = scalar_select %p40, %s41, %s42
      %p46 = pneg %p40
      %p47 = scmp.eq.s32.totalorder %s10, 3
      %p48 = por %p46, %p47
      %p49 = scmp.ne.s32.totalorder %s41, %s44
      %p50 = scmp.eq.s32.totalorder %s10, 0
      %p51 = por %p49, %p50
      %p52 = scmp.ne.s32.totalorder %s41, %s44
      %p53 = scmp.eq.s32.totalorder %s15, 3
      %p54 = por %p52, %p53
      %p55 = scmp.ne.s32.totalorder %s44, %s45
      %p56 = scmp.eq.s32.totalorder %s15, 0
      %p57 = por %p55, %p56
      %p58 = scmp.ne.s32.totalorder %s44, %s45
      %p59 = scmp.eq.s32.totalorder %s16, 3
      %p60 = por %p58, %p59
      %p62 = scmp.ne.s32.totalorder %s45, %s61
      %p63 = scmp.eq.s32.totalorder %s16, 0
      %p64 = por %p62, %p63
      %s66 = sadd.s32 %s65, 1
      %p69 = scmp.eq.s32.totalorder %s10, 3
      %p70 = scmp.ne.s32.totalorder %s65, %s67
      %p71 = scmp.eq.s32.totalorder %s10, 0
      %p72 = por %p70, %p71
      %p73 = scmp.ne.s32.totalorder %s65, %s67
      %p74 = scmp.eq.s32.totalorder %s15, 3
      %p75 = por %p73, %p74
      %p76 = scmp.ne.s32.totalorder %s67, %s68
      %p77 = scmp.eq.s32.totalorder %s15, 0
      %p78 = por %p76, %p77
      %p79 = scmp.ne.s32.totalorder %s67, %s68
      %p80 = scmp.eq.s32.totalorder %s16, 3
      %p81 = por %p79, %p80
      %p83 = scmp.ne.s32.totalorder %s68, %s82
      %p84 = scmp.eq.s32.totalorder %s16, 0
      %p85 = por %p83, %p84
      %s87 = sadd.s32 %s86, 1
      %p90 = scmp.eq.s32.totalorder %s10, 3
      %p91 = scmp.ne.s32.totalorder %s86, %s88
      %p92 = scmp.eq.s32.totalorder %s10, 0
      %p93 = por %p91, %p92
      %p94 = scmp.ne.s32.totalorder %s86, %s88
      %p95 = scmp.eq.s32.totalorder %s15, 3
      %p96 = por %p94, %p95
      %p97 = scmp.ne.s32.totalorder %s88, %s89
      %p98 = scmp.eq.s32.totalorder %s15, 0
      %p99 = por %p97, %p98
      %p100 = scmp.ne.s32.totalorder %s88, %s89
      %p101 = scmp.eq.s32.totalorder %s16, 3
      %p102 = por %p100, %p101
      %p104 = scmp.ne.s32.totalorder %s89, %s103
      %p105 = scmp.eq.s32.totalorder %s16, 0
      %p106 = por %p104, %p105
      %s107 = ssub.s32 %s10, %s17
      %p108 = scmp.eq.s32.totalorder %s107, 0
      %s110 = sadd.s32 %s109, 1
      %s111 = scalar_select %p108, %s109, %s110
      %p114 = pneg %p108
      %p115 = scmp.eq.s32.totalorder %s10, 3
      %p116 = por %p114, %p115
      %p117 = scmp.ne.s32.totalorder %s109, %s112
      %p118 = scmp.eq.s32.totalorder %s10, 0
      %p119 = por %p117, %p118
      %p120 = scmp.ne.s32.totalorder %s109, %s112
      %p121 = scmp.eq.s32.totalorder %s15, 3
      %p122 = por %p120, %p121
      %p123 = scmp.ne.s32.totalorder %s112, %s113
      %p124 = scmp.eq.s32.totalorder %s15, 0
      %p125 = por %p123, %p124
      %p126 = scmp.ne.s32.totalorder %s112, %s113
      %p127 = scmp.eq.s32.totalorder %s16, 3
      %p128 = por %p126, %p127
      %p130 = scmp.ne.s32.totalorder %s113, %s129
      %p131 = scmp.eq.s32.totalorder %s16, 0
      %p132 = por %p130, %p131
      %p133 = scmp.le.s32.totalorder 1, %s10
      %p134 = scmp.lt.s32.totalorder %s10, 5
      %p135 = pnand %p133, %p134
      %p136 = pneg %p135
      // Predicated region
      $region9: #{_lambda_.29} parent=5 // pred_check
        _
      $region10: #{_lambda_.29} parent=5 // pred_check_branch
        %138 = sbr.rel (%p135) target = $region12
      $region11: #{_lambda_.29} parent=5 // pred_region
        %s139 = ssub.s32 %s10, 1
        // Predicated region
        $region13: #{_lambda_.29} parent=11 // pred_check
          %p140 = pneg %p31
        $region14: #{_lambda_.29} parent=11 // pred_check_branch
          %142 = sbr.rel (%p140) target = $region16
        $region15: #{_lambda_.29} parent=11 // pred_region
          _
        $region16: #{_lambda_.29} parent=11 // pred_fallthru
          _
        // Predicated region
        $region17: #{_lambda_.29} parent=11 // pred_check
          %p143 = pneg %p78
        $region18: #{_lambda_.29} parent=11 // pred_check_branch
          %145 = sbr.rel (%p143) target = $region20
        $region19: #{_lambda_.29} parent=11 // pred_region
          _
        $region20: #{_lambda_.29} parent=11 // pred_fallthru
          _
        // Predicated region
        $region21: #{_lambda_.29} parent=11 // pred_check
          %p146 = pneg %p99
        $region22: #{_lambda_.29} parent=11 // pred_check_branch
          %148 = sbr.rel (%p146) target = $region24
        $region23: #{_lambda_.29} parent=11 // pred_region
          _
        $region24: #{_lambda_.29} parent=11 // pred_fallthru
          _
      $region12: #{_lambda_.29} parent=5 // pred_fallthru
        _
      %p149 = scmp.lt.s32.totalorder %s10, 4
      // Predicated region
      $region25: #{_lambda_.29} parent=5 // pred_check
        %p150 = pneg %p149
      $region26: #{_lambda_.29} parent=5 // pred_check_branch
        %152 = sbr.rel (%p150) target = $region28
      $region27: #{_lambda_.29} parent=5 // pred_region
        // Predicated region
        $region29: #{_lambda_.29} parent=27 // pred_check
          %p153 = pneg %p51
        $region30: #{_lambda_.29} parent=27 // pred_check_branch
          %155 = sbr.rel (%p153) target = $region32
        $region31: #{_lambda_.29} parent=27 // pred_region
          %s156 = sand.u32 %s41, 1
          %s157 = sand.u32 %s41, 1
          %s158 = smul.addr %s157, 144
          %s159 = scalar_lea.vmem [#allocation2], %s158
          %s160 = smul.u32 2, %s10
          %s161 = smul.addr %s160, 4
          %s162 = scalar_lea.vmem %s1, %s161
          // Predicated region
          $region33: #{_lambda_.29} parent=31 // pred_check
            _
          $region34: #{_lambda_.29} parent=31 // pred_check_branch
            %164 = sbr.rel (0) target = $region36
          $region35: #{_lambda_.29} parent=31 // pred_region
            // Predicated region
            $region37: #{_lambda_.29} parent=35 // pred_check
              _
            $region38: #{_lambda_.29} parent=35 // pred_check_branch
              %166 = sbr.rel (0) target = $region40
            $region39: #{_lambda_.29} parent=35 // pred_region
              // Predicated region
              $region52: #{_lambda_.29} parent=39 // pred_check
                _
              $region53: #{_lambda_.29} parent=39 // pred_check_branch
                %216 = sbr.rel (0) target = $region55
              $region54: #{_lambda_.29} parent=39 // pred_region
                loop: start=0, step=1, limit=1
                $region56: #{_lambda_.29} parent=54 // loop_pre_header
                  _
                $region57: #{_lambda_.29} parent=54 // loop_header
                  %s218 = sphi 0, %s222
                  %p219 = scmp.ge.s32.totalorder %s218, 1
                  %s223 = sphi %s162, %s162
                  %s224 = sphi %s159, %s159
                $region58: #{_lambda_.29} parent=54 // loop_header_branch
                  %221 = sbr.rel (%p219) target = $region62
                $region59: #{_lambda_.29} parent=54 // loop_body
                  %v225 = vld [vmem:[%s223] sm:$0xff]
                  %226 = vst [vmem:[%s224] sm:$0xff] %v225
                  %v227 = vld [vmem:[%s223 + $0x20] sm:$0xff]
                  %228 = vst [vmem:[%s224 + $0x8] sm:$0xff] %v227
                  %v229 = vld [vmem:[%s223 + $0x40] sm:$0xff]
                  %230 = vst [vmem:[%s224 + $0x10] sm:$0xff] %v229
                  %v231 = vld [vmem:[%s223 + $0x60] sm:$0xff]
                  %232 = vst [vmem:[%s224 + $0x18] sm:$0xff] %v231
                  %v233 = vld [vmem:[%s223 + $0x80] sm:$0xff]
                  %234 = vst [vmem:[%s224 + $0x20] sm:$0xff] %v233
                  %v235 = vld [vmem:[%s223 + $0xa0] sm:$0xff]
                  %236 = vst [vmem:[%s224 + $0x28] sm:$0xff] %v235
                  %v237 = vld [vmem:[%s223 + $0xc0] sm:$0xff]
                  %238 = vst [vmem:[%s224 + $0x30] sm:$0xff] %v237
                  %v239 = vld [vmem:[%s223 + $0xe0] sm:$0xff]
                  %240 = vst [vmem:[%s224 + $0x38] sm:$0xff] %v239
                  %v241 = vld [vmem:[%s223 + $0x100] sm:$0xff]
                  %242 = vst [vmem:[%s224 + $0x40] sm:$0xff] %v241
                  %v243 = vld [vmem:[%s223 + $0x120] sm:$0xff]
                  %244 = vst [vmem:[%s224 + $0x48] sm:$0xff] %v243
                  %v245 = vld [vmem:[%s223 + $0x140] sm:$0xff]
                  %246 = vst [vmem:[%s224 + $0x50] sm:$0xff] %v245
                  %v247 = vld [vmem:[%s223 + $0x160] sm:$0xff]
                  %248 = vst [vmem:[%s224 + $0x58] sm:$0xff] %v247
                  %v249 = vld [vmem:[%s223 + $0x180] sm:$0xff]
                  %250 = vst [vmem:[%s224 + $0x60] sm:$0xff] %v249
                  %v251 = vld [vmem:[%s223 + $0x1a0] sm:$0xff]
                  %252 = vst [vmem:[%s224 + $0x68] sm:$0xff] %v251
                  %v253 = vld [vmem:[%s223 + $0x1c0] sm:$0xff]
                  %254 = vst [vmem:[%s224 + $0x70] sm:$0xff] %v253
                  %v255 = vld [vmem:[%s223 + $0x1e0] sm:$0xff]
                  %256 = vst [vmem:[%s224 + $0x78] sm:$0xff] %v255
                  %v257 = vld [vmem:[%s223 + $0x200] sm:$0xff]
                  %258 = vst [vmem:[%s224 + $0x80] sm:$0xff] %v257
                  %v259 = vld [vmem:[%s223 + $0x220] sm:$0xff]
                  %260 = vst [vmem:[%s224 + $0x88] sm:$0xff] %v259
                $region60: #{_lambda_.29} parent=54 // loop_footer
                  %s222 = sadd.s32 1, %s218
                $region61: #{_lambda_.29} parent=54 // loop_footer_branch
                  %217 = sbr.rel target = $region57
                $region62: #{_lambda_.29} parent=54 // loop_exit
                  _
              $region55: #{_lambda_.29} parent=39 // pred_fallthru
                _
              // Predicated region
              $region63: #{_lambda_.29} parent=39 // pred_check
                _
              $region64: #{_lambda_.29} parent=39 // pred_check_branch
                %262 = sbr.rel target = $region66
              $region65: #{_lambda_.29} parent=39 // pred_region
                _
              $region66: #{_lambda_.29} parent=39 // pred_fallthru
                _
            $region40: #{_lambda_.29} parent=35 // pred_fallthru
              _
            // Predicated region
            $region41: #{_lambda_.29} parent=35 // pred_check
              _
            $region42: #{_lambda_.29} parent=35 // pred_check_branch
              %168 = sbr.rel target = $region44
            $region43: #{_lambda_.29} parent=35 // pred_region
              %s170 = ssub.s32 256, 1
              loop: start=0, step=1, limit=1
              $region45: #{_lambda_.29} parent=43 // loop_pre_header
                _
              $region46: #{_lambda_.29} parent=43 // loop_header
                %s172 = sphi 0, %s176
                %p173 = scmp.ge.s32.totalorder %s172, 1
                %s177 = sphi %s162, %s162
                %s178 = sphi %s159, %s159
              $region47: #{_lambda_.29} parent=43 // loop_header_branch
                %175 = sbr.rel (%p173) target = $region51
              $region48: #{_lambda_.29} parent=43 // loop_body
                %v179 = vld [vmem:[%s177] sm:%s170]
                %180 = vst [vmem:[%s178] sm:%s170] %v179
                %v181 = vld [vmem:[%s177 + $0x20] sm:%s170]
                %182 = vst [vmem:[%s178 + $0x8] sm:%s170] %v181
                %v183 = vld [vmem:[%s177 + $0x40] sm:%s170]
                %184 = vst [vmem:[%s178 + $0x10] sm:%s170] %v183
                %v185 = vld [vmem:[%s177 + $0x60] sm:%s170]
                %186 = vst [vmem:[%s178 + $0x18] sm:%s170] %v185
                %v187 = vld [vmem:[%s177 + $0x80] sm:%s170]
                %188 = vst [vmem:[%s178 + $0x20] sm:%s170] %v187
                %v189 = vld [vmem:[%s177 + $0xa0] sm:%s170]
                %190 = vst [vmem:[%s178 + $0x28] sm:%s170] %v189
                %v191 = vld [vmem:[%s177 + $0xc0] sm:%s170]
                %192 = vst [vmem:[%s178 + $0x30] sm:%s170] %v191
                %v193 = vld [vmem:[%s177 + $0xe0] sm:%s170]
                %194 = vst [vmem:[%s178 + $0x38] sm:%s170] %v193
                %v195 = vld [vmem:[%s177 + $0x100] sm:%s170]
                %196 = vst [vmem:[%s178 + $0x40] sm:%s170] %v195
                %v197 = vld [vmem:[%s177 + $0x120] sm:%s170]
                %198 = vst [vmem:[%s178 + $0x48] sm:%s170] %v197
                %v199 = vld [vmem:[%s177 + $0x140] sm:%s170]
                %200 = vst [vmem:[%s178 + $0x50] sm:%s170] %v199
                %v201 = vld [vmem:[%s177 + $0x160] sm:%s170]
                %202 = vst [vmem:[%s178 + $0x58] sm:%s170] %v201
                %v203 = vld [vmem:[%s177 + $0x180] sm:%s170]
                %204 = vst [vmem:[%s178 + $0x60] sm:%s170] %v203
                %v205 = vld [vmem:[%s177 + $0x1a0] sm:%s170]
                %206 = vst [vmem:[%s178 + $0x68] sm:%s170] %v205
                %v207 = vld [vmem:[%s177 + $0x1c0] sm:%s170]
                %208 = vst [vmem:[%s178 + $0x70] sm:%s170] %v207
                %v209 = vld [vmem:[%s177 + $0x1e0] sm:%s170]
                %210 = vst [vmem:[%s178 + $0x78] sm:%s170] %v209
                %v211 = vld [vmem:[%s177 + $0x200] sm:%s170]
                %212 = vst [vmem:[%s178 + $0x80] sm:%s170] %v211
                %v213 = vld [vmem:[%s177 + $0x220] sm:%s170]
                %214 = vst [vmem:[%s178 + $0x88] sm:%s170] %v213
              $region49: #{_lambda_.29} parent=43 // loop_footer
                %s176 = sadd.s32 1, %s172
              $region50: #{_lambda_.29} parent=43 // loop_footer_branch
                %171 = sbr.rel target = $region46
              $region51: #{_lambda_.29} parent=43 // loop_exit
                _
            $region44: #{_lambda_.29} parent=35 // pred_fallthru
              _
          $region36: #{_lambda_.29} parent=31 // pred_fallthru
            _
          %263 = vnop
        $region32: #{_lambda_.29} parent=27 // pred_fallthru
          _
      $region28: #{_lambda_.29} parent=5 // pred_fallthru
        _
      %p264 = scmp.le.s32.totalorder 1, %s10
      %p265 = scmp.lt.s32.totalorder %s10, 5
      %p266 = pnand %p264, %p265
      %p267 = pneg %p266
      // Predicated region
      $region67: #{_lambda_.29} parent=5 // pred_check
        _
      $region68: #{_lambda_.29} parent=5 // pred_check_branch
        %269 = sbr.rel (%p266) target = $region70
      $region69: #{_lambda_.29} parent=5 // pred_region
        %s270 = ssub.s32 %s10, 1
        %s271 = sand.u32 %s44, 1
        %s272 = sand.u32 %s44, 1
        %s273 = smul.addr %s272, 144
        %s274 = scalar_lea.vmem [#allocation2], %s273
        // Predicated region
        $region71: #{_lambda_.29} parent=69 // pred_check
          %p275 = pneg %p57
        $region72: #{_lambda_.29} parent=69 // pred_check_branch
          %277 = sbr.rel (%p275) target = $region74
        $region73: #{_lambda_.29} parent=69 // pred_region
          _
        $region74: #{_lambda_.29} parent=69 // pred_fallthru
          _
        %p278 = pneg %p31
        %p279 = pneg %p28
        %s280 = sand.u32 %s44, 1
        %s281 = sand.u32 %s44, 1
        %s282 = smul.addr %s281, 144
        %s283 = scalar_lea.vmem [#allocation2], %s282
        %p284 = pneg %p57
        %p285 = pneg %p54
        %p286 = pneg %p78
        %p287 = pneg %p75
        %p288 = pneg %p99
        %p289 = pneg %p96
        %p290 = pneg %p125
        %p291 = pneg %p122
        %s292 = sand.u32 %s112, 1
        %s293 = sand.u32 %s112, 1
        %s294 = smul.addr %s293, 32
        %s295 = scalar_lea.vmem [#allocation3], %s294
        %s296 = smul.u32 2, %s15
        %s297 = smul.u32 2, %s15
        %v299 = vld [vmem:[%s0] sm:$0xff]
        %v300 = vld [vmem:[%s0 + $0x8] sm:$0xff]
        %v301 = vld [vmem:[%s274] sm:$0xff]
        %v302 = vld [vmem:[%s274 + $0x8] sm:$0xff]
        %v303 = vld [vmem:[%s274 + $0x10] sm:$0xff]
        %v304 = vld [vmem:[%s274 + $0x18] sm:$0xff]
        %v305 = vld [vmem:[%s274 + $0x20] sm:$0xff]
        %v306 = vld [vmem:[%s274 + $0x28] sm:$0xff]
        %v307 = vld [vmem:[%s274 + $0x30] sm:$0xff]
        %v308 = vld [vmem:[%s274 + $0x38] sm:$0xff]
        %v309 = vld [vmem:[%s274 + $0x40] sm:$0xff]
        %v310 = vld [vmem:[%s274 + $0x48] sm:$0xff]
        %v311 = vld [vmem:[%s274 + $0x50] sm:$0xff]
        %v312 = vld [vmem:[%s274 + $0x58] sm:$0xff]
        %v313 = vld [vmem:[%s274 + $0x60] sm:$0xff]
        %v314 = vld [vmem:[%s274 + $0x68] sm:$0xff]
        %v315 = vld [vmem:[%s274 + $0x70] sm:$0xff]
        %v316 = vld [vmem:[%s274 + $0x78] sm:$0xff]
        %v317 = vld [vmem:[%s274 + $0x80] sm:$0xff]
        %v318 = vld [vmem:[%s274 + $0x88] sm:$0xff]
        %v321 = vunpack.c.l.b16 %v299
        %v322 = vunpack.c.h.b16 %v299
        %v323 = vunpack.c.l.b16 %v300
        %v324 = vunpack.c.h.b16 %v300
        %v325 = vpack.c.b16 %v323, %v321
        %v326 = vpack.c.b16 %v324, %v322
        %v346 = vunpack.c.l.b16 %v301
        %v347 = vunpack.c.h.b16 %v301
        %v348 = vunpack.c.l.b16 %v302
        %v349 = vunpack.c.h.b16 %v302
        %v350 = vunpack.c.l.b16 %v303
        %v351 = vunpack.c.h.b16 %v303
        %v352 = vunpack.c.l.b16 %v304
        %v353 = vunpack.c.h.b16 %v304
        %v354 = vunpack.c.l.b16 %v305
        %v355 = vunpack.c.h.b16 %v305
        %v356 = vunpack.c.l.b16 %v306
        %v357 = vunpack.c.h.b16 %v306
        %v358 = vunpack.c.l.b16 %v307
        %v359 = vunpack.c.h.b16 %v307
        %v360 = vunpack.c.l.b16 %v308
        %v361 = vunpack.c.h.b16 %v308
        %v362 = vunpack.c.l.b16 %v309
        %v363 = vunpack.c.h.b16 %v309
        %v364 = vunpack.c.l.b16 %v310
        %v365 = vunpack.c.h.b16 %v310
        %v366 = vunpack.c.l.b16 %v311
        %v367 = vunpack.c.h.b16 %v311
        %v368 = vunpack.c.l.b16 %v312
        %v369 = vunpack.c.h.b16 %v312
        %v370 = vunpack.c.l.b16 %v313
        %v371 = vunpack.c.h.b16 %v313
        %v372 = vunpack.c.l.b16 %v314
        %v373 = vunpack.c.h.b16 %v314
        %v374 = vunpack.c.l.b16 %v315
        %v375 = vunpack.c.h.b16 %v315
        %v376 = vunpack.c.l.b16 %v316
        %v377 = vunpack.c.h.b16 %v316
        %v378 = vunpack.c.l.b16 %v317
        %v379 = vunpack.c.h.b16 %v317
        %v380 = vunpack.c.l.b16 %v318
        %v381 = vunpack.c.h.b16 %v318
        %v382 = vpack.c.b16 %v348, %v346
        %v383 = vpack.c.b16 %v349, %v347
        %v384 = vpack.c.b16 %v352, %v350
        %v385 = vpack.c.b16 %v353, %v351
        %v386 = vpack.c.b16 %v356, %v354
        %v387 = vpack.c.b16 %v357, %v355
        %v388 = vpack.c.b16 %v360, %v358
        %v389 = vpack.c.b16 %v361, %v359
        %v390 = vpack.c.b16 %v364, %v362
        %v391 = vpack.c.b16 %v365, %v363
        %v392 = vpack.c.b16 %v368, %v366
        %v393 = vpack.c.b16 %v369, %v367
        %v394 = vpack.c.b16 %v372, %v370
        %v395 = vpack.c.b16 %v373, %v371
        %v396 = vpack.c.b16 %v376, %v374
        %v397 = vpack.c.b16 %v377, %v375
        %v398 = vpack.c.b16 %v380, %v378
        %v399 = vpack.c.b16 %v381, %v379
        %vm418 = vcmask 130048
        %v420 = vsel %vm418, %v326, 0
        %422 = vmatprep.subr.bf16.mxu0 %v397
        %423 = vmatpush1.bf16.msra.mxu0 %v396
        %424 = vmatprep.subr.bf16.mxu0 %v395
        %425 = vmatpush1.bf16.msra.mxu0 %v394
        %426 = vmatprep.subr.bf16.mxu0 %v393
        %427 = vmatpush1.bf16.msra.mxu0 %v392
        %428 = vmatprep.subr.bf16.mxu0 %v391
        %429 = vmatpush1.bf16.msra.mxu0 %v390
        %430 = vmatprep.subr.bf16.mxu0 %v389
        %431 = vmatpush1.bf16.msra.mxu0 %v388
        %432 = vmatprep.subr.bf16.mxu0 %v387
        %433 = vmatpush1.bf16.msra.mxu0 %v386
        %434 = vmatprep.subr.bf16.mxu0 %v385
        %435 = vmatpush1.bf16.msra.mxu0 %v384
        %436 = vmatprep.subr.bf16.mxu0 %v383
        %437 = vmatpush1.bf16.msra.mxu0 %v382
        %438 = vmatprep.subr.bf16.mxu0 0
        %439 = vmatpush2.bf16.msra.mxu0 0
        %440 = vmatprep.subr.bf16.mxu0 0
        %441 = vmatpush2.bf16.msra.mxu0 0
        %442 = vmatprep.subr.bf16.mxu0 0
        %443 = vmatpush2.bf16.msra.mxu0 0
        %444 = vmatprep.subr.bf16.mxu0 0
        %445 = vmatpush2.bf16.msra.mxu0 0
        %446 = vmatprep.subr.bf16.mxu0 0
        %447 = vmatpush2.bf16.msra.mxu0 0
        %448 = vmatprep.subr.bf16.mxu0 0
        %449 = vmatpush2.bf16.msra.mxu0 0
        %450 = vmatprep.subr.bf16.mxu0 0
        %451 = vmatpush2.bf16.msra.mxu0 0
        %452 = vmatprep.subr.bf16.mxu0 %v399
        %453 = vmatpush2.bf16.msra.mxu0 %v398
        %454 = vmatprep.mubr.bf16.mxu0 %v420
        %455 = vmatmul.mubr.bf16.gmra.mxu0 %v325
        %v456 = vpop.f32.mrf.mxu0
        %v457 = vadd.f32 0.0, %v456
        %v458 = vpop.f32.mrf.mxu0
        %v459 = vadd.f32 0.0, %v458
        %v460 = vpop.f32.mrf.mxu0
        %v461 = vadd.f32 0.0, %v460
        %v462 = vpop.f32.mrf.mxu0
        %v463 = vadd.f32 0.0, %v462
        %464 = vdwg.mxu0
        %v465 = vld [vmem:[%s2] sm:$0xff]
        %v466 = vld [vmem:[%s2 + $0x8] sm:$0xff]
        %468 = vset.pattern.permute.xlu0 0
        %469 = vperm.xlu0 %468, %v465
        %v470 = vpop.permute.xlu0 %469
        %473 = vset.pattern.permute.xlu0 0
        %474 = vperm.xlu0 %473, %v466
        %v475 = vpop.permute.xlu0 %474
        %v477 = vmul.f32 %v457, %v470
        %v478 = vmul.f32 %v459, %v470
        %v479 = vmul.f32 %v461, %v475
        %v480 = vmul.f32 %v463, %v475
        %v481 = vld [vmem:[%s3] sm:$0xff]
        %v482 = vld [vmem:[%s3 + $0x8] sm:$0xff]
        %484 = vset.pattern.permute.xlu0 0
        %485 = vperm.xlu0 %484, %v481
        %v486 = vpop.permute.xlu0 %485
        %489 = vset.pattern.permute.xlu0 0
        %490 = vperm.xlu0 %489, %v482
        %v491 = vpop.permute.xlu0 %490
        %v493 = vadd.f32 %v477, %v486
        %v494 = vadd.f32 %v478, %v486
        %v495 = vadd.f32 %v479, %v491
        %v496 = vadd.f32 %v480, %v491
        %v497 = vmax.f32 %v493, 0.0
        %v498 = vmax.f32 %v494, 0.0
        %v499 = vmax.f32 %v495, 0.0
        %v500 = vmax.f32 %v496, 0.0
        %501 = vst [vmem:[%s295] sm:$0xff] %v497
        %502 = vst [vmem:[%s295 + $0x8] sm:$0xff] %v498
        %503 = vst [vmem:[%s295 + $0x10] sm:$0xff] %v499
        %504 = vst [vmem:[%s295 + $0x18] sm:$0xff] %v500
        %s505 = sand.u32 %s112, 1
        %s506 = sand.u32 %s112, 1
        %s507 = smul.addr %s506, 32
        %s508 = scalar_lea.vmem [#allocation3], %s507
        // Predicated region
        $region75: #{_lambda_.29} parent=69 // pred_check
          %p509 = pneg %p122
        $region76: #{_lambda_.29} parent=69 // pred_check_branch
          %511 = sbr.rel (%p509) target = $region78
        $region77: #{_lambda_.29} parent=69 // pred_region
          %s512 = smul.u32 2, %s15
          %s513 = smul.addr %s512, 8
          %s514 = scalar_lea.vmem %s4, %s513
          // Predicated region
          $region79: #{_lambda_.29} parent=77 // pred_check
            _
          $region80: #{_lambda_.29} parent=77 // pred_check_branch
            %516 = sbr.rel (0) target = $region82
          $region81: #{_lambda_.29} parent=77 // pred_region
            // Predicated region
            $region83: #{_lambda_.29} parent=81 // pred_check
              _
            $region84: #{_lambda_.29} parent=81 // pred_check_branch
              %518 = sbr.rel (0) target = $region86
            $region85: #{_lambda_.29} parent=81 // pred_region
              loop: start=0, step=1, limit=1
              $region87: #{_lambda_.29} parent=85 // loop_pre_header
                _
              $region88: #{_lambda_.29} parent=85 // loop_header
                %s520 = sphi 0, %s524
                %p521 = scmp.ge.s32.totalorder %s520, 1
                %s525 = sphi %s508, %s508
                %s526 = sphi %s514, %s514
              $region89: #{_lambda_.29} parent=85 // loop_header_branch
                %523 = sbr.rel (%p521) target = $region93
              $region90: #{_lambda_.29} parent=85 // loop_body
                %v527 = vld [vmem:[%s525] sm:$0xff]
                %528 = vst [vmem:[%s526] sm:$0xff] %v527
                %v529 = vld [vmem:[%s525 + $0x8] sm:$0xff]
                %530 = vst [vmem:[%s526 + $0x8] sm:$0xff] %v529
                %v531 = vld [vmem:[%s525 + $0x10] sm:$0xff]
                %532 = vst [vmem:[%s526 + $0x40] sm:$0xff] %v531
                %v533 = vld [vmem:[%s525 + $0x18] sm:$0xff]
                %534 = vst [vmem:[%s526 + $0x48] sm:$0xff] %v533
              $region91: #{_lambda_.29} parent=85 // loop_footer
                %s524 = sadd.s32 1, %s520
              $region92: #{_lambda_.29} parent=85 // loop_footer_branch
                %519 = sbr.rel target = $region88
              $region93: #{_lambda_.29} parent=85 // loop_exit
                _
            $region86: #{_lambda_.29} parent=81 // pred_fallthru
              _
            // Predicated region
            $region94: #{_lambda_.29} parent=81 // pred_check
              _
            $region95: #{_lambda_.29} parent=81 // pred_check_branch
              %536 = sbr.rel target = $region97
            $region96: #{_lambda_.29} parent=81 // pred_region
              _
            $region97: #{_lambda_.29} parent=81 // pred_fallthru
              _
          $region82: #{_lambda_.29} parent=77 // pred_fallthru
            _
          %537 = vnop
        $region78: #{_lambda_.29} parent=69 // pred_fallthru
          _
      $region70: #{_lambda_.29} parent=5 // pred_fallthru
        _
      %p538 = scmp.le.s32.totalorder 2, %s10
      // Predicated region
      $region98: #{_lambda_.29} parent=5 // pred_check
        %p539 = pneg %p538
      $region99: #{_lambda_.29} parent=5 // pred_check_branch
        %541 = sbr.rel (%p539) target = $region101
      $region100: #{_lambda_.29} parent=5 // pred_region
        %s542 = ssub.s32 %s10, 2
        // Predicated region
        $region102: #{_lambda_.29} parent=100 // pred_check
          %p543 = pneg %p128
        $region103: #{_lambda_.29} parent=100 // pred_check_branch
          %545 = sbr.rel (%p543) target = $region105
        $region104: #{_lambda_.29} parent=100 // pred_region
          %s546 = sand.u32 %s113, 1
          %s547 = sand.u32 %s113, 1
          %s548 = smul.addr %s547, 32
          %s549 = scalar_lea.vmem [#allocation3], %s548
        $region105: #{_lambda_.29} parent=100 // pred_fallthru
          _
      $region101: #{_lambda_.29} parent=5 // pred_fallthru
        _
    $region6: #{_lambda_.29} parent=1 // loop_footer
      %s14 = sadd.s32 1, %s10
    $region7: #{_lambda_.29} parent=1 // loop_footer_branch
      %9 = sbr.rel target = $region3
    $region8: #{_lambda_.29} parent=1 // loop_exit
      _

// kernel: _lambda_.30
$region0: #{_lambda_.30}
  #allocation0 [shape = 'u32[]', space=smem, size = 0x4, offset = 0x4, fixed_abs, tag = 'smem constant byte address 0x4 - core index']
  #allocation1 [shape = 'u32[144,128]{1,0:T(1,128)}', space=vmem, size = 0x12000, scoped, tag = 'internal scratch']
  %s0 = inlined_call_operand.vmem [shape: bf16[8,72], index: 0, kind: input, shape index: {}]
  %s1 = inlined_call_operand.vmem [shape: bf16[72,4096], index: 1, kind: input, shape index: {}]
  %s2 = inlined_call_operand.vmem [shape: f32[8,1], index: 2, kind: input, shape index: {}]
  %s3 = inlined_call_operand.vmem [shape: f32[8,1], index: 3, kind: input, shape index: {}]
  %s4 = inlined_call_operand.vmem [shape: f32[8,4096], index: 4, kind: output, shape index: {}]
  %s5 = sld [smem:[#allocation0]]
  $region72: #{_lambda_.30} parent=0
    _
  %s7 = ssub.s32 1, %s5
  %s8 = scalar_select 0, %s7, %s5
  $region1: #{_lambda_.30} parent=0
    #allocation2 [shape = 'u8[294912]{0}', space=vmem, size = 0x48000, scoped, tag = 'input window, operand 1']
    loop: start=0, step=1, limit=6
    $region2: #{_lambda_.30} parent=1 // loop_pre_header
      _
    $region3: #{_lambda_.30} parent=1 // loop_header
      %s10 = sphi 0, %s14
      %p11 = scmp.ge.s32.totalorder %s10, 6
      %s18 = sphi 0, %s18
      %s20 = sphi 0, %s18
      %s21 = sphi 0, %s20
      %s35 = sphi 0, %s21
      %s41 = sphi 0, %s43
      %s44 = sphi 0, %s41
      %s45 = sphi 0, %s44
      %s61 = sphi 0, %s45
      %s65 = sphi 0, %s65
      %s67 = sphi 0, %s65
      %s68 = sphi 0, %s67
      %s82 = sphi 0, %s68
      %s86 = sphi 0, %s86
      %s88 = sphi 0, %s86
      %s89 = sphi 0, %s88
      %s103 = sphi 0, %s89
      %s109 = sphi 0, %s111
      %s112 = sphi 0, %s109
      %s113 = sphi 0, %s112
      %s129 = sphi 0, %s113
    $region4: #{_lambda_.30} parent=1 // loop_header_branch
      %13 = sbr.rel (%p11) target = $region8
    $region5: #{_lambda_.30} parent=1 // loop_body
      %s15 = ssub.s32 %s10, 1
      %s16 = ssub.s32 %s10, 2
      %s17 = sadd.s32 %s10, 1
      %s19 = sadd.s32 %s18, 1
      %p22 = scmp.eq.s32.totalorder %s10, 3
      %p23 = scmp.ne.s32.totalorder %s18, %s20
      %p24 = scmp.eq.s32.totalorder %s10, 0
      %p25 = por %p23, %p24
      %p26 = scmp.ne.s32.totalorder %s18, %s20
      %p27 = scmp.eq.s32.totalorder %s15, 3
      %p28 = por %p26, %p27
      %p29 = scmp.ne.s32.totalorder %s20, %s21
      %p30 = scmp.eq.s32.totalorder %s15, 0
      %p31 = por %p29, %p30
      %p32 = scmp.ne.s32.totalorder %s20, %s21
      %p33 = scmp.eq.s32.totalorder %s16, 3
      %p34 = por %p32, %p33
      %p36 = scmp.ne.s32.totalorder %s21, %s35
      %p37 = scmp.eq.s32.totalorder %s16, 0
      %p38 = por %p36, %p37
      %s39 = ssub.s32 %s10, %s17
      %p40 = scmp.eq.s32.totalorder %s39, 0
      %s42 = sadd.s32 %s41, 1
      %s43 = scalar_select %p40, %s41, %s42
      %p46 = pneg %p40
      %p47 = scmp.eq.s32.totalorder %s10, 3
      %p48 = por %p46, %p47
      %p49 = scmp.ne.s32.totalorder %s41, %s44
      %p50 = scmp.eq.s32.totalorder %s10, 0
      %p51 = por %p49, %p50
      %p52 = scmp.ne.s32.totalorder %s41, %s44
      %p53 = scmp.eq.s32.totalorder %s15, 3
      %p54 = por %p52, %p53
      %p55 = scmp.ne.s32.totalorder %s44, %s45
      %p56 = scmp.eq.s32.totalorder %s15, 0
      %p57 = por %p55, %p56
      %p58 = scmp.ne.s32.totalorder %s44, %s45
      %p59 = scmp.eq.s32.totalorder %s16, 3
      %p60 = por %p58, %p59
      %p62 = scmp.ne.s32.totalorder %s45, %s61
      %p63 = scmp.eq.s32.totalorder %s16, 0
      %p64 = por %p62, %p63
      %s66 = sadd.s32 %s65, 1
      %p69 = scmp.eq.s32.totalorder %s10, 3
      %p70 = scmp.ne.s32.totalorder %s65, %s67
      %p71 = scmp.eq.s32.totalorder %s10, 0
      %p72 = por %p70, %p71
      %p73 = scmp.ne.s32.totalorder %s65, %s67
      %p74 = scmp.eq.s32.totalorder %s15, 3
      %p75 = por %p73, %p74
      %p76 = scmp.ne.s32.totalorder %s67, %s68
      %p77 = scmp.eq.s32.totalorder %s15, 0
      %p78 = por %p76, %p77
      %p79 = scmp.ne.s32.totalorder %s67, %s68
      %p80 = scmp.eq.s32.totalorder %s16, 3
      %p81 = por %p79, %p80
      %p83 = scmp.ne.s32.totalorder %s68, %s82
      %p84 = scmp.eq.s32.totalorder %s16, 0
      %p85 = por %p83, %p84
      %s87 = sadd.s32 %s86, 1
      %p90 = scmp.eq.s32.totalorder %s10, 3
      %p91 = scmp.ne.s32.totalorder %s86, %s88
      %p92 = scmp.eq.s32.totalorder %s10, 0
      %p93 = por %p91, %p92
      %p94 = scmp.ne.s32.totalorder %s86, %s88
      %p95 = scmp.eq.s32.totalorder %s15, 3
      %p96 = por %p94, %p95
      %p97 = scmp.ne.s32.totalorder %s88, %s89
      %p98 = scmp.eq.s32.totalorder %s15, 0
      %p99 = por %p97, %p98
      %p100 = scmp.ne.s32.totalorder %s88, %s89
      %p101 = scmp.eq.s32.totalorder %s16, 3
      %p102 = por %p100, %p101
      %p104 = scmp.ne.s32.totalorder %s89, %s103
      %p105 = scmp.eq.s32.totalorder %s16, 0
      %p106 = por %p104, %p105
      %s107 = ssub.s32 %s10, %s17
      %p108 = scmp.eq.s32.totalorder %s107, 0
      %s110 = sadd.s32 %s109, 1
      %s111 = scalar_select %p108, %s109, %s110
      %p114 = pneg %p108
      %p115 = scmp.eq.s32.totalorder %s10, 3
      %p116 = por %p114, %p115
      %p117 = scmp.ne.s32.totalorder %s109, %s112
      %p118 = scmp.eq.s32.totalorder %s10, 0
      %p119 = por %p117, %p118
      %p120 = scmp.ne.s32.totalorder %s109, %s112
      %p121 = scmp.eq.s32.totalorder %s15, 3
      %p122 = por %p120, %p121
      %p123 = scmp.ne.s32.totalorder %s112, %s113
      %p124 = scmp.eq.s32.totalorder %s15, 0
      %p125 = por %p123, %p124
      %p126 = scmp.ne.s32.totalorder %s112, %s113
      %p127 = scmp.eq.s32.totalorder %s16, 3
      %p128 = por %p126, %p127
      %p130 = scmp.ne.s32.totalorder %s113, %s129
      %p131 = scmp.eq.s32.totalorder %s16, 0
      %p132 = por %p130, %p131
      %p133 = scmp.le.s32.totalorder 1, %s10
      %p134 = scmp.lt.s32.totalorder %s10, 5
      %p135 = pnand %p133, %p134
      %p136 = pneg %p135
      // Predicated region
      $region9: #{_lambda_.30} parent=5 // pred_check
        _
      $region10: #{_lambda_.30} parent=5 // pred_check_branch
        %138 = sbr.rel (%p135) target = $region12
      $region11: #{_lambda_.30} parent=5 // pred_region
        %s139 = ssub.s32 %s10, 1
        // Predicated region
        $region13: #{_lambda_.30} parent=11 // pred_check
          %p140 = pneg %p31
        $region14: #{_lambda_.30} parent=11 // pred_check_branch
          %142 = sbr.rel (%p140) target = $region16
        $region15: #{_lambda_.30} parent=11 // pred_region
          _
        $region16: #{_lambda_.30} parent=11 // pred_fallthru
          _
        // Predicated region
        $region17: #{_lambda_.30} parent=11 // pred_check
          %p143 = pneg %p78
        $region18: #{_lambda_.30} parent=11 // pred_check_branch
          %145 = sbr.rel (%p143) target = $region20
        $region19: #{_lambda_.30} parent=11 // pred_region
          _
        $region20: #{_lambda_.30} parent=11 // pred_fallthru
          _
        // Predicated region
        $region21: #{_lambda_.30} parent=11 // pred_check
          %p146 = pneg %p99
        $region22: #{_lambda_.30} parent=11 // pred_check_branch
          %148 = sbr.rel (%p146) target = $region24
        $region23: #{_lambda_.30} parent=11 // pred_region
          _
        $region24: #{_lambda_.30} parent=11 // pred_fallthru
          _
      $region12: #{_lambda_.30} parent=5 // pred_fallthru
        _
      %p149 = scmp.lt.s32.totalorder %s10, 4
      // Predicated region
      $region25: #{_lambda_.30} parent=5 // pred_check
        %p150 = pneg %p149
      $region26: #{_lambda_.30} parent=5 // pred_check_branch
        %152 = sbr.rel (%p150) target = $region28
      $region27: #{_lambda_.30} parent=5 // pred_region
        // Predicated region
        $region29: #{_lambda_.30} parent=27 // pred_check
          %p153 = pneg %p51
        $region30: #{_lambda_.30} parent=27 // pred_check_branch
          %155 = sbr.rel (%p153) target = $region32
        $region31: #{_lambda_.30} parent=27 // pred_region
          %s156 = sand.u32 %s41, 1
          %s157 = sand.u32 %s41, 1
          %s158 = smul.addr %s157, 288
          %s159 = scalar_lea.vmem [#allocation2], %s158
          %s160 = smul.u32 8, %s10
          %s161 = smul.addr %s160, 4
          %s162 = scalar_lea.vmem %s1, %s161
          // Predicated region
          $region33: #{_lambda_.30} parent=31 // pred_check
            _
          $region34: #{_lambda_.30} parent=31 // pred_check_branch
            %164 = sbr.rel (0) target = $region36
          $region35: #{_lambda_.30} parent=31 // pred_region
            // Predicated region
            $region37: #{_lambda_.30} parent=35 // pred_check
              _
            $region38: #{_lambda_.30} parent=35 // pred_check_branch
              %166 = sbr.rel (0) target = $region40
            $region39: #{_lambda_.30} parent=35 // pred_region
              loop: start=0, step=1, limit=1
              $region41: #{_lambda_.30} parent=39 // loop_pre_header
                _
              $region42: #{_lambda_.30} parent=39 // loop_header
                %s168 = sphi 0, %s172
                %p169 = scmp.ge.s32.totalorder %s168, 1
                %s173 = sphi %s162, %s162
                %s174 = sphi %s159, %s159
              $region43: #{_lambda_.30} parent=39 // loop_header_branch
                %171 = sbr.rel (%p169) target = $region47
              $region44: #{_lambda_.30} parent=39 // loop_body
                %v175 = vld [vmem:[%s173] sm:$0xff]
                %176 = vst [vmem:[%s174] sm:$0xff] %v175
                %v177 = vld [vmem:[%s173 + $0x8] sm:$0xff]
                %178 = vst [vmem:[%s174 + $0x8] sm:$0xff] %v177
                %v179 = vld [vmem:[%s173 + $0x10] sm:$0xff]
                %180 = vst [vmem:[%s174 + $0x10] sm:$0xff] %v179
                %v181 = vld [vmem:[%s173 + $0x18] sm:$0xff]
                %182 = vst [vmem:[%s174 + $0x18] sm:$0xff] %v181
                %v183 = vld [vmem:[%s173 + $0x80] sm:$0xff]
                %184 = vst [vmem:[%s174 + $0x20] sm:$0xff] %v183
                %v185 = vld [vmem:[%s173 + $0x88] sm:$0xff]
                %186 = vst [vmem:[%s174 + $0x28] sm:$0xff] %v185
                %v187 = vld [vmem:[%s173 + $0x90] sm:$0xff]
                %188 = vst [vmem:[%s174 + $0x30] sm:$0xff] %v187
                %v189 = vld [vmem:[%s173 + $0x98] sm:$0xff]
                %190 = vst [vmem:[%s174 + $0x38] sm:$0xff] %v189
                %v191 = vld [vmem:[%s173 + $0x100] sm:$0xff]
                %192 = vst [vmem:[%s174 + $0x40] sm:$0xff] %v191
                %v193 = vld [vmem:[%s173 + $0x108] sm:$0xff]
                %194 = vst [vmem:[%s174 + $0x48] sm:$0xff] %v193
                %v195 = vld [vmem:[%s173 + $0x110] sm:$0xff]
                %196 = vst [vmem:[%s174 + $0x50] sm:$0xff] %v195
                %v197 = vld [vmem:[%s173 + $0x118] sm:$0xff]
                %198 = vst [vmem:[%s174 + $0x58] sm:$0xff] %v197
                %v199 = vld [vmem:[%s173 + $0x180] sm:$0xff]
                %200 = vst [vmem:[%s174 + $0x60] sm:$0xff] %v199
                %v201 = vld [vmem:[%s173 + $0x188] sm:$0xff]
                %202 = vst [vmem:[%s174 + $0x68] sm:$0xff] %v201
                %v203 = vld [vmem:[%s173 + $0x190] sm:$0xff]
                %204 = vst [vmem:[%s174 + $0x70] sm:$0xff] %v203
                %v205 = vld [vmem:[%s173 + $0x198] sm:$0xff]
                %206 = vst [vmem:[%s174 + $0x78] sm:$0xff] %v205
                %v207 = vld [vmem:[%s173 + $0x200] sm:$0xff]
                %208 = vst [vmem:[%s174 + $0x80] sm:$0xff] %v207
                %v209 = vld [vmem:[%s173 + $0x208] sm:$0xff]
                %210 = vst [vmem:[%s174 + $0x88] sm:$0xff] %v209
                %v211 = vld [vmem:[%s173 + $0x210] sm:$0xff]
                %212 = vst [vmem:[%s174 + $0x90] sm:$0xff] %v211
                %v213 = vld [vmem:[%s173 + $0x218] sm:$0xff]
                %214 = vst [vmem:[%s174 + $0x98] sm:$0xff] %v213
                %v215 = vld [vmem:[%s173 + $0x280] sm:$0xff]
                %216 = vst [vmem:[%s174 + $0xa0] sm:$0xff] %v215
                %v217 = vld [vmem:[%s173 + $0x288] sm:$0xff]
                %218 = vst [vmem:[%s174 + $0xa8] sm:$0xff] %v217
                %v219 = vld [vmem:[%s173 + $0x290] sm:$0xff]
                %220 = vst [vmem:[%s174 + $0xb0] sm:$0xff] %v219
                %v221 = vld [vmem:[%s173 + $0x298] sm:$0xff]
                %222 = vst [vmem:[%s174 + $0xb8] sm:$0xff] %v221
                %v223 = vld [vmem:[%s173 + $0x300] sm:$0xff]
                %224 = vst [vmem:[%s174 + $0xc0] sm:$0xff] %v223
                %v225 = vld [vmem:[%s173 + $0x308] sm:$0xff]
                %226 = vst [vmem:[%s174 + $0xc8] sm:$0xff] %v225
                %v227 = vld [vmem:[%s173 + $0x310] sm:$0xff]
                %228 = vst [vmem:[%s174 + $0xd0] sm:$0xff] %v227
                %v229 = vld [vmem:[%s173 + $0x318] sm:$0xff]
                %230 = vst [vmem:[%s174 + $0xd8] sm:$0xff] %v229
                %v231 = vld [vmem:[%s173 + $0x380] sm:$0xff]
                %232 = vst [vmem:[%s174 + $0xe0] sm:$0xff] %v231
                %v233 = vld [vmem:[%s173 + $0x388] sm:$0xff]
                %234 = vst [vmem:[%s174 + $0xe8] sm:$0xff] %v233
                %v235 = vld [vmem:[%s173 + $0x390] sm:$0xff]
                %236 = vst [vmem:[%s174 + $0xf0] sm:$0xff] %v235
                %v237 = vld [vmem:[%s173 + $0x398] sm:$0xff]
                %238 = vst [vmem:[%s174 + $0xf8] sm:$0xff] %v237
                %v239 = vld [vmem:[%s173 + $0x400] sm:$0xff]
                %240 = vst [vmem:[%s174 + $0x100] sm:$0xff] %v239
                %v241 = vld [vmem:[%s173 + $0x408] sm:$0xff]
                %242 = vst [vmem:[%s174 + $0x108] sm:$0xff] %v241
                %v243 = vld [vmem:[%s173 + $0x410] sm:$0xff]
                %244 = vst [vmem:[%s174 + $0x110] sm:$0xff] %v243
                %v245 = vld [vmem:[%s173 + $0x418] sm:$0xff]
                %246 = vst [vmem:[%s174 + $0x118] sm:$0xff] %v245
              $region45: #{_lambda_.30} parent=39 // loop_footer
                %s172 = sadd.s32 1, %s168
              $region46: #{_lambda_.30} parent=39 // loop_footer_branch
                %167 = sbr.rel target = $region42
              $region47: #{_lambda_.30} parent=39 // loop_exit
                _
            $region40: #{_lambda_.30} parent=35 // pred_fallthru
              _
            // Predicated region
            $region48: #{_lambda_.30} parent=35 // pred_check
              _
            $region49: #{_lambda_.30} parent=35 // pred_check_branch
              %248 = sbr.rel target = $region51
            $region50: #{_lambda_.30} parent=35 // pred_region
              _
            $region51: #{_lambda_.30} parent=35 // pred_fallthru
              _
          $region36: #{_lambda_.30} parent=31 // pred_fallthru
            _
          %249 = vnop
        $region32: #{_lambda_.30} parent=27 // pred_fallthru
          _
      $region28: #{_lambda_.30} parent=5 // pred_fallthru
        _
      %p250 = scmp.le.s32.totalorder 1, %s10
      %p251 = scmp.lt.s32.totalorder %s10, 5
      %p252 = pnand %p250, %p251
      %p253 = pneg %p252
      // Predicated region
      $region52: #{_lambda_.30} parent=5 // pred_check
        _
      $region53: #{_lambda_.30} parent=5 // pred_check_branch
        %255 = sbr.rel (%p252) target = $region55
      $region54: #{_lambda_.30} parent=5 // pred_region
        %s256 = ssub.s32 %s10, 1
        %s257 = sand.u32 %s44, 1
        %s258 = sand.u32 %s44, 1
        %s259 = smul.addr %s258, 288
        %s260 = scalar_lea.vmem [#allocation2], %s259
        // Predicated region
        $region56: #{_lambda_.30} parent=54 // pred_check
          %p261 = pneg %p57
        $region57: #{_lambda_.30} parent=54 // pred_check_branch
          %263 = sbr.rel (%p261) target = $region59
        $region58: #{_lambda_.30} parent=54 // pred_region
          _
        $region59: #{_lambda_.30} parent=54 // pred_fallthru
          _
        %p264 = pneg %p31
        %p265 = pneg %p28
        %s266 = sand.u32 %s44, 1
        %s267 = sand.u32 %s44, 1
        %s268 = smul.addr %s267, 288
        %s269 = scalar_lea.vmem [#allocation2], %s268
        %p270 = pneg %p57
        %p271 = pneg %p54
        %p272 = pneg %p78
        %p273 = pneg %p75
        %p274 = pneg %p99
        %p275 = pneg %p96
        %p276 = pneg %p125
        %p277 = pneg %p122
        %s278 = smul.u32 8, %s15
        %p279 = scmp.lt.s32.totalorder %s278, 31
        %s280 = scalar_select %p279, %s278, 31
        %s281 = smul.addr %s280, 8
        %s282 = scalar_lea.vmem %s4, %s281
        %s283 = smul.u32 8, %s15
        %s284 = smul.u32 8, %s15
        %p285 = scmp.lt.s32.totalorder %s284, 31
        %s286 = scalar_select %p285, %s284, 31
        %s287 = smul.addr %s286, 8
        %s288 = scalar_lea.vmem %s4, %s287
        %s289 = smul.u32 8, %s15
        %v291 = vld [vmem:[%s0] sm:$0xf]
        %v292 = vld [vmem:[%s260] sm:$0xff]
        %v293 = vld [vmem:[%s260 + $0x8] sm:$0xff]
        %v294 = vld [vmem:[%s260 + $0x10] sm:$0xff]
        %v295 = vld [vmem:[%s260 + $0x18] sm:$0xff]
        %v296 = vld [vmem:[%s260 + $0x20] sm:$0xff]
        %v297 = vld [vmem:[%s260 + $0x28] sm:$0xff]
        %v298 = vld [vmem:[%s260 + $0x30] sm:$0xff]
        %v299 = vld [vmem:[%s260 + $0x38] sm:$0xff]
        %v300 = vld [vmem:[%s260 + $0x40] sm:$0xff]
        %v301 = vld [vmem:[%s260 + $0x48] sm:$0xff]
        %v302 = vld [vmem:[%s260 + $0x50] sm:$0xff]
        %v303 = vld [vmem:[%s260 + $0x58] sm:$0xff]
        %v304 = vld [vmem:[%s260 + $0x60] sm:$0xff]
        %v305 = vld [vmem:[%s260 + $0x68] sm:$0xff]
        %v306 = vld [vmem:[%s260 + $0x70] sm:$0xff]
        %v307 = vld [vmem:[%s260 + $0x78] sm:$0xff]
        %v308 = vld [vmem:[%s260 + $0x80] sm:$0xff]
        %v309 = vld [vmem:[%s260 + $0x88] sm:$0xff]
        %v310 = vld [vmem:[%s260 + $0x90] sm:$0xff]
        %v311 = vld [vmem:[%s260 + $0x98] sm:$0xff]
        %v312 = vld [vmem:[%s260 + $0xa0] sm:$0xff]
        %v313 = vld [vmem:[%s260 + $0xa8] sm:$0xff]
        %v314 = vld [vmem:[%s260 + $0xb0] sm:$0xff]
        %v315 = vld [vmem:[%s260 + $0xb8] sm:$0xff]
        %v316 = vld [vmem:[%s260 + $0xc0] sm:$0xff]
        %v317 = vld [vmem:[%s260 + $0xc8] sm:$0xff]
        %v318 = vld [vmem:[%s260 + $0xd0] sm:$0xff]
        %v319 = vld [vmem:[%s260 + $0xd8] sm:$0xff]
        %v320 = vld [vmem:[%s260 + $0xe0] sm:$0xff]
        %v321 = vld [vmem:[%s260 + $0xe8] sm:$0xff]
        %v322 = vld [vmem:[%s260 + $0xf0] sm:$0xff]
        %v323 = vld [vmem:[%s260 + $0xf8] sm:$0xff]
        %v324 = vld [vmem:[%s260 + $0x100] sm:$0xff]
        %v325 = vld [vmem:[%s260 + $0x108] sm:$0xff]
        %v326 = vld [vmem:[%s260 + $0x110] sm:$0xff]
        %v327 = vld [vmem:[%s260 + $0x118] sm:$0xff]
        %v364 = vunpack.c.l.b16 %v292
        %v365 = vunpack.c.h.b16 %v292
        %v366 = vunpack.c.l.b16 %v293
        %v367 = vunpack.c.h.b16 %v293
        %v368 = vunpack.c.l.b16 %v294
        %v369 = vunpack.c.h.b16 %v294
        %v370 = vunpack.c.l.b16 %v295
        %v371 = vunpack.c.h.b16 %v295
        %v372 = vunpack.c.l.b16 %v296
        %v373 = vunpack.c.h.b16 %v296
        %v374 = vunpack.c.l.b16 %v297
        %v375 = vunpack.c.h.b16 %v297
        %v376 = vunpack.c.l.b16 %v298
        %v377 = vunpack.c.h.b16 %v298
        %v378 = vunpack.c.l.b16 %v299
        %v379 = vunpack.c.h.b16 %v299
        %v380 = vunpack.c.l.b16 %v300
        %v381 = vunpack.c.h.b16 %v300
        %v382 = vunpack.c.l.b16 %v301
        %v383 = vunpack.c.h.b16 %v301
        %v384 = vunpack.c.l.b16 %v302
        %v385 = vunpack.c.h.b16 %v302
        %v386 = vunpack.c.l.b16 %v303
        %v387 = vunpack.c.h.b16 %v303
        %v388 = vunpack.c.l.b16 %v304
        %v389 = vunpack.c.h.b16 %v304
        %v390 = vunpack.c.l.b16 %v305
        %v391 = vunpack.c.h.b16 %v305
        %v392 = vunpack.c.l.b16 %v306
        %v393 = vunpack.c.h.b16 %v306
        %v394 = vunpack.c.l.b16 %v307
        %v395 = vunpack.c.h.b16 %v307
        %v396 = vunpack.c.l.b16 %v308
        %v397 = vunpack.c.h.b16 %v308
        %v398 = vunpack.c.l.b16 %v309
        %v399 = vunpack.c.h.b16 %v309
        %v400 = vunpack.c.l.b16 %v310
        %v401 = vunpack.c.h.b16 %v310
        %v402 = vunpack.c.l.b16 %v311
        %v403 = vunpack.c.h.b16 %v311
        %v404 = vunpack.c.l.b16 %v312
        %v405 = vunpack.c.h.b16 %v312
        %v406 = vunpack.c.l.b16 %v313
        %v407 = vunpack.c.h.b16 %v313
        %v408 = vunpack.c.l.b16 %v314
        %v409 = vunpack.c.h.b16 %v314
        %v410 = vunpack.c.l.b16 %v315
        %v411 = vunpack.c.h.b16 %v315
        %v412 = vunpack.c.l.b16 %v316
        %v413 = vunpack.c.h.b16 %v316
        %v414 = vunpack.c.l.b16 %v317
        %v415 = vunpack.c.h.b16 %v317
        %v416 = vunpack.c.l.b16 %v318
        %v417 = vunpack.c.h.b16 %v318
        %v418 = vunpack.c.l.b16 %v319
        %v419 = vunpack.c.h.b16 %v319
        %v420 = vunpack.c.l.b16 %v320
        %v421 = vunpack.c.h.b16 %v320
        %v422 = vunpack.c.l.b16 %v321
        %v423 = vunpack.c.h.b16 %v321
        %v424 = vunpack.c.l.b16 %v322
        %v425 = vunpack.c.h.b16 %v322
        %v426 = vunpack.c.l.b16 %v323
        %v427 = vunpack.c.h.b16 %v323
        %v428 = vunpack.c.l.b16 %v324
        %v429 = vunpack.c.h.b16 %v324
        %v430 = vunpack.c.l.b16 %v325
        %v431 = vunpack.c.h.b16 %v325
        %v432 = vunpack.c.l.b16 %v326
        %v433 = vunpack.c.h.b16 %v326
        %v434 = vunpack.c.l.b16 %v327
        %v435 = vunpack.c.h.b16 %v327
        %v436 = vpack.c.b16 %v372, %v364
        %v437 = vpack.c.b16 %v373, %v365
        %v438 = vpack.c.b16 %v374, %v366
        %v439 = vpack.c.b16 %v375, %v367
        %v440 = vpack.c.b16 %v376, %v368
        %v441 = vpack.c.b16 %v377, %v369
        %v442 = vpack.c.b16 %v378, %v370
        %v443 = vpack.c.b16 %v379, %v371
        %v444 = vpack.c.b16 %v388, %v380
        %v445 = vpack.c.b16 %v389, %v381
        %v446 = vpack.c.b16 %v390, %v382
        %v447 = vpack.c.b16 %v391, %v383
        %v448 = vpack.c.b16 %v392, %v384
        %v449 = vpack.c.b16 %v393, %v385
        %v450 = vpack.c.b16 %v394, %v386
        %v451 = vpack.c.b16 %v395, %v387
        %v452 = vpack.c.b16 %v404, %v396
        %v453 = vpack.c.b16 %v405, %v397
        %v454 = vpack.c.b16 %v406, %v398
        %v455 = vpack.c.b16 %v407, %v399
        %v456 = vpack.c.b16 %v408, %v400
        %v457 = vpack.c.b16 %v409, %v401
        %v458 = vpack.c.b16 %v410, %v402
        %v459 = vpack.c.b16 %v411, %v403
        %v460 = vpack.c.b16 %v420, %v412
        %v461 = vpack.c.b16 %v421, %v413
        %v462 = vpack.c.b16 %v422, %v414
        %v463 = vpack.c.b16 %v423, %v415
        %v464 = vpack.c.b16 %v424, %v416
        %v465 = vpack.c.b16 %v425, %v417
        %v466 = vpack.c.b16 %v426, %v418
        %v467 = vpack.c.b16 %v427, %v419
        %v468 = vpack.c.b16 %v428, %v428
        %v469 = vpack.c.b16 %v429, %v429
        %v470 = vpack.c.b16 %v430, %v430
        %v471 = vpack.c.b16 %v431, %v431
        %v472 = vpack.c.b16 %v432, %v432
        %v473 = vpack.c.b16 %v433, %v433
        %v474 = vpack.c.b16 %v434, %v434
        %v475 = vpack.c.b16 %v435, %v435
        %vm508 = vcmask 588800
        %v510 = vsel %vm508, %v291, 0
        %vm512 = vcmask 1043456
        %v514 = vsel %vm512, %v468, 0
        %v517 = vsel %vm512, %v469, 0
        %v520 = vsel %vm512, %v470, 0
        %v523 = vsel %vm512, %v471, 0
        %v526 = vsel %vm512, %v472, 0
        %v529 = vsel %vm512, %v473, 0
        %v532 = vsel %vm512, %v474, 0
        %v535 = vsel %vm512, %v475, 0
        %537 = vmatprep.subr.bf16.mxu0 0
        %538 = vmatpush1.bf16.msra.mxu0 0
        %539 = vmatprep.subr.bf16.mxu0 0
        %540 = vmatpush1.bf16.msra.mxu0 0
        %541 = vmatprep.subr.bf16.mxu0 0
        %542 = vmatpush1.bf16.msra.mxu0 0
        %543 = vmatprep.subr.bf16.mxu0 %v517
        %544 = vmatpush1.bf16.msra.mxu0 %v514
        %545 = vmatprep.subr.bf16.mxu0 %v461
        %546 = vmatpush1.bf16.msra.mxu0 %v460
        %547 = vmatprep.subr.bf16.mxu0 %v453
        %548 = vmatpush1.bf16.msra.mxu0 %v452
        %549 = vmatprep.subr.bf16.mxu0 %v445
        %550 = vmatpush1.bf16.msra.mxu0 %v444
        %551 = vmatprep.subr.bf16.mxu0 %v437
        %552 = vmatpush1.bf16.msra.mxu0 %v436
        %553 = vmatprep.subr.bf16.mxu0 0
        %554 = vmatpush2.bf16.msra.mxu0 0
        %555 = vmatprep.subr.bf16.mxu0 0
        %556 = vmatpush2.bf16.msra.mxu0 0
        %557 = vmatprep.subr.bf16.mxu0 0
        %558 = vmatpush2.bf16.msra.mxu0 0
        %559 = vmatprep.subr.bf16.mxu0 0
        %560 = vmatpush2.bf16.msra.mxu0 0
        %561 = vmatprep.subr.bf16.mxu0 0
        %562 = vmatpush2.bf16.msra.mxu0 0
        %563 = vmatprep.subr.bf16.mxu0 0
        %564 = vmatpush2.bf16.msra.mxu0 0
        %565 = vmatprep.subr.bf16.mxu0 0
        %566 = vmatpush2.bf16.msra.mxu0 0
        %567 = vmatprep.subr.bf16.mxu0 0
        %568 = vmatpush2.bf16.msra.mxu0 0
        %569 = vmatprep.mubr.bf16.mxu0 0
        %570 = vmatmul.mubr.bf16.gmra.mxu0 %v510
        %v571 = vpop.f32.mrf.mxu0
        %v572 = vadd.f32 0.0, %v571
        %v573 = vpop.f32.mrf.mxu0
        %v574 = vadd.f32 0.0, %v573
        %v575 = vpop.f32.mrf.mxu0
        %v576 = vpop.f32.mrf.mxu0
        %577 = vdwg.mxu0
        %578 = vmatprep.subr.bf16.mxu0 0
        %579 = vmatpush1.bf16.msra.mxu0 0
        %580 = vmatprep.subr.bf16.mxu0 0
        %581 = vmatpush1.bf16.msra.mxu0 0
        %582 = vmatprep.subr.bf16.mxu0 0
        %583 = vmatpush1.bf16.msra.mxu0 0
        %584 = vmatprep.subr.bf16.mxu0 %v523
        %585 = vmatpush1.bf16.msra.mxu0 %v520
        %586 = vmatprep.subr.bf16.mxu0 %v463
        %587 = vmatpush1.bf16.msra.mxu0 %v462
        %588 = vmatprep.subr.bf16.mxu0 %v455
        %589 = vmatpush1.bf16.msra.mxu0 %v454
        %590 = vmatprep.subr.bf16.mxu0 %v447
        %591 = vmatpush1.bf16.msra.mxu0 %v446
        %592 = vmatprep.subr.bf16.mxu0 %v439
        %593 = vmatpush1.bf16.msra.mxu0 %v438
        %594 = vmatprep.subr.bf16.mxu0 0
        %595 = vmatpush2.bf16.msra.mxu0 0
        %596 = vmatprep.subr.bf16.mxu0 0
        %597 = vmatpush2.bf16.msra.mxu0 0
        %598 = vmatprep.subr.bf16.mxu0 0
        %599 = vmatpush2.bf16.msra.mxu0 0
        %600 = vmatprep.subr.bf16.mxu0 0
        %601 = vmatpush2.bf16.msra.mxu0 0
        %602 = vmatprep.subr.bf16.mxu0 0
        %603 = vmatpush2.bf16.msra.mxu0 0
        %604 = vmatprep.subr.bf16.mxu0 0
        %605 = vmatpush2.bf16.msra.mxu0 0
        %606 = vmatprep.subr.bf16.mxu0 0
        %607 = vmatpush2.bf16.msra.mxu0 0
        %608 = vmatprep.subr.bf16.mxu0 0
        %609 = vmatpush2.bf16.msra.mxu0 0
        %610 = vmatprep.mubr.bf16.mxu0 0
        %611 = vmatmul.mubr.bf16.gmra.mxu0 %v510
        %v612 = vpop.f32.mrf.mxu0
        %v613 = vadd.f32 0.0, %v612
        %v614 = vpop.f32.mrf.mxu0
        %v615 = vadd.f32 0.0, %v614
        %v616 = vpop.f32.mrf.mxu0
        %v617 = vpop.f32.mrf.mxu0
        %618 = vdwg.mxu0
        %619 = vmatprep.subr.bf16.mxu0 0
        %620 = vmatpush1.bf16.msra.mxu0 0
        %621 = vmatprep.subr.bf16.mxu0 0
        %622 = vmatpush1.bf16.msra.mxu0 0
        %623 = vmatprep.subr.bf16.mxu0 0
        %624 = vmatpush1.bf16.msra.mxu0 0
        %625 = vmatprep.subr.bf16.mxu0 %v529
        %626 = vmatpush1.bf16.msra.mxu0 %v526
        %627 = vmatprep.subr.bf16.mxu0 %v465
        %628 = vmatpush1.bf16.msra.mxu0 %v464
        %629 = vmatprep.subr.bf16.mxu0 %v457
        %630 = vmatpush1.bf16.msra.mxu0 %v456
        %631 = vmatprep.subr.bf16.mxu0 %v449
        %632 = vmatpush1.bf16.msra.mxu0 %v448
        %633 = vmatprep.subr.bf16.mxu0 %v441
        %634 = vmatpush1.bf16.msra.mxu0 %v440
        %635 = vmatprep.subr.bf16.mxu0 0
        %636 = vmatpush2.bf16.msra.mxu0 0
        %637 = vmatprep.subr.bf16.mxu0 0
        %638 = vmatpush2.bf16.msra.mxu0 0
        %639 = vmatprep.subr.bf16.mxu0 0
        %640 = vmatpush2.bf16.msra.mxu0 0
        %641 = vmatprep.subr.bf16.mxu0 0
        %642 = vmatpush2.bf16.msra.mxu0 0
        %643 = vmatprep.subr.bf16.mxu0 0
        %644 = vmatpush2.bf16.msra.mxu0 0
        %645 = vmatprep.subr.bf16.mxu0 0
        %646 = vmatpush2.bf16.msra.mxu0 0
        %647 = vmatprep.subr.bf16.mxu0 0
        %648 = vmatpush2.bf16.msra.mxu0 0
        %649 = vmatprep.subr.bf16.mxu0 0
        %650 = vmatpush2.bf16.msra.mxu0 0
        %651 = vmatprep.mubr.bf16.mxu0 0
        %652 = vmatmul.mubr.bf16.gmra.mxu0 %v510
        %v653 = vpop.f32.mrf.mxu0
        %v654 = vadd.f32 0.0, %v653
        %v655 = vpop.f32.mrf.mxu0
        %v656 = vadd.f32 0.0, %v655
        %v657 = vpop.f32.mrf.mxu0
        %v658 = vpop.f32.mrf.mxu0
        %659 = vdwg.mxu0
        %660 = vmatprep.subr.bf16.mxu0 0
        %661 = vmatpush1.bf16.msra.mxu0 0
        %662 = vmatprep.subr.bf16.mxu0 0
        %663 = vmatpush1.bf16.msra.mxu0 0
        %664 = vmatprep.subr.bf16.mxu0 0
        %665 = vmatpush1.bf16.msra.mxu0 0
        %666 = vmatprep.subr.bf16.mxu0 %v535
        %667 = vmatpush1.bf16.msra.mxu0 %v532
        %668 = vmatprep.subr.bf16.mxu0 %v467
        %669 = vmatpush1.bf16.msra.mxu0 %v466
        %670 = vmatprep.subr.bf16.mxu0 %v459
        %671 = vmatpush1.bf16.msra.mxu0 %v458
        %672 = vmatprep.subr.bf16.mxu0 %v451
        %673 = vmatpush1.bf16.msra.mxu0 %v450
        %674 = vmatprep.subr.bf16.mxu0 %v443
        %675 = vmatpush1.bf16.msra.mxu0 %v442
        %676 = vmatprep.subr.bf16.mxu0 0
        %677 = vmatpush2.bf16.msra.mxu0 0
        %678 = vmatprep.subr.bf16.mxu0 0
        %679 = vmatpush2.bf16.msra.mxu0 0
        %680 = vmatprep.subr.bf16.mxu0 0
        %681 = vmatpush2.bf16.msra.mxu0 0
        %682 = vmatprep.subr.bf16.mxu0 0
        %683 = vmatpush2.bf16.msra.mxu0 0
        %684 = vmatprep.subr.bf16.mxu0 0
        %685 = vmatpush2.bf16.msra.mxu0 0
        %686 = vmatprep.subr.bf16.mxu0 0
        %687 = vmatpush2.bf16.msra.mxu0 0
        %688 = vmatprep.subr.bf16.mxu0 0
        %689 = vmatpush2.bf16.msra.mxu0 0
        %690 = vmatprep.subr.bf16.mxu0 0
        %691 = vmatpush2.bf16.msra.mxu0 0
        %692 = vmatprep.mubr.bf16.mxu0 0
        %693 = vmatmul.mubr.bf16.gmra.mxu0 %v510
        %v694 = vpop.f32.mrf.mxu0
        %v695 = vadd.f32 0.0, %v694
        %v696 = vpop.f32.mrf.mxu0
        %v697 = vadd.f32 0.0, %v696
        %v698 = vpop.f32.mrf.mxu0
        %v699 = vpop.f32.mrf.mxu0
        %700 = vdwg.mxu0
        %v701 = vld [vmem:[%s2] sm:$0xff]
        %703 = vset.pattern.permute.xlu0 0
        %704 = vperm.xlu0 %703, %v701
        %v705 = vpop.permute.xlu0 %704
        %v707 = vmul.f32 %v572, %v705
        %v708 = vmul.f32 %v574, %v705
        %v709 = vmul.f32 %v613, %v705
        %v710 = vmul.f32 %v615, %v705
        %v711 = vmul.f32 %v654, %v705
        %v712 = vmul.f32 %v656, %v705
        %v713 = vmul.f32 %v695, %v705
        %v714 = vmul.f32 %v697, %v705
        %v715 = vld [vmem:[%s3] sm:$0xff]
        %717 = vset.pattern.permute.xlu0 0
        %718 = vperm.xlu0 %717, %v715
        %v719 = vpop.permute.xlu0 %718
        %v721 = vadd.f32 %v707, %v719
        %v722 = vadd.f32 %v708, %v719
        %v723 = vadd.f32 %v709, %v719
        %v724 = vadd.f32 %v710, %v719
        %v725 = vadd.f32 %v711, %v719
        %v726 = vadd.f32 %v712, %v719
        %v727 = vadd.f32 %v713, %v719
        %v728 = vadd.f32 %v714, %v719
        %v729 = vmax.f32 %v721, 0.0
        %v730 = vmax.f32 %v722, 0.0
        %v731 = vmax.f32 %v723, 0.0
        %v732 = vmax.f32 %v724, 0.0
        %v733 = vmax.f32 %v725, 0.0
        %v734 = vmax.f32 %v726, 0.0
        %v735 = vmax.f32 %v727, 0.0
        %v736 = vmax.f32 %v728, 0.0
        %737 = vst [vmem:[%s288] sm:$0xff] %v729
        %738 = vst [vmem:[%s288 + $0x8] sm:$0xff] %v730
        %739 = vst [vmem:[%s288 + $0x10] sm:$0xff] %v731
        %740 = vst [vmem:[%s288 + $0x18] sm:$0xff] %v732
        %741 = vst [vmem:[%s288 + $0x20] sm:$0xff] %v733
        %742 = vst [vmem:[%s288 + $0x28] sm:$0xff] %v734
        %743 = vst [vmem:[%s288 + $0x30] sm:$0xff] %v735
        %744 = vst [vmem:[%s288 + $0x38] sm:$0xff] %v736
        %s745 = smul.u32 8, %s15
        %p746 = scmp.lt.s32.totalorder %s745, 31
        %s747 = scalar_select %p746, %s745, 31
        %s748 = smul.addr %s747, 8
        %s749 = scalar_lea.vmem %s4, %s748
        // Predicated region
        $region60: #{_lambda_.30} parent=54 // pred_check
          %p750 = pneg %p122
        $region61: #{_lambda_.30} parent=54 // pred_check_branch
          %752 = sbr.rel (%p750) target = $region63
        $region62: #{_lambda_.30} parent=54 // pred_region
          %s753 = smul.u32 8, %s15
        $region63: #{_lambda_.30} parent=54 // pred_fallthru
          _
      $region55: #{_lambda_.30} parent=5 // pred_fallthru
        _
      %p754 = scmp.le.s32.totalorder 2, %s10
      // Predicated region
      $region64: #{_lambda_.30} parent=5 // pred_check
        %p755 = pneg %p754
      $region65: #{_lambda_.30} parent=5 // pred_check_branch
        %757 = sbr.rel (%p755) target = $region67
      $region66: #{_lambda_.30} parent=5 // pred_region
        %s758 = ssub.s32 %s10, 2
        // Predicated region
        $region68: #{_lambda_.30} parent=66 // pred_check
          %p759 = pneg %p128
        $region69: #{_lambda_.30} parent=66 // pred_check_branch
          %761 = sbr.rel (%p759) target = $region71
        $region70: #{_lambda_.30} parent=66 // pred_region
          %s762 = smul.u32 8, %s16
          %p763 = scmp.lt.s32.totalorder %s762, 31
          %s764 = scalar_select %p763, %s762, 31
          %s765 = smul.addr %s764, 8
          %s766 = scalar_lea.vmem %s4, %s765
        $region71: #{_lambda_.30} parent=66 // pred_fallthru
          _
      $region67: #{_lambda_.30} parent=5 // pred_fallthru
        _
    $region6: #{_lambda_.30} parent=1 // loop_footer
      %s14 = sadd.s32 1, %s10
    $region7: #{_lambda_.30} parent=1 // loop_footer_branch
      %9 = sbr.rel target = $region3
    $region8: #{_lambda_.30} parent=1 // loop_exit
      _

// kernel: _lambda_.31
$region0: #{_lambda_.31}
  #allocation0 [shape = 'u32[]', space=smem, size = 0x4, offset = 0x4, fixed_abs, tag = 'smem constant byte address 0x4 - core index']
  #allocation1 [shape = 'u32[144,128]{1,0:T(1,128)}', space=vmem, size = 0x12000, scoped, tag = 'internal scratch']
  %s0 = inlined_call_operand.vmem [shape: bf16[8,36], index: 0, kind: input, shape index: {}]
  %s1 = inlined_call_operand.vmem [shape: bf16[36,16384], index: 1, kind: input, shape index: {}]
  %s2 = inlined_call_operand.vmem [shape: f32[8,1], index: 2, kind: input, shape index: {}]
  %s3 = inlined_call_operand.vmem [shape: f32[8,1], index: 3, kind: input, shape index: {}]
  %s4 = inlined_call_operand.vmem [shape: f32[8,16384], index: 4, kind: output, shape index: {}]
  %s5 = sld [smem:[#allocation0]]
  $region72: #{_lambda_.31} parent=0
    _
  %s7 = ssub.s32 1, %s5
  %s8 = scalar_select 0, %s7, %s5
  $region1: #{_lambda_.31} parent=0
    #allocation2 [shape = 'u8[655360]{0}', space=vmem, size = 0xa0000, scoped, tag = 'input window, operand 1']
    loop: start=0, step=1, limit=6
    $region2: #{_lambda_.31} parent=1 // loop_pre_header
      _
    $region3: #{_lambda_.31} parent=1 // loop_header
      %s10 = sphi 0, %s14
      %p11 = scmp.ge.s32.totalorder %s10, 6
      %s18 = sphi 0, %s18
      %s20 = sphi 0, %s18
      %s21 = sphi 0, %s20
      %s35 = sphi 0, %s21
      %s41 = sphi 0, %s43
      %s44 = sphi 0, %s41
      %s45 = sphi 0, %s44
      %s61 = sphi 0, %s45
      %s65 = sphi 0, %s65
      %s67 = sphi 0, %s65
      %s68 = sphi 0, %s67
      %s82 = sphi 0, %s68
      %s86 = sphi 0, %s86
      %s88 = sphi 0, %s86
      %s89 = sphi 0, %s88
      %s103 = sphi 0, %s89
      %s109 = sphi 0, %s111
      %s112 = sphi 0, %s109
      %s113 = sphi 0, %s112
      %s129 = sphi 0, %s113
    $region4: #{_lambda_.31} parent=1 // loop_header_branch
      %13 = sbr.rel (%p11) target = $region8
    $region5: #{_lambda_.31} parent=1 // loop_body
      %s15 = ssub.s32 %s10, 1
      %s16 = ssub.s32 %s10, 2
      %s17 = sadd.s32 %s10, 1
      %s19 = sadd.s32 %s18, 1
      %p22 = scmp.eq.s32.totalorder %s10, 3
      %p23 = scmp.ne.s32.totalorder %s18, %s20
      %p24 = scmp.eq.s32.totalorder %s10, 0
      %p25 = por %p23, %p24
      %p26 = scmp.ne.s32.totalorder %s18, %s20
      %p27 = scmp.eq.s32.totalorder %s15, 3
      %p28 = por %p26, %p27
      %p29 = scmp.ne.s32.totalorder %s20, %s21
      %p30 = scmp.eq.s32.totalorder %s15, 0
      %p31 = por %p29, %p30
      %p32 = scmp.ne.s32.totalorder %s20, %s21
      %p33 = scmp.eq.s32.totalorder %s16, 3
      %p34 = por %p32, %p33
      %p36 = scmp.ne.s32.totalorder %s21, %s35
      %p37 = scmp.eq.s32.totalorder %s16, 0
      %p38 = por %p36, %p37
      %s39 = ssub.s32 %s10, %s17
      %p40 = scmp.eq.s32.totalorder %s39, 0
      %s42 = sadd.s32 %s41, 1
      %s43 = scalar_select %p40, %s41, %s42
      %p46 = pneg %p40
      %p47 = scmp.eq.s32.totalorder %s10, 3
      %p48 = por %p46, %p47
      %p49 = scmp.ne.s32.totalorder %s41, %s44
      %p50 = scmp.eq.s32.totalorder %s10, 0
      %p51 = por %p49, %p50
      %p52 = scmp.ne.s32.totalorder %s41, %s44
      %p53 = scmp.eq.s32.totalorder %s15, 3
      %p54 = por %p52, %p53
      %p55 = scmp.ne.s32.totalorder %s44, %s45
      %p56 = scmp.eq.s32.totalorder %s15, 0
      %p57 = por %p55, %p56
      %p58 = scmp.ne.s32.totalorder %s44, %s45
      %p59 = scmp.eq.s32.totalorder %s16, 3
      %p60 = por %p58, %p59
      %p62 = scmp.ne.s32.totalorder %s45, %s61
      %p63 = scmp.eq.s32.totalorder %s16, 0
      %p64 = por %p62, %p63
      %s66 = sadd.s32 %s65, 1
      %p69 = scmp.eq.s32.totalorder %s10, 3
      %p70 = scmp.ne.s32.totalorder %s65, %s67
      %p71 = scmp.eq.s32.totalorder %s10, 0
      %p72 = por %p70, %p71
      %p73 = scmp.ne.s32.totalorder %s65, %s67
      %p74 = scmp.eq.s32.totalorder %s15, 3
      %p75 = por %p73, %p74
      %p76 = scmp.ne.s32.totalorder %s67, %s68
      %p77 = scmp.eq.s32.totalorder %s15, 0
      %p78 = por %p76, %p77
      %p79 = scmp.ne.s32.totalorder %s67, %s68
      %p80 = scmp.eq.s32.totalorder %s16, 3
      %p81 = por %p79, %p80
      %p83 = scmp.ne.s32.totalorder %s68, %s82
      %p84 = scmp.eq.s32.totalorder %s16, 0
      %p85 = por %p83, %p84
      %s87 = sadd.s32 %s86, 1
      %p90 = scmp.eq.s32.totalorder %s10, 3
      %p91 = scmp.ne.s32.totalorder %s86, %s88
      %p92 = scmp.eq.s32.totalorder %s10, 0
      %p93 = por %p91, %p92
      %p94 = scmp.ne.s32.totalorder %s86, %s88
      %p95 = scmp.eq.s32.totalorder %s15, 3
      %p96 = por %p94, %p95
      %p97 = scmp.ne.s32.totalorder %s88, %s89
      %p98 = scmp.eq.s32.totalorder %s15, 0
      %p99 = por %p97, %p98
      %p100 = scmp.ne.s32.totalorder %s88, %s89
      %p101 = scmp.eq.s32.totalorder %s16, 3
      %p102 = por %p100, %p101
      %p104 = scmp.ne.s32.totalorder %s89, %s103
      %p105 = scmp.eq.s32.totalorder %s16, 0
      %p106 = por %p104, %p105
      %s107 = ssub.s32 %s10, %s17
      %p108 = scmp.eq.s32.totalorder %s107, 0
      %s110 = sadd.s32 %s109, 1
      %s111 = scalar_select %p108, %s109, %s110
      %p114 = pneg %p108
      %p115 = scmp.eq.s32.totalorder %s10, 3
      %p116 = por %p114, %p115
      %p117 = scmp.ne.s32.totalorder %s109, %s112
      %p118 = scmp.eq.s32.totalorder %s10, 0
      %p119 = por %p117, %p118
      %p120 = scmp.ne.s32.totalorder %s109, %s112
      %p121 = scmp.eq.s32.totalorder %s15, 3
      %p122 = por %p120, %p121
      %p123 = scmp.ne.s32.totalorder %s112, %s113
      %p124 = scmp.eq.s32.totalorder %s15, 0
      %p125 = por %p123, %p124
      %p126 = scmp.ne.s32.totalorder %s112, %s113
      %p127 = scmp.eq.s32.totalorder %s16, 3
      %p128 = por %p126, %p127
      %p130 = scmp.ne.s32.totalorder %s113, %s129
      %p131 = scmp.eq.s32.totalorder %s16, 0
      %p132 = por %p130, %p131
      %p133 = scmp.le.s32.totalorder 1, %s10
      %p134 = scmp.lt.s32.totalorder %s10, 5
      %p135 = pnand %p133, %p134
      %p136 = pneg %p135
      // Predicated region
      $region9: #{_lambda_.31} parent=5 // pred_check
        _
      $region10: #{_lambda_.31} parent=5 // pred_check_branch
        %138 = sbr.rel (%p135) target = $region12
      $region11: #{_lambda_.31} parent=5 // pred_region
        %s139 = ssub.s32 %s10, 1
        // Predicated region
        $region13: #{_lambda_.31} parent=11 // pred_check
          %p140 = pneg %p31
        $region14: #{_lambda_.31} parent=11 // pred_check_branch
          %142 = sbr.rel (%p140) target = $region16
        $region15: #{_lambda_.31} parent=11 // pred_region
          _
        $region16: #{_lambda_.31} parent=11 // pred_fallthru
          _
        // Predicated region
        $region17: #{_lambda_.31} parent=11 // pred_check
          %p143 = pneg %p78
        $region18: #{_lambda_.31} parent=11 // pred_check_branch
          %145 = sbr.rel (%p143) target = $region20
        $region19: #{_lambda_.31} parent=11 // pred_region
          _
        $region20: #{_lambda_.31} parent=11 // pred_fallthru
          _
        // Predicated region
        $region21: #{_lambda_.31} parent=11 // pred_check
          %p146 = pneg %p99
        $region22: #{_lambda_.31} parent=11 // pred_check_branch
          %148 = sbr.rel (%p146) target = $region24
        $region23: #{_lambda_.31} parent=11 // pred_region
          _
        $region24: #{_lambda_.31} parent=11 // pred_fallthru
          _
      $region12: #{_lambda_.31} parent=5 // pred_fallthru
        _
      %p149 = scmp.lt.s32.totalorder %s10, 4
      // Predicated region
      $region25: #{_lambda_.31} parent=5 // pred_check
        %p150 = pneg %p149
      $region26: #{_lambda_.31} parent=5 // pred_check_branch
        %152 = sbr.rel (%p150) target = $region28
      $region27: #{_lambda_.31} parent=5 // pred_region
        // Predicated region
        $region29: #{_lambda_.31} parent=27 // pred_check
          %p153 = pneg %p51
        $region30: #{_lambda_.31} parent=27 // pred_check_branch
          %155 = sbr.rel (%p153) target = $region32
        $region31: #{_lambda_.31} parent=27 // pred_region
          %s156 = sand.u32 %s41, 1
          %s157 = sand.u32 %s41, 1
          %s158 = smul.addr %s157, 640
          %s159 = scalar_lea.vmem [#allocation2], %s158
          %s160 = smul.u32 32, %s10
          %s161 = smul.addr %s160, 4
          %s162 = scalar_lea.vmem %s1, %s161
          // Predicated region
          $region33: #{_lambda_.31} parent=31 // pred_check
            _
          $region34: #{_lambda_.31} parent=31 // pred_check_branch
            %164 = sbr.rel (0) target = $region36
          $region35: #{_lambda_.31} parent=31 // pred_region
            // Predicated region
            $region37: #{_lambda_.31} parent=35 // pred_check
              _
            $region38: #{_lambda_.31} parent=35 // pred_check_branch
              %166 = sbr.rel (0) target = $region40
            $region39: #{_lambda_.31} parent=35 // pred_region
              loop: start=0, step=1, limit=1
              $region41: #{_lambda_.31} parent=39 // loop_pre_header
                _
              $region42: #{_lambda_.31} parent=39 // loop_header
                %s168 = sphi 0, %s172
                %p169 = scmp.ge.s32.totalorder %s168, 1
                %s173 = sphi %s162, %s162
                %s174 = sphi %s159, %s159
              $region43: #{_lambda_.31} parent=39 // loop_header_branch
                %171 = sbr.rel (%p169) target = $region47
              $region44: #{_lambda_.31} parent=39 // loop_body
                %v175 = vld [vmem:[%s173] sm:$0xff]
                %176 = vst [vmem:[%s174] sm:$0xff] %v175
                %v177 = vld [vmem:[%s173 + $0x8] sm:$0xff]
                %178 = vst [vmem:[%s174 + $0x8] sm:$0xff] %v177
                %v179 = vld [vmem:[%s173 + $0x10] sm:$0xff]
                %180 = vst [vmem:[%s174 + $0x10] sm:$0xff] %v179
                %v181 = vld [vmem:[%s173 + $0x18] sm:$0xff]
                %182 = vst [vmem:[%s174 + $0x18] sm:$0xff] %v181
                %v183 = vld [vmem:[%s173 + $0x20] sm:$0xff]
                %184 = vst [vmem:[%s174 + $0x20] sm:$0xff] %v183
                %v185 = vld [vmem:[%s173 + $0x28] sm:$0xff]
                %186 = vst [vmem:[%s174 + $0x28] sm:$0xff] %v185
                %v187 = vld [vmem:[%s173 + $0x30] sm:$0xff]
                %188 = vst [vmem:[%s174 + $0x30] sm:$0xff] %v187
                %v189 = vld [vmem:[%s173 + $0x38] sm:$0xff]
                %190 = vst [vmem:[%s174 + $0x38] sm:$0xff] %v189
                %v191 = vld [vmem:[%s173 + $0x40] sm:$0xff]
                %192 = vst [vmem:[%s174 + $0x40] sm:$0xff] %v191
                %v193 = vld [vmem:[%s173 + $0x48] sm:$0xff]
                %194 = vst [vmem:[%s174 + $0x48] sm:$0xff] %v193
                %v195 = vld [vmem:[%s173 + $0x50] sm:$0xff]
                %196 = vst [vmem:[%s174 + $0x50] sm:$0xff] %v195
                %v197 = vld [vmem:[%s173 + $0x58] sm:$0xff]
                %198 = vst [vmem:[%s174 + $0x58] sm:$0xff] %v197
                %v199 = vld [vmem:[%s173 + $0x60] sm:$0xff]
                %200 = vst [vmem:[%s174 + $0x60] sm:$0xff] %v199
                %v201 = vld [vmem:[%s173 + $0x68] sm:$0xff]
                %202 = vst [vmem:[%s174 + $0x68] sm:$0xff] %v201
                %v203 = vld [vmem:[%s173 + $0x70] sm:$0xff]
                %204 = vst [vmem:[%s174 + $0x70] sm:$0xff] %v203
                %v205 = vld [vmem:[%s173 + $0x78] sm:$0xff]
                %206 = vst [vmem:[%s174 + $0x78] sm:$0xff] %v205
                %v207 = vld [vmem:[%s173 + $0x200] sm:$0xff]
                %208 = vst [vmem:[%s174 + $0x80] sm:$0xff] %v207
                %v209 = vld [vmem:[%s173 + $0x208] sm:$0xff]
                %210 = vst [vmem:[%s174 + $0x88] sm:$0xff] %v209
                %v211 = vld [vmem:[%s173 + $0x210] sm:$0xff]
                %212 = vst [vmem:[%s174 + $0x90] sm:$0xff] %v211
                %v213 = vld [vmem:[%s173 + $0x218] sm:$0xff]
                %214 = vst [vmem:[%s174 + $0x98] sm:$0xff] %v213
                %v215 = vld [vmem:[%s173 + $0x220] sm:$0xff]
                %216 = vst [vmem:[%s174 + $0xa0] sm:$0xff] %v215
                %v217 = vld [vmem:[%s173 + $0x228] sm:$0xff]
                %218 = vst [vmem:[%s174 + $0xa8] sm:$0xff] %v217
                %v219 = vld [vmem:[%s173 + $0x230] sm:$0xff]
                %220 = vst [vmem:[%s174 + $0xb0] sm:$0xff] %v219
                %v221 = vld [vmem:[%s173 + $0x238] sm:$0xff]
                %222 = vst [vmem:[%s174 + $0xb8] sm:$0xff] %v221
                %v223 = vld [vmem:[%s173 + $0x240] sm:$0xff]
                %224 = vst [vmem:[%s174 + $0xc0] sm:$0xff] %v223
                %v225 = vld [vmem:[%s173 + $0x248] sm:$0xff]
                %226 = vst [vmem:[%s174 + $0xc8] sm:$0xff] %v225
                %v227 = vld [vmem:[%s173 + $0x250] sm:$0xff]
                %228 = vst [vmem:[%s174 + $0xd0] sm:$0xff] %v227
                %v229 = vld [vmem:[%s173 + $0x258] sm:$0xff]
                %230 = vst [vmem:[%s174 + $0xd8] sm:$0xff] %v229
                %v231 = vld [vmem:[%s173 + $0x260] sm:$0xff]
                %232 = vst [vmem:[%s174 + $0xe0] sm:$0xff] %v231
                %v233 = vld [vmem:[%s173 + $0x268] sm:$0xff]
                %234 = vst [vmem:[%s174 + $0xe8] sm:$0xff] %v233
                %v235 = vld [vmem:[%s173 + $0x270] sm:$0xff]
                %236 = vst [vmem:[%s174 + $0xf0] sm:$0xff] %v235
                %v237 = vld [vmem:[%s173 + $0x278] sm:$0xff]
                %238 = vst [vmem:[%s174 + $0xf8] sm:$0xff] %v237
                %v239 = vld [vmem:[%s173 + $0x400] sm:$0xff]
                %240 = vst [vmem:[%s174 + $0x100] sm:$0xff] %v239
                %v241 = vld [vmem:[%s173 + $0x408] sm:$0xff]
                %242 = vst [vmem:[%s174 + $0x108] sm:$0xff] %v241
                %v243 = vld [vmem:[%s173 + $0x410] sm:$0xff]
                %244 = vst [vmem:[%s174 + $0x110] sm:$0xff] %v243
                %v245 = vld [vmem:[%s173 + $0x418] sm:$0xff]
                %246 = vst [vmem:[%s174 + $0x118] sm:$0xff] %v245
                %v247 = vld [vmem:[%s173 + $0x420] sm:$0xff]
                %248 = vst [vmem:[%s174 + $0x120] sm:$0xff] %v247
                %v249 = vld [vmem:[%s173 + $0x428] sm:$0xff]
                %250 = vst [vmem:[%s174 + $0x128] sm:$0xff] %v249
                %v251 = vld [vmem:[%s173 + $0x430] sm:$0xff]
                %252 = vst [vmem:[%s174 + $0x130] sm:$0xff] %v251
                %v253 = vld [vmem:[%s173 + $0x438] sm:$0xff]
                %254 = vst [vmem:[%s174 + $0x138] sm:$0xff] %v253
                %v255 = vld [vmem:[%s173 + $0x440] sm:$0xff]
                %256 = vst [vmem:[%s174 + $0x140] sm:$0xff] %v255
                %v257 = vld [vmem:[%s173 + $0x448] sm:$0xff]
                %258 = vst [vmem:[%s174 + $0x148] sm:$0xff] %v257
                %v259 = vld [vmem:[%s173 + $0x450] sm:$0xff]
                %260 = vst [vmem:[%s174 + $0x150] sm:$0xff] %v259
                %v261 = vld [vmem:[%s173 + $0x458] sm:$0xff]
                %262 = vst [vmem:[%s174 + $0x158] sm:$0xff] %v261
                %v263 = vld [vmem:[%s173 + $0x460] sm:$0xff]
                %264 = vst [vmem:[%s174 + $0x160] sm:$0xff] %v263
                %v265 = vld [vmem:[%s173 + $0x468] sm:$0xff]
                %266 = vst [vmem:[%s174 + $0x168] sm:$0xff] %v265
                %v267 = vld [vmem:[%s173 + $0x470] sm:$0xff]
                %268 = vst [vmem:[%s174 + $0x170] sm:$0xff] %v267
                %v269 = vld [vmem:[%s173 + $0x478] sm:$0xff]
                %270 = vst [vmem:[%s174 + $0x178] sm:$0xff] %v269
                %v271 = vld [vmem:[%s173 + $0x600] sm:$0xff]
                %272 = vst [vmem:[%s174 + $0x180] sm:$0xff] %v271
                %v273 = vld [vmem:[%s173 + $0x608] sm:$0xff]
                %274 = vst [vmem:[%s174 + $0x188] sm:$0xff] %v273
                %v275 = vld [vmem:[%s173 + $0x610] sm:$0xff]
                %276 = vst [vmem:[%s174 + $0x190] sm:$0xff] %v275
                %v277 = vld [vmem:[%s173 + $0x618] sm:$0xff]
                %278 = vst [vmem:[%s174 + $0x198] sm:$0xff] %v277
                %v279 = vld [vmem:[%s173 + $0x620] sm:$0xff]
                %280 = vst [vmem:[%s174 + $0x1a0] sm:$0xff] %v279
                %v281 = vld [vmem:[%s173 + $0x628] sm:$0xff]
                %282 = vst [vmem:[%s174 + $0x1a8] sm:$0xff] %v281
                %v283 = vld [vmem:[%s173 + $0x630] sm:$0xff]
                %284 = vst [vmem:[%s174 + $0x1b0] sm:$0xff] %v283
                %v285 = vld [vmem:[%s173 + $0x638] sm:$0xff]
                %286 = vst [vmem:[%s174 + $0x1b8] sm:$0xff] %v285
                %v287 = vld [vmem:[%s173 + $0x640] sm:$0xff]
                %288 = vst [vmem:[%s174 + $0x1c0] sm:$0xff] %v287
                %v289 = vld [vmem:[%s173 + $0x648] sm:$0xff]
                %290 = vst [vmem:[%s174 + $0x1c8] sm:$0xff] %v289
                %v291 = vld [vmem:[%s173 + $0x650] sm:$0xff]
                %292 = vst [vmem:[%s174 + $0x1d0] sm:$0xff] %v291
                %v293 = vld [vmem:[%s173 + $0x658] sm:$0xff]
                %294 = vst [vmem:[%s174 + $0x1d8] sm:$0xff] %v293
                %v295 = vld [vmem:[%s173 + $0x660] sm:$0xff]
                %296 = vst [vmem:[%s174 + $0x1e0] sm:$0xff] %v295
                %v297 = vld [vmem:[%s173 + $0x668] sm:$0xff]
                %298 = vst [vmem:[%s174 + $0x1e8] sm:$0xff] %v297
                %v299 = vld [vmem:[%s173 + $0x670] sm:$0xff]
                %300 = vst [vmem:[%s174 + $0x1f0] sm:$0xff] %v299
                %v301 = vld [vmem:[%s173 + $0x678] sm:$0xff]
                %302 = vst [vmem:[%s174 + $0x1f8] sm:$0xff] %v301
                %v303 = vld [vmem:[%s173 + $0x800] sm:$0xff]
                %304 = vst [vmem:[%s174 + $0x200] sm:$0xff] %v303
                %v305 = vld [vmem:[%s173 + $0x808] sm:$0xff]
                %306 = vst [vmem:[%s174 + $0x208] sm:$0xff] %v305
                %v307 = vld [vmem:[%s173 + $0x810] sm:$0xff]
                %308 = vst [vmem:[%s174 + $0x210] sm:$0xff] %v307
                %v309 = vld [vmem:[%s173 + $0x818] sm:$0xff]
                %310 = vst [vmem:[%s174 + $0x218] sm:$0xff] %v309
                %v311 = vld [vmem:[%s173 + $0x820] sm:$0xff]
                %312 = vst [vmem:[%s174 + $0x220] sm:$0xff] %v311
                %v313 = vld [vmem:[%s173 + $0x828] sm:$0xff]
                %314 = vst [vmem:[%s174 + $0x228] sm:$0xff] %v313
                %v315 = vld [vmem:[%s173 + $0x830] sm:$0xff]
                %316 = vst [vmem:[%s174 + $0x230] sm:$0xff] %v315
                %v317 = vld [vmem:[%s173 + $0x838] sm:$0xff]
                %318 = vst [vmem:[%s174 + $0x238] sm:$0xff] %v317
                %v319 = vld [vmem:[%s173 + $0x840] sm:$0xff]
                %320 = vst [vmem:[%s174 + $0x240] sm:$0xff] %v319
                %v321 = vld [vmem:[%s173 + $0x848] sm:$0xff]
                %322 = vst [vmem:[%s174 + $0x248] sm:$0xff] %v321
                %v323 = vld [vmem:[%s173 + $0x850] sm:$0xff]
                %324 = vst [vmem:[%s174 + $0x250] sm:$0xff] %v323
                %v325 = vld [vmem:[%s173 + $0x858] sm:$0xff]
                %326 = vst [vmem:[%s174 + $0x258] sm:$0xff] %v325
                %v327 = vld [vmem:[%s173 + $0x860] sm:$0xff]
                %328 = vst [vmem:[%s174 + $0x260] sm:$0xff] %v327
                %v329 = vld [vmem:[%s173 + $0x868] sm:$0xff]
                %330 = vst [vmem:[%s174 + $0x268] sm:$0xff] %v329
                %v331 = vld [vmem:[%s173 + $0x870] sm:$0xff]
                %332 = vst [vmem:[%s174 + $0x270] sm:$0xff] %v331
                %v333 = vld [vmem:[%s173 + $0x878] sm:$0xff]
                %334 = vst [vmem:[%s174 + $0x278] sm:$0xff] %v333
              $region45: #{_lambda_.31} parent=39 // loop_footer
                %s172 = sadd.s32 1, %s168
              $region46: #{_lambda_.31} parent=39 // loop_footer_branch
                %167 = sbr.rel target = $region42
              $region47: #{_lambda_.31} parent=39 // loop_exit
                _
            $region40: #{_lambda_.31} parent=35 // pred_fallthru
              _
            // Predicated region
            $region48: #{_lambda_.31} parent=35 // pred_check
              _
            $region49: #{_lambda_.31} parent=35 // pred_check_branch
              %336 = sbr.rel target = $region51
            $region50: #{_lambda_.31} parent=35 // pred_region
              _
            $region51: #{_lambda_.31} parent=35 // pred_fallthru
              _
          $region36: #{_lambda_.31} parent=31 // pred_fallthru
            _
          %337 = vnop
        $region32: #{_lambda_.31} parent=27 // pred_fallthru
          _
      $region28: #{_lambda_.31} parent=5 // pred_fallthru
        _
      %p338 = scmp.le.s32.totalorder 1, %s10
      %p339 = scmp.lt.s32.totalorder %s10, 5
      %p340 = pnand %p338, %p339
      %p341 = pneg %p340
      // Predicated region
      $region52: #{_lambda_.31} parent=5 // pred_check
        _
      $region53: #{_lambda_.31} parent=5 // pred_check_branch
        %343 = sbr.rel (%p340) target = $region55
      $region54: #{_lambda_.31} parent=5 // pred_region
        %s344 = ssub.s32 %s10, 1
        %s345 = sand.u32 %s44, 1
        %s346 = sand.u32 %s44, 1
        %s347 = smul.addr %s346, 640
        %s348 = scalar_lea.vmem [#allocation2], %s347
        // Predicated region
        $region56: #{_lambda_.31} parent=54 // pred_check
          %p349 = pneg %p57
        $region57: #{_lambda_.31} parent=54 // pred_check_branch
          %351 = sbr.rel (%p349) target = $region59
        $region58: #{_lambda_.31} parent=54 // pred_region
          _
        $region59: #{_lambda_.31} parent=54 // pred_fallthru
          _
        %p352 = pneg %p31
        %p353 = pneg %p28
        %s354 = sand.u32 %s44, 1
        %s355 = sand.u32 %s44, 1
        %s356 = smul.addr %s355, 640
        %s357 = scalar_lea.vmem [#allocation2], %s356
        %p358 = pneg %p57
        %p359 = pneg %p54
        %p360 = pneg %p78
        %p361 = pneg %p75
        %p362 = pneg %p99
        %p363 = pneg %p96
        %p364 = pneg %p125
        %p365 = pneg %p122
        %s366 = smul.u32 32, %s15
        %p367 = scmp.lt.s32.totalorder %s366, 127
        %s368 = scalar_select %p367, %s366, 127
        %s369 = smul.addr %s368, 8
        %s370 = scalar_lea.vmem %s4, %s369
        %s371 = smul.u32 32, %s15
        %s372 = smul.u32 32, %s15
        %p373 = scmp.lt.s32.totalorder %s372, 127
        %s374 = scalar_select %p373, %s372, 127
        %s375 = smul.addr %s374, 8
        %s376 = scalar_lea.vmem %s4, %s375
        %s377 = smul.u32 32, %s15
        %v379 = vld [vmem:[%s0] sm:$0xf]
        %v380 = vld [vmem:[%s348] sm:$0xff]
        %v381 = vld [vmem:[%s348 + $0x8] sm:$0xff]
        %v382 = vld [vmem:[%s348 + $0x10] sm:$0xff]
        %v383 = vld [vmem:[%s348 + $0x18] sm:$0xff]
        %v384 = vld [vmem:[%s348 + $0x20] sm:$0xff]
        %v385 = vld [vmem:[%s348 + $0x28] sm:$0xff]
        %v386 = vld [vmem:[%s348 + $0x30] sm:$0xff]
        %v387 = vld [vmem:[%s348 + $0x38] sm:$0xff]
        %v388 = vld [vmem:[%s348 + $0x40] sm:$0xff]
        %v389 = vld [vmem:[%s348 + $0x48] sm:$0xff]
        %v390 = vld [vmem:[%s348 + $0x50] sm:$0xff]
        %v391 = vld [vmem:[%s348 + $0x58] sm:$0xff]
        %v392 = vld [vmem:[%s348 + $0x60] sm:$0xff]
        %v393 = vld [vmem:[%s348 + $0x68] sm:$0xff]
        %v394 = vld [vmem:[%s348 + $0x70] sm:$0xff]
        %v395 = vld [vmem:[%s348 + $0x78] sm:$0xff]
        %v396 = vld [vmem:[%s348 + $0x80] sm:$0xff]
        %v397 = vld [vmem:[%s348 + $0x88] sm:$0xff]
        %v398 = vld [vmem:[%s348 + $0x90] sm:$0xff]
        %v399 = vld [vmem:[%s348 + $0x98] sm:$0xff]
        %v400 = vld [vmem:[%s348 + $0xa0] sm:$0xff]
        %v401 = vld [vmem:[%s348 + $0xa8] sm:$0xff]
        %v402 = vld [vmem:[%s348 + $0xb0] sm:$0xff]
        %v403 = vld [vmem:[%s348 + $0xb8] sm:$0xff]
        %v404 = vld [vmem:[%s348 + $0xc0] sm:$0xff]
        %v405 = vld [vmem:[%s348 + $0xc8] sm:$0xff]
        %v406 = vld [vmem:[%s348 + $0xd0] sm:$0xff]
        %v407 = vld [vmem:[%s348 + $0xd8] sm:$0xff]
        %v408 = vld [vmem:[%s348 + $0xe0] sm:$0xff]
        %v409 = vld [vmem:[%s348 + $0xe8] sm:$0xff]
        %v410 = vld [vmem:[%s348 + $0xf0] sm:$0xff]
        %v411 = vld [vmem:[%s348 + $0xf8] sm:$0xff]
        %v412 = vld [vmem:[%s348 + $0x100] sm:$0xff]
        %v413 = vld [vmem:[%s348 + $0x108] sm:$0xff]
        %v414 = vld [vmem:[%s348 + $0x110] sm:$0xff]
        %v415 = vld [vmem:[%s348 + $0x118] sm:$0xff]
        %v416 = vld [vmem:[%s348 + $0x120] sm:$0xff]
        %v417 = vld [vmem:[%s348 + $0x128] sm:$0xff]
        %v418 = vld [vmem:[%s348 + $0x130] sm:$0xff]
        %v419 = vld [vmem:[%s348 + $0x138] sm:$0xff]
        %v420 = vld [vmem:[%s348 + $0x140] sm:$0xff]
        %v421 = vld [vmem:[%s348 + $0x148] sm:$0xff]
        %v422 = vld [vmem:[%s348 + $0x150] sm:$0xff]
        %v423 = vld [vmem:[%s348 + $0x158] sm:$0xff]
        %v424 = vld [vmem:[%s348 + $0x160] sm:$0xff]
        %v425 = vld [vmem:[%s348 + $0x168] sm:$0xff]
        %v426 = vld [vmem:[%s348 + $0x170] sm:$0xff]
        %v427 = vld [vmem:[%s348 + $0x178] sm:$0xff]
        %v428 = vld [vmem:[%s348 + $0x180] sm:$0xff]
        %v429 = vld [vmem:[%s348 + $0x188] sm:$0xff]
        %v430 = vld [vmem:[%s348 + $0x190] sm:$0xff]
        %v431 = vld [vmem:[%s348 + $0x198] sm:$0xff]
        %v432 = vld [vmem:[%s348 + $0x1a0] sm:$0xff]
        %v433 = vld [vmem:[%s348 + $0x1a8] sm:$0xff]
        %v434 = vld [vmem:[%s348 + $0x1b0] sm:$0xff]
        %v435 = vld [vmem:[%s348 + $0x1b8] sm:$0xff]
        %v436 = vld [vmem:[%s348 + $0x1c0] sm:$0xff]
        %v437 = vld [vmem:[%s348 + $0x1c8] sm:$0xff]
        %v438 = vld [vmem:[%s348 + $0x1d0] sm:$0xff]
        %v439 = vld [vmem:[%s348 + $0x1d8] sm:$0xff]
        %v440 = vld [vmem:[%s348 + $0x1e0] sm:$0xff]
        %v441 = vld [vmem:[%s348 + $0x1e8] sm:$0xff]
        %v442 = vld [vmem:[%s348 + $0x1f0] sm:$0xff]
        %v443 = vld [vmem:[%s348 + $0x1f8] sm:$0xff]
        %v444 = vld [vmem:[%s348 + $0x200] sm:$0x33]
        %v445 = vld [vmem:[%s348 + $0x208] sm:$0x33]
        %v446 = vld [vmem:[%s348 + $0x210] sm:$0x33]
        %v447 = vld [vmem:[%s348 + $0x218] sm:$0x33]
        %v448 = vld [vmem:[%s348 + $0x220] sm:$0x33]
        %v449 = vld [vmem:[%s348 + $0x228] sm:$0x33]
        %v450 = vld [vmem:[%s348 + $0x230] sm:$0x33]
        %v451 = vld [vmem:[%s348 + $0x238] sm:$0x33]
        %v452 = vld [vmem:[%s348 + $0x240] sm:$0x33]
        %v453 = vld [vmem:[%s348 + $0x248] sm:$0x33]
        %v454 = vld [vmem:[%s348 + $0x250] sm:$0x33]
        %v455 = vld [vmem:[%s348 + $0x258] sm:$0x33]
        %v456 = vld [vmem:[%s348 + $0x260] sm:$0x33]
        %v457 = vld [vmem:[%s348 + $0x268] sm:$0x33]
        %v458 = vld [vmem:[%s348 + $0x270] sm:$0x33]
        %v459 = vld [vmem:[%s348 + $0x278] sm:$0x33]
        %v540 = vunpack.c.l.b16 %v380
        %v541 = vunpack.c.h.b16 %v380
        %v542 = vunpack.c.l.b16 %v381
        %v543 = vunpack.c.h.b16 %v381
        %v544 = vunpack.c.l.b16 %v382
        %v545 = vunpack.c.h.b16 %v382
        %v546 = vunpack.c.l.b16 %v383
        %v547 = vunpack.c.h.b16 %v383
        %v548 = vunpack.c.l.b16 %v384
        %v549 = vunpack.c.h.b16 %v384
        %v550 = vunpack.c.l.b16 %v385
        %v551 = vunpack.c.h.b16 %v385
        %v552 = vunpack.c.l.b16 %v386
        %v553 = vunpack.c.h.b16 %v386
        %v554 = vunpack.c.l.b16 %v387
        %v555 = vunpack.c.h.b16 %v387
        %v556 = vunpack.c.l.b16 %v388
        %v557 = vunpack.c.h.b16 %v388
        %v558 = vunpack.c.l.b16 %v389
        %v559 = vunpack.c.h.b16 %v389
        %v560 = vunpack.c.l.b16 %v390
        %v561 = vunpack.c.h.b16 %v390
        %v562 = vunpack.c.l.b16 %v391
        %v563 = vunpack.c.h.b16 %v391
        %v564 = vunpack.c.l.b16 %v392
        %v565 = vunpack.c.h.b16 %v392
        %v566 = vunpack.c.l.b16 %v393
        %v567 = vunpack.c.h.b16 %v393
        %v568 = vunpack.c.l.b16 %v394
        %v569 = vunpack.c.h.b16 %v394
        %v570 = vunpack.c.l.b16 %v395
        %v571 = vunpack.c.h.b16 %v395
        %v572 = vunpack.c.l.b16 %v396
        %v573 = vunpack.c.h.b16 %v396
        %v574 = vunpack.c.l.b16 %v397
        %v575 = vunpack.c.h.b16 %v397
        %v576 = vunpack.c.l.b16 %v398
        %v577 = vunpack.c.h.b16 %v398
        %v578 = vunpack.c.l.b16 %v399
        %v579 = vunpack.c.h.b16 %v399
        %v580 = vunpack.c.l.b16 %v400
        %v581 = vunpack.c.h.b16 %v400
        %v582 = vunpack.c.l.b16 %v401
        %v583 = vunpack.c.h.b16 %v401
        %v584 = vunpack.c.l.b16 %v402
        %v585 = vunpack.c.h.b16 %v402
        %v586 = vunpack.c.l.b16 %v403
        %v587 = vunpack.c.h.b16 %v403
        %v588 = vunpack.c.l.b16 %v404
        %v589 = vunpack.c.h.b16 %v404
        %v590 = vunpack.c.l.b16 %v405
        %v591 = vunpack.c.h.b16 %v405
        %v592 = vunpack.c.l.b16 %v406
        %v593 = vunpack.c.h.b16 %v406
        %v594 = vunpack.c.l.b16 %v407
        %v595 = vunpack.c.h.b16 %v407
        %v596 = vunpack.c.l.b16 %v408
        %v597 = vunpack.c.h.b16 %v408
        %v598 = vunpack.c.l.b16 %v409
        %v599 = vunpack.c.h.b16 %v409
        %v600 = vunpack.c.l.b16 %v410
        %v601 = vunpack.c.h.b16 %v410
        %v602 = vunpack.c.l.b16 %v411
        %v603 = vunpack.c.h.b16 %v411
        %v604 = vunpack.c.l.b16 %v412
        %v605 = vunpack.c.h.b16 %v412
        %v606 = vunpack.c.l.b16 %v413
        %v607 = vunpack.c.h.b16 %v413
        %v608 = vunpack.c.l.b16 %v414
        %v609 = vunpack.c.h.b16 %v414
        %v610 = vunpack.c.l.b16 %v415
        %v611 = vunpack.c.h.b16 %v415
        %v612 = vunpack.c.l.b16 %v416
        %v613 = vunpack.c.h.b16 %v416
        %v614 = vunpack.c.l.b16 %v417
        %v615 = vunpack.c.h.b16 %v417
        %v616 = vunpack.c.l.b16 %v418
        %v617 = vunpack.c.h.b16 %v418
        %v618 = vunpack.c.l.b16 %v419
        %v619 = vunpack.c.h.b16 %v419
        %v620 = vunpack.c.l.b16 %v420
        %v621 = vunpack.c.h.b16 %v420
        %v622 = vunpack.c.l.b16 %v421
        %v623 = vunpack.c.h.b16 %v421
        %v624 = vunpack.c.l.b16 %v422
        %v625 = vunpack.c.h.b16 %v422
        %v626 = vunpack.c.l.b16 %v423
        %v627 = vunpack.c.h.b16 %v423
        %v628 = vunpack.c.l.b16 %v424
        %v629 = vunpack.c.h.b16 %v424
        %v630 = vunpack.c.l.b16 %v425
        %v631 = vunpack.c.h.b16 %v425
        %v632 = vunpack.c.l.b16 %v426
        %v633 = vunpack.c.h.b16 %v426
        %v634 = vunpack.c.l.b16 %v427
        %v635 = vunpack.c.h.b16 %v427
        %v636 = vunpack.c.l.b16 %v428
        %v637 = vunpack.c.h.b16 %v428
        %v638 = vunpack.c.l.b16 %v429
        %v639 = vunpack.c.h.b16 %v429
        %v640 = vunpack.c.l.b16 %v430
        %v641 = vunpack.c.h.b16 %v430
        %v642 = vunpack.c.l.b16 %v431
        %v643 = vunpack.c.h.b16 %v431
        %v644 = vunpack.c.l.b16 %v432
        %v645 = vunpack.c.h.b16 %v432
        %v646 = vunpack.c.l.b16 %v433
        %v647 = vunpack.c.h.b16 %v433
        %v648 = vunpack.c.l.b16 %v434
        %v649 = vunpack.c.h.b16 %v434
        %v650 = vunpack.c.l.b16 %v435
        %v651 = vunpack.c.h.b16 %v435
        %v652 = vunpack.c.l.b16 %v436
        %v653 = vunpack.c.h.b16 %v436
        %v654 = vunpack.c.l.b16 %v437
        %v655 = vunpack.c.h.b16 %v437
        %v656 = vunpack.c.l.b16 %v438
        %v657 = vunpack.c.h.b16 %v438
        %v658 = vunpack.c.l.b16 %v439
        %v659 = vunpack.c.h.b16 %v439
        %v660 = vunpack.c.l.b16 %v440
        %v661 = vunpack.c.h.b16 %v440
        %v662 = vunpack.c.l.b16 %v441
        %v663 = vunpack.c.h.b16 %v441
        %v664 = vunpack.c.l.b16 %v442
        %v665 = vunpack.c.h.b16 %v442
        %v666 = vunpack.c.l.b16 %v443
        %v667 = vunpack.c.h.b16 %v443
        %v668 = vunpack.c.l.b16 %v444
        %v669 = vunpack.c.h.b16 %v444
        %v670 = vunpack.c.l.b16 %v445
        %v671 = vunpack.c.h.b16 %v445
        %v672 = vunpack.c.l.b16 %v446
        %v673 = vunpack.c.h.b16 %v446
        %v674 = vunpack.c.l.b16 %v447
        %v675 = vunpack.c.h.b16 %v447
        %v676 = vunpack.c.l.b16 %v448
        %v677 = vunpack.c.h.b16 %v448
        %v678 = vunpack.c.l.b16 %v449
        %v679 = vunpack.c.h.b16 %v449
        %v680 = vunpack.c.l.b16 %v450
        %v681 = vunpack.c.h.b16 %v450
        %v682 = vunpack.c.l.b16 %v451
        %v683 = vunpack.c.h.b16 %v451
        %v684 = vunpack.c.l.b16 %v452
        %v685 = vunpack.c.h.b16 %v452
        %v686 = vunpack.c.l.b16 %v453
        %v687 = vunpack.c.h.b16 %v453
        %v688 = vunpack.c.l.b16 %v454
        %v689 = vunpack.c.h.b16 %v454
        %v690 = vunpack.c.l.b16 %v455
        %v691 = vunpack.c.h.b16 %v455
        %v692 = vunpack.c.l.b16 %v456
        %v693 = vunpack.c.h.b16 %v456
        %v694 = vunpack.c.l.b16 %v457
        %v695 = vunpack.c.h.b16 %v457
        %v696 = vunpack.c.l.b16 %v458
        %v697 = vunpack.c.h.b16 %v458
        %v698 = vunpack.c.l.b16 %v459
        %v699 = vunpack.c.h.b16 %v459
        %v700 = vpack.c.b16 %v572, %v540
        %v701 = vpack.c.b16 %v573, %v541
        %v702 = vpack.c.b16 %v574, %v542
        %v703 = vpack.c.b16 %v575, %v543
        %v704 = vpack.c.b16 %v576, %v544
        %v705 = vpack.c.b16 %v577, %v545
        %v706 = vpack.c.b16 %v578, %v546
        %v707 = vpack.c.b16 %v579, %v547
        %v708 = vpack.c.b16 %v580, %v548
        %v709 = vpack.c.b16 %v581, %v549
        %v710 = vpack.c.b16 %v582, %v550
        %v711 = vpack.c.b16 %v583, %v551
        %v712 = vpack.c.b16 %v584, %v552
        %v713 = vpack.c.b16 %v585, %v553
        %v714 = vpack.c.b16 %v586, %v554
        %v715 = vpack.c.b16 %v587, %v555
        %v716 = vpack.c.b16 %v588, %v556
        %v717 = vpack.c.b16 %v589, %v557
        %v718 = vpack.c.b16 %v590, %v558
        %v719 = vpack.c.b16 %v591, %v559
        %v720 = vpack.c.b16 %v592, %v560
        %v721 = vpack.c.b16 %v593, %v561
        %v722 = vpack.c.b16 %v594, %v562
        %v723 = vpack.c.b16 %v595, %v563
        %v724 = vpack.c.b16 %v596, %v564
        %v725 = vpack.c.b16 %v597, %v565
        %v726 = vpack.c.b16 %v598, %v566
        %v727 = vpack.c.b16 %v599, %v567
        %v728 = vpack.c.b16 %v600, %v568
        %v729 = vpack.c.b16 %v601, %v569
        %v730 = vpack.c.b16 %v602, %v570
        %v731 = vpack.c.b16 %v603, %v571
        %v732 = vpack.c.b16 %v636, %v604
        %v733 = vpack.c.b16 %v637, %v605
        %v734 = vpack.c.b16 %v638, %v606
        %v735 = vpack.c.b16 %v639, %v607
        %v736 = vpack.c.b16 %v640, %v608
        %v737 = vpack.c.b16 %v641, %v609
        %v738 = vpack.c.b16 %v642, %v610
        %v739 = vpack.c.b16 %v643, %v611
        %v740 = vpack.c.b16 %v644, %v612
        %v741 = vpack.c.b16 %v645, %v613
        %v742 = vpack.c.b16 %v646, %v614
        %v743 = vpack.c.b16 %v647, %v615
        %v744 = vpack.c.b16 %v648, %v616
        %v745 = vpack.c.b16 %v649, %v617
        %v746 = vpack.c.b16 %v650, %v618
        %v747 = vpack.c.b16 %v651, %v619
        %v748 = vpack.c.b16 %v652, %v620
        %v749 = vpack.c.b16 %v653, %v621
        %v750 = vpack.c.b16 %v654, %v622
        %v751 = vpack.c.b16 %v655, %v623
        %v752 = vpack.c.b16 %v656, %v624
        %v753 = vpack.c.b16 %v657, %v625
        %v754 = vpack.c.b16 %v658, %v626
        %v755 = vpack.c.b16 %v659, %v627
        %v756 = vpack.c.b16 %v660, %v628
        %v757 = vpack.c.b16 %v661, %v629
        %v758 = vpack.c.b16 %v662, %v630
        %v759 = vpack.c.b16 %v663, %v631
        %v760 = vpack.c.b16 %v664, %v632
        %v761 = vpack.c.b16 %v665, %v633
        %v762 = vpack.c.b16 %v666, %v634
        %v763 = vpack.c.b16 %v667, %v635
        %v764 = vpack.c.b16 %v668, %v668
        %v765 = vpack.c.b16 %v669, %v669
        %v766 = vpack.c.b16 %v670, %v670
        %v767 = vpack.c.b16 %v671, %v671
        %v768 = vpack.c.b16 %v672, %v672
        %v769 = vpack.c.b16 %v673, %v673
        %v770 = vpack.c.b16 %v674, %v674
        %v771 = vpack.c.b16 %v675, %v675
        %v772 = vpack.c.b16 %v676, %v676
        %v773 = vpack.c.b16 %v677, %v677
        %v774 = vpack.c.b16 %v678, %v678
        %v775 = vpack.c.b16 %v679, %v679
        %v776 = vpack.c.b16 %v680, %v680
        %v777 = vpack.c.b16 %v681, %v681
        %v778 = vpack.c.b16 %v682, %v682
        %v779 = vpack.c.b16 %v683, %v683
        %v780 = vpack.c.b16 %v684, %v684
        %v781 = vpack.c.b16 %v685, %v685
        %v782 = vpack.c.b16 %v686, %v686
        %v783 = vpack.c.b16 %v687, %v687
        %v784 = vpack.c.b16 %v688, %v688
        %v785 = vpack.c.b16 %v689, %v689
        %v786 = vpack.c.b16 %v690, %v690
        %v787 = vpack.c.b16 %v691, %v691
        %v788 = vpack.c.b16 %v692, %v692
        %v789 = vpack.c.b16 %v693, %v693
        %v790 = vpack.c.b16 %v694, %v694
        %v791 = vpack.c.b16 %v695, %v695
        %v792 = vpack.c.b16 %v696, %v696
        %v793 = vpack.c.b16 %v697, %v697
        %v794 = vpack.c.b16 %v698, %v698
        %v795 = vpack.c.b16 %v699, %v699
        %vm860 = vcmask 293888
        %v862 = vsel %vm860, %v379, 0
        %vm864 = vcmask 1041408
        %v866 = vsel %vm864, %v764, 0
        %v869 = vsel %vm864, %v765, 0
        %v872 = vsel %vm864, %v766, 0
        %v875 = vsel %vm864, %v767, 0
        %v878 = vsel %vm864, %v768, 0
        %v881 = vsel %vm864, %v769, 0
        %v884 = vsel %vm864, %v770, 0
        %v887 = vsel %vm864, %v771, 0
        %v890 = vsel %vm864, %v772, 0
        %v893 = vsel %vm864, %v773, 0
        %v896 = vsel %vm864, %v774, 0
        %v899 = vsel %vm864, %v775, 0
        %v902 = vsel %vm864, %v776, 0
        %v905 = vsel %vm864, %v777, 0
        %v908 = vsel %vm864, %v778, 0
        %v911 = vsel %vm864, %v779, 0
        %v914 = vsel %vm864, %v780, 0
        %v917 = vsel %vm864, %v781, 0
        %v920 = vsel %vm864, %v782, 0
        %v923 = vsel %vm864, %v783, 0
        %v926 = vsel %vm864, %v784, 0
        %v929 = vsel %vm864, %v785, 0
        %v932 = vsel %vm864, %v786, 0
        %v935 = vsel %vm864, %v787, 0
        %v938 = vsel %vm864, %v788, 0
        %v941 = vsel %vm864, %v789, 0
        %v944 = vsel %vm864, %v790, 0
        %v947 = vsel %vm864, %v791, 0
        %v950 = vsel %vm864, %v792, 0
        %v953 = vsel %vm864, %v793, 0
        %v956 = vsel %vm864, %v794, 0
        %v959 = vsel %vm864, %v795, 0
        %961 = vmatprep.subr.bf16.mxu0 0
        %962 = vmatpush1.bf16.msra.mxu0 0
        %963 = vmatprep.subr.bf16.mxu0 0
        %964 = vmatpush1.bf16.msra.mxu0 0
        %965 = vmatprep.subr.bf16.mxu0 0
        %966 = vmatpush1.bf16.msra.mxu0 0
        %967 = vmatprep.subr.bf16.mxu0 0
        %968 = vmatpush1.bf16.msra.mxu0 0
        %969 = vmatprep.subr.bf16.mxu0 0
        %970 = vmatpush1.bf16.msra.mxu0 0
        %971 = vmatprep.subr.bf16.mxu0 %v869
        %972 = vmatpush1.bf16.msra.mxu0 %v866
        %973 = vmatprep.subr.bf16.mxu0 %v733
        %974 = vmatpush1.bf16.msra.mxu0 %v732
        %975 = vmatprep.subr.bf16.mxu0 %v701
        %976 = vmatpush1.bf16.msra.mxu0 %v700
        %977 = vmatprep.subr.bf16.mxu0 0
        %978 = vmatpush2.bf16.msra.mxu0 0
        %979 = vmatprep.subr.bf16.mxu0 0
        %980 = vmatpush2.bf16.msra.mxu0 0
        %981 = vmatprep.subr.bf16.mxu0 0
        %982 = vmatpush2.bf16.msra.mxu0 0
        %983 = vmatprep.subr.bf16.mxu0 0
        %984 = vmatpush2.bf16.msra.mxu0 0
        %985 = vmatprep.subr.bf16.mxu0 0
        %986 = vmatpush2.bf16.msra.mxu0 0
        %987 = vmatprep.subr.bf16.mxu0 0
        %988 = vmatpush2.bf16.msra.mxu0 0
        %989 = vmatprep.subr.bf16.mxu0 0
        %990 = vmatpush2.bf16.msra.mxu0 0
        %991 = vmatprep.subr.bf16.mxu0 0
        %992 = vmatpush2.bf16.msra.mxu0 0
        %993 = vmatprep.mubr.bf16.mxu0 0
        %994 = vmatmul.mubr.bf16.gmra.mxu0 %v862
        %v995 = vpop.f32.mrf.mxu0
        %v996 = vadd.f32 0.0, %v995
        %v997 = vpop.f32.mrf.mxu0
        %v998 = vadd.f32 0.0, %v997
        %v999 = vpop.f32.mrf.mxu0
        %v1000 = vpop.f32.mrf.mxu0
        %1001 = vdwg.mxu0
        %1002 = vmatprep.subr.bf16.mxu0 0
        %1003 = vmatpush1.bf16.msra.mxu0 0
        %1004 = vmatprep.subr.bf16.mxu0 0
        %1005 = vmatpush1.bf16.msra.mxu0 0
        %1006 = vmatprep.subr.bf16.mxu0 0
        %1007 = vmatpush1.bf16.msra.mxu0 0
        %1008 = vmatprep.subr.bf16.mxu0 0
        %1009 = vmatpush1.bf16.msra.mxu0 0
        %1010 = vmatprep.subr.bf16.mxu0 0
        %1011 = vmatpush1.bf16.msra.mxu0 0
        %1012 = vmatprep.subr.bf16.mxu0 %v875
        %1013 = vmatpush1.bf16.msra.mxu0 %v872
        %1014 = vmatprep.subr.bf16.mxu0 %v735
        %1015 = vmatpush1.bf16.msra.mxu0 %v734
        %1016 = vmatprep.subr.bf16.mxu0 %v703
        %1017 = vmatpush1.bf16.msra.mxu0 %v702
        %1018 = vmatprep.subr.bf16.mxu0 0
        %1019 = vmatpush2.bf16.msra.mxu0 0
        %1020 = vmatprep.subr.bf16.mxu0 0
        %1021 = vmatpush2.bf16.msra.mxu0 0
        %1022 = vmatprep.subr.bf16.mxu0 0
        %1023 = vmatpush2.bf16.msra.mxu0 0
        %1024 = vmatprep.subr.bf16.mxu0 0
        %1025 = vmatpush2.bf16.msra.mxu0 0
        %1026 = vmatprep.subr.bf16.mxu0 0
        %1027 = vmatpush2.bf16.msra.mxu0 0
        %1028 = vmatprep.subr.bf16.mxu0 0
        %1029 = vmatpush2.bf16.msra.mxu0 0
        %1030 = vmatprep.subr.bf16.mxu0 0
        %1031 = vmatpush2.bf16.msra.mxu0 0
        %1032 = vmatprep.subr.bf16.mxu0 0
        %1033 = vmatpush2.bf16.msra.mxu0 0
        %1034 = vmatprep.mubr.bf16.mxu0 0
        %1035 = vmatmul.mubr.bf16.gmra.mxu0 %v862
        %v1036 = vpop.f32.mrf.mxu0
        %v1037 = vadd.f32 0.0, %v1036
        %v1038 = vpop.f32.mrf.mxu0
        %v1039 = vadd.f32 0.0, %v1038
        %v1040 = vpop.f32.mrf.mxu0
        %v1041 = vpop.f32.mrf.mxu0
        %1042 = vdwg.mxu0
        %1043 = vmatprep.subr.bf16.mxu0 0
        %1044 = vmatpush1.bf16.msra.mxu0 0
        %1045 = vmatprep.subr.bf16.mxu0 0
        %1046 = vmatpush1.bf16.msra.mxu0 0
        %1047 = vmatprep.subr.bf16.mxu0 0
        %1048 = vmatpush1.bf16.msra.mxu0 0
        %1049 = vmatprep.subr.bf16.mxu0 0
        %1050 = vmatpush1.bf16.msra.mxu0 0
        %1051 = vmatprep.subr.bf16.mxu0 0
        %1052 = vmatpush1.bf16.msra.mxu0 0
        %1053 = vmatprep.subr.bf16.mxu0 %v881
        %1054 = vmatpush1.bf16.msra.mxu0 %v878
        %1055 = vmatprep.subr.bf16.mxu0 %v737
        %1056 = vmatpush1.bf16.msra.mxu0 %v736
        %1057 = vmatprep.subr.bf16.mxu0 %v705
        %1058 = vmatpush1.bf16.msra.mxu0 %v704
        %1059 = vmatprep.subr.bf16.mxu0 0
        %1060 = vmatpush2.bf16.msra.mxu0 0
        %1061 = vmatprep.subr.bf16.mxu0 0
        %1062 = vmatpush2.bf16.msra.mxu0 0
        %1063 = vmatprep.subr.bf16.mxu0 0
        %1064 = vmatpush2.bf16.msra.mxu0 0
        %1065 = vmatprep.subr.bf16.mxu0 0
        %1066 = vmatpush2.bf16.msra.mxu0 0
        %1067 = vmatprep.subr.bf16.mxu0 0
        %1068 = vmatpush2.bf16.msra.mxu0 0
        %1069 = vmatprep.subr.bf16.mxu0 0
        %1070 = vmatpush2.bf16.msra.mxu0 0
        %1071 = vmatprep.subr.bf16.mxu0 0
        %1072 = vmatpush2.bf16.msra.mxu0 0
        %1073 = vmatprep.subr.bf16.mxu0 0
        %1074 = vmatpush2.bf16.msra.mxu0 0
        %1075 = vmatprep.mubr.bf16.mxu0 0
        %1076 = vmatmul.mubr.bf16.gmra.mxu0 %v862
        %v1077 = vpop.f32.mrf.mxu0
        %v1078 = vadd.f32 0.0, %v1077
        %v1079 = vpop.f32.mrf.mxu0
        %v1080 = vadd.f32 0.0, %v1079
        %v1081 = vpop.f32.mrf.mxu0
        %v1082 = vpop.f32.mrf.mxu0
        %1083 = vdwg.mxu0
        %1084 = vmatprep.subr.bf16.mxu0 0
        %1085 = vmatpush1.bf16.msra.mxu0 0
        %1086 = vmatprep.subr.bf16.mxu0 0
        %1087 = vmatpush1.bf16.msra.mxu0 0
        %1088 = vmatprep.subr.bf16.mxu0 0
        %1089 = vmatpush1.bf16.msra.mxu0 0
        %1090 = vmatprep.subr.bf16.mxu0 0
        %1091 = vmatpush1.bf16.msra.mxu0 0
        %1092 = vmatprep.subr.bf16.mxu0 0
        %1093 = vmatpush1.bf16.msra.mxu0 0
        %1094 = vmatprep.subr.bf16.mxu0 %v887
        %1095 = vmatpush1.bf16.msra.mxu0 %v884
        %1096 = vmatprep.subr.bf16.mxu0 %v739
        %1097 = vmatpush1.bf16.msra.mxu0 %v738
        %1098 = vmatprep.subr.bf16.mxu0 %v707
        %1099 = vmatpush1.bf16.msra.mxu0 %v706
        %1100 = vmatprep.subr.bf16.mxu0 0
        %1101 = vmatpush2.bf16.msra.mxu0 0
        %1102 = vmatprep.subr.bf16.mxu0 0
        %1103 = vmatpush2.bf16.msra.mxu0 0
        %1104 = vmatprep.subr.bf16.mxu0 0
        %1105 = vmatpush2.bf16.msra.mxu0 0
        %1106 = vmatprep.subr.bf16.mxu0 0
        %1107 = vmatpush2.bf16.msra.mxu0 0
        %1108 = vmatprep.subr.bf16.mxu0 0
        %1109 = vmatpush2.bf16.msra.mxu0 0
        %1110 = vmatprep.subr.bf16.mxu0 0
        %1111 = vmatpush2.bf16.msra.mxu0 0
        %1112 = vmatprep.subr.bf16.mxu0 0
        %1113 = vmatpush2.bf16.msra.mxu0 0
        %1114 = vmatprep.subr.bf16.mxu0 0
        %1115 = vmatpush2.bf16.msra.mxu0 0
        %1116 = vmatprep.mubr.bf16.mxu0 0
        %1117 = vmatmul.mubr.bf16.gmra.mxu0 %v862
        %v1118 = vpop.f32.mrf.mxu0
        %v1119 = vadd.f32 0.0, %v1118
        %v1120 = vpop.f32.mrf.mxu0
        %v1121 = vadd.f32 0.0, %v1120
        %v1122 = vpop.f32.mrf.mxu0
        %v1123 = vpop.f32.mrf.mxu0
        %1124 = vdwg.mxu0
        %1125 = vmatprep.subr.bf16.mxu0 0
        %1126 = vmatpush1.bf16.msra.mxu0 0
        %1127 = vmatprep.subr.bf16.mxu0 0
        %1128 = vmatpush1.bf16.msra.mxu0 0
        %1129 = vmatprep.subr.bf16.mxu0 0
        %1130 = vmatpush1.bf16.msra.mxu0 0
        %1131 = vmatprep.subr.bf16.mxu0 0
        %1132 = vmatpush1.bf16.msra.mxu0 0
        %1133 = vmatprep.subr.bf16.mxu0 0
        %1134 = vmatpush1.bf16.msra.mxu0 0
        %1135 = vmatprep.subr.bf16.mxu0 %v893
        %1136 = vmatpush1.bf16.msra.mxu0 %v890
        %1137 = vmatprep.subr.bf16.mxu0 %v741
        %1138 = vmatpush1.bf16.msra.mxu0 %v740
        %1139 = vmatprep.subr.bf16.mxu0 %v709
        %1140 = vmatpush1.bf16.msra.mxu0 %v708
        %1141 = vmatprep.subr.bf16.mxu0 0
        %1142 = vmatpush2.bf16.msra.mxu0 0
        %1143 = vmatprep.subr.bf16.mxu0 0
        %1144 = vmatpush2.bf16.msra.mxu0 0
        %1145 = vmatprep.subr.bf16.mxu0 0
        %1146 = vmatpush2.bf16.msra.mxu0 0
        %1147 = vmatprep.subr.bf16.mxu0 0
        %1148 = vmatpush2.bf16.msra.mxu0 0
        %1149 = vmatprep.subr.bf16.mxu0 0
        %1150 = vmatpush2.bf16.msra.mxu0 0
        %1151 = vmatprep.subr.bf16.mxu0 0
        %1152 = vmatpush2.bf16.msra.mxu0 0
        %1153 = vmatprep.subr.bf16.mxu0 0
        %1154 = vmatpush2.bf16.msra.mxu0 0
        %1155 = vmatprep.subr.bf16.mxu0 0
        %1156 = vmatpush2.bf16.msra.mxu0 0
        %1157 = vmatprep.mubr.bf16.mxu0 0
        %1158 = vmatmul.mubr.bf16.gmra.mxu0 %v862
        %v1159 = vpop.f32.mrf.mxu0
        %v1160 = vadd.f32 0.0, %v1159
        %v1161 = vpop.f32.mrf.mxu0
        %v1162 = vadd.f32 0.0, %v1161
        %v1163 = vpop.f32.mrf.mxu0
        %v1164 = vpop.f32.mrf.mxu0
        %1165 = vdwg.mxu0
        %1166 = vmatprep.subr.bf16.mxu0 0
        %1167 = vmatpush1.bf16.msra.mxu0 0
        %1168 = vmatprep.subr.bf16.mxu0 0
        %1169 = vmatpush1.bf16.msra.mxu0 0
        %1170 = vmatprep.subr.bf16.mxu0 0
        %1171 = vmatpush1.bf16.msra.mxu0 0
        %1172 = vmatprep.subr.bf16.mxu0 0
        %1173 = vmatpush1.bf16.msra.mxu0 0
        %1174 = vmatprep.subr.bf16.mxu0 0
        %1175 = vmatpush1.bf16.msra.mxu0 0
        %1176 = vmatprep.subr.bf16.mxu0 %v899
        %1177 = vmatpush1.bf16.msra.mxu0 %v896
        %1178 = vmatprep.subr.bf16.mxu0 %v743
        %1179 = vmatpush1.bf16.msra.mxu0 %v742
        %1180 = vmatprep.subr.bf16.mxu0 %v711
        %1181 = vmatpush1.bf16.msra.mxu0 %v710
        %1182 = vmatprep.subr.bf16.mxu0 0
        %1183 = vmatpush2.bf16.msra.mxu0 0
        %1184 = vmatprep.subr.bf16.mxu0 0
        %1185 = vmatpush2.bf16.msra.mxu0 0
        %1186 = vmatprep.subr.bf16.mxu0 0
        %1187 = vmatpush2.bf16.msra.mxu0 0
        %1188 = vmatprep.subr.bf16.mxu0 0
        %1189 = vmatpush2.bf16.msra.mxu0 0
        %1190 = vmatprep.subr.bf16.mxu0 0
        %1191 = vmatpush2.bf16.msra.mxu0 0
        %1192 = vmatprep.subr.bf16.mxu0 0
        %1193 = vmatpush2.bf16.msra.mxu0 0
        %1194 = vmatprep.subr.bf16.mxu0 0
        %1195 = vmatpush2.bf16.msra.mxu0 0
        %1196 = vmatprep.subr.bf16.mxu0 0
        %1197 = vmatpush2.bf16.msra.mxu0 0
        %1198 = vmatprep.mubr.bf16.mxu0 0
        %1199 = vmatmul.mubr.bf16.gmra.mxu0 %v862
        %v1200 = vpop.f32.mrf.mxu0
        %v1201 = vadd.f32 0.0, %v1200
        %v1202 = vpop.f32.mrf.mxu0
        %v1203 = vadd.f32 0.0, %v1202
        %v1204 = vpop.f32.mrf.mxu0
        %v1205 = vpop.f32.mrf.mxu0
        %1206 = vdwg.mxu0
        %1207 = vmatprep.subr.bf16.mxu0 0
        %1208 = vmatpush1.bf16.msra.mxu0 0
        %1209 = vmatprep.subr.bf16.mxu0 0
        %1210 = vmatpush1.bf16.msra.mxu0 0
        %1211 = vmatprep.subr.bf16.mxu0 0
        %1212 = vmatpush1.bf16.msra.mxu0 0
        %1213 = vmatprep.subr.bf16.mxu0 0
        %1214 = vmatpush1.bf16.msra.mxu0 0
        %1215 = vmatprep.subr.bf16.mxu0 0
        %1216 = vmatpush1.bf16.msra.mxu0 0
        %1217 = vmatprep.subr.bf16.mxu0 %v905
        %1218 = vmatpush1.bf16.msra.mxu0 %v902
        %1219 = vmatprep.subr.bf16.mxu0 %v745
        %1220 = vmatpush1.bf16.msra.mxu0 %v744
        %1221 = vmatprep.subr.bf16.mxu0 %v713
        %1222 = vmatpush1.bf16.msra.mxu0 %v712
        %1223 = vmatprep.subr.bf16.mxu0 0
        %1224 = vmatpush2.bf16.msra.mxu0 0
        %1225 = vmatprep.subr.bf16.mxu0 0
        %1226 = vmatpush2.bf16.msra.mxu0 0
        %1227 = vmatprep.subr.bf16.mxu0 0
        %1228 = vmatpush2.bf16.msra.mxu0 0
        %1229 = vmatprep.subr.bf16.mxu0 0
        %1230 = vmatpush2.bf16.msra.mxu0 0
        %1231 = vmatprep.subr.bf16.mxu0 0
        %1232 = vmatpush2.bf16.msra.mxu0 0
        %1233 = vmatprep.subr.bf16.mxu0 0
        %1234 = vmatpush2.bf16.msra.mxu0 0
        %1235 = vmatprep.subr.bf16.mxu0 0
        %1236 = vmatpush2.bf16.msra.mxu0 0
        %1237 = vmatprep.subr.bf16.mxu0 0
        %1238 = vmatpush2.bf16.msra.mxu0 0
        %1239 = vmatprep.mubr.bf16.mxu0 0
        %1240 = vmatmul.mubr.bf16.gmra.mxu0 %v862
        %v1241 = vpop.f32.mrf.mxu0
        %v1242 = vadd.f32 0.0, %v1241
        %v1243 = vpop.f32.mrf.mxu0
        %v1244 = vadd.f32 0.0, %v1243
        %v1245 = vpop.f32.mrf.mxu0
        %v1246 = vpop.f32.mrf.mxu0
        %1247 = vdwg.mxu0
        %1248 = vmatprep.subr.bf16.mxu0 0
        %1249 = vmatpush1.bf16.msra.mxu0 0
        %1250 = vmatprep.subr.bf16.mxu0 0
        %1251 = vmatpush1.bf16.msra.mxu0 0
        %1252 = vmatprep.subr.bf16.mxu0 0
        %1253 = vmatpush1.bf16.msra.mxu0 0
        %1254 = vmatprep.subr.bf16.mxu0 0
        %1255 = vmatpush1.bf16.msra.mxu0 0
        %1256 = vmatprep.subr.bf16.mxu0 0
        %1257 = vmatpush1.bf16.msra.mxu0 0
        %1258 = vmatprep.subr.bf16.mxu0 %v911
        %1259 = vmatpush1.bf16.msra.mxu0 %v908
        %1260 = vmatprep.subr.bf16.mxu0 %v747
        %1261 = vmatpush1.bf16.msra.mxu0 %v746
        %1262 = vmatprep.subr.bf16.mxu0 %v715
        %1263 = vmatpush1.bf16.msra.mxu0 %v714
        %1264 = vmatprep.subr.bf16.mxu0 0
        %1265 = vmatpush2.bf16.msra.mxu0 0
        %1266 = vmatprep.subr.bf16.mxu0 0
        %1267 = vmatpush2.bf16.msra.mxu0 0
        %1268 = vmatprep.subr.bf16.mxu0 0
        %1269 = vmatpush2.bf16.msra.mxu0 0
        %1270 = vmatprep.subr.bf16.mxu0 0
        %1271 = vmatpush2.bf16.msra.mxu0 0
        %1272 = vmatprep.subr.bf16.mxu0 0
        %1273 = vmatpush2.bf16.msra.mxu0 0
        %1274 = vmatprep.subr.bf16.mxu0 0
        %1275 = vmatpush2.bf16.msra.mxu0 0
        %1276 = vmatprep.subr.bf16.mxu0 0
        %1277 = vmatpush2.bf16.msra.mxu0 0
        %1278 = vmatprep.subr.bf16.mxu0 0
        %1279 = vmatpush2.bf16.msra.mxu0 0
        %1280 = vmatprep.mubr.bf16.mxu0 0
        %1281 = vmatmul.mubr.bf16.gmra.mxu0 %v862
        %v1282 = vpop.f32.mrf.mxu0
        %v1283 = vadd.f32 0.0, %v1282
        %v1284 = vpop.f32.mrf.mxu0
        %v1285 = vadd.f32 0.0, %v1284
        %v1286 = vpop.f32.mrf.mxu0
        %v1287 = vpop.f32.mrf.mxu0
        %1288 = vdwg.mxu0
        %1289 = vmatprep.subr.bf16.mxu0 0
        %1290 = vmatpush1.bf16.msra.mxu0 0
        %1291 = vmatprep.subr.bf16.mxu0 0
        %1292 = vmatpush1.bf16.msra.mxu0 0
        %1293 = vmatprep.subr.bf16.mxu0 0
        %1294 = vmatpush1.bf16.msra.mxu0 0
        %1295 = vmatprep.subr.bf16.mxu0 0
        %1296 = vmatpush1.bf16.msra.mxu0 0
        %1297 = vmatprep.subr.bf16.mxu0 0
        %1298 = vmatpush1.bf16.msra.mxu0 0
        %1299 = vmatprep.subr.bf16.mxu0 %v917
        %1300 = vmatpush1.bf16.msra.mxu0 %v914
        %1301 = vmatprep.subr.bf16.mxu0 %v749
        %1302 = vmatpush1.bf16.msra.mxu0 %v748
        %1303 = vmatprep.subr.bf16.mxu0 %v717
        %1304 = vmatpush1.bf16.msra.mxu0 %v716
        %1305 = vmatprep.subr.bf16.mxu0 0
        %1306 = vmatpush2.bf16.msra.mxu0 0
        %1307 = vmatprep.subr.bf16.mxu0 0
        %1308 = vmatpush2.bf16.msra.mxu0 0
        %1309 = vmatprep.subr.bf16.mxu0 0
        %1310 = vmatpush2.bf16.msra.mxu0 0
        %1311 = vmatprep.subr.bf16.mxu0 0
        %1312 = vmatpush2.bf16.msra.mxu0 0
        %1313 = vmatprep.subr.bf16.mxu0 0
        %1314 = vmatpush2.bf16.msra.mxu0 0
        %1315 = vmatprep.subr.bf16.mxu0 0
        %1316 = vmatpush2.bf16.msra.mxu0 0
        %1317 = vmatprep.subr.bf16.mxu0 0
        %1318 = vmatpush2.bf16.msra.mxu0 0
        %1319 = vmatprep.subr.bf16.mxu0 0
        %1320 = vmatpush2.bf16.msra.mxu0 0
        %1321 = vmatprep.mubr.bf16.mxu0 0
        %1322 = vmatmul.mubr.bf16.gmra.mxu0 %v862
        %v1323 = vpop.f32.mrf.mxu0
        %v1324 = vadd.f32 0.0, %v1323
        %v1325 = vpop.f32.mrf.mxu0
        %v1326 = vadd.f32 0.0, %v1325
        %v1327 = vpop.f32.mrf.mxu0
        %v1328 = vpop.f32.mrf.mxu0
        %1329 = vdwg.mxu0
        %1330 = vmatprep.subr.bf16.mxu0 0
        %1331 = vmatpush1.bf16.msra.mxu0 0
        %1332 = vmatprep.subr.bf16.mxu0 0
        %1333 = vmatpush1.bf16.msra.mxu0 0
        %1334 = vmatprep.subr.bf16.mxu0 0
        %1335 = vmatpush1.bf16.msra.mxu0 0
        %1336 = vmatprep.subr.bf16.mxu0 0
        %1337 = vmatpush1.bf16.msra.mxu0 0
        %1338 = vmatprep.subr.bf16.mxu0 0
        %1339 = vmatpush1.bf16.msra.mxu0 0
        %1340 = vmatprep.subr.bf16.mxu0 %v923
        %1341 = vmatpush1.bf16.msra.mxu0 %v920
        %1342 = vmatprep.subr.bf16.mxu0 %v751
        %1343 = vmatpush1.bf16.msra.mxu0 %v750
        %1344 = vmatprep.subr.bf16.mxu0 %v719
        %1345 = vmatpush1.bf16.msra.mxu0 %v718
        %1346 = vmatprep.subr.bf16.mxu0 0
        %1347 = vmatpush2.bf16.msra.mxu0 0
        %1348 = vmatprep.subr.bf16.mxu0 0
        %1349 = vmatpush2.bf16.msra.mxu0 0
        %1350 = vmatprep.subr.bf16.mxu0 0
        %1351 = vmatpush2.bf16.msra.mxu0 0
        %1352 = vmatprep.subr.bf16.mxu0 0
        %1353 = vmatpush2.bf16.msra.mxu0 0
        %1354 = vmatprep.subr.bf16.mxu0 0
        %1355 = vmatpush2.bf16.msra.mxu0 0
        %1356 = vmatprep.subr.bf16.mxu0 0
        %1357 = vmatpush2.bf16.msra.mxu0 0
        %1358 = vmatprep.subr.bf16.mxu0 0
        %1359 = vmatpush2.bf16.msra.mxu0 0
        %1360 = vmatprep.subr.bf16.mxu0 0
        %1361 = vmatpush2.bf16.msra.mxu0 0
        %1362 = vmatprep.mubr.bf16.mxu0 0
        %1363 = vmatmul.mubr.bf16.gmra.mxu0 %v862
        %v1364 = vpop.f32.mrf.mxu0
        %v1365 = vadd.f32 0.0, %v1364
        %v1366 = vpop.f32.mrf.mxu0
        %v1367 = vadd.f32 0.0, %v1366
        %v1368 = vpop.f32.mrf.mxu0
        %v1369 = vpop.f32.mrf.mxu0
        %1370 = vdwg.mxu0
        %1371 = vmatprep.subr.bf16.mxu0 0
        %1372 = vmatpush1.bf16.msra.mxu0 0
        %1373 = vmatprep.subr.bf16.mxu0 0
        %1374 = vmatpush1.bf16.msra.mxu0 0
        %1375 = vmatprep.subr.bf16.mxu0 0
        %1376 = vmatpush1.bf16.msra.mxu0 0
        %1377 = vmatprep.subr.bf16.mxu0 0
        %1378 = vmatpush1.bf16.msra.mxu0 0
        %1379 = vmatprep.subr.bf16.mxu0 0
        %1380 = vmatpush1.bf16.msra.mxu0 0
        %1381 = vmatprep.subr.bf16.mxu0 %v929
        %1382 = vmatpush1.bf16.msra.mxu0 %v926
        %1383 = vmatprep.subr.bf16.mxu0 %v753
        %1384 = vmatpush1.bf16.msra.mxu0 %v752
        %1385 = vmatprep.subr.bf16.mxu0 %v721
        %1386 = vmatpush1.bf16.msra.mxu0 %v720
        %1387 = vmatprep.subr.bf16.mxu0 0
        %1388 = vmatpush2.bf16.msra.mxu0 0
        %1389 = vmatprep.subr.bf16.mxu0 0
        %1390 = vmatpush2.bf16.msra.mxu0 0
        %1391 = vmatprep.subr.bf16.mxu0 0
        %1392 = vmatpush2.bf16.msra.mxu0 0
        %1393 = vmatprep.subr.bf16.mxu0 0
        %1394 = vmatpush2.bf16.msra.mxu0 0
        %1395 = vmatprep.subr.bf16.mxu0 0
        %1396 = vmatpush2.bf16.msra.mxu0 0
        %1397 = vmatprep.subr.bf16.mxu0 0
        %1398 = vmatpush2.bf16.msra.mxu0 0
        %1399 = vmatprep.subr.bf16.mxu0 0
        %1400 = vmatpush2.bf16.msra.mxu0 0
        %1401 = vmatprep.subr.bf16.mxu0 0
        %1402 = vmatpush2.bf16.msra.mxu0 0
        %1403 = vmatprep.mubr.bf16.mxu0 0
        %1404 = vmatmul.mubr.bf16.gmra.mxu0 %v862
        %v1405 = vpop.f32.mrf.mxu0
        %v1406 = vadd.f32 0.0, %v1405
        %v1407 = vpop.f32.mrf.mxu0
        %v1408 = vadd.f32 0.0, %v1407
        %v1409 = vpop.f32.mrf.mxu0
        %v1410 = vpop.f32.mrf.mxu0
        %1411 = vdwg.mxu0
        %1412 = vmatprep.subr.bf16.mxu0 0
        %1413 = vmatpush1.bf16.msra.mxu0 0
        %1414 = vmatprep.subr.bf16.mxu0 0
        %1415 = vmatpush1.bf16.msra.mxu0 0
        %1416 = vmatprep.subr.bf16.mxu0 0
        %1417 = vmatpush1.bf16.msra.mxu0 0
        %1418 = vmatprep.subr.bf16.mxu0 0
        %1419 = vmatpush1.bf16.msra.mxu0 0
        %1420 = vmatprep.subr.bf16.mxu0 0
        %1421 = vmatpush1.bf16.msra.mxu0 0
        %1422 = vmatprep.subr.bf16.mxu0 %v935
        %1423 = vmatpush1.bf16.msra.mxu0 %v932
        %1424 = vmatprep.subr.bf16.mxu0 %v755
        %1425 = vmatpush1.bf16.msra.mxu0 %v754
        %1426 = vmatprep.subr.bf16.mxu0 %v723
        %1427 = vmatpush1.bf16.msra.mxu0 %v722
        %1428 = vmatprep.subr.bf16.mxu0 0
        %1429 = vmatpush2.bf16.msra.mxu0 0
        %1430 = vmatprep.subr.bf16.mxu0 0
        %1431 = vmatpush2.bf16.msra.mxu0 0
        %1432 = vmatprep.subr.bf16.mxu0 0
        %1433 = vmatpush2.bf16.msra.mxu0 0
        %1434 = vmatprep.subr.bf16.mxu0 0
        %1435 = vmatpush2.bf16.msra.mxu0 0
        %1436 = vmatprep.subr.bf16.mxu0 0
        %1437 = vmatpush2.bf16.msra.mxu0 0
        %1438 = vmatprep.subr.bf16.mxu0 0
        %1439 = vmatpush2.bf16.msra.mxu0 0
        %1440 = vmatprep.subr.bf16.mxu0 0
        %1441 = vmatpush2.bf16.msra.mxu0 0
        %1442 = vmatprep.subr.bf16.mxu0 0
        %1443 = vmatpush2.bf16.msra.mxu0 0
        %1444 = vmatprep.mubr.bf16.mxu0 0
        %1445 = vmatmul.mubr.bf16.gmra.mxu0 %v862
        %v1446 = vpop.f32.mrf.mxu0
        %v1447 = vadd.f32 0.0, %v1446
        %v1448 = vpop.f32.mrf.mxu0
        %v1449 = vadd.f32 0.0, %v1448
        %v1450 = vpop.f32.mrf.mxu0
        %v1451 = vpop.f32.mrf.mxu0
        %1452 = vdwg.mxu0
        %1453 = vmatprep.subr.bf16.mxu0 0
        %1454 = vmatpush1.bf16.msra.mxu0 0
        %1455 = vmatprep.subr.bf16.mxu0 0
        %1456 = vmatpush1.bf16.msra.mxu0 0
        %1457 = vmatprep.subr.bf16.mxu0 0
        %1458 = vmatpush1.bf16.msra.mxu0 0
        %1459 = vmatprep.subr.bf16.mxu0 0
        %1460 = vmatpush1.bf16.msra.mxu0 0
        %1461 = vmatprep.subr.bf16.mxu0 0
        %1462 = vmatpush1.bf16.msra.mxu0 0
        %1463 = vmatprep.subr.bf16.mxu0 %v941
        %1464 = vmatpush1.bf16.msra.mxu0 %v938
        %1465 = vmatprep.subr.bf16.mxu0 %v757
        %1466 = vmatpush1.bf16.msra.mxu0 %v756
        %1467 = vmatprep.subr.bf16.mxu0 %v725
        %1468 = vmatpush1.bf16.msra.mxu0 %v724
        %1469 = vmatprep.subr.bf16.mxu0 0
        %1470 = vmatpush2.bf16.msra.mxu0 0
        %1471 = vmatprep.subr.bf16.mxu0 0
        %1472 = vmatpush2.bf16.msra.mxu0 0
        %1473 = vmatprep.subr.bf16.mxu0 0
        %1474 = vmatpush2.bf16.msra.mxu0 0
        %1475 = vmatprep.subr.bf16.mxu0 0
        %1476 = vmatpush2.bf16.msra.mxu0 0
        %1477 = vmatprep.subr.bf16.mxu0 0
        %1478 = vmatpush2.bf16.msra.mxu0 0
        %1479 = vmatprep.subr.bf16.mxu0 0
        %1480 = vmatpush2.bf16.msra.mxu0 0
        %1481 = vmatprep.subr.bf16.mxu0 0
        %1482 = vmatpush2.bf16.msra.mxu0 0
        %1483 = vmatprep.subr.bf16.mxu0 0
        %1484 = vmatpush2.bf16.msra.mxu0 0
        %1485 = vmatprep.mubr.bf16.mxu0 0
        %1486 = vmatmul.mubr.bf16.gmra.mxu0 %v862
        %v1487 = vpop.f32.mrf.mxu0
        %v1488 = vadd.f32 0.0, %v1487
        %v1489 = vpop.f32.mrf.mxu0
        %v1490 = vadd.f32 0.0, %v1489
        %v1491 = vpop.f32.mrf.mxu0
        %v1492 = vpop.f32.mrf.mxu0
        %1493 = vdwg.mxu0
        %1494 = vmatprep.subr.bf16.mxu0 0
        %1495 = vmatpush1.bf16.msra.mxu0 0
        %1496 = vmatprep.subr.bf16.mxu0 0
        %1497 = vmatpush1.bf16.msra.mxu0 0
        %1498 = vmatprep.subr.bf16.mxu0 0
        %1499 = vmatpush1.bf16.msra.mxu0 0
        %1500 = vmatprep.subr.bf16.mxu0 0
        %1501 = vmatpush1.bf16.msra.mxu0 0
        %1502 = vmatprep.subr.bf16.mxu0 0
        %1503 = vmatpush1.bf16.msra.mxu0 0
        %1504 = vmatprep.subr.bf16.mxu0 %v947
        %1505 = vmatpush1.bf16.msra.mxu0 %v944
        %1506 = vmatprep.subr.bf16.mxu0 %v759
        %1507 = vmatpush1.bf16.msra.mxu0 %v758
        %1508 = vmatprep.subr.bf16.mxu0 %v727
        %1509 = vmatpush1.bf16.msra.mxu0 %v726
        %1510 = vmatprep.subr.bf16.mxu0 0
        %1511 = vmatpush2.bf16.msra.mxu0 0
        %1512 = vmatprep.subr.bf16.mxu0 0
        %1513 = vmatpush2.bf16.msra.mxu0 0
        %1514 = vmatprep.subr.bf16.mxu0 0
        %1515 = vmatpush2.bf16.msra.mxu0 0
        %1516 = vmatprep.subr.bf16.mxu0 0
        %1517 = vmatpush2.bf16.msra.mxu0 0
        %1518 = vmatprep.subr.bf16.mxu0 0
        %1519 = vmatpush2.bf16.msra.mxu0 0
        %1520 = vmatprep.subr.bf16.mxu0 0
        %1521 = vmatpush2.bf16.msra.mxu0 0
        %1522 = vmatprep.subr.bf16.mxu0 0
        %1523 = vmatpush2.bf16.msra.mxu0 0
        %1524 = vmatprep.subr.bf16.mxu0 0
        %1525 = vmatpush2.bf16.msra.mxu0 0
        %1526 = vmatprep.mubr.bf16.mxu0 0
        %1527 = vmatmul.mubr.bf16.gmra.mxu0 %v862
        %v1528 = vpop.f32.mrf.mxu0
        %v1529 = vadd.f32 0.0, %v1528
        %v1530 = vpop.f32.mrf.mxu0
        %v1531 = vadd.f32 0.0, %v1530
        %v1532 = vpop.f32.mrf.mxu0
        %v1533 = vpop.f32.mrf.mxu0
        %1534 = vdwg.mxu0
        %1535 = vmatprep.subr.bf16.mxu0 0
        %1536 = vmatpush1.bf16.msra.mxu0 0
        %1537 = vmatprep.subr.bf16.mxu0 0
        %1538 = vmatpush1.bf16.msra.mxu0 0
        %1539 = vmatprep.subr.bf16.mxu0 0
        %1540 = vmatpush1.bf16.msra.mxu0 0
        %1541 = vmatprep.subr.bf16.mxu0 0
        %1542 = vmatpush1.bf16.msra.mxu0 0
        %1543 = vmatprep.subr.bf16.mxu0 0
        %1544 = vmatpush1.bf16.msra.mxu0 0
        %1545 = vmatprep.subr.bf16.mxu0 %v953
        %1546 = vmatpush1.bf16.msra.mxu0 %v950
        %1547 = vmatprep.subr.bf16.mxu0 %v761
        %1548 = vmatpush1.bf16.msra.mxu0 %v760
        %1549 = vmatprep.subr.bf16.mxu0 %v729
        %1550 = vmatpush1.bf16.msra.mxu0 %v728
        %1551 = vmatprep.subr.bf16.mxu0 0
        %1552 = vmatpush2.bf16.msra.mxu0 0
        %1553 = vmatprep.subr.bf16.mxu0 0
        %1554 = vmatpush2.bf16.msra.mxu0 0
        %1555 = vmatprep.subr.bf16.mxu0 0
        %1556 = vmatpush2.bf16.msra.mxu0 0
        %1557 = vmatprep.subr.bf16.mxu0 0
        %1558 = vmatpush2.bf16.msra.mxu0 0
        %1559 = vmatprep.subr.bf16.mxu0 0
        %1560 = vmatpush2.bf16.msra.mxu0 0
        %1561 = vmatprep.subr.bf16.mxu0 0
        %1562 = vmatpush2.bf16.msra.mxu0 0
        %1563 = vmatprep.subr.bf16.mxu0 0
        %1564 = vmatpush2.bf16.msra.mxu0 0
        %1565 = vmatprep.subr.bf16.mxu0 0
        %1566 = vmatpush2.bf16.msra.mxu0 0
        %1567 = vmatprep.mubr.bf16.mxu0 0
        %1568 = vmatmul.mubr.bf16.gmra.mxu0 %v862
        %v1569 = vpop.f32.mrf.mxu0
        %v1570 = vadd.f32 0.0, %v1569
        %v1571 = vpop.f32.mrf.mxu0
        %v1572 = vadd.f32 0.0, %v1571
        %v1573 = vpop.f32.mrf.mxu0
        %v1574 = vpop.f32.mrf.mxu0
        %1575 = vdwg.mxu0
        %1576 = vmatprep.subr.bf16.mxu0 0
        %1577 = vmatpush1.bf16.msra.mxu0 0
        %1578 = vmatprep.subr.bf16.mxu0 0
        %1579 = vmatpush1.bf16.msra.mxu0 0
        %1580 = vmatprep.subr.bf16.mxu0 0
        %1581 = vmatpush1.bf16.msra.mxu0 0
        %1582 = vmatprep.subr.bf16.mxu0 0
        %1583 = vmatpush1.bf16.msra.mxu0 0
        %1584 = vmatprep.subr.bf16.mxu0 0
        %1585 = vmatpush1.bf16.msra.mxu0 0
        %1586 = vmatprep.subr.bf16.mxu0 %v959
        %1587 = vmatpush1.bf16.msra.mxu0 %v956
        %1588 = vmatprep.subr.bf16.mxu0 %v763
        %1589 = vmatpush1.bf16.msra.mxu0 %v762
        %1590 = vmatprep.subr.bf16.mxu0 %v731
        %1591 = vmatpush1.bf16.msra.mxu0 %v730
        %1592 = vmatprep.subr.bf16.mxu0 0
        %1593 = vmatpush2.bf16.msra.mxu0 0
        %1594 = vmatprep.subr.bf16.mxu0 0
        %1595 = vmatpush2.bf16.msra.mxu0 0
        %1596 = vmatprep.subr.bf16.mxu0 0
        %1597 = vmatpush2.bf16.msra.mxu0 0
        %1598 = vmatprep.subr.bf16.mxu0 0
        %1599 = vmatpush2.bf16.msra.mxu0 0
        %1600 = vmatprep.subr.bf16.mxu0 0
        %1601 = vmatpush2.bf16.msra.mxu0 0
        %1602 = vmatprep.subr.bf16.mxu0 0
        %1603 = vmatpush2.bf16.msra.mxu0 0
        %1604 = vmatprep.subr.bf16.mxu0 0
        %1605 = vmatpush2.bf16.msra.mxu0 0
        %1606 = vmatprep.subr.bf16.mxu0 0
        %1607 = vmatpush2.bf16.msra.mxu0 0
        %1608 = vmatprep.mubr.bf16.mxu0 0
        %1609 = vmatmul.mubr.bf16.gmra.mxu0 %v862
        %v1610 = vpop.f32.mrf.mxu0
        %v1611 = vadd.f32 0.0, %v1610
        %v1612 = vpop.f32.mrf.mxu0
        %v1613 = vadd.f32 0.0, %v1612
        %v1614 = vpop.f32.mrf.mxu0
        %v1615 = vpop.f32.mrf.mxu0
        %1616 = vdwg.mxu0
        %v1617 = vld [vmem:[%s2] sm:$0xff]
        %1619 = vset.pattern.permute.xlu0 0
        %1620 = vperm.xlu0 %1619, %v1617
        %v1621 = vpop.permute.xlu0 %1620
        %v1623 = vmul.f32 %v996, %v1621
        %v1624 = vmul.f32 %v998, %v1621
        %v1625 = vmul.f32 %v1037, %v1621
        %v1626 = vmul.f32 %v1039, %v1621
        %v1627 = vmul.f32 %v1078, %v1621
        %v1628 = vmul.f32 %v1080, %v1621
        %v1629 = vmul.f32 %v1119, %v1621
        %v1630 = vmul.f32 %v1121, %v1621
        %v1631 = vmul.f32 %v1160, %v1621
        %v1632 = vmul.f32 %v1162, %v1621
        %v1633 = vmul.f32 %v1201, %v1621
        %v1634 = vmul.f32 %v1203, %v1621
        %v1635 = vmul.f32 %v1242, %v1621
        %v1636 = vmul.f32 %v1244, %v1621
        %v1637 = vmul.f32 %v1283, %v1621
        %v1638 = vmul.f32 %v1285, %v1621
        %v1639 = vmul.f32 %v1324, %v1621
        %v1640 = vmul.f32 %v1326, %v1621
        %v1641 = vmul.f32 %v1365, %v1621
        %v1642 = vmul.f32 %v1367, %v1621
        %v1643 = vmul.f32 %v1406, %v1621
        %v1644 = vmul.f32 %v1408, %v1621
        %v1645 = vmul.f32 %v1447, %v1621
        %v1646 = vmul.f32 %v1449, %v1621
        %v1647 = vmul.f32 %v1488, %v1621
        %v1648 = vmul.f32 %v1490, %v1621
        %v1649 = vmul.f32 %v1529, %v1621
        %v1650 = vmul.f32 %v1531, %v1621
        %v1651 = vmul.f32 %v1570, %v1621
        %v1652 = vmul.f32 %v1572, %v1621
        %v1653 = vmul.f32 %v1611, %v1621
        %v1654 = vmul.f32 %v1613, %v1621
        %v1655 = vld [vmem:[%s3] sm:$0xff]
        %1657 = vset.pattern.permute.xlu0 0
        %1658 = vperm.xlu0 %1657, %v1655
        %v1659 = vpop.permute.xlu0 %1658
        %v1661 = vadd.f32 %v1623, %v1659
        %v1662 = vadd.f32 %v1624, %v1659
        %v1663 = vadd.f32 %v1625, %v1659
        %v1664 = vadd.f32 %v1626, %v1659
        %v1665 = vadd.f32 %v1627, %v1659
        %v1666 = vadd.f32 %v1628, %v1659
        %v1667 = vadd.f32 %v1629, %v1659
        %v1668 = vadd.f32 %v1630, %v1659
        %v1669 = vadd.f32 %v1631, %v1659
        %v1670 = vadd.f32 %v1632, %v1659
        %v1671 = vadd.f32 %v1633, %v1659
        %v1672 = vadd.f32 %v1634, %v1659
        %v1673 = vadd.f32 %v1635, %v1659
        %v1674 = vadd.f32 %v1636, %v1659
        %v1675 = vadd.f32 %v1637, %v1659
        %v1676 = vadd.f32 %v1638, %v1659
        %v1677 = vadd.f32 %v1639, %v1659
        %v1678 = vadd.f32 %v1640, %v1659
        %v1679 = vadd.f32 %v1641, %v1659
        %v1680 = vadd.f32 %v1642, %v1659
        %v1681 = vadd.f32 %v1643, %v1659
        %v1682 = vadd.f32 %v1644, %v1659
        %v1683 = vadd.f32 %v1645, %v1659
        %v1684 = vadd.f32 %v1646, %v1659
        %v1685 = vadd.f32 %v1647, %v1659
        %v1686 = vadd.f32 %v1648, %v1659
        %v1687 = vadd.f32 %v1649, %v1659
        %v1688 = vadd.f32 %v1650, %v1659
        %v1689 = vadd.f32 %v1651, %v1659
        %v1690 = vadd.f32 %v1652, %v1659
        %v1691 = vadd.f32 %v1653, %v1659
        %v1692 = vadd.f32 %v1654, %v1659
        %v1693 = vtanh.pop %v1661
        %v1694 = vtanh.pop %v1662
        %v1695 = vtanh.pop %v1663
        %v1696 = vtanh.pop %v1664
        %v1697 = vtanh.pop %v1665
        %v1698 = vtanh.pop %v1666
        %v1699 = vtanh.pop %v1667
        %v1700 = vtanh.pop %v1668
        %v1701 = vtanh.pop %v1669
        %v1702 = vtanh.pop %v1670
        %v1703 = vtanh.pop %v1671
        %v1704 = vtanh.pop %v1672
        %v1705 = vtanh.pop %v1673
        %v1706 = vtanh.pop %v1674
        %v1707 = vtanh.pop %v1675
        %v1708 = vtanh.pop %v1676
        %v1709 = vtanh.pop %v1677
        %v1710 = vtanh.pop %v1678
        %v1711 = vtanh.pop %v1679
        %v1712 = vtanh.pop %v1680
        %v1713 = vtanh.pop %v1681
        %v1714 = vtanh.pop %v1682
        %v1715 = vtanh.pop %v1683
        %v1716 = vtanh.pop %v1684
        %v1717 = vtanh.pop %v1685
        %v1718 = vtanh.pop %v1686
        %v1719 = vtanh.pop %v1687
        %v1720 = vtanh.pop %v1688
        %v1721 = vtanh.pop %v1689
        %v1722 = vtanh.pop %v1690
        %v1723 = vtanh.pop %v1691
        %v1724 = vtanh.pop %v1692
        %1725 = vst [vmem:[%s376] sm:$0xff] %v1693
        %1726 = vst [vmem:[%s376 + $0x8] sm:$0xff] %v1694
        %1727 = vst [vmem:[%s376 + $0x10] sm:$0xff] %v1695
        %1728 = vst [vmem:[%s376 + $0x18] sm:$0xff] %v1696
        %1729 = vst [vmem:[%s376 + $0x20] sm:$0xff] %v1697
        %1730 = vst [vmem:[%s376 + $0x28] sm:$0xff] %v1698
        %1731 = vst [vmem:[%s376 + $0x30] sm:$0xff] %v1699
        %1732 = vst [vmem:[%s376 + $0x38] sm:$0xff] %v1700
        %1733 = vst [vmem:[%s376 + $0x40] sm:$0xff] %v1701
        %1734 = vst [vmem:[%s376 + $0x48] sm:$0xff] %v1702
        %1735 = vst [vmem:[%s376 + $0x50] sm:$0xff] %v1703
        %1736 = vst [vmem:[%s376 + $0x58] sm:$0xff] %v1704
        %1737 = vst [vmem:[%s376 + $0x60] sm:$0xff] %v1705
        %1738 = vst [vmem:[%s376 + $0x68] sm:$0xff] %v1706
        %1739 = vst [vmem:[%s376 + $0x70] sm:$0xff] %v1707
        %1740 = vst [vmem:[%s376 + $0x78] sm:$0xff] %v1708
        %1741 = vst [vmem:[%s376 + $0x80] sm:$0xff] %v1709
        %1742 = vst [vmem:[%s376 + $0x88] sm:$0xff] %v1710
        %1743 = vst [vmem:[%s376 + $0x90] sm:$0xff] %v1711
        %1744 = vst [vmem:[%s376 + $0x98] sm:$0xff] %v1712
        %1745 = vst [vmem:[%s376 + $0xa0] sm:$0xff] %v1713
        %1746 = vst [vmem:[%s376 + $0xa8] sm:$0xff] %v1714
        %1747 = vst [vmem:[%s376 + $0xb0] sm:$0xff] %v1715
        %1748 = vst [vmem:[%s376 + $0xb8] sm:$0xff] %v1716
        %1749 = vst [vmem:[%s376 + $0xc0] sm:$0xff] %v1717
        %1750 = vst [vmem:[%s376 + $0xc8] sm:$0xff] %v1718
        %1751 = vst [vmem:[%s376 + $0xd0] sm:$0xff] %v1719
        %1752 = vst [vmem:[%s376 + $0xd8] sm:$0xff] %v1720
        %1753 = vst [vmem:[%s376 + $0xe0] sm:$0xff] %v1721
        %1754 = vst [vmem:[%s376 + $0xe8] sm:$0xff] %v1722
        %1755 = vst [vmem:[%s376 + $0xf0] sm:$0xff] %v1723
        %1756 = vst [vmem:[%s376 + $0xf8] sm:$0xff] %v1724
        %s1757 = smul.u32 32, %s15
        %p1758 = scmp.lt.s32.totalorder %s1757, 127
        %s1759 = scalar_select %p1758, %s1757, 127
        %s1760 = smul.addr %s1759, 8
        %s1761 = scalar_lea.vmem %s4, %s1760
        // Predicated region
        $region60: #{_lambda_.31} parent=54 // pred_check
          %p1762 = pneg %p122
        $region61: #{_lambda_.31} parent=54 // pred_check_branch
          %1764 = sbr.rel (%p1762) target = $region63
        $region62: #{_lambda_.31} parent=54 // pred_region
          %s1765 = smul.u32 32, %s15
        $region63: #{_lambda_.31} parent=54 // pred_fallthru
          _
      $region55: #{_lambda_.31} parent=5 // pred_fallthru
        _
      %p1766 = scmp.le.s32.totalorder 2, %s10
      // Predicated region
      $region64: #{_lambda_.31} parent=5 // pred_check
        %p1767 = pneg %p1766
      $region65: #{_lambda_.31} parent=5 // pred_check_branch
        %1769 = sbr.rel (%p1767) target = $region67
      $region66: #{_lambda_.31} parent=5 // pred_region
        %s1770 = ssub.s32 %s10, 2
        // Predicated region
        $region68: #{_lambda_.31} parent=66 // pred_check
          %p1771 = pneg %p128
        $region69: #{_lambda_.31} parent=66 // pred_check_branch
          %1773 = sbr.rel (%p1771) target = $region71
        $region70: #{_lambda_.31} parent=66 // pred_region
          %s1774 = smul.u32 32, %s16
          %p1775 = scmp.lt.s32.totalorder %s1774, 127
          %s1776 = scalar_select %p1775, %s1774, 127
          %s1777 = smul.addr %s1776, 8
          %s1778 = scalar_lea.vmem %s4, %s1777
        $region71: #{_lambda_.31} parent=66 // pred_fallthru
          _
      $region67: #{_lambda_.31} parent=5 // pred_fallthru
        _
    $region6: #{_lambda_.31} parent=1 // loop_footer
      %s14 = sadd.s32 1, %s10
    $region7: #{_lambda_.31} parent=1 // loop_footer_branch
      %9 = sbr.rel target = $region3
    $region8: #{_lambda_.31} parent=1 // loop_exit
      _

</llo_original>
